<compile_context>
chip_gen: v7x
topology: tpu7x:2x2x1
jax: 0.10.0
libtpu: 0.0.40
codegen_flags: <defaults>
</compile_context>

<pallas_src>
import functools
import numpy as np

import jax
import jax.numpy as jnp
from jax.experimental import pallas as pl
from jax.experimental.pallas import tpu as pltpu


def _round_up(x, m):
    return ((x + m - 1) // m) * m


# ----------------------------------------------------------------------------
# Fused forward kernel
# ----------------------------------------------------------------------------
def _convnet_kernel(x_ref, w1_ref, b1_ref, w2_ref, b2_ref,
                    wf1_ref, bf1_ref, wf2_ref, bf2_ref, wf3_ref, bf3_ref,
                    out_ref, flat_ref, *, pool_h, pool_w):
    f32, bf16 = jnp.float32, jnp.bfloat16
    B = x_ref.shape[0]
    Cin, KH1, _, N1 = w1_ref.shape
    H1 = x_ref.shape[2] - KH1 + 1          # conv1 output height
    blk = N1 // pool_w                     # lanes per W-pool-offset block
    Hp, _, N2 = w2_ref.shape               # pooled height, blk, flat width
    n_cls = out_ref.shape[1]

    # conv1 -> relu -> maxpool -> conv2 -> relu -> flatten  (per batch element)
    for b in range(B):
        acc1 = jnp.zeros((H1, N1), f32)
        for ci in range(Cin):
            for dh in range(KH1):
                lhs = x_ref[b, ci, dh:dh + H1, :].astype(bf16)       # (H1, W0)
                acc1 += jnp.dot(lhs, w1_ref[ci, dh],
                                preferred_element_type=f32)          # (H1, N1)
        y1 = jnp.maximum(acc1 + b1_ref[...], 0.0)                    # bias+relu

        # W max-pool: columns are laid out as pool_w blocks of `blk` lanes
        # (one block per within-window offset) -> lane-dense VPU maximum tree.
        cp = y1[:, 0:blk]
        for r in range(1, pool_w):
            cp = jnp.maximum(cp, y1[:, r * blk:(r + 1) * blk])       # (H1, blk)

        # H max-pool (consecutive row groups) fused with conv2.  conv2 is a sum
        # over pooled rows of (1, blk) @ (blk, N2) matmuls whose columns are
        # already in torch (C, H, W) flatten order -> flatten is free.
        acc2 = jnp.zeros((1, N2), f32)
        for i in range(Hp):
            prow = cp[pool_h * i:pool_h * i + 1, :]
            for r in range(1, pool_h):
                prow = jnp.maximum(prow,
                                   cp[pool_h * i + r:pool_h * i + r + 1, :])
            acc2 += jnp.dot(prow.astype(bf16), w2_ref[i],
                            preferred_element_type=f32)              # (1, N2)
        flat_ref[b:b + 1, :] = jnp.maximum(acc2 + b2_ref[...], 0.0)

    # fc1 -> (dropout = id) -> relu(fc2) -> (dropout = id) -> softmax(fc3)
    flat = flat_ref[...].astype(bf16)                                # (B, N2)
    h1 = jnp.dot(flat, wf1_ref[...], preferred_element_type=f32) + bf1_ref[...]
    h2 = jnp.dot(h1.astype(bf16), wf2_ref[...],
                 preferred_element_type=f32) + bf2_ref[...]
    h2 = jnp.maximum(h2, 0.0)
    logits = jnp.dot(h2.astype(bf16), wf3_ref[...],
                     preferred_element_type=f32) + bf3_ref[...]
    lg = logits[:, :n_cls]                         # drop zero-padded classes
    m = jnp.max(lg, axis=-1, keepdims=True)
    e = jnp.exp(lg - m)
    s = jnp.sum(e, axis=-1, keepdims=True)
    out_ref[...] = e * pl.reciprocal(s, approx=True)


# ----------------------------------------------------------------------------
# Wrapper (single fused pallas_call, everything VMEM resident)
# ----------------------------------------------------------------------------
@functools.partial(jax.jit, static_argnames=("pool_h", "pool_w", "n_classes"))
def convnet_trad_forward(x, kw, *, pool_h, pool_w, n_classes):
    B = x.shape[0]
    args = (x, kw["w1"], kw["b1"], kw["w2"], kw["b2"],
            kw["wf1"], kw["bf1"], kw["wf2"], kw["bf2"], kw["wf3"], kw["bf3"])
    Cin, KH1, W0, N1 = kw["w1"].shape
    H1 = x.shape[2] - KH1 + 1
    Hp, blk, N2 = kw["w2"].shape
    NF1, NF2, NF3 = kw["wf1"].shape[1], kw["wf2"].shape[1], kw["wf3"].shape[1]
    flops = 2 * B * (Cin * KH1 * H1 * W0 * N1 + Hp * blk * N2
                     + N2 * NF1 + NF1 * NF2 + NF2 * NF3)
    bytes_accessed = (sum(a.size * a.dtype.itemsize for a in args)
                      + B * n_classes * 4)
    vmem_spec = pl.BlockSpec(memory_space=pltpu.MemorySpace.VMEM)
    kern = functools.partial(_convnet_kernel, pool_h=pool_h, pool_w=pool_w)
    return pl.pallas_call(
        kern,
        out_shape=jax.ShapeDtypeStruct((B, n_classes), jnp.float32),
        in_specs=[vmem_spec] * len(args),
        out_specs=vmem_spec,
        scratch_shapes=[pltpu.VMEM((B, N2), jnp.float32)],
        cost_estimate=pl.CostEstimate(
            flops=int(flops),
            transcendentals=int(B * (n_classes + 1)),
            bytes_accessed=int(bytes_accessed)),
    )(*args)


# ----------------------------------------------------------------------------
# Parameter construction (torch layout) + one-time packing to kernel layout
# ----------------------------------------------------------------------------
def get_conv_layer_dimensions(input_dim, kernel_sizes, strides, padding):
    dims = [input_dim]
    for k, s, p in zip(kernel_sizes, strides, padding):
        dims.append(tuple(
            int((dims[-1][d] + 2 * p[d] - k[d]) / s[d] + 1)
            for d in range(len(k))))
    return dims


def init_params(key, n_classes, data_size):
    """PyTorch-layout parameters with PyTorch-style U(-1/sqrt(fan_in)) init."""
    n_channels, n_features, n_frames = data_size
    kernel_sizes = [(4, 20), (2, 4), (2, 4)]
    strides = [(1, 1), (2, 4), (1, 1)]
    padding = [(0, 0), (0, 0), (0, 0)]
    conv_dims = get_conv_layer_dimensions(
        (n_features, n_frames), kernel_sizes, strides, padding)
    fc1_in = int(np.prod(conv_dims[-1])) * 64

    def u(k, shape, fan_in):
        bound = 1.0 / np.sqrt(fan_in)
        return jax.random.uniform(k, shape, jnp.float32, -bound, bound)

    ks = jax.random.split(key, 10)
    return {
        "conv1_w": u(ks[0], (64, n_channels, 4, 20), n_channels * 4 * 20),
        "conv1_b": u(ks[1], (64,), n_channels * 4 * 20),
        "conv2_w": u(ks[2], (64, 64, 2, 4), 64 * 2 * 4),
        "conv2_b": u(ks[3], (64,), 64 * 2 * 4),
        "fc1_w": u(ks[4], (32, fc1_in), fc1_in),
        "fc1_b": u(ks[5], (32,), fc1_in),
        "fc2_w": u(ks[6], (128, 32), 32),
        "fc2_b": u(ks[7], (128,), 32),
        "fc3_w": u(ks[8], (n_classes, 128), 128),
        "fc3_b": u(ks[9], (n_classes,), 128),
    }


def pack_params(params, n_classes, data_size):
    """One-time conversion of torch-layout weights to the fused-kernel layout.

    conv1 -> (Cin, KH1, W_in, N1) bf16 Toeplitz-over-W matrices; columns are
             ordered (pool_offset r, out_channel, pooled_col k), each r-block
             zero-padded to a multiple of 128 lanes so the in-kernel W-pool is
             a max of lane-aligned slices.
    conv2 -> (Hp, blk, N2) bf16 matrices mapping a pooled row directly to the
             flattened (C,H,W) conv2 output (torch flatten order).
    fc    -> pre-transposed (in, out) bf16 matrices, outputs zero-padded to
             128 lanes; biases stay f32.
    """
    n_ch, n_feat, n_frames = data_size
    C1, C2 = 64, 64
    KH1, KW1 = 4, 20
    PH, PW = 2, 4
    KH2, KW2 = 2, 4
    H0, W0 = n_feat, n_frames
    H1, W1 = H0 - KH1 + 1, W0 - KW1 + 1                  # conv1 out (10, 20)
    Hp, Wp = (H1 - PH) // PH + 1, (W1 - PW) // PW + 1    # pooled   (5, 5)
    H2, W2 = Hp - KH2 + 1, Wp - KW2 + 1                  # conv2 out (4, 2)
    blk = _round_up(C1 * Wp, 128)                        # 384
    N1 = PW * blk                                        # 1536
    n_flat = C2 * H2 * W2                                # 512
    N2 = _round_up(n_flat, 128)
    NF1 = _round_up(32, 128)
    NF2 = _round_up(128, 128)
    NF3 = _round_up(n_classes, 128)

    w1 = np.asarray(params["conv1_w"], np.float32)
    b1 = np.asarray(params["conv1_b"], np.float32)
    w2 = np.asarray(params["conv2_w"], np.float32)
    b2 = np.asarray(params["conv2_b"], np.float32)

    # conv1: Toeplitz over W ...
    w1t = np.zeros((n_ch, KH1, W0, C1, W1), np.float32)
    for dw in range(KW1):
        for wo in range(W1):
            w1t[:, :, wo + dw, :, wo] = np.transpose(w1[:, :, :, dw], (1, 2, 0))
    # ... then reorder/pad columns into the pooling-friendly (r, c_out, k) order.
    w1big = np.zeros((n_ch, KH1, W0, N1), np.float32)
    b1big = np.zeros((1, N1), np.float32)
    for r in range(PW):
        for k in range(Wp):
            cols = r * blk + np.arange(C1) * Wp + k
            w1big[:, :, :, cols] = w1t[:, :, :, :, PW * k + r]
            b1big[0, cols] = b1

    # conv2: pooled row i (lane layout c*Wp + k) -> flattened (d, u, v) output.
    w2f = np.zeros((Hp, blk, N2), np.float32)
    for u in range(H2):
        for v in range(W2):
            for eh in range(KH2):
                for ew in range(KW2):
                    i, k = u + eh, v + ew
                    if i >= Hp or k >= Wp:
                        continue
                    rows = np.arange(C1) * Wp + k
                    cols = np.arange(C2) * (H2 * W2) + u * W2 + v
                    w2f[i, rows[:, None], cols[None, :]] = w2[:, :, eh, ew].T
    b2flat = np.zeros((1, N2), np.float32)
    b2flat[0, :n_flat] = np.repeat(b2, H2 * W2)

    # fully connected: pre-transposed (in, out), zero-padded 128-wide outputs.
    wf1 = np.zeros((N2, NF1), np.float32)
    wf1[:n_flat, :32] = np.asarray(params["fc1_w"], np.float32).T
    bf1 = np.zeros((1, NF1), np.float32)
    bf1[0, :32] = np.asarray(params["fc1_b"], np.float32)
    wf2 = np.zeros((NF1, NF2), np.float32)
    wf2[:32, :128] = np.asarray(params["fc2_w"], np.float32).T
    bf2 = np.zeros((1, NF2), np.float32)
    bf2[0, :128] = np.asarray(params["fc2_b"], np.float32)
    wf3 = np.zeros((NF2, NF3), np.float32)
    wf3[:128, :n_classes] = np.asarray(params["fc3_w"], np.float32).T
    bf3 = np.zeros((1, NF3), np.float32)
    bf3[0, :n_classes] = np.asarray(params["fc3_b"], np.float32)

    bf16 = jnp.bfloat16
    kw = {
        "w1": jnp.asarray(w1big, bf16), "b1": jnp.asarray(b1big),
        "w2": jnp.asarray(w2f, bf16), "b2": jnp.asarray(b2flat),
        "wf1": jnp.asarray(wf1, bf16), "bf1": jnp.asarray(bf1),
        "wf2": jnp.asarray(wf2, bf16), "bf2": jnp.asarray(bf2),
        "wf3": jnp.asarray(wf3, bf16), "bf3": jnp.asarray(bf3),
    }
    cfg = dict(pool_h=PH, pool_w=PW, n_classes=n_classes)
    return kw, cfg


# ----------------------------------------------------------------------------
# Pure-JAX reference of the PyTorch module (for validation)
# ----------------------------------------------------------------------------
def reference_forward(x, params):
    dn = ("NCHW", "OIHW", "NCHW")
    y = jax.lax.conv_general_dilated(x, params["conv1_w"], (1, 1), "VALID",
                                     dimension_numbers=dn)
    y = jax.nn.relu(y + params["conv1_b"][None, :, None, None])
    y = jax.lax.reduce_window(y, -jnp.inf, jax.lax.max,
                              (1, 1, 2, 4), (1, 1, 2, 4), "VALID")
    y = jax.lax.conv_general_dilated(y, params["conv2_w"], (1, 1), "VALID",
                                     dimension_numbers=dn)
    y = jax.nn.relu(y + params["conv2_b"][None, :, None, None])
    y = y.reshape(y.shape[0], -1)
    y = y @ params["fc1_w"].T + params["fc1_b"]
    y = jax.nn.relu(y @ params["fc2_w"].T + params["fc2_b"])
    y = y @ params["fc3_w"].T + params["fc3_b"]
    return jax.nn.softmax(y, axis=1)


# ----------------------------------------------------------------------------
if __name__ == "__main__":
    n_classes = 10
    data_size = (1, 13, 39)     # (n_channels, n_features (MFCC), n_frames)
    batch = 2

    key = jax.random.PRNGKey(0)
    k_x, k_p = jax.random.split(key)
    x = jax.random.normal(k_x, (batch,) + data_size, jnp.float32)
    params = init_params(k_p, n_classes, data_size)
    kernel_weights, cfg = pack_params(params, n_classes, data_size)

    out = convnet_trad_forward(x, kernel_weights, **cfg)
    out = jax.block_until_ready(out)

    assert out.shape == (batch, n_classes), out.shape
    # softmax rows sum to 1 (approx reciprocal -> small tolerance)
    assert np.allclose(np.asarray(jnp.sum(out, axis=1)), 1.0, atol=5e-3)
    # compare against the pure-JAX reference (bf16 matmul operands -> loose tol)
    ref = np.asarray(jax.block_until_ready(reference_forward(x, params)))
    assert np.allclose(np.asarray(out), ref, atol=3e-2, rtol=3e-2), (
        float(np.max(np.abs(np.asarray(out) - ref))))
    print("KERNEL_OK")
</pallas_src>

<mosaic_0001>
module attributes {stable_mosaic.version = 11 : i64} {
  func.func @_convnet_kernel(%arg0: memref<2x1x13x39xf32, #tpu.memory_space<vmem>>, %arg1: memref<1x4x39x1536xbf16, #tpu.memory_space<vmem>>, %arg2: memref<1x1536xf32, #tpu.memory_space<vmem>>, %arg3: memref<5x384x512xbf16, #tpu.memory_space<vmem>>, %arg4: memref<1x512xf32, #tpu.memory_space<vmem>>, %arg5: memref<512x128xbf16, #tpu.memory_space<vmem>>, %arg6: memref<1x128xf32, #tpu.memory_space<vmem>>, %arg7: memref<128x128xbf16, #tpu.memory_space<vmem>>, %arg8: memref<1x128xf32, #tpu.memory_space<vmem>>, %arg9: memref<128x128xbf16, #tpu.memory_space<vmem>>, %arg10: memref<1x128xf32, #tpu.memory_space<vmem>>, %arg11: memref<2x10xf32, #tpu.memory_space<vmem>>, %arg12: memref<2x512xf32, #tpu.memory_space<vmem>>) attributes {dimension_semantics = [], scalar_prefetch = 0 : i64, scratch_operands = 1 : i64, tpu.core_type = #tpu.core_type<tc>} {
    %cst = arith.constant 0.000000e+00 : f32
    %0 = vector.broadcast %cst : f32 to vector<10x1536xf32>
    %c0 = arith.constant 0 : index
    %c0_0 = arith.constant 0 : index
    %c0_1 = arith.constant 0 : index
    %c0_2 = arith.constant 0 : index
    %1 = vector.load %arg0[%c0, %c0_0, %c0_1, %c0_2] : memref<2x1x13x39xf32, #tpu.memory_space<vmem>>, vector<1x1x10x39xf32>
    %2 = vector.shape_cast %1 : vector<1x1x10x39xf32> to vector<10x39xf32>
    %3 = arith.truncf %2 : vector<10x39xf32> to vector<10x39xbf16>
    %c0_3 = arith.constant 0 : index
    %c0_4 = arith.constant 0 : index
    %c0_5 = arith.constant 0 : index
    %c0_6 = arith.constant 0 : index
    %4 = vector.load %arg1[%c0_3, %c0_4, %c0_5, %c0_6] : memref<1x4x39x1536xbf16, #tpu.memory_space<vmem>>, vector<1x1x39x1536xbf16>
    %5 = vector.shape_cast %4 : vector<1x1x39x1536xbf16> to vector<39x1536xbf16>
    %cst_7 = arith.constant dense<0.000000e+00> : vector<10x1536xf32>
    %6 = tpu.matmul %3, %5, %cst_7 {dimension_numbers = #tpu.dot_dimension_numbers<[1], [0], [0], [1], [0, 0, 1, 1], [], []>} : vector<10x39xbf16>, vector<39x1536xbf16>, vector<10x1536xf32> -> vector<10x1536xf32>
    %7 = arith.addf %0, %6 : vector<10x1536xf32>
    %c0_8 = arith.constant 0 : index
    %c0_9 = arith.constant 0 : index
    %c1 = arith.constant 1 : index
    %c0_10 = arith.constant 0 : index
    %8 = vector.load %arg0[%c0_8, %c0_9, %c1, %c0_10] : memref<2x1x13x39xf32, #tpu.memory_space<vmem>>, vector<1x1x10x39xf32>
    %9 = vector.shape_cast %8 : vector<1x1x10x39xf32> to vector<10x39xf32>
    %10 = arith.truncf %9 : vector<10x39xf32> to vector<10x39xbf16>
    %c0_11 = arith.constant 0 : index
    %c1_12 = arith.constant 1 : index
    %c0_13 = arith.constant 0 : index
    %c0_14 = arith.constant 0 : index
    %11 = vector.load %arg1[%c0_11, %c1_12, %c0_13, %c0_14] : memref<1x4x39x1536xbf16, #tpu.memory_space<vmem>>, vector<1x1x39x1536xbf16>
    %12 = vector.shape_cast %11 : vector<1x1x39x1536xbf16> to vector<39x1536xbf16>
    %cst_15 = arith.constant dense<0.000000e+00> : vector<10x1536xf32>
    %13 = tpu.matmul %10, %12, %cst_15 {dimension_numbers = #tpu.dot_dimension_numbers<[1], [0], [0], [1], [0, 0, 1, 1], [], []>} : vector<10x39xbf16>, vector<39x1536xbf16>, vector<10x1536xf32> -> vector<10x1536xf32>
    %14 = arith.addf %7, %13 : vector<10x1536xf32>
    %c0_16 = arith.constant 0 : index
    %c0_17 = arith.constant 0 : index
    %c2 = arith.constant 2 : index
    %c0_18 = arith.constant 0 : index
    %15 = vector.load %arg0[%c0_16, %c0_17, %c2, %c0_18] : memref<2x1x13x39xf32, #tpu.memory_space<vmem>>, vector<1x1x10x39xf32>
    %16 = vector.shape_cast %15 : vector<1x1x10x39xf32> to vector<10x39xf32>
    %17 = arith.truncf %16 : vector<10x39xf32> to vector<10x39xbf16>
    %c0_19 = arith.constant 0 : index
    %c2_20 = arith.constant 2 : index
    %c0_21 = arith.constant 0 : index
    %c0_22 = arith.constant 0 : index
    %18 = vector.load %arg1[%c0_19, %c2_20, %c0_21, %c0_22] : memref<1x4x39x1536xbf16, #tpu.memory_space<vmem>>, vector<1x1x39x1536xbf16>
    %19 = vector.shape_cast %18 : vector<1x1x39x1536xbf16> to vector<39x1536xbf16>
    %cst_23 = arith.constant dense<0.000000e+00> : vector<10x1536xf32>
    %20 = tpu.matmul %17, %19, %cst_23 {dimension_numbers = #tpu.dot_dimension_numbers<[1], [0], [0], [1], [0, 0, 1, 1], [], []>} : vector<10x39xbf16>, vector<39x1536xbf16>, vector<10x1536xf32> -> vector<10x1536xf32>
    %21 = arith.addf %14, %20 : vector<10x1536xf32>
    %c0_24 = arith.constant 0 : index
    %c0_25 = arith.constant 0 : index
    %c3 = arith.constant 3 : index
    %c0_26 = arith.constant 0 : index
    %22 = vector.load %arg0[%c0_24, %c0_25, %c3, %c0_26] : memref<2x1x13x39xf32, #tpu.memory_space<vmem>>, vector<1x1x10x39xf32>
    %23 = vector.shape_cast %22 : vector<1x1x10x39xf32> to vector<10x39xf32>
    %24 = arith.truncf %23 : vector<10x39xf32> to vector<10x39xbf16>
    %c0_27 = arith.constant 0 : index
    %c3_28 = arith.constant 3 : index
    %c0_29 = arith.constant 0 : index
    %c0_30 = arith.constant 0 : index
    %25 = vector.load %arg1[%c0_27, %c3_28, %c0_29, %c0_30] : memref<1x4x39x1536xbf16, #tpu.memory_space<vmem>>, vector<1x1x39x1536xbf16>
    %26 = vector.shape_cast %25 : vector<1x1x39x1536xbf16> to vector<39x1536xbf16>
    %cst_31 = arith.constant dense<0.000000e+00> : vector<10x1536xf32>
    %27 = tpu.matmul %24, %26, %cst_31 {dimension_numbers = #tpu.dot_dimension_numbers<[1], [0], [0], [1], [0, 0, 1, 1], [], []>} : vector<10x39xbf16>, vector<39x1536xbf16>, vector<10x1536xf32> -> vector<10x1536xf32>
    %28 = arith.addf %21, %27 : vector<10x1536xf32>
    %c0_32 = arith.constant 0 : index
    %c0_33 = arith.constant 0 : index
    %29 = vector.load %arg2[%c0_32, %c0_33] : memref<1x1536xf32, #tpu.memory_space<vmem>>, vector<1x1536xf32>
    %30 = vector.broadcast %29 : vector<1x1536xf32> to vector<10x1536xf32>
    %31 = arith.addf %28, %30 : vector<10x1536xf32>
    %cst_34 = arith.constant 0.000000e+00 : f32
    %32 = vector.broadcast %cst_34 : f32 to vector<10x1536xf32>
    %33 = arith.maximumf %31, %32 : vector<10x1536xf32>
    %34 = vector.extract_strided_slice %33 {offsets = [0, 0], sizes = [10, 384], strides = [1, 1]} : vector<10x1536xf32> to vector<10x384xf32>
    %35 = vector.extract_strided_slice %33 {offsets = [0, 384], sizes = [10, 384], strides = [1, 1]} : vector<10x1536xf32> to vector<10x384xf32>
    %36 = arith.maximumf %34, %35 : vector<10x384xf32>
    %37 = vector.extract_strided_slice %33 {offsets = [0, 768], sizes = [10, 384], strides = [1, 1]} : vector<10x1536xf32> to vector<10x384xf32>
    %38 = arith.maximumf %36, %37 : vector<10x384xf32>
    %39 = vector.extract_strided_slice %33 {offsets = [0, 1152], sizes = [10, 384], strides = [1, 1]} : vector<10x1536xf32> to vector<10x384xf32>
    %40 = arith.maximumf %38, %39 : vector<10x384xf32>
    %cst_35 = arith.constant 0.000000e+00 : f32
    %41 = vector.broadcast %cst_35 : f32 to vector<1x512xf32>
    %42 = vector.extract_strided_slice %40 {offsets = [0, 0], sizes = [1, 384], strides = [1, 1]} : vector<10x384xf32> to vector<1x384xf32>
    %43 = vector.extract_strided_slice %40 {offsets = [1, 0], sizes = [1, 384], strides = [1, 1]} : vector<10x384xf32> to vector<1x384xf32>
    %44 = arith.maximumf %42, %43 : vector<1x384xf32>
    %45 = arith.truncf %44 : vector<1x384xf32> to vector<1x384xbf16>
    %c0_36 = arith.constant 0 : index
    %c0_37 = arith.constant 0 : index
    %c0_38 = arith.constant 0 : index
    %46 = vector.load %arg3[%c0_36, %c0_37, %c0_38] : memref<5x384x512xbf16, #tpu.memory_space<vmem>>, vector<1x384x512xbf16>
    %47 = vector.shape_cast %46 : vector<1x384x512xbf16> to vector<384x512xbf16>
    %cst_39 = arith.constant dense<0.000000e+00> : vector<1x512xf32>
    %48 = tpu.matmul %45, %47, %cst_39 {dimension_numbers = #tpu.dot_dimension_numbers<[1], [0], [0], [1], [0, 0, 1, 1], [], []>} : vector<1x384xbf16>, vector<384x512xbf16>, vector<1x512xf32> -> vector<1x512xf32>
    %49 = arith.addf %41, %48 : vector<1x512xf32>
    %50 = vector.extract_strided_slice %40 {offsets = [2, 0], sizes = [1, 384], strides = [1, 1]} : vector<10x384xf32> to vector<1x384xf32>
    %51 = vector.extract_strided_slice %40 {offsets = [3, 0], sizes = [1, 384], strides = [1, 1]} : vector<10x384xf32> to vector<1x384xf32>
    %52 = arith.maximumf %50, %51 : vector<1x384xf32>
    %53 = arith.truncf %52 : vector<1x384xf32> to vector<1x384xbf16>
    %c1_40 = arith.constant 1 : index
    %c0_41 = arith.constant 0 : index
    %c0_42 = arith.constant 0 : index
    %54 = vector.load %arg3[%c1_40, %c0_41, %c0_42] : memref<5x384x512xbf16, #tpu.memory_space<vmem>>, vector<1x384x512xbf16>
    %55 = vector.shape_cast %54 : vector<1x384x512xbf16> to vector<384x512xbf16>
    %cst_43 = arith.constant dense<0.000000e+00> : vector<1x512xf32>
    %56 = tpu.matmul %53, %55, %cst_43 {dimension_numbers = #tpu.dot_dimension_numbers<[1], [0], [0], [1], [0, 0, 1, 1], [], []>} : vector<1x384xbf16>, vector<384x512xbf16>, vector<1x512xf32> -> vector<1x512xf32>
    %57 = arith.addf %49, %56 : vector<1x512xf32>
    %58 = vector.extract_strided_slice %40 {offsets = [4, 0], sizes = [1, 384], strides = [1, 1]} : vector<10x384xf32> to vector<1x384xf32>
    %59 = vector.extract_strided_slice %40 {offsets = [5, 0], sizes = [1, 384], strides = [1, 1]} : vector<10x384xf32> to vector<1x384xf32>
    %60 = arith.maximumf %58, %59 : vector<1x384xf32>
    %61 = arith.truncf %60 : vector<1x384xf32> to vector<1x384xbf16>
    %c2_44 = arith.constant 2 : index
    %c0_45 = arith.constant 0 : index
    %c0_46 = arith.constant 0 : index
    %62 = vector.load %arg3[%c2_44, %c0_45, %c0_46] : memref<5x384x512xbf16, #tpu.memory_space<vmem>>, vector<1x384x512xbf16>
    %63 = vector.shape_cast %62 : vector<1x384x512xbf16> to vector<384x512xbf16>
    %cst_47 = arith.constant dense<0.000000e+00> : vector<1x512xf32>
    %64 = tpu.matmul %61, %63, %cst_47 {dimension_numbers = #tpu.dot_dimension_numbers<[1], [0], [0], [1], [0, 0, 1, 1], [], []>} : vector<1x384xbf16>, vector<384x512xbf16>, vector<1x512xf32> -> vector<1x512xf32>
    %65 = arith.addf %57, %64 : vector<1x512xf32>
    %66 = vector.extract_strided_slice %40 {offsets = [6, 0], sizes = [1, 384], strides = [1, 1]} : vector<10x384xf32> to vector<1x384xf32>
    %67 = vector.extract_strided_slice %40 {offsets = [7, 0], sizes = [1, 384], strides = [1, 1]} : vector<10x384xf32> to vector<1x384xf32>
    %68 = arith.maximumf %66, %67 : vector<1x384xf32>
    %69 = arith.truncf %68 : vector<1x384xf32> to vector<1x384xbf16>
    %c3_48 = arith.constant 3 : index
    %c0_49 = arith.constant 0 : index
    %c0_50 = arith.constant 0 : index
    %70 = vector.load %arg3[%c3_48, %c0_49, %c0_50] : memref<5x384x512xbf16, #tpu.memory_space<vmem>>, vector<1x384x512xbf16>
    %71 = vector.shape_cast %70 : vector<1x384x512xbf16> to vector<384x512xbf16>
    %cst_51 = arith.constant dense<0.000000e+00> : vector<1x512xf32>
    %72 = tpu.matmul %69, %71, %cst_51 {dimension_numbers = #tpu.dot_dimension_numbers<[1], [0], [0], [1], [0, 0, 1, 1], [], []>} : vector<1x384xbf16>, vector<384x512xbf16>, vector<1x512xf32> -> vector<1x512xf32>
    %73 = arith.addf %65, %72 : vector<1x512xf32>
    %74 = vector.extract_strided_slice %40 {offsets = [8, 0], sizes = [1, 384], strides = [1, 1]} : vector<10x384xf32> to vector<1x384xf32>
    %75 = vector.extract_strided_slice %40 {offsets = [9, 0], sizes = [1, 384], strides = [1, 1]} : vector<10x384xf32> to vector<1x384xf32>
    %76 = arith.maximumf %74, %75 : vector<1x384xf32>
    %77 = arith.truncf %76 : vector<1x384xf32> to vector<1x384xbf16>
    %c4 = arith.constant 4 : index
    %c0_52 = arith.constant 0 : index
    %c0_53 = arith.constant 0 : index
    %78 = vector.load %arg3[%c4, %c0_52, %c0_53] : memref<5x384x512xbf16, #tpu.memory_space<vmem>>, vector<1x384x512xbf16>
    %79 = vector.shape_cast %78 : vector<1x384x512xbf16> to vector<384x512xbf16>
    %cst_54 = arith.constant dense<0.000000e+00> : vector<1x512xf32>
    %80 = tpu.matmul %77, %79, %cst_54 {dimension_numbers = #tpu.dot_dimension_numbers<[1], [0], [0], [1], [0, 0, 1, 1], [], []>} : vector<1x384xbf16>, vector<384x512xbf16>, vector<1x512xf32> -> vector<1x512xf32>
    %81 = arith.addf %73, %80 : vector<1x512xf32>
    %c0_55 = arith.constant 0 : index
    %c0_56 = arith.constant 0 : index
    %82 = vector.load %arg4[%c0_55, %c0_56] : memref<1x512xf32, #tpu.memory_space<vmem>>, vector<1x512xf32>
    %83 = arith.addf %81, %82 : vector<1x512xf32>
    %cst_57 = arith.constant 0.000000e+00 : f32
    %84 = vector.broadcast %cst_57 : f32 to vector<1x512xf32>
    %85 = arith.maximumf %83, %84 : vector<1x512xf32>
    %c0_58 = arith.constant 0 : index
    %c0_59 = arith.constant 0 : index
    %86 = vector.load %arg12[%c0_58, %c0_59] : memref<2x512xf32, #tpu.memory_space<vmem>>, vector<1x512xf32>
    tpu.vector_store %arg12[%c0_58, %c0_59], %85 {strides = array<i32>} : memref<2x512xf32, #tpu.memory_space<vmem>>, vector<1x512xf32>,
    %cst_60 = arith.constant 0.000000e+00 : f32
    %87 = vector.broadcast %cst_60 : f32 to vector<10x1536xf32>
    %c1_61 = arith.constant 1 : index
    %c0_62 = arith.constant 0 : index
    %c0_63 = arith.constant 0 : index
    %c0_64 = arith.constant 0 : index
    %88 = vector.load %arg0[%c1_61, %c0_62, %c0_63, %c0_64] : memref<2x1x13x39xf32, #tpu.memory_space<vmem>>, vector<1x1x10x39xf32>
    %89 = vector.shape_cast %88 : vector<1x1x10x39xf32> to vector<10x39xf32>
    %90 = arith.truncf %89 : vector<10x39xf32> to vector<10x39xbf16>
    %c0_65 = arith.constant 0 : index
    %c0_66 = arith.constant 0 : index
    %c0_67 = arith.constant 0 : index
    %c0_68 = arith.constant 0 : index
    %91 = vector.load %arg1[%c0_65, %c0_66, %c0_67, %c0_68] : memref<1x4x39x1536xbf16, #tpu.memory_space<vmem>>, vector<1x1x39x1536xbf16>
    %92 = vector.shape_cast %91 : vector<1x1x39x1536xbf16> to vector<39x1536xbf16>
    %cst_69 = arith.constant dense<0.000000e+00> : vector<10x1536xf32>
    %93 = tpu.matmul %90, %92, %cst_69 {dimension_numbers = #tpu.dot_dimension_numbers<[1], [0], [0], [1], [0, 0, 1, 1], [], []>} : vector<10x39xbf16>, vector<39x1536xbf16>, vector<10x1536xf32> -> vector<10x1536xf32>
    %94 = arith.addf %87, %93 : vector<10x1536xf32>
    %c1_70 = arith.constant 1 : index
    %c0_71 = arith.constant 0 : index
    %c1_72 = arith.constant 1 : index
    %c0_73 = arith.constant 0 : index
    %95 = vector.load %arg0[%c1_70, %c0_71, %c1_72, %c0_73] : memref<2x1x13x39xf32, #tpu.memory_space<vmem>>, vector<1x1x10x39xf32>
    %96 = vector.shape_cast %95 : vector<1x1x10x39xf32> to vector<10x39xf32>
    %97 = arith.truncf %96 : vector<10x39xf32> to vector<10x39xbf16>
    %c0_74 = arith.constant 0 : index
    %c1_75 = arith.constant 1 : index
    %c0_76 = arith.constant 0 : index
    %c0_77 = arith.constant 0 : index
    %98 = vector.load %arg1[%c0_74, %c1_75, %c0_76, %c0_77] : memref<1x4x39x1536xbf16, #tpu.memory_space<vmem>>, vector<1x1x39x1536xbf16>
    %99 = vector.shape_cast %98 : vector<1x1x39x1536xbf16> to vector<39x1536xbf16>
    %cst_78 = arith.constant dense<0.000000e+00> : vector<10x1536xf32>
    %100 = tpu.matmul %97, %99, %cst_78 {dimension_numbers = #tpu.dot_dimension_numbers<[1], [0], [0], [1], [0, 0, 1, 1], [], []>} : vector<10x39xbf16>, vector<39x1536xbf16>, vector<10x1536xf32> -> vector<10x1536xf32>
    %101 = arith.addf %94, %100 : vector<10x1536xf32>
    %c1_79 = arith.constant 1 : index
    %c0_80 = arith.constant 0 : index
    %c2_81 = arith.constant 2 : index
    %c0_82 = arith.constant 0 : index
    %102 = vector.load %arg0[%c1_79, %c0_80, %c2_81, %c0_82] : memref<2x1x13x39xf32, #tpu.memory_space<vmem>>, vector<1x1x10x39xf32>
    %103 = vector.shape_cast %102 : vector<1x1x10x39xf32> to vector<10x39xf32>
    %104 = arith.truncf %103 : vector<10x39xf32> to vector<10x39xbf16>
    %c0_83 = arith.constant 0 : index
    %c2_84 = arith.constant 2 : index
    %c0_85 = arith.constant 0 : index
    %c0_86 = arith.constant 0 : index
    %105 = vector.load %arg1[%c0_83, %c2_84, %c0_85, %c0_86] : memref<1x4x39x1536xbf16, #tpu.memory_space<vmem>>, vector<1x1x39x1536xbf16>
    %106 = vector.shape_cast %105 : vector<1x1x39x1536xbf16> to vector<39x1536xbf16>
    %cst_87 = arith.constant dense<0.000000e+00> : vector<10x1536xf32>
    %107 = tpu.matmul %104, %106, %cst_87 {dimension_numbers = #tpu.dot_dimension_numbers<[1], [0], [0], [1], [0, 0, 1, 1], [], []>} : vector<10x39xbf16>, vector<39x1536xbf16>, vector<10x1536xf32> -> vector<10x1536xf32>
    %108 = arith.addf %101, %107 : vector<10x1536xf32>
    %c1_88 = arith.constant 1 : index
    %c0_89 = arith.constant 0 : index
    %c3_90 = arith.constant 3 : index
    %c0_91 = arith.constant 0 : index
    %109 = vector.load %arg0[%c1_88, %c0_89, %c3_90, %c0_91] : memref<2x1x13x39xf32, #tpu.memory_space<vmem>>, vector<1x1x10x39xf32>
    %110 = vector.shape_cast %109 : vector<1x1x10x39xf32> to vector<10x39xf32>
    %111 = arith.truncf %110 : vector<10x39xf32> to vector<10x39xbf16>
    %c0_92 = arith.constant 0 : index
    %c3_93 = arith.constant 3 : index
    %c0_94 = arith.constant 0 : index
    %c0_95 = arith.constant 0 : index
    %112 = vector.load %arg1[%c0_92, %c3_93, %c0_94, %c0_95] : memref<1x4x39x1536xbf16, #tpu.memory_space<vmem>>, vector<1x1x39x1536xbf16>
    %113 = vector.shape_cast %112 : vector<1x1x39x1536xbf16> to vector<39x1536xbf16>
    %cst_96 = arith.constant dense<0.000000e+00> : vector<10x1536xf32>
    %114 = tpu.matmul %111, %113, %cst_96 {dimension_numbers = #tpu.dot_dimension_numbers<[1], [0], [0], [1], [0, 0, 1, 1], [], []>} : vector<10x39xbf16>, vector<39x1536xbf16>, vector<10x1536xf32> -> vector<10x1536xf32>
    %115 = arith.addf %108, %114 : vector<10x1536xf32>
    %c0_97 = arith.constant 0 : index
    %c0_98 = arith.constant 0 : index
    %116 = vector.load %arg2[%c0_97, %c0_98] : memref<1x1536xf32, #tpu.memory_space<vmem>>, vector<1x1536xf32>
    %117 = vector.broadcast %116 : vector<1x1536xf32> to vector<10x1536xf32>
    %118 = arith.addf %115, %117 : vector<10x1536xf32>
    %cst_99 = arith.constant 0.000000e+00 : f32
    %119 = vector.broadcast %cst_99 : f32 to vector<10x1536xf32>
    %120 = arith.maximumf %118, %119 : vector<10x1536xf32>
    %121 = vector.extract_strided_slice %120 {offsets = [0, 0], sizes = [10, 384], strides = [1, 1]} : vector<10x1536xf32> to vector<10x384xf32>
    %122 = vector.extract_strided_slice %120 {offsets = [0, 384], sizes = [10, 384], strides = [1, 1]} : vector<10x1536xf32> to vector<10x384xf32>
    %123 = arith.maximumf %121, %122 : vector<10x384xf32>
    %124 = vector.extract_strided_slice %120 {offsets = [0, 768], sizes = [10, 384], strides = [1, 1]} : vector<10x1536xf32> to vector<10x384xf32>
    %125 = arith.maximumf %123, %124 : vector<10x384xf32>
    %126 = vector.extract_strided_slice %120 {offsets = [0, 1152], sizes = [10, 384], strides = [1, 1]} : vector<10x1536xf32> to vector<10x384xf32>
    %127 = arith.maximumf %125, %126 : vector<10x384xf32>
    %cst_100 = arith.constant 0.000000e+00 : f32
    %128 = vector.broadcast %cst_100 : f32 to vector<1x512xf32>
    %129 = vector.extract_strided_slice %127 {offsets = [0, 0], sizes = [1, 384], strides = [1, 1]} : vector<10x384xf32> to vector<1x384xf32>
    %130 = vector.extract_strided_slice %127 {offsets = [1, 0], sizes = [1, 384], strides = [1, 1]} : vector<10x384xf32> to vector<1x384xf32>
    %131 = arith.maximumf %129, %130 : vector<1x384xf32>
    %132 = arith.truncf %131 : vector<1x384xf32> to vector<1x384xbf16>
    %c0_101 = arith.constant 0 : index
    %c0_102 = arith.constant 0 : index
    %c0_103 = arith.constant 0 : index
    %133 = vector.load %arg3[%c0_101, %c0_102, %c0_103] : memref<5x384x512xbf16, #tpu.memory_space<vmem>>, vector<1x384x512xbf16>
    %134 = vector.shape_cast %133 : vector<1x384x512xbf16> to vector<384x512xbf16>
    %cst_104 = arith.constant dense<0.000000e+00> : vector<1x512xf32>
    %135 = tpu.matmul %132, %134, %cst_104 {dimension_numbers = #tpu.dot_dimension_numbers<[1], [0], [0], [1], [0, 0, 1, 1], [], []>} : vector<1x384xbf16>, vector<384x512xbf16>, vector<1x512xf32> -> vector<1x512xf32>
    %136 = arith.addf %128, %135 : vector<1x512xf32>
    %137 = vector.extract_strided_slice %127 {offsets = [2, 0], sizes = [1, 384], strides = [1, 1]} : vector<10x384xf32> to vector<1x384xf32>
    %138 = vector.extract_strided_slice %127 {offsets = [3, 0], sizes = [1, 384], strides = [1, 1]} : vector<10x384xf32> to vector<1x384xf32>
    %139 = arith.maximumf %137, %138 : vector<1x384xf32>
    %140 = arith.truncf %139 : vector<1x384xf32> to vector<1x384xbf16>
    %c1_105 = arith.constant 1 : index
    %c0_106 = arith.constant 0 : index
    %c0_107 = arith.constant 0 : index
    %141 = vector.load %arg3[%c1_105, %c0_106, %c0_107] : memref<5x384x512xbf16, #tpu.memory_space<vmem>>, vector<1x384x512xbf16>
    %142 = vector.shape_cast %141 : vector<1x384x512xbf16> to vector<384x512xbf16>
    %cst_108 = arith.constant dense<0.000000e+00> : vector<1x512xf32>
    %143 = tpu.matmul %140, %142, %cst_108 {dimension_numbers = #tpu.dot_dimension_numbers<[1], [0], [0], [1], [0, 0, 1, 1], [], []>} : vector<1x384xbf16>, vector<384x512xbf16>, vector<1x512xf32> -> vector<1x512xf32>
    %144 = arith.addf %136, %143 : vector<1x512xf32>
    %145 = vector.extract_strided_slice %127 {offsets = [4, 0], sizes = [1, 384], strides = [1, 1]} : vector<10x384xf32> to vector<1x384xf32>
    %146 = vector.extract_strided_slice %127 {offsets = [5, 0], sizes = [1, 384], strides = [1, 1]} : vector<10x384xf32> to vector<1x384xf32>
    %147 = arith.maximumf %145, %146 : vector<1x384xf32>
    %148 = arith.truncf %147 : vector<1x384xf32> to vector<1x384xbf16>
    %c2_109 = arith.constant 2 : index
    %c0_110 = arith.constant 0 : index
    %c0_111 = arith.constant 0 : index
    %149 = vector.load %arg3[%c2_109, %c0_110, %c0_111] : memref<5x384x512xbf16, #tpu.memory_space<vmem>>, vector<1x384x512xbf16>
    %150 = vector.shape_cast %149 : vector<1x384x512xbf16> to vector<384x512xbf16>
    %cst_112 = arith.constant dense<0.000000e+00> : vector<1x512xf32>
    %151 = tpu.matmul %148, %150, %cst_112 {dimension_numbers = #tpu.dot_dimension_numbers<[1], [0], [0], [1], [0, 0, 1, 1], [], []>} : vector<1x384xbf16>, vector<384x512xbf16>, vector<1x512xf32> -> vector<1x512xf32>
    %152 = arith.addf %144, %151 : vector<1x512xf32>
    %153 = vector.extract_strided_slice %127 {offsets = [6, 0], sizes = [1, 384], strides = [1, 1]} : vector<10x384xf32> to vector<1x384xf32>
    %154 = vector.extract_strided_slice %127 {offsets = [7, 0], sizes = [1, 384], strides = [1, 1]} : vector<10x384xf32> to vector<1x384xf32>
    %155 = arith.maximumf %153, %154 : vector<1x384xf32>
    %156 = arith.truncf %155 : vector<1x384xf32> to vector<1x384xbf16>
    %c3_113 = arith.constant 3 : index
    %c0_114 = arith.constant 0 : index
    %c0_115 = arith.constant 0 : index
    %157 = vector.load %arg3[%c3_113, %c0_114, %c0_115] : memref<5x384x512xbf16, #tpu.memory_space<vmem>>, vector<1x384x512xbf16>
    %158 = vector.shape_cast %157 : vector<1x384x512xbf16> to vector<384x512xbf16>
    %cst_116 = arith.constant dense<0.000000e+00> : vector<1x512xf32>
    %159 = tpu.matmul %156, %158, %cst_116 {dimension_numbers = #tpu.dot_dimension_numbers<[1], [0], [0], [1], [0, 0, 1, 1], [], []>} : vector<1x384xbf16>, vector<384x512xbf16>, vector<1x512xf32> -> vector<1x512xf32>
    %160 = arith.addf %152, %159 : vector<1x512xf32>
    %161 = vector.extract_strided_slice %127 {offsets = [8, 0], sizes = [1, 384], strides = [1, 1]} : vector<10x384xf32> to vector<1x384xf32>
    %162 = vector.extract_strided_slice %127 {offsets = [9, 0], sizes = [1, 384], strides = [1, 1]} : vector<10x384xf32> to vector<1x384xf32>
    %163 = arith.maximumf %161, %162 : vector<1x384xf32>
    %164 = arith.truncf %163 : vector<1x384xf32> to vector<1x384xbf16>
    %c4_117 = arith.constant 4 : index
    %c0_118 = arith.constant 0 : index
    %c0_119 = arith.constant 0 : index
    %165 = vector.load %arg3[%c4_117, %c0_118, %c0_119] : memref<5x384x512xbf16, #tpu.memory_space<vmem>>, vector<1x384x512xbf16>
    %166 = vector.shape_cast %165 : vector<1x384x512xbf16> to vector<384x512xbf16>
    %cst_120 = arith.constant dense<0.000000e+00> : vector<1x512xf32>
    %167 = tpu.matmul %164, %166, %cst_120 {dimension_numbers = #tpu.dot_dimension_numbers<[1], [0], [0], [1], [0, 0, 1, 1], [], []>} : vector<1x384xbf16>, vector<384x512xbf16>, vector<1x512xf32> -> vector<1x512xf32>
    %168 = arith.addf %160, %167 : vector<1x512xf32>
    %c0_121 = arith.constant 0 : index
    %c0_122 = arith.constant 0 : index
    %169 = vector.load %arg4[%c0_121, %c0_122] : memref<1x512xf32, #tpu.memory_space<vmem>>, vector<1x512xf32>
    %170 = arith.addf %168, %169 : vector<1x512xf32>
    %cst_123 = arith.constant 0.000000e+00 : f32
    %171 = vector.broadcast %cst_123 : f32 to vector<1x512xf32>
    %172 = arith.maximumf %170, %171 : vector<1x512xf32>
    %c1_124 = arith.constant 1 : index
    %c0_125 = arith.constant 0 : index
    %173 = vector.load %arg12[%c1_124, %c0_125] : memref<2x512xf32, #tpu.memory_space<vmem>>, vector<1x512xf32>
    tpu.vector_store %arg12[%c1_124, %c0_125], %172 {strides = array<i32>} : memref<2x512xf32, #tpu.memory_space<vmem>>, vector<1x512xf32>,
    %c0_126 = arith.constant 0 : index
    %c0_127 = arith.constant 0 : index
    %174 = vector.load %arg12[%c0_126, %c0_127] : memref<2x512xf32, #tpu.memory_space<vmem>>, vector<2x512xf32>
    %175 = arith.truncf %174 : vector<2x512xf32> to vector<2x512xbf16>
    %c0_128 = arith.constant 0 : index
    %c0_129 = arith.constant 0 : index
    %176 = vector.load %arg5[%c0_128, %c0_129] : memref<512x128xbf16, #tpu.memory_space<vmem>>, vector<512x128xbf16>
    %cst_130 = arith.constant dense<0.000000e+00> : vector<2x128xf32>
    %177 = tpu.matmul %175, %176, %cst_130 {dimension_numbers = #tpu.dot_dimension_numbers<[1], [0], [0], [1], [0, 0, 1, 1], [], []>} : vector<2x512xbf16>, vector<512x128xbf16>, vector<2x128xf32> -> vector<2x128xf32>
    %c0_131 = arith.constant 0 : index
    %c0_132 = arith.constant 0 : index
    %178 = vector.load %arg6[%c0_131, %c0_132] : memref<1x128xf32, #tpu.memory_space<vmem>>, vector<1x128xf32>
    %179 = vector.broadcast %178 : vector<1x128xf32> to vector<2x128xf32>
    %180 = arith.addf %177, %179 : vector<2x128xf32>
    %181 = arith.truncf %180 : vector<2x128xf32> to vector<2x128xbf16>
    %c0_133 = arith.constant 0 : index
    %c0_134 = arith.constant 0 : index
    %182 = vector.load %arg7[%c0_133, %c0_134] : memref<128x128xbf16, #tpu.memory_space<vmem>>, vector<128x128xbf16>
    %cst_135 = arith.constant dense<0.000000e+00> : vector<2x128xf32>
    %183 = tpu.matmul %181, %182, %cst_135 {dimension_numbers = #tpu.dot_dimension_numbers<[1], [0], [0], [1], [0, 0, 1, 1], [], []>} : vector<2x128xbf16>, vector<128x128xbf16>, vector<2x128xf32> -> vector<2x128xf32>
    %c0_136 = arith.constant 0 : index
    %c0_137 = arith.constant 0 : index
    %184 = vector.load %arg8[%c0_136, %c0_137] : memref<1x128xf32, #tpu.memory_space<vmem>>, vector<1x128xf32>
    %185 = vector.broadcast %184 : vector<1x128xf32> to vector<2x128xf32>
    %186 = arith.addf %183, %185 : vector<2x128xf32>
    %cst_138 = arith.constant 0.000000e+00 : f32
    %187 = vector.broadcast %cst_138 : f32 to vector<2x128xf32>
    %188 = arith.maximumf %186, %187 : vector<2x128xf32>
    %189 = arith.truncf %188 : vector<2x128xf32> to vector<2x128xbf16>
    %c0_139 = arith.constant 0 : index
    %c0_140 = arith.constant 0 : index
    %190 = vector.load %arg9[%c0_139, %c0_140] : memref<128x128xbf16, #tpu.memory_space<vmem>>, vector<128x128xbf16>
    %cst_141 = arith.constant dense<0.000000e+00> : vector<2x128xf32>
    %191 = tpu.matmul %189, %190, %cst_141 {dimension_numbers = #tpu.dot_dimension_numbers<[1], [0], [0], [1], [0, 0, 1, 1], [], []>} : vector<2x128xbf16>, vector<128x128xbf16>, vector<2x128xf32> -> vector<2x128xf32>
    %c0_142 = arith.constant 0 : index
    %c0_143 = arith.constant 0 : index
    %192 = vector.load %arg10[%c0_142, %c0_143] : memref<1x128xf32, #tpu.memory_space<vmem>>, vector<1x128xf32>
    %193 = vector.broadcast %192 : vector<1x128xf32> to vector<2x128xf32>
    %194 = arith.addf %191, %193 : vector<2x128xf32>
    %195 = vector.extract_strided_slice %194 {offsets = [0, 0], sizes = [2, 10], strides = [1, 1]} : vector<2x128xf32> to vector<2x10xf32>
    %cst_144 = arith.constant dense<0xFF800000> : vector<2xf32>
    %196 = vector.multi_reduction <maximumf>, %195, %cst_144 [1] : vector<2x10xf32> to vector<2xf32>
    %197 = vector.shape_cast %196 : vector<2xf32> to vector<2x1xf32>
    %198 = vector.broadcast %197 : vector<2x1xf32> to vector<2x10xf32>
    %199 = arith.subf %195, %198 : vector<2x10xf32>
    %200 = math.exp %199 : vector<2x10xf32>
    %cst_145 = arith.constant dense<0.000000e+00> : vector<2xf32>
    %201 = vector.multi_reduction <add>, %200, %cst_145 [1] : vector<2x10xf32> to vector<2xf32>
    %202 = vector.shape_cast %201 : vector<2xf32> to vector<2x1xf32>
    %203 = tpu.reciprocal %202 {approx = true} : vector<2x1xf32> -> vector<2x1xf32>
    %204 = vector.broadcast %203 : vector<2x1xf32> to vector<2x10xf32>
    %205 = arith.mulf %200, %204 : vector<2x10xf32>
    %c0_146 = arith.constant 0 : index
    %c0_147 = arith.constant 0 : index
    %206 = vector.load %arg11[%c0_146, %c0_147] : memref<2x10xf32, #tpu.memory_space<vmem>>, vector<2x10xf32>
    tpu.vector_store %arg11[%c0_146, %c0_147], %205 {strides = array<i32>} : memref<2x10xf32, #tpu.memory_space<vmem>>, vector<2x10xf32>,
    return
  }
}

</mosaic_0001>

<llo_original>
// kernel: convnet_trad_forward.1
$region0: #{convnet_trad_forward.1}
  #allocation0 [shape = 'u32[]', space=smem, size = 0x4, offset = 0x4, fixed_abs, tag = 'smem constant byte address 0x4 - core index']
  #allocation1 [shape = 'u32[144,128]{1,0:T(1,128)}', space=vmem, size = 0x12000, scoped, tag = 'internal scratch']
  #allocation2 [shape = 'f32[2,512]{1,0:T(2,128)}', space=vmem, size = 0x1000, scoped, tag = 'scratch operand']
  %s0 = inlined_call_operand.vmem [shape: f32[2,1,13,39], index: 0, kind: input, shape index: {}]
  %s1 = inlined_call_operand.vmem [shape: bf16[1,4,39,1536], index: 1, kind: input, shape index: {}]
  %s2 = inlined_call_operand.hbm [shape: f32[1,1536], index: 2, kind: input, shape index: {}]
  %s3 = inlined_call_operand.hbm [shape: bf16[5,384,512], index: 3, kind: input, shape index: {}]
  %s4 = inlined_call_operand.hbm [shape: f32[1,512], index: 4, kind: input, shape index: {}]
  %s5 = inlined_call_operand.hbm [shape: bf16[512,128], index: 5, kind: input, shape index: {}]
  %s6 = inlined_call_operand.hbm [shape: f32[1,128], index: 6, kind: input, shape index: {}]
  %s7 = inlined_call_operand.hbm [shape: bf16[128,128], index: 7, kind: input, shape index: {}]
  %s8 = inlined_call_operand.hbm [shape: f32[1,128], index: 8, kind: input, shape index: {}]
  %s9 = inlined_call_operand.hbm [shape: bf16[128,128], index: 9, kind: input, shape index: {}]
  %s10 = inlined_call_operand.hbm [shape: f32[1,128], index: 10, kind: input, shape index: {}]
  %s11 = inlined_call_operand.hbm [shape: f32[2,10], index: 11, kind: output, shape index: {}]
  %s12 = sld [smem:[#allocation0]]
  $region90: #{convnet_trad_forward.1} parent=0
    _
  %s14 = ssub.s32 1, %s12
  %s15 = scalar_select 0, %s14, %s12
  $region1: #{convnet_trad_forward.1} parent=0
    #allocation3 [shape = 'u8[6144]{0}', space=vmem, size = 0x1800, scoped, tag = 'input window, operand 2, single buffered']
    #allocation4 [shape = 's32[1]{0}', space=sflag, size = 0x4, scoped, tag = 'scoped memory for convnet_trad_forward.1']
    #allocation5 [shape = 's32[1]{0}', space=sflag, size = 0x4, scoped, tag = 'scoped memory for convnet_trad_forward.1']
    #allocation6 [shape = 'u8[1966080]{0}', space=vmem, size = 0x1e0000, scoped, tag = 'input window, operand 3, single buffered']
    #allocation7 [shape = 's32[1]{0}', space=sflag, size = 0x4, scoped, tag = 'scoped memory for convnet_trad_forward.1']
    #allocation8 [shape = 'u8[2048]{0}', space=vmem, size = 0x800, scoped, tag = 'input window, operand 4, single buffered']
    #allocation9 [shape = 'u8[131072]{0}', space=vmem, size = 0x20000, scoped, tag = 'input window, operand 5, single buffered']
    #allocation10 [shape = 's32[1]{0}', space=sflag, size = 0x4, scoped, tag = 'scoped memory for convnet_trad_forward.1']
    #allocation11 [shape = 'u8[512]{0}', space=vmem, size = 0x400, scoped, tag = 'input window, operand 6, single buffered']
    #allocation12 [shape = 'u8[32768]{0}', space=vmem, size = 0x8000, scoped, tag = 'input window, operand 7, single buffered']
    #allocation13 [shape = 's32[1]{0}', space=sflag, size = 0x4, scoped, tag = 'scoped memory for convnet_trad_forward.1']
    #allocation14 [shape = 'u8[512]{0}', space=vmem, size = 0x400, scoped, tag = 'input window, operand 8, single buffered']
    #allocation15 [shape = 'u8[32768]{0}', space=vmem, size = 0x8000, scoped, tag = 'input window, operand 9, single buffered']
    #allocation16 [shape = 's32[1]{0}', space=sflag, size = 0x4, scoped, tag = 'scoped memory for convnet_trad_forward.1']
    #allocation17 [shape = 'u8[512]{0}', space=vmem, size = 0x400, scoped, tag = 'input window, operand 10, single buffered']
    #allocation18 [shape = 'u8[1024]{0}', space=vmem, size = 0x400, scoped, tag = 'output window, operand 0, single buffered']
    %16 = vsyncpa [#allocation4], 0
    %17 = vsyncpa [#allocation7], 0
    %18 = vsyncpa [#allocation10], 0
    %19 = vsyncpa [#allocation13], 0
    %20 = vsyncpa [#allocation16], 0
    %21 = vsyncpa [#allocation5], 0
    // Predicated region
    $region2: #{convnet_trad_forward.1} parent=1 // pred_check
      _
    $region3: #{convnet_trad_forward.1} parent=1 // pred_check_branch
      %23 = sbr.rel (0) target = $region5
    $region4: #{convnet_trad_forward.1} parent=1 // pred_region
      _
    $region5: #{convnet_trad_forward.1} parent=1 // pred_fallthru
      _
    // Predicated region
    $region6: #{convnet_trad_forward.1} parent=1 // pred_check
      _
    $region7: #{convnet_trad_forward.1} parent=1 // pred_check_branch
      %25 = sbr.rel (0) target = $region9
    $region8: #{convnet_trad_forward.1} parent=1 // pred_region
      _
    $region9: #{convnet_trad_forward.1} parent=1 // pred_fallthru
      _
    // Predicated region
    $region10: #{convnet_trad_forward.1} parent=1 // pred_check
      _
    $region11: #{convnet_trad_forward.1} parent=1 // pred_check_branch
      %27 = sbr.rel (0) target = $region13
    $region12: #{convnet_trad_forward.1} parent=1 // pred_region
      %s29 = ssub.s32 192, 192
      %30 = vsyncadd [#allocation4], %s29
      %s32 = sshll.u32 [#allocation3], 4
      %s33 = int_to_ptr.vmem [resolvable:$true] %s32
      %35 = dma.hbm_to_vmem [thread:$0]  %s2, 192, %s33, [#allocation4]
    $region13: #{convnet_trad_forward.1} parent=1 // pred_fallthru
      _
    // Predicated region
    $region14: #{convnet_trad_forward.1} parent=1 // pred_check
      _
    $region15: #{convnet_trad_forward.1} parent=1 // pred_check_branch
      %37 = sbr.rel (0) target = $region17
    $region16: #{convnet_trad_forward.1} parent=1 // pred_region
      %s39 = ssub.s32 61440, 61440
      %40 = vsyncadd [#allocation7], %s39
      %s41 = sshll.u32 [#allocation6], 4
      %s42 = int_to_ptr.vmem [resolvable:$true] %s41
      %47 = dma.hbm_to_vmem [thread:$0]  %s3, 61440, %s42, [#allocation7], 256, 256, 16
    $region17: #{convnet_trad_forward.1} parent=1 // pred_fallthru
      _
    // Predicated region
    $region18: #{convnet_trad_forward.1} parent=1 // pred_check
      _
    $region19: #{convnet_trad_forward.1} parent=1 // pred_check_branch
      %49 = sbr.rel (0) target = $region21
    $region20: #{convnet_trad_forward.1} parent=1 // pred_region
      %s51 = ssub.s32 64, 64
      %52 = vsyncadd [#allocation7], %s51
      %s54 = sshll.u32 [#allocation8], 4
      %s55 = int_to_ptr.vmem [resolvable:$true] %s54
      %57 = dma.hbm_to_vmem [thread:$0]  %s4, 64, %s55, [#allocation7]
    $region21: #{convnet_trad_forward.1} parent=1 // pred_fallthru
      _
    // Predicated region
    $region22: #{convnet_trad_forward.1} parent=1 // pred_check
      _
    $region23: #{convnet_trad_forward.1} parent=1 // pred_check_branch
      %59 = sbr.rel (0) target = $region25
    $region24: #{convnet_trad_forward.1} parent=1 // pred_region
      %s61 = ssub.s32 4096, 4096
      %62 = vsyncadd [#allocation10], %s61
      %s63 = sshll.u32 [#allocation9], 4
      %s64 = int_to_ptr.vmem [resolvable:$true] %s63
      %69 = dma.hbm_to_vmem [thread:$0]  %s5, 4096, %s64, [#allocation10], 64, 64, 4
    $region25: #{convnet_trad_forward.1} parent=1 // pred_fallthru
      _
    // Predicated region
    $region26: #{convnet_trad_forward.1} parent=1 // pred_check
      _
    $region27: #{convnet_trad_forward.1} parent=1 // pred_check_branch
      %71 = sbr.rel (0) target = $region29
    $region28: #{convnet_trad_forward.1} parent=1 // pred_region
      %s73 = ssub.s32 16, 16
      %74 = vsyncadd [#allocation10], %s73
      %s76 = sshll.u32 [#allocation11], 4
      %s77 = int_to_ptr.vmem [resolvable:$true] %s76
      %79 = dma.hbm_to_vmem [thread:$0]  %s6, 16, %s77, [#allocation10]
    $region29: #{convnet_trad_forward.1} parent=1 // pred_fallthru
      _
    // Predicated region
    $region30: #{convnet_trad_forward.1} parent=1 // pred_check
      _
    $region31: #{convnet_trad_forward.1} parent=1 // pred_check_branch
      %81 = sbr.rel (0) target = $region33
    $region32: #{convnet_trad_forward.1} parent=1 // pred_region
      %s83 = ssub.s32 1024, 1024
      %84 = vsyncadd [#allocation13], %s83
      %s85 = sshll.u32 [#allocation12], 4
      %s86 = int_to_ptr.vmem [resolvable:$true] %s85
      %91 = dma.hbm_to_vmem [thread:$0]  %s7, 1024, %s86, [#allocation13], 64, 64, 4
    $region33: #{convnet_trad_forward.1} parent=1 // pred_fallthru
      _
    // Predicated region
    $region34: #{convnet_trad_forward.1} parent=1 // pred_check
      _
    $region35: #{convnet_trad_forward.1} parent=1 // pred_check_branch
      %93 = sbr.rel (0) target = $region37
    $region36: #{convnet_trad_forward.1} parent=1 // pred_region
      %s95 = ssub.s32 16, 16
      %96 = vsyncadd [#allocation13], %s95
      %s98 = sshll.u32 [#allocation14], 4
      %s99 = int_to_ptr.vmem [resolvable:$true] %s98
      %101 = dma.hbm_to_vmem [thread:$0]  %s8, 16, %s99, [#allocation13]
    $region37: #{convnet_trad_forward.1} parent=1 // pred_fallthru
      _
    // Predicated region
    $region38: #{convnet_trad_forward.1} parent=1 // pred_check
      _
    $region39: #{convnet_trad_forward.1} parent=1 // pred_check_branch
      %103 = sbr.rel (0) target = $region41
    $region40: #{convnet_trad_forward.1} parent=1 // pred_region
      %s105 = ssub.s32 1024, 1024
      %106 = vsyncadd [#allocation16], %s105
      %s107 = sshll.u32 [#allocation15], 4
      %s108 = int_to_ptr.vmem [resolvable:$true] %s107
      %113 = dma.hbm_to_vmem [thread:$0]  %s9, 1024, %s108, [#allocation16], 64, 64, 4
    $region41: #{convnet_trad_forward.1} parent=1 // pred_fallthru
      _
    // Predicated region
    $region42: #{convnet_trad_forward.1} parent=1 // pred_check
      _
    $region43: #{convnet_trad_forward.1} parent=1 // pred_check_branch
      %115 = sbr.rel (0) target = $region45
    $region44: #{convnet_trad_forward.1} parent=1 // pred_region
      %s117 = ssub.s32 16, 16
      %118 = vsyncadd [#allocation16], %s117
      %s120 = sshll.u32 [#allocation17], 4
      %s121 = int_to_ptr.vmem [resolvable:$true] %s120
      %123 = dma.hbm_to_vmem [thread:$0]  %s10, 16, %s121, [#allocation16]
    $region45: #{convnet_trad_forward.1} parent=1 // pred_fallthru
      _
    // Predicated region
    $region46: #{convnet_trad_forward.1} parent=1 // pred_check
      _
    $region47: #{convnet_trad_forward.1} parent=1 // pred_check_branch
      %125 = sbr.rel (0) target = $region49
    $region48: #{convnet_trad_forward.1} parent=1 // pred_region
      %126 = dma.done [#allocation4], 192
    $region49: #{convnet_trad_forward.1} parent=1 // pred_fallthru
      _
    // Predicated region
    $region50: #{convnet_trad_forward.1} parent=1 // pred_check
      _
    $region51: #{convnet_trad_forward.1} parent=1 // pred_check_branch
      %128 = sbr.rel (0) target = $region53
    $region52: #{convnet_trad_forward.1} parent=1 // pred_region
      %129 = dma.done [#allocation7], 61440
    $region53: #{convnet_trad_forward.1} parent=1 // pred_fallthru
      _
    // Predicated region
    $region54: #{convnet_trad_forward.1} parent=1 // pred_check
      _
    $region55: #{convnet_trad_forward.1} parent=1 // pred_check_branch
      %131 = sbr.rel (0) target = $region57
    $region56: #{convnet_trad_forward.1} parent=1 // pred_region
      %132 = dma.done [#allocation7], 64
    $region57: #{convnet_trad_forward.1} parent=1 // pred_fallthru
      _
    // Predicated region
    $region58: #{convnet_trad_forward.1} parent=1 // pred_check
      _
    $region59: #{convnet_trad_forward.1} parent=1 // pred_check_branch
      %134 = sbr.rel (0) target = $region61
    $region60: #{convnet_trad_forward.1} parent=1 // pred_region
      %135 = dma.done [#allocation10], 4096
    $region61: #{convnet_trad_forward.1} parent=1 // pred_fallthru
      _
    // Predicated region
    $region62: #{convnet_trad_forward.1} parent=1 // pred_check
      _
    $region63: #{convnet_trad_forward.1} parent=1 // pred_check_branch
      %137 = sbr.rel (0) target = $region65
    $region64: #{convnet_trad_forward.1} parent=1 // pred_region
      %138 = dma.done [#allocation10], 16
    $region65: #{convnet_trad_forward.1} parent=1 // pred_fallthru
      _
    // Predicated region
    $region66: #{convnet_trad_forward.1} parent=1 // pred_check
      _
    $region67: #{convnet_trad_forward.1} parent=1 // pred_check_branch
      %140 = sbr.rel (0) target = $region69
    $region68: #{convnet_trad_forward.1} parent=1 // pred_region
      %141 = dma.done [#allocation13], 1024
    $region69: #{convnet_trad_forward.1} parent=1 // pred_fallthru
      _
    // Predicated region
    $region70: #{convnet_trad_forward.1} parent=1 // pred_check
      _
    $region71: #{convnet_trad_forward.1} parent=1 // pred_check_branch
      %143 = sbr.rel (0) target = $region73
    $region72: #{convnet_trad_forward.1} parent=1 // pred_region
      %144 = dma.done [#allocation13], 16
    $region73: #{convnet_trad_forward.1} parent=1 // pred_fallthru
      _
    // Predicated region
    $region74: #{convnet_trad_forward.1} parent=1 // pred_check
      _
    $region75: #{convnet_trad_forward.1} parent=1 // pred_check_branch
      %146 = sbr.rel (0) target = $region77
    $region76: #{convnet_trad_forward.1} parent=1 // pred_region
      %147 = dma.done [#allocation16], 1024
    $region77: #{convnet_trad_forward.1} parent=1 // pred_fallthru
      _
    // Predicated region
    $region78: #{convnet_trad_forward.1} parent=1 // pred_check
      _
    $region79: #{convnet_trad_forward.1} parent=1 // pred_check_branch
      %149 = sbr.rel (0) target = $region81
    $region80: #{convnet_trad_forward.1} parent=1 // pred_region
      %150 = dma.done [#allocation16], 16
    $region81: #{convnet_trad_forward.1} parent=1 // pred_fallthru
      _
    %v152 = vld [vmem:[%s0] sm:$0xff]
    %v153 = vld [vmem:[%s0 + $0x8] sm:$0x3]
    %v154 = vpack.c.bf16 %v153, %v152
    %v155 = vld [vmem:[%s1] sm:$0xff]
    %v156 = vld [vmem:[%s1 + $0x8] sm:$0xff]
    %v157 = vld [vmem:[%s1 + $0x10] sm:$0xff]
    %v158 = vld [vmem:[%s1 + $0x18] sm:$0xff]
    %v159 = vld [vmem:[%s1 + $0x20] sm:$0xff]
    %v160 = vld [vmem:[%s1 + $0x28] sm:$0xff]
    %v161 = vld [vmem:[%s1 + $0x30] sm:$0xff]
    %v162 = vld [vmem:[%s1 + $0x38] sm:$0xff]
    %v163 = vld [vmem:[%s1 + $0x40] sm:$0xff]
    %v164 = vld [vmem:[%s1 + $0x48] sm:$0xff]
    %v165 = vld [vmem:[%s1 + $0x50] sm:$0xff]
    %v166 = vld [vmem:[%s1 + $0x58] sm:$0xff]
    %v167 = vld [vmem:[%s1 + $0x60] sm:$0xff]
    %v168 = vld [vmem:[%s1 + $0x68] sm:$0xff]
    %v169 = vld [vmem:[%s1 + $0x70] sm:$0xff]
    %v170 = vld [vmem:[%s1 + $0x78] sm:$0xff]
    %v171 = vld [vmem:[%s1 + $0x80] sm:$0xff]
    %v172 = vld [vmem:[%s1 + $0x88] sm:$0xff]
    %v173 = vld [vmem:[%s1 + $0x90] sm:$0xff]
    %v174 = vld [vmem:[%s1 + $0x98] sm:$0xff]
    %v175 = vld [vmem:[%s1 + $0xa0] sm:$0xff]
    %v176 = vld [vmem:[%s1 + $0xa8] sm:$0xff]
    %v177 = vld [vmem:[%s1 + $0xb0] sm:$0xff]
    %v178 = vld [vmem:[%s1 + $0xb8] sm:$0xff]
    %v179 = vld [vmem:[%s1 + $0xc0] sm:$0xff]
    %v180 = vld [vmem:[%s1 + $0xc8] sm:$0xff]
    %v181 = vld [vmem:[%s1 + $0xd0] sm:$0xff]
    %v182 = vld [vmem:[%s1 + $0xd8] sm:$0xff]
    %v183 = vld [vmem:[%s1 + $0xe0] sm:$0xff]
    %v184 = vld [vmem:[%s1 + $0xe8] sm:$0xff]
    %v185 = vld [vmem:[%s0 + $0x1] sm:$0xff]
    %v186 = vld [vmem:[%s0 + $0x9] sm:$0x3]
    %v187 = vpack.c.bf16 %v186, %v185
    %s188 = scalar_lea.vmem %s1, 240
    %v189 = vld [vmem:[%s188] sm:$0xff]
    %v190 = vld [vmem:[%s188 + $0x8] sm:$0xff]
    %v191 = vld [vmem:[%s188 + $0x10] sm:$0xff]
    %v192 = vld [vmem:[%s188 + $0x18] sm:$0xff]
    %v193 = vld [vmem:[%s188 + $0x20] sm:$0xff]
    %v194 = vld [vmem:[%s188 + $0x28] sm:$0xff]
    %v195 = vld [vmem:[%s188 + $0x30] sm:$0xff]
    %v196 = vld [vmem:[%s188 + $0x38] sm:$0xff]
    %v197 = vld [vmem:[%s188 + $0x40] sm:$0xff]
    %v198 = vld [vmem:[%s188 + $0x48] sm:$0xff]
    %v199 = vld [vmem:[%s188 + $0x50] sm:$0xff]
    %v200 = vld [vmem:[%s188 + $0x58] sm:$0xff]
    %v201 = vld [vmem:[%s188 + $0x60] sm:$0xff]
    %v202 = vld [vmem:[%s188 + $0x68] sm:$0xff]
    %v203 = vld [vmem:[%s188 + $0x70] sm:$0xff]
    %v204 = vld [vmem:[%s188 + $0x78] sm:$0xff]
    %v205 = vld [vmem:[%s188 + $0x80] sm:$0xff]
    %v206 = vld [vmem:[%s188 + $0x88] sm:$0xff]
    %v207 = vld [vmem:[%s188 + $0x90] sm:$0xff]
    %v208 = vld [vmem:[%s188 + $0x98] sm:$0xff]
    %v209 = vld [vmem:[%s188 + $0xa0] sm:$0xff]
    %v210 = vld [vmem:[%s188 + $0xa8] sm:$0xff]
    %v211 = vld [vmem:[%s188 + $0xb0] sm:$0xff]
    %v212 = vld [vmem:[%s188 + $0xb8] sm:$0xff]
    %v213 = vld [vmem:[%s188 + $0xc0] sm:$0xff]
    %v214 = vld [vmem:[%s188 + $0xc8] sm:$0xff]
    %v215 = vld [vmem:[%s188 + $0xd0] sm:$0xff]
    %v216 = vld [vmem:[%s188 + $0xd8] sm:$0xff]
    %v217 = vld [vmem:[%s188 + $0xe0] sm:$0xff]
    %v218 = vld [vmem:[%s188 + $0xe8] sm:$0xff]
    %v249 = vunpack.c.l.b16 %v189
    %v250 = vunpack.c.h.b16 %v189
    %v251 = vunpack.c.l.b16 %v190
    %v252 = vunpack.c.h.b16 %v190
    %v253 = vunpack.c.l.b16 %v191
    %v254 = vunpack.c.h.b16 %v191
    %v255 = vunpack.c.l.b16 %v192
    %v256 = vunpack.c.h.b16 %v192
    %v257 = vunpack.c.l.b16 %v193
    %v258 = vunpack.c.h.b16 %v193
    %v259 = vunpack.c.l.b16 %v194
    %v260 = vunpack.c.h.b16 %v194
    %v261 = vunpack.c.l.b16 %v195
    %v262 = vunpack.c.h.b16 %v195
    %v263 = vunpack.c.l.b16 %v196
    %v264 = vunpack.c.h.b16 %v196
    %v265 = vunpack.c.l.b16 %v197
    %v266 = vunpack.c.h.b16 %v197
    %v267 = vunpack.c.l.b16 %v198
    %v268 = vunpack.c.h.b16 %v198
    %v269 = vunpack.c.l.b16 %v199
    %v270 = vunpack.c.h.b16 %v199
    %v271 = vunpack.c.l.b16 %v200
    %v272 = vunpack.c.h.b16 %v200
    %v273 = vunpack.c.l.b16 %v201
    %v274 = vunpack.c.h.b16 %v201
    %v275 = vunpack.c.l.b16 %v202
    %v276 = vunpack.c.h.b16 %v202
    %v277 = vunpack.c.l.b16 %v203
    %v278 = vunpack.c.h.b16 %v203
    %v279 = vunpack.c.l.b16 %v204
    %v280 = vunpack.c.h.b16 %v204
    %v281 = vunpack.c.l.b16 %v205
    %v282 = vunpack.c.h.b16 %v205
    %v283 = vunpack.c.l.b16 %v206
    %v284 = vunpack.c.h.b16 %v206
    %v285 = vunpack.c.l.b16 %v207
    %v286 = vunpack.c.h.b16 %v207
    %v287 = vunpack.c.l.b16 %v208
    %v288 = vunpack.c.h.b16 %v208
    %v289 = vunpack.c.l.b16 %v209
    %v290 = vunpack.c.h.b16 %v209
    %v291 = vunpack.c.l.b16 %v210
    %v292 = vunpack.c.h.b16 %v210
    %v293 = vunpack.c.l.b16 %v211
    %v294 = vunpack.c.h.b16 %v211
    %v295 = vunpack.c.l.b16 %v212
    %v296 = vunpack.c.h.b16 %v212
    %v297 = vunpack.c.l.b16 %v213
    %v298 = vunpack.c.h.b16 %v213
    %v299 = vunpack.c.l.b16 %v214
    %v300 = vunpack.c.h.b16 %v214
    %v301 = vunpack.c.l.b16 %v215
    %v302 = vunpack.c.h.b16 %v215
    %v303 = vunpack.c.l.b16 %v216
    %v304 = vunpack.c.h.b16 %v216
    %v305 = vunpack.c.l.b16 %v217
    %v306 = vunpack.c.h.b16 %v217
    %v307 = vunpack.c.l.b16 %v218
    %v308 = vunpack.c.h.b16 %v218
    %v309 = vpack.c.b16 %v261, %v249
    %v310 = vpack.c.b16 %v262, %v250
    %v311 = vpack.c.b16 %v263, %v251
    %v312 = vpack.c.b16 %v264, %v252
    %v313 = vpack.c.b16 %v265, %v253
    %v314 = vpack.c.b16 %v266, %v254
    %v315 = vpack.c.b16 %v267, %v255
    %v316 = vpack.c.b16 %v268, %v256
    %v317 = vpack.c.b16 %v269, %v257
    %v318 = vpack.c.b16 %v270, %v258
    %v319 = vpack.c.b16 %v271, %v259
    %v320 = vpack.c.b16 %v272, %v260
    %v321 = vpack.c.b16 %v285, %v273
    %v322 = vpack.c.b16 %v286, %v274
    %v323 = vpack.c.b16 %v287, %v275
    %v324 = vpack.c.b16 %v288, %v276
    %v325 = vpack.c.b16 %v289, %v277
    %v326 = vpack.c.b16 %v290, %v278
    %v327 = vpack.c.b16 %v291, %v279
    %v328 = vpack.c.b16 %v292, %v280
    %v329 = vpack.c.b16 %v293, %v281
    %v330 = vpack.c.b16 %v294, %v282
    %v331 = vpack.c.b16 %v295, %v283
    %v332 = vpack.c.b16 %v296, %v284
    %v333 = vpack.c.b16 %v297, %v297
    %v334 = vpack.c.b16 %v298, %v298
    %v335 = vpack.c.b16 %v299, %v299
    %v336 = vpack.c.b16 %v300, %v300
    %v337 = vpack.c.b16 %v301, %v301
    %v338 = vpack.c.b16 %v302, %v302
    %v339 = vpack.c.b16 %v303, %v303
    %v340 = vpack.c.b16 %v304, %v304
    %v341 = vpack.c.b16 %v305, %v305
    %v342 = vpack.c.b16 %v306, %v306
    %v343 = vpack.c.b16 %v307, %v307
    %v344 = vpack.c.b16 %v308, %v308
    %vm369 = vcmask 318464
    %v371 = vsel %vm369, %v187, 0
    %vm373 = vcmask 1042432
    %vm374 = vcmask 1043456
    %v375 = vsel %vm373, 4294967295, 65535
    %v376 = vsel %vm374, %v375, 0
    %v378 = vand.u32 %v333, %v376
    %v381 = vand.u32 %v334, %v376
    %v384 = vand.u32 %v335, %v376
    %v387 = vand.u32 %v336, %v376
    %v390 = vand.u32 %v337, %v376
    %v393 = vand.u32 %v338, %v376
    %v396 = vand.u32 %v339, %v376
    %v399 = vand.u32 %v340, %v376
    %v402 = vand.u32 %v341, %v376
    %v405 = vand.u32 %v342, %v376
    %v408 = vand.u32 %v343, %v376
    %v411 = vand.u32 %v344, %v376
    %413 = vmatprep.subr.bf16.mxu0 %v310
    %414 = vmatpush1.bf16.msra.mxu0 %v309
    %415 = vmatprep.subr.bf16.mxu0 %v322
    %416 = vmatpush1.bf16.msra.mxu0 %v321
    %417 = vmatprep.subr.bf16.mxu0 %v381
    %418 = vmatpush1.bf16.msra.mxu0 %v378
    %419 = vmatprep.subr.bf16.mxu0 0
    %420 = vmatpush1.bf16.msra.mxu0 0
    %421 = vmatprep.subr.bf16.mxu0 0
    %422 = vmatpush1.bf16.msra.mxu0 0
    %423 = vmatprep.subr.bf16.mxu0 0
    %424 = vmatpush1.bf16.msra.mxu0 0
    %425 = vmatprep.subr.bf16.mxu0 0
    %426 = vmatpush1.bf16.msra.mxu0 0
    %427 = vmatprep.subr.bf16.mxu0 0
    %428 = vmatpush1.bf16.msra.mxu0 0
    %429 = vmatprep.subr.bf16.mxu0 0
    %430 = vmatpush1.bf16.msra.mxu0 0
    %431 = vmatprep.subr.bf16.mxu0 0
    %432 = vmatpush1.bf16.msra.mxu0 0
    %433 = vmatprep.subr.bf16.mxu0 0
    %434 = vmatpush1.bf16.msra.mxu0 0
    %435 = vmatprep.subr.bf16.mxu0 0
    %436 = vmatpush1.bf16.msra.mxu0 0
    %437 = vmatprep.subr.bf16.mxu0 0
    %438 = vmatpush1.bf16.msra.mxu0 0
    %439 = vmatprep.subr.bf16.mxu0 0
    %440 = vmatpush1.bf16.msra.mxu0 0
    %441 = vmatprep.subr.bf16.mxu0 0
    %442 = vmatpush1.bf16.msra.mxu0 0
    %443 = vmatprep.subr.bf16.mxu0 0
    %444 = vmatpush1.bf16.msra.mxu0 0
    %445 = vmatprep.mubr.bf16.mxu0 0
    %446 = vmatmul.mubr.bf16.gmra.mrb[0].mxu0 %v371
    %v447 = vpop.f32.mrb[0].mxu0
    %v448 = vadd.f32 0.0, %v447
    %v449 = vpop.f32.mrb[0].mxu0
    %v450 = vadd.f32 0.0, %v449
    %v451 = vpop.f32.mrb[0].mxu0
    %v452 = vadd.f32 0.0, %v451
    %v453 = vpop.f32.mrb[0].mxu0
    %v454 = vadd.f32 0.0, %v453
    %455 = vdwg.mxu0
    %456 = vmatprep.subr.bf16.mxu0 %v312
    %457 = vmatpush1.bf16.msra.mxu0 %v311
    %458 = vmatprep.subr.bf16.mxu0 %v324
    %459 = vmatpush1.bf16.msra.mxu0 %v323
    %460 = vmatprep.subr.bf16.mxu0 %v387
    %461 = vmatpush1.bf16.msra.mxu0 %v384
    %462 = vmatprep.subr.bf16.mxu0 0
    %463 = vmatpush1.bf16.msra.mxu0 0
    %464 = vmatprep.subr.bf16.mxu0 0
    %465 = vmatpush1.bf16.msra.mxu0 0
    %466 = vmatprep.subr.bf16.mxu0 0
    %467 = vmatpush1.bf16.msra.mxu0 0
    %468 = vmatprep.subr.bf16.mxu0 0
    %469 = vmatpush1.bf16.msra.mxu0 0
    %470 = vmatprep.subr.bf16.mxu0 0
    %471 = vmatpush1.bf16.msra.mxu0 0
    %472 = vmatprep.subr.bf16.mxu0 0
    %473 = vmatpush1.bf16.msra.mxu0 0
    %474 = vmatprep.subr.bf16.mxu0 0
    %475 = vmatpush1.bf16.msra.mxu0 0
    %476 = vmatprep.subr.bf16.mxu0 0
    %477 = vmatpush1.bf16.msra.mxu0 0
    %478 = vmatprep.subr.bf16.mxu0 0
    %479 = vmatpush1.bf16.msra.mxu0 0
    %480 = vmatprep.subr.bf16.mxu0 0
    %481 = vmatpush1.bf16.msra.mxu0 0
    %482 = vmatprep.subr.bf16.mxu0 0
    %483 = vmatpush1.bf16.msra.mxu0 0
    %484 = vmatprep.subr.bf16.mxu0 0
    %485 = vmatpush1.bf16.msra.mxu0 0
    %486 = vmatprep.subr.bf16.mxu0 0
    %487 = vmatpush1.bf16.msra.mxu0 0
    %488 = vmatprep.mubr.bf16.mxu0 0
    %489 = vmatmul.mubr.bf16.gmra.mrb[0].mxu0 %v371
    %v490 = vpop.f32.mrb[0].mxu0
    %v491 = vadd.f32 0.0, %v490
    %v492 = vpop.f32.mrb[0].mxu0
    %v493 = vadd.f32 0.0, %v492
    %v494 = vpop.f32.mrb[0].mxu0
    %v495 = vadd.f32 0.0, %v494
    %v496 = vpop.f32.mrb[0].mxu0
    %v497 = vadd.f32 0.0, %v496
    %498 = vdwg.mxu0
    %499 = vmatprep.subr.bf16.mxu0 %v314
    %500 = vmatpush1.bf16.msra.mxu0 %v313
    %501 = vmatprep.subr.bf16.mxu0 %v326
    %502 = vmatpush1.bf16.msra.mxu0 %v325
    %503 = vmatprep.subr.bf16.mxu0 %v393
    %504 = vmatpush1.bf16.msra.mxu0 %v390
    %505 = vmatprep.subr.bf16.mxu0 0
    %506 = vmatpush1.bf16.msra.mxu0 0
    %507 = vmatprep.subr.bf16.mxu0 0
    %508 = vmatpush1.bf16.msra.mxu0 0
    %509 = vmatprep.subr.bf16.mxu0 0
    %510 = vmatpush1.bf16.msra.mxu0 0
    %511 = vmatprep.subr.bf16.mxu0 0
    %512 = vmatpush1.bf16.msra.mxu0 0
    %513 = vmatprep.subr.bf16.mxu0 0
    %514 = vmatpush1.bf16.msra.mxu0 0
    %515 = vmatprep.subr.bf16.mxu0 0
    %516 = vmatpush1.bf16.msra.mxu0 0
    %517 = vmatprep.subr.bf16.mxu0 0
    %518 = vmatpush1.bf16.msra.mxu0 0
    %519 = vmatprep.subr.bf16.mxu0 0
    %520 = vmatpush1.bf16.msra.mxu0 0
    %521 = vmatprep.subr.bf16.mxu0 0
    %522 = vmatpush1.bf16.msra.mxu0 0
    %523 = vmatprep.subr.bf16.mxu0 0
    %524 = vmatpush1.bf16.msra.mxu0 0
    %525 = vmatprep.subr.bf16.mxu0 0
    %526 = vmatpush1.bf16.msra.mxu0 0
    %527 = vmatprep.subr.bf16.mxu0 0
    %528 = vmatpush1.bf16.msra.mxu0 0
    %529 = vmatprep.subr.bf16.mxu0 0
    %530 = vmatpush1.bf16.msra.mxu0 0
    %531 = vmatprep.mubr.bf16.mxu0 0
    %532 = vmatmul.mubr.bf16.gmra.mrb[0].mxu0 %v371
    %v533 = vpop.f32.mrb[0].mxu0
    %v534 = vadd.f32 0.0, %v533
    %v535 = vpop.f32.mrb[0].mxu0
    %v536 = vadd.f32 0.0, %v535
    %v537 = vpop.f32.mrb[0].mxu0
    %v538 = vadd.f32 0.0, %v537
    %v539 = vpop.f32.mrb[0].mxu0
    %v540 = vadd.f32 0.0, %v539
    %541 = vdwg.mxu0
    %542 = vmatprep.subr.bf16.mxu0 %v316
    %543 = vmatpush1.bf16.msra.mxu0 %v315
    %544 = vmatprep.subr.bf16.mxu0 %v328
    %545 = vmatpush1.bf16.msra.mxu0 %v327
    %546 = vmatprep.subr.bf16.mxu0 %v399
    %547 = vmatpush1.bf16.msra.mxu0 %v396
    %548 = vmatprep.subr.bf16.mxu0 0
    %549 = vmatpush1.bf16.msra.mxu0 0
    %550 = vmatprep.subr.bf16.mxu0 0
    %551 = vmatpush1.bf16.msra.mxu0 0
    %552 = vmatprep.subr.bf16.mxu0 0
    %553 = vmatpush1.bf16.msra.mxu0 0
    %554 = vmatprep.subr.bf16.mxu0 0
    %555 = vmatpush1.bf16.msra.mxu0 0
    %556 = vmatprep.subr.bf16.mxu0 0
    %557 = vmatpush1.bf16.msra.mxu0 0
    %558 = vmatprep.subr.bf16.mxu0 0
    %559 = vmatpush1.bf16.msra.mxu0 0
    %560 = vmatprep.subr.bf16.mxu0 0
    %561 = vmatpush1.bf16.msra.mxu0 0
    %562 = vmatprep.subr.bf16.mxu0 0
    %563 = vmatpush1.bf16.msra.mxu0 0
    %564 = vmatprep.subr.bf16.mxu0 0
    %565 = vmatpush1.bf16.msra.mxu0 0
    %566 = vmatprep.subr.bf16.mxu0 0
    %567 = vmatpush1.bf16.msra.mxu0 0
    %568 = vmatprep.subr.bf16.mxu0 0
    %569 = vmatpush1.bf16.msra.mxu0 0
    %570 = vmatprep.subr.bf16.mxu0 0
    %571 = vmatpush1.bf16.msra.mxu0 0
    %572 = vmatprep.subr.bf16.mxu0 0
    %573 = vmatpush1.bf16.msra.mxu0 0
    %574 = vmatprep.mubr.bf16.mxu0 0
    %575 = vmatmul.mubr.bf16.gmra.mrb[0].mxu0 %v371
    %v576 = vpop.f32.mrb[0].mxu0
    %v577 = vadd.f32 0.0, %v576
    %v578 = vpop.f32.mrb[0].mxu0
    %v579 = vadd.f32 0.0, %v578
    %v580 = vpop.f32.mrb[0].mxu0
    %v581 = vadd.f32 0.0, %v580
    %v582 = vpop.f32.mrb[0].mxu0
    %v583 = vadd.f32 0.0, %v582
    %584 = vdwg.mxu0
    %585 = vmatprep.subr.bf16.mxu0 %v318
    %586 = vmatpush1.bf16.msra.mxu0 %v317
    %587 = vmatprep.subr.bf16.mxu0 %v330
    %588 = vmatpush1.bf16.msra.mxu0 %v329
    %589 = vmatprep.subr.bf16.mxu0 %v405
    %590 = vmatpush1.bf16.msra.mxu0 %v402
    %591 = vmatprep.subr.bf16.mxu0 0
    %592 = vmatpush1.bf16.msra.mxu0 0
    %593 = vmatprep.subr.bf16.mxu0 0
    %594 = vmatpush1.bf16.msra.mxu0 0
    %595 = vmatprep.subr.bf16.mxu0 0
    %596 = vmatpush1.bf16.msra.mxu0 0
    %597 = vmatprep.subr.bf16.mxu0 0
    %598 = vmatpush1.bf16.msra.mxu0 0
    %599 = vmatprep.subr.bf16.mxu0 0
    %600 = vmatpush1.bf16.msra.mxu0 0
    %601 = vmatprep.subr.bf16.mxu0 0
    %602 = vmatpush1.bf16.msra.mxu0 0
    %603 = vmatprep.subr.bf16.mxu0 0
    %604 = vmatpush1.bf16.msra.mxu0 0
    %605 = vmatprep.subr.bf16.mxu0 0
    %606 = vmatpush1.bf16.msra.mxu0 0
    %607 = vmatprep.subr.bf16.mxu0 0
    %608 = vmatpush1.bf16.msra.mxu0 0
    %609 = vmatprep.subr.bf16.mxu0 0
    %610 = vmatpush1.bf16.msra.mxu0 0
    %611 = vmatprep.subr.bf16.mxu0 0
    %612 = vmatpush1.bf16.msra.mxu0 0
    %613 = vmatprep.subr.bf16.mxu0 0
    %614 = vmatpush1.bf16.msra.mxu0 0
    %615 = vmatprep.subr.bf16.mxu0 0
    %616 = vmatpush1.bf16.msra.mxu0 0
    %617 = vmatprep.mubr.bf16.mxu0 0
    %618 = vmatmul.mubr.bf16.gmra.mrb[0].mxu0 %v371
    %v619 = vpop.f32.mrb[0].mxu0
    %v620 = vadd.f32 0.0, %v619
    %v621 = vpop.f32.mrb[0].mxu0
    %v622 = vadd.f32 0.0, %v621
    %v623 = vpop.f32.mrb[0].mxu0
    %v624 = vadd.f32 0.0, %v623
    %v625 = vpop.f32.mrb[0].mxu0
    %v626 = vadd.f32 0.0, %v625
    %627 = vdwg.mxu0
    %628 = vmatprep.subr.bf16.mxu0 %v320
    %629 = vmatpush1.bf16.msra.mxu0 %v319
    %630 = vmatprep.subr.bf16.mxu0 %v332
    %631 = vmatpush1.bf16.msra.mxu0 %v331
    %632 = vmatprep.subr.bf16.mxu0 %v411
    %633 = vmatpush1.bf16.msra.mxu0 %v408
    %634 = vmatprep.subr.bf16.mxu0 0
    %635 = vmatpush1.bf16.msra.mxu0 0
    %636 = vmatprep.subr.bf16.mxu0 0
    %637 = vmatpush1.bf16.msra.mxu0 0
    %638 = vmatprep.subr.bf16.mxu0 0
    %639 = vmatpush1.bf16.msra.mxu0 0
    %640 = vmatprep.subr.bf16.mxu0 0
    %641 = vmatpush1.bf16.msra.mxu0 0
    %642 = vmatprep.subr.bf16.mxu0 0
    %643 = vmatpush1.bf16.msra.mxu0 0
    %644 = vmatprep.subr.bf16.mxu0 0
    %645 = vmatpush1.bf16.msra.mxu0 0
    %646 = vmatprep.subr.bf16.mxu0 0
    %647 = vmatpush1.bf16.msra.mxu0 0
    %648 = vmatprep.subr.bf16.mxu0 0
    %649 = vmatpush1.bf16.msra.mxu0 0
    %650 = vmatprep.subr.bf16.mxu0 0
    %651 = vmatpush1.bf16.msra.mxu0 0
    %652 = vmatprep.subr.bf16.mxu0 0
    %653 = vmatpush1.bf16.msra.mxu0 0
    %654 = vmatprep.subr.bf16.mxu0 0
    %655 = vmatpush1.bf16.msra.mxu0 0
    %656 = vmatprep.subr.bf16.mxu0 0
    %657 = vmatpush1.bf16.msra.mxu0 0
    %658 = vmatprep.subr.bf16.mxu0 0
    %659 = vmatpush1.bf16.msra.mxu0 0
    %660 = vmatprep.mubr.bf16.mxu0 0
    %661 = vmatmul.mubr.bf16.gmra.mrb[0].mxu0 %v371
    %v662 = vpop.f32.mrb[0].mxu0
    %v663 = vadd.f32 0.0, %v662
    %v664 = vpop.f32.mrb[0].mxu0
    %v665 = vadd.f32 0.0, %v664
    %v666 = vpop.f32.mrb[0].mxu0
    %v667 = vadd.f32 0.0, %v666
    %v668 = vpop.f32.mrb[0].mxu0
    %v669 = vadd.f32 0.0, %v668
    %670 = vdwg.mxu0
    %v701 = vunpack.c.l.b16 %v155
    %v702 = vunpack.c.h.b16 %v155
    %v703 = vunpack.c.l.b16 %v156
    %v704 = vunpack.c.h.b16 %v156
    %v705 = vunpack.c.l.b16 %v157
    %v706 = vunpack.c.h.b16 %v157
    %v707 = vunpack.c.l.b16 %v158
    %v708 = vunpack.c.h.b16 %v158
    %v709 = vunpack.c.l.b16 %v159
    %v710 = vunpack.c.h.b16 %v159
    %v711 = vunpack.c.l.b16 %v160
    %v712 = vunpack.c.h.b16 %v160
    %v713 = vunpack.c.l.b16 %v161
    %v714 = vunpack.c.h.b16 %v161
    %v715 = vunpack.c.l.b16 %v162
    %v716 = vunpack.c.h.b16 %v162
    %v717 = vunpack.c.l.b16 %v163
    %v718 = vunpack.c.h.b16 %v163
    %v719 = vunpack.c.l.b16 %v164
    %v720 = vunpack.c.h.b16 %v164
    %v721 = vunpack.c.l.b16 %v165
    %v722 = vunpack.c.h.b16 %v165
    %v723 = vunpack.c.l.b16 %v166
    %v724 = vunpack.c.h.b16 %v166
    %v725 = vunpack.c.l.b16 %v167
    %v726 = vunpack.c.h.b16 %v167
    %v727 = vunpack.c.l.b16 %v168
    %v728 = vunpack.c.h.b16 %v168
    %v729 = vunpack.c.l.b16 %v169
    %v730 = vunpack.c.h.b16 %v169
    %v731 = vunpack.c.l.b16 %v170
    %v732 = vunpack.c.h.b16 %v170
    %v733 = vunpack.c.l.b16 %v171
    %v734 = vunpack.c.h.b16 %v171
    %v735 = vunpack.c.l.b16 %v172
    %v736 = vunpack.c.h.b16 %v172
    %v737 = vunpack.c.l.b16 %v173
    %v738 = vunpack.c.h.b16 %v173
    %v739 = vunpack.c.l.b16 %v174
    %v740 = vunpack.c.h.b16 %v174
    %v741 = vunpack.c.l.b16 %v175
    %v742 = vunpack.c.h.b16 %v175
    %v743 = vunpack.c.l.b16 %v176
    %v744 = vunpack.c.h.b16 %v176
    %v745 = vunpack.c.l.b16 %v177
    %v746 = vunpack.c.h.b16 %v177
    %v747 = vunpack.c.l.b16 %v178
    %v748 = vunpack.c.h.b16 %v178
    %v749 = vunpack.c.l.b16 %v179
    %v750 = vunpack.c.h.b16 %v179
    %v751 = vunpack.c.l.b16 %v180
    %v752 = vunpack.c.h.b16 %v180
    %v753 = vunpack.c.l.b16 %v181
    %v754 = vunpack.c.h.b16 %v181
    %v755 = vunpack.c.l.b16 %v182
    %v756 = vunpack.c.h.b16 %v182
    %v757 = vunpack.c.l.b16 %v183
    %v758 = vunpack.c.h.b16 %v183
    %v759 = vunpack.c.l.b16 %v184
    %v760 = vunpack.c.h.b16 %v184
    %v761 = vpack.c.b16 %v713, %v701
    %v762 = vpack.c.b16 %v714, %v702
    %v763 = vpack.c.b16 %v715, %v703
    %v764 = vpack.c.b16 %v716, %v704
    %v765 = vpack.c.b16 %v717, %v705
    %v766 = vpack.c.b16 %v718, %v706
    %v767 = vpack.c.b16 %v719, %v707
    %v768 = vpack.c.b16 %v720, %v708
    %v769 = vpack.c.b16 %v721, %v709
    %v770 = vpack.c.b16 %v722, %v710
    %v771 = vpack.c.b16 %v723, %v711
    %v772 = vpack.c.b16 %v724, %v712
    %v773 = vpack.c.b16 %v737, %v725
    %v774 = vpack.c.b16 %v738, %v726
    %v775 = vpack.c.b16 %v739, %v727
    %v776 = vpack.c.b16 %v740, %v728
    %v777 = vpack.c.b16 %v741, %v729
    %v778 = vpack.c.b16 %v742, %v730
    %v779 = vpack.c.b16 %v743, %v731
    %v780 = vpack.c.b16 %v744, %v732
    %v781 = vpack.c.b16 %v745, %v733
    %v782 = vpack.c.b16 %v746, %v734
    %v783 = vpack.c.b16 %v747, %v735
    %v784 = vpack.c.b16 %v748, %v736
    %v785 = vpack.c.b16 %v749, %v749
    %v786 = vpack.c.b16 %v750, %v750
    %v787 = vpack.c.b16 %v751, %v751
    %v788 = vpack.c.b16 %v752, %v752
    %v789 = vpack.c.b16 %v753, %v753
    %v790 = vpack.c.b16 %v754, %v754
    %v791 = vpack.c.b16 %v755, %v755
    %v792 = vpack.c.b16 %v756, %v756
    %v793 = vpack.c.b16 %v757, %v757
    %v794 = vpack.c.b16 %v758, %v758
    %v795 = vpack.c.b16 %v759, %v759
    %v796 = vpack.c.b16 %v760, %v760
    %v822 = vsel %vm369, %v154, 0
    %v825 = vand.u32 %v785, %v376
    %v828 = vand.u32 %v786, %v376
    %v831 = vand.u32 %v787, %v376
    %v834 = vand.u32 %v788, %v376
    %v837 = vand.u32 %v789, %v376
    %v840 = vand.u32 %v790, %v376
    %v843 = vand.u32 %v791, %v376
    %v846 = vand.u32 %v792, %v376
    %v849 = vand.u32 %v793, %v376
    %v852 = vand.u32 %v794, %v376
    %v855 = vand.u32 %v795, %v376
    %v858 = vand.u32 %v796, %v376
    %860 = vmatprep.subr.bf16.mxu0 %v762
    %861 = vmatpush1.bf16.msra.mxu0 %v761
    %862 = vmatprep.subr.bf16.mxu0 %v774
    %863 = vmatpush1.bf16.msra.mxu0 %v773
    %864 = vmatprep.subr.bf16.mxu0 %v828
    %865 = vmatpush1.bf16.msra.mxu0 %v825
    %866 = vmatprep.subr.bf16.mxu0 0
    %867 = vmatpush1.bf16.msra.mxu0 0
    %868 = vmatprep.subr.bf16.mxu0 0
    %869 = vmatpush1.bf16.msra.mxu0 0
    %870 = vmatprep.subr.bf16.mxu0 0
    %871 = vmatpush1.bf16.msra.mxu0 0
    %872 = vmatprep.subr.bf16.mxu0 0
    %873 = vmatpush1.bf16.msra.mxu0 0
    %874 = vmatprep.subr.bf16.mxu0 0
    %875 = vmatpush1.bf16.msra.mxu0 0
    %876 = vmatprep.subr.bf16.mxu0 0
    %877 = vmatpush1.bf16.msra.mxu0 0
    %878 = vmatprep.subr.bf16.mxu0 0
    %879 = vmatpush1.bf16.msra.mxu0 0
    %880 = vmatprep.subr.bf16.mxu0 0
    %881 = vmatpush1.bf16.msra.mxu0 0
    %882 = vmatprep.subr.bf16.mxu0 0
    %883 = vmatpush1.bf16.msra.mxu0 0
    %884 = vmatprep.subr.bf16.mxu0 0
    %885 = vmatpush1.bf16.msra.mxu0 0
    %886 = vmatprep.subr.bf16.mxu0 0
    %887 = vmatpush1.bf16.msra.mxu0 0
    %888 = vmatprep.subr.bf16.mxu0 0
    %889 = vmatpush1.bf16.msra.mxu0 0
    %890 = vmatprep.subr.bf16.mxu0 0
    %891 = vmatpush1.bf16.msra.mxu0 0
    %892 = vmatprep.mubr.bf16.mxu0 0
    %893 = vmatmul.mubr.bf16.gmra.mrb[0].mxu0 %v822
    %v894 = vpop.f32.mrb[0].mxu0
    %v895 = vadd.f32 %v448, %v894
    %v896 = vpop.f32.mrb[0].mxu0
    %v897 = vadd.f32 %v450, %v896
    %v898 = vpop.f32.mrb[0].mxu0
    %v899 = vadd.f32 %v452, %v898
    %v900 = vpop.f32.mrb[0].mxu0
    %v901 = vadd.f32 %v454, %v900
    %902 = vdwg.mxu0
    %903 = vmatprep.subr.bf16.mxu0 %v764
    %904 = vmatpush1.bf16.msra.mxu0 %v763
    %905 = vmatprep.subr.bf16.mxu0 %v776
    %906 = vmatpush1.bf16.msra.mxu0 %v775
    %907 = vmatprep.subr.bf16.mxu0 %v834
    %908 = vmatpush1.bf16.msra.mxu0 %v831
    %909 = vmatprep.subr.bf16.mxu0 0
    %910 = vmatpush1.bf16.msra.mxu0 0
    %911 = vmatprep.subr.bf16.mxu0 0
    %912 = vmatpush1.bf16.msra.mxu0 0
    %913 = vmatprep.subr.bf16.mxu0 0
    %914 = vmatpush1.bf16.msra.mxu0 0
    %915 = vmatprep.subr.bf16.mxu0 0
    %916 = vmatpush1.bf16.msra.mxu0 0
    %917 = vmatprep.subr.bf16.mxu0 0
    %918 = vmatpush1.bf16.msra.mxu0 0
    %919 = vmatprep.subr.bf16.mxu0 0
    %920 = vmatpush1.bf16.msra.mxu0 0
    %921 = vmatprep.subr.bf16.mxu0 0
    %922 = vmatpush1.bf16.msra.mxu0 0
    %923 = vmatprep.subr.bf16.mxu0 0
    %924 = vmatpush1.bf16.msra.mxu0 0
    %925 = vmatprep.subr.bf16.mxu0 0
    %926 = vmatpush1.bf16.msra.mxu0 0
    %927 = vmatprep.subr.bf16.mxu0 0
    %928 = vmatpush1.bf16.msra.mxu0 0
    %929 = vmatprep.subr.bf16.mxu0 0
    %930 = vmatpush1.bf16.msra.mxu0 0
    %931 = vmatprep.subr.bf16.mxu0 0
    %932 = vmatpush1.bf16.msra.mxu0 0
    %933 = vmatprep.subr.bf16.mxu0 0
    %934 = vmatpush1.bf16.msra.mxu0 0
    %935 = vmatprep.mubr.bf16.mxu0 0
    %936 = vmatmul.mubr.bf16.gmra.mrb[0].mxu0 %v822
    %v937 = vpop.f32.mrb[0].mxu0
    %v938 = vadd.f32 %v491, %v937
    %v939 = vpop.f32.mrb[0].mxu0
    %v940 = vadd.f32 %v493, %v939
    %v941 = vpop.f32.mrb[0].mxu0
    %v942 = vadd.f32 %v495, %v941
    %v943 = vpop.f32.mrb[0].mxu0
    %v944 = vadd.f32 %v497, %v943
    %945 = vdwg.mxu0
    %946 = vmatprep.subr.bf16.mxu0 %v766
    %947 = vmatpush1.bf16.msra.mxu0 %v765
    %948 = vmatprep.subr.bf16.mxu0 %v778
    %949 = vmatpush1.bf16.msra.mxu0 %v777
    %950 = vmatprep.subr.bf16.mxu0 %v840
    %951 = vmatpush1.bf16.msra.mxu0 %v837
    %952 = vmatprep.subr.bf16.mxu0 0
    %953 = vmatpush1.bf16.msra.mxu0 0
    %954 = vmatprep.subr.bf16.mxu0 0
    %955 = vmatpush1.bf16.msra.mxu0 0
    %956 = vmatprep.subr.bf16.mxu0 0
    %957 = vmatpush1.bf16.msra.mxu0 0
    %958 = vmatprep.subr.bf16.mxu0 0
    %959 = vmatpush1.bf16.msra.mxu0 0
    %960 = vmatprep.subr.bf16.mxu0 0
    %961 = vmatpush1.bf16.msra.mxu0 0
    %962 = vmatprep.subr.bf16.mxu0 0
    %963 = vmatpush1.bf16.msra.mxu0 0
    %964 = vmatprep.subr.bf16.mxu0 0
    %965 = vmatpush1.bf16.msra.mxu0 0
    %966 = vmatprep.subr.bf16.mxu0 0
    %967 = vmatpush1.bf16.msra.mxu0 0
    %968 = vmatprep.subr.bf16.mxu0 0
    %969 = vmatpush1.bf16.msra.mxu0 0
    %970 = vmatprep.subr.bf16.mxu0 0
    %971 = vmatpush1.bf16.msra.mxu0 0
    %972 = vmatprep.subr.bf16.mxu0 0
    %973 = vmatpush1.bf16.msra.mxu0 0
    %974 = vmatprep.subr.bf16.mxu0 0
    %975 = vmatpush1.bf16.msra.mxu0 0
    %976 = vmatprep.subr.bf16.mxu0 0
    %977 = vmatpush1.bf16.msra.mxu0 0
    %978 = vmatprep.mubr.bf16.mxu0 0
    %979 = vmatmul.mubr.bf16.gmra.mrb[0].mxu0 %v822
    %v980 = vpop.f32.mrb[0].mxu0
    %v981 = vadd.f32 %v534, %v980
    %v982 = vpop.f32.mrb[0].mxu0
    %v983 = vadd.f32 %v536, %v982
    %v984 = vpop.f32.mrb[0].mxu0
    %v985 = vadd.f32 %v538, %v984
    %v986 = vpop.f32.mrb[0].mxu0
    %v987 = vadd.f32 %v540, %v986
    %988 = vdwg.mxu0
    %989 = vmatprep.subr.bf16.mxu0 %v768
    %990 = vmatpush1.bf16.msra.mxu0 %v767
    %991 = vmatprep.subr.bf16.mxu0 %v780
    %992 = vmatpush1.bf16.msra.mxu0 %v779
    %993 = vmatprep.subr.bf16.mxu0 %v846
    %994 = vmatpush1.bf16.msra.mxu0 %v843
    %995 = vmatprep.subr.bf16.mxu0 0
    %996 = vmatpush1.bf16.msra.mxu0 0
    %997 = vmatprep.subr.bf16.mxu0 0
    %998 = vmatpush1.bf16.msra.mxu0 0
    %999 = vmatprep.subr.bf16.mxu0 0
    %1000 = vmatpush1.bf16.msra.mxu0 0
    %1001 = vmatprep.subr.bf16.mxu0 0
    %1002 = vmatpush1.bf16.msra.mxu0 0
    %1003 = vmatprep.subr.bf16.mxu0 0
    %1004 = vmatpush1.bf16.msra.mxu0 0
    %1005 = vmatprep.subr.bf16.mxu0 0
    %1006 = vmatpush1.bf16.msra.mxu0 0
    %1007 = vmatprep.subr.bf16.mxu0 0
    %1008 = vmatpush1.bf16.msra.mxu0 0
    %1009 = vmatprep.subr.bf16.mxu0 0
    %1010 = vmatpush1.bf16.msra.mxu0 0
    %1011 = vmatprep.subr.bf16.mxu0 0
    %1012 = vmatpush1.bf16.msra.mxu0 0
    %1013 = vmatprep.subr.bf16.mxu0 0
    %1014 = vmatpush1.bf16.msra.mxu0 0
    %1015 = vmatprep.subr.bf16.mxu0 0
    %1016 = vmatpush1.bf16.msra.mxu0 0
    %1017 = vmatprep.subr.bf16.mxu0 0
    %1018 = vmatpush1.bf16.msra.mxu0 0
    %1019 = vmatprep.subr.bf16.mxu0 0
    %1020 = vmatpush1.bf16.msra.mxu0 0
    %1021 = vmatprep.mubr.bf16.mxu0 0
    %1022 = vmatmul.mubr.bf16.gmra.mrb[0].mxu0 %v822
    %v1023 = vpop.f32.mrb[0].mxu0
    %v1024 = vadd.f32 %v577, %v1023
    %v1025 = vpop.f32.mrb[0].mxu0
    %v1026 = vadd.f32 %v579, %v1025
    %v1027 = vpop.f32.mrb[0].mxu0
    %v1028 = vadd.f32 %v581, %v1027
    %v1029 = vpop.f32.mrb[0].mxu0
    %v1030 = vadd.f32 %v583, %v1029
    %1031 = vdwg.mxu0
    %1032 = vmatprep.subr.bf16.mxu0 %v770
    %1033 = vmatpush1.bf16.msra.mxu0 %v769
    %1034 = vmatprep.subr.bf16.mxu0 %v782
    %1035 = vmatpush1.bf16.msra.mxu0 %v781
    %1036 = vmatprep.subr.bf16.mxu0 %v852
    %1037 = vmatpush1.bf16.msra.mxu0 %v849
    %1038 = vmatprep.subr.bf16.mxu0 0
    %1039 = vmatpush1.bf16.msra.mxu0 0
    %1040 = vmatprep.subr.bf16.mxu0 0
    %1041 = vmatpush1.bf16.msra.mxu0 0
    %1042 = vmatprep.subr.bf16.mxu0 0
    %1043 = vmatpush1.bf16.msra.mxu0 0
    %1044 = vmatprep.subr.bf16.mxu0 0
    %1045 = vmatpush1.bf16.msra.mxu0 0
    %1046 = vmatprep.subr.bf16.mxu0 0
    %1047 = vmatpush1.bf16.msra.mxu0 0
    %1048 = vmatprep.subr.bf16.mxu0 0
    %1049 = vmatpush1.bf16.msra.mxu0 0
    %1050 = vmatprep.subr.bf16.mxu0 0
    %1051 = vmatpush1.bf16.msra.mxu0 0
    %1052 = vmatprep.subr.bf16.mxu0 0
    %1053 = vmatpush1.bf16.msra.mxu0 0
    %1054 = vmatprep.subr.bf16.mxu0 0
    %1055 = vmatpush1.bf16.msra.mxu0 0
    %1056 = vmatprep.subr.bf16.mxu0 0
    %1057 = vmatpush1.bf16.msra.mxu0 0
    %1058 = vmatprep.subr.bf16.mxu0 0
    %1059 = vmatpush1.bf16.msra.mxu0 0
    %1060 = vmatprep.subr.bf16.mxu0 0
    %1061 = vmatpush1.bf16.msra.mxu0 0
    %1062 = vmatprep.subr.bf16.mxu0 0
    %1063 = vmatpush1.bf16.msra.mxu0 0
    %1064 = vmatprep.mubr.bf16.mxu0 0
    %1065 = vmatmul.mubr.bf16.gmra.mrb[0].mxu0 %v822
    %v1066 = vpop.f32.mrb[0].mxu0
    %v1067 = vadd.f32 %v620, %v1066
    %v1068 = vpop.f32.mrb[0].mxu0
    %v1069 = vadd.f32 %v622, %v1068
    %v1070 = vpop.f32.mrb[0].mxu0
    %v1071 = vadd.f32 %v624, %v1070
    %v1072 = vpop.f32.mrb[0].mxu0
    %v1073 = vadd.f32 %v626, %v1072
    %1074 = vdwg.mxu0
    %1075 = vmatprep.subr.bf16.mxu0 %v772
    %1076 = vmatpush1.bf16.msra.mxu0 %v771
    %1077 = vmatprep.subr.bf16.mxu0 %v784
    %1078 = vmatpush1.bf16.msra.mxu0 %v783
    %1079 = vmatprep.subr.bf16.mxu0 %v858
    %1080 = vmatpush1.bf16.msra.mxu0 %v855
    %1081 = vmatprep.subr.bf16.mxu0 0
    %1082 = vmatpush1.bf16.msra.mxu0 0
    %1083 = vmatprep.subr.bf16.mxu0 0
    %1084 = vmatpush1.bf16.msra.mxu0 0
    %1085 = vmatprep.subr.bf16.mxu0 0
    %1086 = vmatpush1.bf16.msra.mxu0 0
    %1087 = vmatprep.subr.bf16.mxu0 0
    %1088 = vmatpush1.bf16.msra.mxu0 0
    %1089 = vmatprep.subr.bf16.mxu0 0
    %1090 = vmatpush1.bf16.msra.mxu0 0
    %1091 = vmatprep.subr.bf16.mxu0 0
    %1092 = vmatpush1.bf16.msra.mxu0 0
    %1093 = vmatprep.subr.bf16.mxu0 0
    %1094 = vmatpush1.bf16.msra.mxu0 0
    %1095 = vmatprep.subr.bf16.mxu0 0
    %1096 = vmatpush1.bf16.msra.mxu0 0
    %1097 = vmatprep.subr.bf16.mxu0 0
    %1098 = vmatpush1.bf16.msra.mxu0 0
    %1099 = vmatprep.subr.bf16.mxu0 0
    %1100 = vmatpush1.bf16.msra.mxu0 0
    %1101 = vmatprep.subr.bf16.mxu0 0
    %1102 = vmatpush1.bf16.msra.mxu0 0
    %1103 = vmatprep.subr.bf16.mxu0 0
    %1104 = vmatpush1.bf16.msra.mxu0 0
    %1105 = vmatprep.subr.bf16.mxu0 0
    %1106 = vmatpush1.bf16.msra.mxu0 0
    %1107 = vmatprep.mubr.bf16.mxu0 0
    %1108 = vmatmul.mubr.bf16.gmra.mrb[0].mxu0 %v822
    %v1109 = vpop.f32.mrb[0].mxu0
    %v1110 = vadd.f32 %v663, %v1109
    %v1111 = vpop.f32.mrb[0].mxu0
    %v1112 = vadd.f32 %v665, %v1111
    %v1113 = vpop.f32.mrb[0].mxu0
    %v1114 = vadd.f32 %v667, %v1113
    %v1115 = vpop.f32.mrb[0].mxu0
    %v1116 = vadd.f32 %v669, %v1115
    %1117 = vdwg.mxu0
    %v1118 = vld [vmem:[%s0 + $0x2] sm:$0xff]
    %v1119 = vld [vmem:[%s0 + $0xa] sm:$0x3]
    %v1120 = vpack.c.bf16 %v1119, %v1118
    %s1121 = scalar_lea.vmem %s1, 480
    %v1122 = vld [vmem:[%s1121] sm:$0xff]
    %v1123 = vld [vmem:[%s1121 + $0x8] sm:$0xff]
    %v1124 = vld [vmem:[%s1121 + $0x10] sm:$0xff]
    %v1125 = vld [vmem:[%s1121 + $0x18] sm:$0xff]
    %v1126 = vld [vmem:[%s1121 + $0x20] sm:$0xff]
    %v1127 = vld [vmem:[%s1121 + $0x28] sm:$0xff]
    %v1128 = vld [vmem:[%s1121 + $0x30] sm:$0xff]
    %v1129 = vld [vmem:[%s1121 + $0x38] sm:$0xff]
    %v1130 = vld [vmem:[%s1121 + $0x40] sm:$0xff]
    %v1131 = vld [vmem:[%s1121 + $0x48] sm:$0xff]
    %v1132 = vld [vmem:[%s1121 + $0x50] sm:$0xff]
    %v1133 = vld [vmem:[%s1121 + $0x58] sm:$0xff]
    %v1134 = vld [vmem:[%s1121 + $0x60] sm:$0xff]
    %v1135 = vld [vmem:[%s1121 + $0x68] sm:$0xff]
    %v1136 = vld [vmem:[%s1121 + $0x70] sm:$0xff]
    %v1137 = vld [vmem:[%s1121 + $0x78] sm:$0xff]
    %v1138 = vld [vmem:[%s1121 + $0x80] sm:$0xff]
    %v1139 = vld [vmem:[%s1121 + $0x88] sm:$0xff]
    %v1140 = vld [vmem:[%s1121 + $0x90] sm:$0xff]
    %v1141 = vld [vmem:[%s1121 + $0x98] sm:$0xff]
    %v1142 = vld [vmem:[%s1121 + $0xa0] sm:$0xff]
    %v1143 = vld [vmem:[%s1121 + $0xa8] sm:$0xff]
    %v1144 = vld [vmem:[%s1121 + $0xb0] sm:$0xff]
    %v1145 = vld [vmem:[%s1121 + $0xb8] sm:$0xff]
    %v1146 = vld [vmem:[%s1121 + $0xc0] sm:$0xff]
    %v1147 = vld [vmem:[%s1121 + $0xc8] sm:$0xff]
    %v1148 = vld [vmem:[%s1121 + $0xd0] sm:$0xff]
    %v1149 = vld [vmem:[%s1121 + $0xd8] sm:$0xff]
    %v1150 = vld [vmem:[%s1121 + $0xe0] sm:$0xff]
    %v1151 = vld [vmem:[%s1121 + $0xe8] sm:$0xff]
    %v1182 = vunpack.c.l.b16 %v1122
    %v1183 = vunpack.c.h.b16 %v1122
    %v1184 = vunpack.c.l.b16 %v1123
    %v1185 = vunpack.c.h.b16 %v1123
    %v1186 = vunpack.c.l.b16 %v1124
    %v1187 = vunpack.c.h.b16 %v1124
    %v1188 = vunpack.c.l.b16 %v1125
    %v1189 = vunpack.c.h.b16 %v1125
    %v1190 = vunpack.c.l.b16 %v1126
    %v1191 = vunpack.c.h.b16 %v1126
    %v1192 = vunpack.c.l.b16 %v1127
    %v1193 = vunpack.c.h.b16 %v1127
    %v1194 = vunpack.c.l.b16 %v1128
    %v1195 = vunpack.c.h.b16 %v1128
    %v1196 = vunpack.c.l.b16 %v1129
    %v1197 = vunpack.c.h.b16 %v1129
    %v1198 = vunpack.c.l.b16 %v1130
    %v1199 = vunpack.c.h.b16 %v1130
    %v1200 = vunpack.c.l.b16 %v1131
    %v1201 = vunpack.c.h.b16 %v1131
    %v1202 = vunpack.c.l.b16 %v1132
    %v1203 = vunpack.c.h.b16 %v1132
    %v1204 = vunpack.c.l.b16 %v1133
    %v1205 = vunpack.c.h.b16 %v1133
    %v1206 = vunpack.c.l.b16 %v1134
    %v1207 = vunpack.c.h.b16 %v1134
    %v1208 = vunpack.c.l.b16 %v1135
    %v1209 = vunpack.c.h.b16 %v1135
    %v1210 = vunpack.c.l.b16 %v1136
    %v1211 = vunpack.c.h.b16 %v1136
    %v1212 = vunpack.c.l.b16 %v1137
    %v1213 = vunpack.c.h.b16 %v1137
    %v1214 = vunpack.c.l.b16 %v1138
    %v1215 = vunpack.c.h.b16 %v1138
    %v1216 = vunpack.c.l.b16 %v1139
    %v1217 = vunpack.c.h.b16 %v1139
    %v1218 = vunpack.c.l.b16 %v1140
    %v1219 = vunpack.c.h.b16 %v1140
    %v1220 = vunpack.c.l.b16 %v1141
    %v1221 = vunpack.c.h.b16 %v1141
    %v1222 = vunpack.c.l.b16 %v1142
    %v1223 = vunpack.c.h.b16 %v1142
    %v1224 = vunpack.c.l.b16 %v1143
    %v1225 = vunpack.c.h.b16 %v1143
    %v1226 = vunpack.c.l.b16 %v1144
    %v1227 = vunpack.c.h.b16 %v1144
    %v1228 = vunpack.c.l.b16 %v1145
    %v1229 = vunpack.c.h.b16 %v1145
    %v1230 = vunpack.c.l.b16 %v1146
    %v1231 = vunpack.c.h.b16 %v1146
    %v1232 = vunpack.c.l.b16 %v1147
    %v1233 = vunpack.c.h.b16 %v1147
    %v1234 = vunpack.c.l.b16 %v1148
    %v1235 = vunpack.c.h.b16 %v1148
    %v1236 = vunpack.c.l.b16 %v1149
    %v1237 = vunpack.c.h.b16 %v1149
    %v1238 = vunpack.c.l.b16 %v1150
    %v1239 = vunpack.c.h.b16 %v1150
    %v1240 = vunpack.c.l.b16 %v1151
    %v1241 = vunpack.c.h.b16 %v1151
    %v1242 = vpack.c.b16 %v1194, %v1182
    %v1243 = vpack.c.b16 %v1195, %v1183
    %v1244 = vpack.c.b16 %v1196, %v1184
    %v1245 = vpack.c.b16 %v1197, %v1185
    %v1246 = vpack.c.b16 %v1198, %v1186
    %v1247 = vpack.c.b16 %v1199, %v1187
    %v1248 = vpack.c.b16 %v1200, %v1188
    %v1249 = vpack.c.b16 %v1201, %v1189
    %v1250 = vpack.c.b16 %v1202, %v1190
    %v1251 = vpack.c.b16 %v1203, %v1191
    %v1252 = vpack.c.b16 %v1204, %v1192
    %v1253 = vpack.c.b16 %v1205, %v1193
    %v1254 = vpack.c.b16 %v1218, %v1206
    %v1255 = vpack.c.b16 %v1219, %v1207
    %v1256 = vpack.c.b16 %v1220, %v1208
    %v1257 = vpack.c.b16 %v1221, %v1209
    %v1258 = vpack.c.b16 %v1222, %v1210
    %v1259 = vpack.c.b16 %v1223, %v1211
    %v1260 = vpack.c.b16 %v1224, %v1212
    %v1261 = vpack.c.b16 %v1225, %v1213
    %v1262 = vpack.c.b16 %v1226, %v1214
    %v1263 = vpack.c.b16 %v1227, %v1215
    %v1264 = vpack.c.b16 %v1228, %v1216
    %v1265 = vpack.c.b16 %v1229, %v1217
    %v1266 = vpack.c.b16 %v1230, %v1230
    %v1267 = vpack.c.b16 %v1231, %v1231
    %v1268 = vpack.c.b16 %v1232, %v1232
    %v1269 = vpack.c.b16 %v1233, %v1233
    %v1270 = vpack.c.b16 %v1234, %v1234
    %v1271 = vpack.c.b16 %v1235, %v1235
    %v1272 = vpack.c.b16 %v1236, %v1236
    %v1273 = vpack.c.b16 %v1237, %v1237
    %v1274 = vpack.c.b16 %v1238, %v1238
    %v1275 = vpack.c.b16 %v1239, %v1239
    %v1276 = vpack.c.b16 %v1240, %v1240
    %v1277 = vpack.c.b16 %v1241, %v1241
    %v1303 = vsel %vm369, %v1120, 0
    %v1306 = vand.u32 %v1266, %v376
    %v1309 = vand.u32 %v1267, %v376
    %v1312 = vand.u32 %v1268, %v376
    %v1315 = vand.u32 %v1269, %v376
    %v1318 = vand.u32 %v1270, %v376
    %v1321 = vand.u32 %v1271, %v376
    %v1324 = vand.u32 %v1272, %v376
    %v1327 = vand.u32 %v1273, %v376
    %v1330 = vand.u32 %v1274, %v376
    %v1333 = vand.u32 %v1275, %v376
    %v1336 = vand.u32 %v1276, %v376
    %v1339 = vand.u32 %v1277, %v376
    %1341 = vmatprep.subr.bf16.mxu0 %v1243
    %1342 = vmatpush1.bf16.msra.mxu0 %v1242
    %1343 = vmatprep.subr.bf16.mxu0 %v1255
    %1344 = vmatpush1.bf16.msra.mxu0 %v1254
    %1345 = vmatprep.subr.bf16.mxu0 %v1309
    %1346 = vmatpush1.bf16.msra.mxu0 %v1306
    %1347 = vmatprep.subr.bf16.mxu0 0
    %1348 = vmatpush1.bf16.msra.mxu0 0
    %1349 = vmatprep.subr.bf16.mxu0 0
    %1350 = vmatpush1.bf16.msra.mxu0 0
    %1351 = vmatprep.subr.bf16.mxu0 0
    %1352 = vmatpush1.bf16.msra.mxu0 0
    %1353 = vmatprep.subr.bf16.mxu0 0
    %1354 = vmatpush1.bf16.msra.mxu0 0
    %1355 = vmatprep.subr.bf16.mxu0 0
    %1356 = vmatpush1.bf16.msra.mxu0 0
    %1357 = vmatprep.subr.bf16.mxu0 0
    %1358 = vmatpush1.bf16.msra.mxu0 0
    %1359 = vmatprep.subr.bf16.mxu0 0
    %1360 = vmatpush1.bf16.msra.mxu0 0
    %1361 = vmatprep.subr.bf16.mxu0 0
    %1362 = vmatpush1.bf16.msra.mxu0 0
    %1363 = vmatprep.subr.bf16.mxu0 0
    %1364 = vmatpush1.bf16.msra.mxu0 0
    %1365 = vmatprep.subr.bf16.mxu0 0
    %1366 = vmatpush1.bf16.msra.mxu0 0
    %1367 = vmatprep.subr.bf16.mxu0 0
    %1368 = vmatpush1.bf16.msra.mxu0 0
    %1369 = vmatprep.subr.bf16.mxu0 0
    %1370 = vmatpush1.bf16.msra.mxu0 0
    %1371 = vmatprep.subr.bf16.mxu0 0
    %1372 = vmatpush1.bf16.msra.mxu0 0
    %1373 = vmatprep.mubr.bf16.mxu0 0
    %1374 = vmatmul.mubr.bf16.gmra.mrb[0].mxu0 %v1303
    %v1375 = vpop.f32.mrb[0].mxu0
    %v1376 = vadd.f32 0.0, %v1375
    %v1377 = vpop.f32.mrb[0].mxu0
    %v1378 = vadd.f32 0.0, %v1377
    %v1379 = vpop.f32.mrb[0].mxu0
    %v1380 = vadd.f32 0.0, %v1379
    %v1381 = vpop.f32.mrb[0].mxu0
    %v1382 = vadd.f32 0.0, %v1381
    %1383 = vdwg.mxu0
    %1384 = vmatprep.subr.bf16.mxu0 %v1245
    %1385 = vmatpush1.bf16.msra.mxu0 %v1244
    %1386 = vmatprep.subr.bf16.mxu0 %v1257
    %1387 = vmatpush1.bf16.msra.mxu0 %v1256
    %1388 = vmatprep.subr.bf16.mxu0 %v1315
    %1389 = vmatpush1.bf16.msra.mxu0 %v1312
    %1390 = vmatprep.subr.bf16.mxu0 0
    %1391 = vmatpush1.bf16.msra.mxu0 0
    %1392 = vmatprep.subr.bf16.mxu0 0
    %1393 = vmatpush1.bf16.msra.mxu0 0
    %1394 = vmatprep.subr.bf16.mxu0 0
    %1395 = vmatpush1.bf16.msra.mxu0 0
    %1396 = vmatprep.subr.bf16.mxu0 0
    %1397 = vmatpush1.bf16.msra.mxu0 0
    %1398 = vmatprep.subr.bf16.mxu0 0
    %1399 = vmatpush1.bf16.msra.mxu0 0
    %1400 = vmatprep.subr.bf16.mxu0 0
    %1401 = vmatpush1.bf16.msra.mxu0 0
    %1402 = vmatprep.subr.bf16.mxu0 0
    %1403 = vmatpush1.bf16.msra.mxu0 0
    %1404 = vmatprep.subr.bf16.mxu0 0
    %1405 = vmatpush1.bf16.msra.mxu0 0
    %1406 = vmatprep.subr.bf16.mxu0 0
    %1407 = vmatpush1.bf16.msra.mxu0 0
    %1408 = vmatprep.subr.bf16.mxu0 0
    %1409 = vmatpush1.bf16.msra.mxu0 0
    %1410 = vmatprep.subr.bf16.mxu0 0
    %1411 = vmatpush1.bf16.msra.mxu0 0
    %1412 = vmatprep.subr.bf16.mxu0 0
    %1413 = vmatpush1.bf16.msra.mxu0 0
    %1414 = vmatprep.subr.bf16.mxu0 0
    %1415 = vmatpush1.bf16.msra.mxu0 0
    %1416 = vmatprep.mubr.bf16.mxu0 0
    %1417 = vmatmul.mubr.bf16.gmra.mrb[0].mxu0 %v1303
    %v1418 = vpop.f32.mrb[0].mxu0
    %v1419 = vadd.f32 0.0, %v1418
    %v1420 = vpop.f32.mrb[0].mxu0
    %v1421 = vadd.f32 0.0, %v1420
    %v1422 = vpop.f32.mrb[0].mxu0
    %v1423 = vadd.f32 0.0, %v1422
    %v1424 = vpop.f32.mrb[0].mxu0
    %v1425 = vadd.f32 0.0, %v1424
    %1426 = vdwg.mxu0
    %1427 = vmatprep.subr.bf16.mxu0 %v1247
    %1428 = vmatpush1.bf16.msra.mxu0 %v1246
    %1429 = vmatprep.subr.bf16.mxu0 %v1259
    %1430 = vmatpush1.bf16.msra.mxu0 %v1258
    %1431 = vmatprep.subr.bf16.mxu0 %v1321
    %1432 = vmatpush1.bf16.msra.mxu0 %v1318
    %1433 = vmatprep.subr.bf16.mxu0 0
    %1434 = vmatpush1.bf16.msra.mxu0 0
    %1435 = vmatprep.subr.bf16.mxu0 0
    %1436 = vmatpush1.bf16.msra.mxu0 0
    %1437 = vmatprep.subr.bf16.mxu0 0
    %1438 = vmatpush1.bf16.msra.mxu0 0
    %1439 = vmatprep.subr.bf16.mxu0 0
    %1440 = vmatpush1.bf16.msra.mxu0 0
    %1441 = vmatprep.subr.bf16.mxu0 0
    %1442 = vmatpush1.bf16.msra.mxu0 0
    %1443 = vmatprep.subr.bf16.mxu0 0
    %1444 = vmatpush1.bf16.msra.mxu0 0
    %1445 = vmatprep.subr.bf16.mxu0 0
    %1446 = vmatpush1.bf16.msra.mxu0 0
    %1447 = vmatprep.subr.bf16.mxu0 0
    %1448 = vmatpush1.bf16.msra.mxu0 0
    %1449 = vmatprep.subr.bf16.mxu0 0
    %1450 = vmatpush1.bf16.msra.mxu0 0
    %1451 = vmatprep.subr.bf16.mxu0 0
    %1452 = vmatpush1.bf16.msra.mxu0 0
    %1453 = vmatprep.subr.bf16.mxu0 0
    %1454 = vmatpush1.bf16.msra.mxu0 0
    %1455 = vmatprep.subr.bf16.mxu0 0
    %1456 = vmatpush1.bf16.msra.mxu0 0
    %1457 = vmatprep.subr.bf16.mxu0 0
    %1458 = vmatpush1.bf16.msra.mxu0 0
    %1459 = vmatprep.mubr.bf16.mxu0 0
    %1460 = vmatmul.mubr.bf16.gmra.mrb[0].mxu0 %v1303
    %v1461 = vpop.f32.mrb[0].mxu0
    %v1462 = vadd.f32 0.0, %v1461
    %v1463 = vpop.f32.mrb[0].mxu0
    %v1464 = vadd.f32 0.0, %v1463
    %v1465 = vpop.f32.mrb[0].mxu0
    %v1466 = vadd.f32 0.0, %v1465
    %v1467 = vpop.f32.mrb[0].mxu0
    %v1468 = vadd.f32 0.0, %v1467
    %1469 = vdwg.mxu0
    %1470 = vmatprep.subr.bf16.mxu0 %v1249
    %1471 = vmatpush1.bf16.msra.mxu0 %v1248
    %1472 = vmatprep.subr.bf16.mxu0 %v1261
    %1473 = vmatpush1.bf16.msra.mxu0 %v1260
    %1474 = vmatprep.subr.bf16.mxu0 %v1327
    %1475 = vmatpush1.bf16.msra.mxu0 %v1324
    %1476 = vmatprep.subr.bf16.mxu0 0
    %1477 = vmatpush1.bf16.msra.mxu0 0
    %1478 = vmatprep.subr.bf16.mxu0 0
    %1479 = vmatpush1.bf16.msra.mxu0 0
    %1480 = vmatprep.subr.bf16.mxu0 0
    %1481 = vmatpush1.bf16.msra.mxu0 0
    %1482 = vmatprep.subr.bf16.mxu0 0
    %1483 = vmatpush1.bf16.msra.mxu0 0
    %1484 = vmatprep.subr.bf16.mxu0 0
    %1485 = vmatpush1.bf16.msra.mxu0 0
    %1486 = vmatprep.subr.bf16.mxu0 0
    %1487 = vmatpush1.bf16.msra.mxu0 0
    %1488 = vmatprep.subr.bf16.mxu0 0
    %1489 = vmatpush1.bf16.msra.mxu0 0
    %1490 = vmatprep.subr.bf16.mxu0 0
    %1491 = vmatpush1.bf16.msra.mxu0 0
    %1492 = vmatprep.subr.bf16.mxu0 0
    %1493 = vmatpush1.bf16.msra.mxu0 0
    %1494 = vmatprep.subr.bf16.mxu0 0
    %1495 = vmatpush1.bf16.msra.mxu0 0
    %1496 = vmatprep.subr.bf16.mxu0 0
    %1497 = vmatpush1.bf16.msra.mxu0 0
    %1498 = vmatprep.subr.bf16.mxu0 0
    %1499 = vmatpush1.bf16.msra.mxu0 0
    %1500 = vmatprep.subr.bf16.mxu0 0
    %1501 = vmatpush1.bf16.msra.mxu0 0
    %1502 = vmatprep.mubr.bf16.mxu0 0
    %1503 = vmatmul.mubr.bf16.gmra.mrb[0].mxu0 %v1303
    %v1504 = vpop.f32.mrb[0].mxu0
    %v1505 = vadd.f32 0.0, %v1504
    %v1506 = vpop.f32.mrb[0].mxu0
    %v1507 = vadd.f32 0.0, %v1506
    %v1508 = vpop.f32.mrb[0].mxu0
    %v1509 = vadd.f32 0.0, %v1508
    %v1510 = vpop.f32.mrb[0].mxu0
    %v1511 = vadd.f32 0.0, %v1510
    %1512 = vdwg.mxu0
    %1513 = vmatprep.subr.bf16.mxu0 %v1251
    %1514 = vmatpush1.bf16.msra.mxu0 %v1250
    %1515 = vmatprep.subr.bf16.mxu0 %v1263
    %1516 = vmatpush1.bf16.msra.mxu0 %v1262
    %1517 = vmatprep.subr.bf16.mxu0 %v1333
    %1518 = vmatpush1.bf16.msra.mxu0 %v1330
    %1519 = vmatprep.subr.bf16.mxu0 0
    %1520 = vmatpush1.bf16.msra.mxu0 0
    %1521 = vmatprep.subr.bf16.mxu0 0
    %1522 = vmatpush1.bf16.msra.mxu0 0
    %1523 = vmatprep.subr.bf16.mxu0 0
    %1524 = vmatpush1.bf16.msra.mxu0 0
    %1525 = vmatprep.subr.bf16.mxu0 0
    %1526 = vmatpush1.bf16.msra.mxu0 0
    %1527 = vmatprep.subr.bf16.mxu0 0
    %1528 = vmatpush1.bf16.msra.mxu0 0
    %1529 = vmatprep.subr.bf16.mxu0 0
    %1530 = vmatpush1.bf16.msra.mxu0 0
    %1531 = vmatprep.subr.bf16.mxu0 0
    %1532 = vmatpush1.bf16.msra.mxu0 0
    %1533 = vmatprep.subr.bf16.mxu0 0
    %1534 = vmatpush1.bf16.msra.mxu0 0
    %1535 = vmatprep.subr.bf16.mxu0 0
    %1536 = vmatpush1.bf16.msra.mxu0 0
    %1537 = vmatprep.subr.bf16.mxu0 0
    %1538 = vmatpush1.bf16.msra.mxu0 0
    %1539 = vmatprep.subr.bf16.mxu0 0
    %1540 = vmatpush1.bf16.msra.mxu0 0
    %1541 = vmatprep.subr.bf16.mxu0 0
    %1542 = vmatpush1.bf16.msra.mxu0 0
    %1543 = vmatprep.subr.bf16.mxu0 0
    %1544 = vmatpush1.bf16.msra.mxu0 0
    %1545 = vmatprep.mubr.bf16.mxu0 0
    %1546 = vmatmul.mubr.bf16.gmra.mrb[0].mxu0 %v1303
    %v1547 = vpop.f32.mrb[0].mxu0
    %v1548 = vadd.f32 0.0, %v1547
    %v1549 = vpop.f32.mrb[0].mxu0
    %v1550 = vadd.f32 0.0, %v1549
    %v1551 = vpop.f32.mrb[0].mxu0
    %v1552 = vadd.f32 0.0, %v1551
    %v1553 = vpop.f32.mrb[0].mxu0
    %v1554 = vadd.f32 0.0, %v1553
    %1555 = vdwg.mxu0
    %1556 = vmatprep.subr.bf16.mxu0 %v1253
    %1557 = vmatpush1.bf16.msra.mxu0 %v1252
    %1558 = vmatprep.subr.bf16.mxu0 %v1265
    %1559 = vmatpush1.bf16.msra.mxu0 %v1264
    %1560 = vmatprep.subr.bf16.mxu0 %v1339
    %1561 = vmatpush1.bf16.msra.mxu0 %v1336
    %1562 = vmatprep.subr.bf16.mxu0 0
    %1563 = vmatpush1.bf16.msra.mxu0 0
    %1564 = vmatprep.subr.bf16.mxu0 0
    %1565 = vmatpush1.bf16.msra.mxu0 0
    %1566 = vmatprep.subr.bf16.mxu0 0
    %1567 = vmatpush1.bf16.msra.mxu0 0
    %1568 = vmatprep.subr.bf16.mxu0 0
    %1569 = vmatpush1.bf16.msra.mxu0 0
    %1570 = vmatprep.subr.bf16.mxu0 0
    %1571 = vmatpush1.bf16.msra.mxu0 0
    %1572 = vmatprep.subr.bf16.mxu0 0
    %1573 = vmatpush1.bf16.msra.mxu0 0
    %1574 = vmatprep.subr.bf16.mxu0 0
    %1575 = vmatpush1.bf16.msra.mxu0 0
    %1576 = vmatprep.subr.bf16.mxu0 0
    %1577 = vmatpush1.bf16.msra.mxu0 0
    %1578 = vmatprep.subr.bf16.mxu0 0
    %1579 = vmatpush1.bf16.msra.mxu0 0
    %1580 = vmatprep.subr.bf16.mxu0 0
    %1581 = vmatpush1.bf16.msra.mxu0 0
    %1582 = vmatprep.subr.bf16.mxu0 0
    %1583 = vmatpush1.bf16.msra.mxu0 0
    %1584 = vmatprep.subr.bf16.mxu0 0
    %1585 = vmatpush1.bf16.msra.mxu0 0
    %1586 = vmatprep.subr.bf16.mxu0 0
    %1587 = vmatpush1.bf16.msra.mxu0 0
    %1588 = vmatprep.mubr.bf16.mxu0 0
    %1589 = vmatmul.mubr.bf16.gmra.mrb[0].mxu0 %v1303
    %v1590 = vpop.f32.mrb[0].mxu0
    %v1591 = vadd.f32 0.0, %v1590
    %v1592 = vpop.f32.mrb[0].mxu0
    %v1593 = vadd.f32 0.0, %v1592
    %v1594 = vpop.f32.mrb[0].mxu0
    %v1595 = vadd.f32 0.0, %v1594
    %v1596 = vpop.f32.mrb[0].mxu0
    %v1597 = vadd.f32 0.0, %v1596
    %1598 = vdwg.mxu0
    %v1599 = vadd.f32 %v895, %v1376
    %v1600 = vadd.f32 %v897, %v1378
    %v1601 = vadd.f32 %v938, %v1419
    %v1602 = vadd.f32 %v940, %v1421
    %v1603 = vadd.f32 %v981, %v1462
    %v1604 = vadd.f32 %v983, %v1464
    %v1605 = vadd.f32 %v1024, %v1505
    %v1606 = vadd.f32 %v1026, %v1507
    %v1607 = vadd.f32 %v1067, %v1548
    %v1608 = vadd.f32 %v1069, %v1550
    %v1609 = vadd.f32 %v1110, %v1591
    %v1610 = vadd.f32 %v1112, %v1593
    %v1611 = vadd.f32 %v899, %v1380
    %v1612 = vadd.f32 %v901, %v1382
    %v1613 = vadd.f32 %v942, %v1423
    %v1614 = vadd.f32 %v944, %v1425
    %v1615 = vadd.f32 %v985, %v1466
    %v1616 = vadd.f32 %v987, %v1468
    %v1617 = vadd.f32 %v1028, %v1509
    %v1618 = vadd.f32 %v1030, %v1511
    %v1619 = vadd.f32 %v1071, %v1552
    %v1620 = vadd.f32 %v1073, %v1554
    %v1621 = vadd.f32 %v1114, %v1595
    %v1622 = vadd.f32 %v1116, %v1597
    %v1623 = vld [vmem:[%s0 + $0x3] sm:$0xff]
    %v1624 = vld [vmem:[%s0 + $0xb] sm:$0x3]
    %v1625 = vpack.c.bf16 %v1624, %v1623
    %s1626 = scalar_lea.vmem %s1, 720
    %v1627 = vld [vmem:[%s1626] sm:$0xff]
    %v1628 = vld [vmem:[%s1626 + $0x8] sm:$0xff]
    %v1629 = vld [vmem:[%s1626 + $0x10] sm:$0xff]
    %v1630 = vld [vmem:[%s1626 + $0x18] sm:$0xff]
    %v1631 = vld [vmem:[%s1626 + $0x20] sm:$0xff]
    %v1632 = vld [vmem:[%s1626 + $0x28] sm:$0xff]
    %v1633 = vld [vmem:[%s1626 + $0x30] sm:$0xff]
    %v1634 = vld [vmem:[%s1626 + $0x38] sm:$0xff]
    %v1635 = vld [vmem:[%s1626 + $0x40] sm:$0xff]
    %v1636 = vld [vmem:[%s1626 + $0x48] sm:$0xff]
    %v1637 = vld [vmem:[%s1626 + $0x50] sm:$0xff]
    %v1638 = vld [vmem:[%s1626 + $0x58] sm:$0xff]
    %v1639 = vld [vmem:[%s1626 + $0x60] sm:$0xff]
    %v1640 = vld [vmem:[%s1626 + $0x68] sm:$0xff]
    %v1641 = vld [vmem:[%s1626 + $0x70] sm:$0xff]
    %v1642 = vld [vmem:[%s1626 + $0x78] sm:$0xff]
    %v1643 = vld [vmem:[%s1626 + $0x80] sm:$0xff]
    %v1644 = vld [vmem:[%s1626 + $0x88] sm:$0xff]
    %v1645 = vld [vmem:[%s1626 + $0x90] sm:$0xff]
    %v1646 = vld [vmem:[%s1626 + $0x98] sm:$0xff]
    %v1647 = vld [vmem:[%s1626 + $0xa0] sm:$0xff]
    %v1648 = vld [vmem:[%s1626 + $0xa8] sm:$0xff]
    %v1649 = vld [vmem:[%s1626 + $0xb0] sm:$0xff]
    %v1650 = vld [vmem:[%s1626 + $0xb8] sm:$0xff]
    %v1651 = vld [vmem:[%s1626 + $0xc0] sm:$0xff]
    %v1652 = vld [vmem:[%s1626 + $0xc8] sm:$0xff]
    %v1653 = vld [vmem:[%s1626 + $0xd0] sm:$0xff]
    %v1654 = vld [vmem:[%s1626 + $0xd8] sm:$0xff]
    %v1655 = vld [vmem:[%s1626 + $0xe0] sm:$0xff]
    %v1656 = vld [vmem:[%s1626 + $0xe8] sm:$0xff]
    %v1687 = vunpack.c.l.b16 %v1627
    %v1688 = vunpack.c.h.b16 %v1627
    %v1689 = vunpack.c.l.b16 %v1628
    %v1690 = vunpack.c.h.b16 %v1628
    %v1691 = vunpack.c.l.b16 %v1629
    %v1692 = vunpack.c.h.b16 %v1629
    %v1693 = vunpack.c.l.b16 %v1630
    %v1694 = vunpack.c.h.b16 %v1630
    %v1695 = vunpack.c.l.b16 %v1631
    %v1696 = vunpack.c.h.b16 %v1631
    %v1697 = vunpack.c.l.b16 %v1632
    %v1698 = vunpack.c.h.b16 %v1632
    %v1699 = vunpack.c.l.b16 %v1633
    %v1700 = vunpack.c.h.b16 %v1633
    %v1701 = vunpack.c.l.b16 %v1634
    %v1702 = vunpack.c.h.b16 %v1634
    %v1703 = vunpack.c.l.b16 %v1635
    %v1704 = vunpack.c.h.b16 %v1635
    %v1705 = vunpack.c.l.b16 %v1636
    %v1706 = vunpack.c.h.b16 %v1636
    %v1707 = vunpack.c.l.b16 %v1637
    %v1708 = vunpack.c.h.b16 %v1637
    %v1709 = vunpack.c.l.b16 %v1638
    %v1710 = vunpack.c.h.b16 %v1638
    %v1711 = vunpack.c.l.b16 %v1639
    %v1712 = vunpack.c.h.b16 %v1639
    %v1713 = vunpack.c.l.b16 %v1640
    %v1714 = vunpack.c.h.b16 %v1640
    %v1715 = vunpack.c.l.b16 %v1641
    %v1716 = vunpack.c.h.b16 %v1641
    %v1717 = vunpack.c.l.b16 %v1642
    %v1718 = vunpack.c.h.b16 %v1642
    %v1719 = vunpack.c.l.b16 %v1643
    %v1720 = vunpack.c.h.b16 %v1643
    %v1721 = vunpack.c.l.b16 %v1644
    %v1722 = vunpack.c.h.b16 %v1644
    %v1723 = vunpack.c.l.b16 %v1645
    %v1724 = vunpack.c.h.b16 %v1645
    %v1725 = vunpack.c.l.b16 %v1646
    %v1726 = vunpack.c.h.b16 %v1646
    %v1727 = vunpack.c.l.b16 %v1647
    %v1728 = vunpack.c.h.b16 %v1647
    %v1729 = vunpack.c.l.b16 %v1648
    %v1730 = vunpack.c.h.b16 %v1648
    %v1731 = vunpack.c.l.b16 %v1649
    %v1732 = vunpack.c.h.b16 %v1649
    %v1733 = vunpack.c.l.b16 %v1650
    %v1734 = vunpack.c.h.b16 %v1650
    %v1735 = vunpack.c.l.b16 %v1651
    %v1736 = vunpack.c.h.b16 %v1651
    %v1737 = vunpack.c.l.b16 %v1652
    %v1738 = vunpack.c.h.b16 %v1652
    %v1739 = vunpack.c.l.b16 %v1653
    %v1740 = vunpack.c.h.b16 %v1653
    %v1741 = vunpack.c.l.b16 %v1654
    %v1742 = vunpack.c.h.b16 %v1654
    %v1743 = vunpack.c.l.b16 %v1655
    %v1744 = vunpack.c.h.b16 %v1655
    %v1745 = vunpack.c.l.b16 %v1656
    %v1746 = vunpack.c.h.b16 %v1656
    %v1747 = vpack.c.b16 %v1699, %v1687
    %v1748 = vpack.c.b16 %v1700, %v1688
    %v1749 = vpack.c.b16 %v1701, %v1689
    %v1750 = vpack.c.b16 %v1702, %v1690
    %v1751 = vpack.c.b16 %v1703, %v1691
    %v1752 = vpack.c.b16 %v1704, %v1692
    %v1753 = vpack.c.b16 %v1705, %v1693
    %v1754 = vpack.c.b16 %v1706, %v1694
    %v1755 = vpack.c.b16 %v1707, %v1695
    %v1756 = vpack.c.b16 %v1708, %v1696
    %v1757 = vpack.c.b16 %v1709, %v1697
    %v1758 = vpack.c.b16 %v1710, %v1698
    %v1759 = vpack.c.b16 %v1723, %v1711
    %v1760 = vpack.c.b16 %v1724, %v1712
    %v1761 = vpack.c.b16 %v1725, %v1713
    %v1762 = vpack.c.b16 %v1726, %v1714
    %v1763 = vpack.c.b16 %v1727, %v1715
    %v1764 = vpack.c.b16 %v1728, %v1716
    %v1765 = vpack.c.b16 %v1729, %v1717
    %v1766 = vpack.c.b16 %v1730, %v1718
    %v1767 = vpack.c.b16 %v1731, %v1719
    %v1768 = vpack.c.b16 %v1732, %v1720
    %v1769 = vpack.c.b16 %v1733, %v1721
    %v1770 = vpack.c.b16 %v1734, %v1722
    %v1771 = vpack.c.b16 %v1735, %v1735
    %v1772 = vpack.c.b16 %v1736, %v1736
    %v1773 = vpack.c.b16 %v1737, %v1737
    %v1774 = vpack.c.b16 %v1738, %v1738
    %v1775 = vpack.c.b16 %v1739, %v1739
    %v1776 = vpack.c.b16 %v1740, %v1740
    %v1777 = vpack.c.b16 %v1741, %v1741
    %v1778 = vpack.c.b16 %v1742, %v1742
    %v1779 = vpack.c.b16 %v1743, %v1743
    %v1780 = vpack.c.b16 %v1744, %v1744
    %v1781 = vpack.c.b16 %v1745, %v1745
    %v1782 = vpack.c.b16 %v1746, %v1746
    %v1808 = vsel %vm369, %v1625, 0
    %v1811 = vand.u32 %v1771, %v376
    %v1814 = vand.u32 %v1772, %v376
    %v1817 = vand.u32 %v1773, %v376
    %v1820 = vand.u32 %v1774, %v376
    %v1823 = vand.u32 %v1775, %v376
    %v1826 = vand.u32 %v1776, %v376
    %v1829 = vand.u32 %v1777, %v376
    %v1832 = vand.u32 %v1778, %v376
    %v1835 = vand.u32 %v1779, %v376
    %v1838 = vand.u32 %v1780, %v376
    %v1841 = vand.u32 %v1781, %v376
    %v1844 = vand.u32 %v1782, %v376
    %1846 = vmatprep.subr.bf16.mxu0 %v1748
    %1847 = vmatpush1.bf16.msra.mxu0 %v1747
    %1848 = vmatprep.subr.bf16.mxu0 %v1760
    %1849 = vmatpush1.bf16.msra.mxu0 %v1759
    %1850 = vmatprep.subr.bf16.mxu0 %v1814
    %1851 = vmatpush1.bf16.msra.mxu0 %v1811
    %1852 = vmatprep.subr.bf16.mxu0 0
    %1853 = vmatpush1.bf16.msra.mxu0 0
    %1854 = vmatprep.subr.bf16.mxu0 0
    %1855 = vmatpush1.bf16.msra.mxu0 0
    %1856 = vmatprep.subr.bf16.mxu0 0
    %1857 = vmatpush1.bf16.msra.mxu0 0
    %1858 = vmatprep.subr.bf16.mxu0 0
    %1859 = vmatpush1.bf16.msra.mxu0 0
    %1860 = vmatprep.subr.bf16.mxu0 0
    %1861 = vmatpush1.bf16.msra.mxu0 0
    %1862 = vmatprep.subr.bf16.mxu0 0
    %1863 = vmatpush1.bf16.msra.mxu0 0
    %1864 = vmatprep.subr.bf16.mxu0 0
    %1865 = vmatpush1.bf16.msra.mxu0 0
    %1866 = vmatprep.subr.bf16.mxu0 0
    %1867 = vmatpush1.bf16.msra.mxu0 0
    %1868 = vmatprep.subr.bf16.mxu0 0
    %1869 = vmatpush1.bf16.msra.mxu0 0
    %1870 = vmatprep.subr.bf16.mxu0 0
    %1871 = vmatpush1.bf16.msra.mxu0 0
    %1872 = vmatprep.subr.bf16.mxu0 0
    %1873 = vmatpush1.bf16.msra.mxu0 0
    %1874 = vmatprep.subr.bf16.mxu0 0
    %1875 = vmatpush1.bf16.msra.mxu0 0
    %1876 = vmatprep.subr.bf16.mxu0 0
    %1877 = vmatpush1.bf16.msra.mxu0 0
    %1878 = vmatprep.mubr.bf16.mxu0 0
    %1879 = vmatmul.mubr.bf16.gmra.mrb[0].mxu0 %v1808
    %v1880 = vpop.f32.mrb[0].mxu0
    %v1881 = vadd.f32 0.0, %v1880
    %v1882 = vpop.f32.mrb[0].mxu0
    %v1883 = vadd.f32 0.0, %v1882
    %v1884 = vpop.f32.mrb[0].mxu0
    %v1885 = vadd.f32 0.0, %v1884
    %v1886 = vpop.f32.mrb[0].mxu0
    %v1887 = vadd.f32 0.0, %v1886
    %1888 = vdwg.mxu0
    %1889 = vmatprep.subr.bf16.mxu0 %v1750
    %1890 = vmatpush1.bf16.msra.mxu0 %v1749
    %1891 = vmatprep.subr.bf16.mxu0 %v1762
    %1892 = vmatpush1.bf16.msra.mxu0 %v1761
    %1893 = vmatprep.subr.bf16.mxu0 %v1820
    %1894 = vmatpush1.bf16.msra.mxu0 %v1817
    %1895 = vmatprep.subr.bf16.mxu0 0
    %1896 = vmatpush1.bf16.msra.mxu0 0
    %1897 = vmatprep.subr.bf16.mxu0 0
    %1898 = vmatpush1.bf16.msra.mxu0 0
    %1899 = vmatprep.subr.bf16.mxu0 0
    %1900 = vmatpush1.bf16.msra.mxu0 0
    %1901 = vmatprep.subr.bf16.mxu0 0
    %1902 = vmatpush1.bf16.msra.mxu0 0
    %1903 = vmatprep.subr.bf16.mxu0 0
    %1904 = vmatpush1.bf16.msra.mxu0 0
    %1905 = vmatprep.subr.bf16.mxu0 0
    %1906 = vmatpush1.bf16.msra.mxu0 0
    %1907 = vmatprep.subr.bf16.mxu0 0
    %1908 = vmatpush1.bf16.msra.mxu0 0
    %1909 = vmatprep.subr.bf16.mxu0 0
    %1910 = vmatpush1.bf16.msra.mxu0 0
    %1911 = vmatprep.subr.bf16.mxu0 0
    %1912 = vmatpush1.bf16.msra.mxu0 0
    %1913 = vmatprep.subr.bf16.mxu0 0
    %1914 = vmatpush1.bf16.msra.mxu0 0
    %1915 = vmatprep.subr.bf16.mxu0 0
    %1916 = vmatpush1.bf16.msra.mxu0 0
    %1917 = vmatprep.subr.bf16.mxu0 0
    %1918 = vmatpush1.bf16.msra.mxu0 0
    %1919 = vmatprep.subr.bf16.mxu0 0
    %1920 = vmatpush1.bf16.msra.mxu0 0
    %1921 = vmatprep.mubr.bf16.mxu0 0
    %1922 = vmatmul.mubr.bf16.gmra.mrb[0].mxu0 %v1808
    %v1923 = vpop.f32.mrb[0].mxu0
    %v1924 = vadd.f32 0.0, %v1923
    %v1925 = vpop.f32.mrb[0].mxu0
    %v1926 = vadd.f32 0.0, %v1925
    %v1927 = vpop.f32.mrb[0].mxu0
    %v1928 = vadd.f32 0.0, %v1927
    %v1929 = vpop.f32.mrb[0].mxu0
    %v1930 = vadd.f32 0.0, %v1929
    %1931 = vdwg.mxu0
    %1932 = vmatprep.subr.bf16.mxu0 %v1752
    %1933 = vmatpush1.bf16.msra.mxu0 %v1751
    %1934 = vmatprep.subr.bf16.mxu0 %v1764
    %1935 = vmatpush1.bf16.msra.mxu0 %v1763
    %1936 = vmatprep.subr.bf16.mxu0 %v1826
    %1937 = vmatpush1.bf16.msra.mxu0 %v1823
    %1938 = vmatprep.subr.bf16.mxu0 0
    %1939 = vmatpush1.bf16.msra.mxu0 0
    %1940 = vmatprep.subr.bf16.mxu0 0
    %1941 = vmatpush1.bf16.msra.mxu0 0
    %1942 = vmatprep.subr.bf16.mxu0 0
    %1943 = vmatpush1.bf16.msra.mxu0 0
    %1944 = vmatprep.subr.bf16.mxu0 0
    %1945 = vmatpush1.bf16.msra.mxu0 0
    %1946 = vmatprep.subr.bf16.mxu0 0
    %1947 = vmatpush1.bf16.msra.mxu0 0
    %1948 = vmatprep.subr.bf16.mxu0 0
    %1949 = vmatpush1.bf16.msra.mxu0 0
    %1950 = vmatprep.subr.bf16.mxu0 0
    %1951 = vmatpush1.bf16.msra.mxu0 0
    %1952 = vmatprep.subr.bf16.mxu0 0
    %1953 = vmatpush1.bf16.msra.mxu0 0
    %1954 = vmatprep.subr.bf16.mxu0 0
    %1955 = vmatpush1.bf16.msra.mxu0 0
    %1956 = vmatprep.subr.bf16.mxu0 0
    %1957 = vmatpush1.bf16.msra.mxu0 0
    %1958 = vmatprep.subr.bf16.mxu0 0
    %1959 = vmatpush1.bf16.msra.mxu0 0
    %1960 = vmatprep.subr.bf16.mxu0 0
    %1961 = vmatpush1.bf16.msra.mxu0 0
    %1962 = vmatprep.subr.bf16.mxu0 0
    %1963 = vmatpush1.bf16.msra.mxu0 0
    %1964 = vmatprep.mubr.bf16.mxu0 0
    %1965 = vmatmul.mubr.bf16.gmra.mrb[0].mxu0 %v1808
    %v1966 = vpop.f32.mrb[0].mxu0
    %v1967 = vadd.f32 0.0, %v1966
    %v1968 = vpop.f32.mrb[0].mxu0
    %v1969 = vadd.f32 0.0, %v1968
    %v1970 = vpop.f32.mrb[0].mxu0
    %v1971 = vadd.f32 0.0, %v1970
    %v1972 = vpop.f32.mrb[0].mxu0
    %v1973 = vadd.f32 0.0, %v1972
    %1974 = vdwg.mxu0
    %1975 = vmatprep.subr.bf16.mxu0 %v1754
    %1976 = vmatpush1.bf16.msra.mxu0 %v1753
    %1977 = vmatprep.subr.bf16.mxu0 %v1766
    %1978 = vmatpush1.bf16.msra.mxu0 %v1765
    %1979 = vmatprep.subr.bf16.mxu0 %v1832
    %1980 = vmatpush1.bf16.msra.mxu0 %v1829
    %1981 = vmatprep.subr.bf16.mxu0 0
    %1982 = vmatpush1.bf16.msra.mxu0 0
    %1983 = vmatprep.subr.bf16.mxu0 0
    %1984 = vmatpush1.bf16.msra.mxu0 0
    %1985 = vmatprep.subr.bf16.mxu0 0
    %1986 = vmatpush1.bf16.msra.mxu0 0
    %1987 = vmatprep.subr.bf16.mxu0 0
    %1988 = vmatpush1.bf16.msra.mxu0 0
    %1989 = vmatprep.subr.bf16.mxu0 0
    %1990 = vmatpush1.bf16.msra.mxu0 0
    %1991 = vmatprep.subr.bf16.mxu0 0
    %1992 = vmatpush1.bf16.msra.mxu0 0
    %1993 = vmatprep.subr.bf16.mxu0 0
    %1994 = vmatpush1.bf16.msra.mxu0 0
    %1995 = vmatprep.subr.bf16.mxu0 0
    %1996 = vmatpush1.bf16.msra.mxu0 0
    %1997 = vmatprep.subr.bf16.mxu0 0
    %1998 = vmatpush1.bf16.msra.mxu0 0
    %1999 = vmatprep.subr.bf16.mxu0 0
    %2000 = vmatpush1.bf16.msra.mxu0 0
    %2001 = vmatprep.subr.bf16.mxu0 0
    %2002 = vmatpush1.bf16.msra.mxu0 0
    %2003 = vmatprep.subr.bf16.mxu0 0
    %2004 = vmatpush1.bf16.msra.mxu0 0
    %2005 = vmatprep.subr.bf16.mxu0 0
    %2006 = vmatpush1.bf16.msra.mxu0 0
    %2007 = vmatprep.mubr.bf16.mxu0 0
    %2008 = vmatmul.mubr.bf16.gmra.mrb[0].mxu0 %v1808
    %v2009 = vpop.f32.mrb[0].mxu0
    %v2010 = vadd.f32 0.0, %v2009
    %v2011 = vpop.f32.mrb[0].mxu0
    %v2012 = vadd.f32 0.0, %v2011
    %v2013 = vpop.f32.mrb[0].mxu0
    %v2014 = vadd.f32 0.0, %v2013
    %v2015 = vpop.f32.mrb[0].mxu0
    %v2016 = vadd.f32 0.0, %v2015
    %2017 = vdwg.mxu0
    %2018 = vmatprep.subr.bf16.mxu0 %v1756
    %2019 = vmatpush1.bf16.msra.mxu0 %v1755
    %2020 = vmatprep.subr.bf16.mxu0 %v1768
    %2021 = vmatpush1.bf16.msra.mxu0 %v1767
    %2022 = vmatprep.subr.bf16.mxu0 %v1838
    %2023 = vmatpush1.bf16.msra.mxu0 %v1835
    %2024 = vmatprep.subr.bf16.mxu0 0
    %2025 = vmatpush1.bf16.msra.mxu0 0
    %2026 = vmatprep.subr.bf16.mxu0 0
    %2027 = vmatpush1.bf16.msra.mxu0 0
    %2028 = vmatprep.subr.bf16.mxu0 0
    %2029 = vmatpush1.bf16.msra.mxu0 0
    %2030 = vmatprep.subr.bf16.mxu0 0
    %2031 = vmatpush1.bf16.msra.mxu0 0
    %2032 = vmatprep.subr.bf16.mxu0 0
    %2033 = vmatpush1.bf16.msra.mxu0 0
    %2034 = vmatprep.subr.bf16.mxu0 0
    %2035 = vmatpush1.bf16.msra.mxu0 0
    %2036 = vmatprep.subr.bf16.mxu0 0
    %2037 = vmatpush1.bf16.msra.mxu0 0
    %2038 = vmatprep.subr.bf16.mxu0 0
    %2039 = vmatpush1.bf16.msra.mxu0 0
    %2040 = vmatprep.subr.bf16.mxu0 0
    %2041 = vmatpush1.bf16.msra.mxu0 0
    %2042 = vmatprep.subr.bf16.mxu0 0
    %2043 = vmatpush1.bf16.msra.mxu0 0
    %2044 = vmatprep.subr.bf16.mxu0 0
    %2045 = vmatpush1.bf16.msra.mxu0 0
    %2046 = vmatprep.subr.bf16.mxu0 0
    %2047 = vmatpush1.bf16.msra.mxu0 0
    %2048 = vmatprep.subr.bf16.mxu0 0
    %2049 = vmatpush1.bf16.msra.mxu0 0
    %2050 = vmatprep.mubr.bf16.mxu0 0
    %2051 = vmatmul.mubr.bf16.gmra.mrb[0].mxu0 %v1808
    %v2052 = vpop.f32.mrb[0].mxu0
    %v2053 = vadd.f32 0.0, %v2052
    %v2054 = vpop.f32.mrb[0].mxu0
    %v2055 = vadd.f32 0.0, %v2054
    %v2056 = vpop.f32.mrb[0].mxu0
    %v2057 = vadd.f32 0.0, %v2056
    %v2058 = vpop.f32.mrb[0].mxu0
    %v2059 = vadd.f32 0.0, %v2058
    %2060 = vdwg.mxu0
    %2061 = vmatprep.subr.bf16.mxu0 %v1758
    %2062 = vmatpush1.bf16.msra.mxu0 %v1757
    %2063 = vmatprep.subr.bf16.mxu0 %v1770
    %2064 = vmatpush1.bf16.msra.mxu0 %v1769
    %2065 = vmatprep.subr.bf16.mxu0 %v1844
    %2066 = vmatpush1.bf16.msra.mxu0 %v1841
    %2067 = vmatprep.subr.bf16.mxu0 0
    %2068 = vmatpush1.bf16.msra.mxu0 0
    %2069 = vmatprep.subr.bf16.mxu0 0
    %2070 = vmatpush1.bf16.msra.mxu0 0
    %2071 = vmatprep.subr.bf16.mxu0 0
    %2072 = vmatpush1.bf16.msra.mxu0 0
    %2073 = vmatprep.subr.bf16.mxu0 0
    %2074 = vmatpush1.bf16.msra.mxu0 0
    %2075 = vmatprep.subr.bf16.mxu0 0
    %2076 = vmatpush1.bf16.msra.mxu0 0
    %2077 = vmatprep.subr.bf16.mxu0 0
    %2078 = vmatpush1.bf16.msra.mxu0 0
    %2079 = vmatprep.subr.bf16.mxu0 0
    %2080 = vmatpush1.bf16.msra.mxu0 0
    %2081 = vmatprep.subr.bf16.mxu0 0
    %2082 = vmatpush1.bf16.msra.mxu0 0
    %2083 = vmatprep.subr.bf16.mxu0 0
    %2084 = vmatpush1.bf16.msra.mxu0 0
    %2085 = vmatprep.subr.bf16.mxu0 0
    %2086 = vmatpush1.bf16.msra.mxu0 0
    %2087 = vmatprep.subr.bf16.mxu0 0
    %2088 = vmatpush1.bf16.msra.mxu0 0
    %2089 = vmatprep.subr.bf16.mxu0 0
    %2090 = vmatpush1.bf16.msra.mxu0 0
    %2091 = vmatprep.subr.bf16.mxu0 0
    %2092 = vmatpush1.bf16.msra.mxu0 0
    %2093 = vmatprep.mubr.bf16.mxu0 0
    %2094 = vmatmul.mubr.bf16.gmra.mrb[0].mxu0 %v1808
    %v2095 = vpop.f32.mrb[0].mxu0
    %v2096 = vadd.f32 0.0, %v2095
    %v2097 = vpop.f32.mrb[0].mxu0
    %v2098 = vadd.f32 0.0, %v2097
    %v2099 = vpop.f32.mrb[0].mxu0
    %v2100 = vadd.f32 0.0, %v2099
    %v2101 = vpop.f32.mrb[0].mxu0
    %v2102 = vadd.f32 0.0, %v2101
    %2103 = vdwg.mxu0
    %v2104 = vadd.f32 %v1599, %v1881
    %v2105 = vadd.f32 %v1600, %v1883
    %v2106 = vadd.f32 %v1601, %v1924
    %v2107 = vadd.f32 %v1602, %v1926
    %v2108 = vadd.f32 %v1603, %v1967
    %v2109 = vadd.f32 %v1604, %v1969
    %v2110 = vadd.f32 %v1605, %v2010
    %v2111 = vadd.f32 %v1606, %v2012
    %v2112 = vadd.f32 %v1607, %v2053
    %v2113 = vadd.f32 %v1608, %v2055
    %v2114 = vadd.f32 %v1609, %v2096
    %v2115 = vadd.f32 %v1610, %v2098
    %v2116 = vadd.f32 %v1611, %v1885
    %v2117 = vadd.f32 %v1612, %v1887
    %v2118 = vadd.f32 %v1613, %v1928
    %v2119 = vadd.f32 %v1614, %v1930
    %v2120 = vadd.f32 %v1615, %v1971
    %v2121 = vadd.f32 %v1616, %v1973
    %v2122 = vadd.f32 %v1617, %v2014
    %v2123 = vadd.f32 %v1618, %v2016
    %v2124 = vadd.f32 %v1619, %v2057
    %v2125 = vadd.f32 %v1620, %v2059
    %v2126 = vadd.f32 %v1621, %v2100
    %v2127 = vadd.f32 %v1622, %v2102
    %v2128 = vld [vmem:[#allocation3] sm:$0xff]
    %v2129 = vld [vmem:[#allocation3 + $0x8] sm:$0xf]
    %v2132 = vlaneseq
    %v2133 = vshrl.u32 %v2132, 7
    %v2134 = vsub.s32 0, %v2133
    %v2135 = vrot.slane %v2128, %v2134
    %v2136 = vlaneseq
    %v2137 = vshrl.u32 %v2136, 7
    %v2138 = vsub.s32 1, %v2137
    %v2139 = vrot.slane %v2128, %v2138
    %v2140 = vlaneseq
    %v2141 = vshrl.u32 %v2140, 7
    %v2142 = vsub.s32 2, %v2141
    %v2143 = vrot.slane %v2128, %v2142
    %v2144 = vlaneseq
    %v2145 = vshrl.u32 %v2144, 7
    %v2146 = vsub.s32 3, %v2145
    %v2147 = vrot.slane %v2128, %v2146
    %v2148 = vlaneseq
    %v2149 = vshrl.u32 %v2148, 7
    %v2150 = vsub.s32 4, %v2149
    %v2151 = vrot.slane %v2128, %v2150
    %v2152 = vlaneseq
    %v2153 = vshrl.u32 %v2152, 7
    %v2154 = vsub.s32 5, %v2153
    %v2155 = vrot.slane %v2128, %v2154
    %v2156 = vlaneseq
    %v2157 = vshrl.u32 %v2156, 7
    %v2158 = vsub.s32 6, %v2157
    %v2159 = vrot.slane %v2128, %v2158
    %v2160 = vlaneseq
    %v2161 = vshrl.u32 %v2160, 7
    %v2162 = vsub.s32 7, %v2161
    %v2163 = vrot.slane %v2128, %v2162
    %v2164 = vlaneseq
    %v2165 = vshrl.u32 %v2164, 7
    %v2166 = vsub.s32 0, %v2165
    %v2167 = vrot.slane %v2129, %v2166
    %v2168 = vlaneseq
    %v2169 = vshrl.u32 %v2168, 7
    %v2170 = vsub.s32 1, %v2169
    %v2171 = vrot.slane %v2129, %v2170
    %v2172 = vlaneseq
    %v2173 = vshrl.u32 %v2172, 7
    %v2174 = vsub.s32 2, %v2173
    %v2175 = vrot.slane %v2129, %v2174
    %v2176 = vlaneseq
    %v2177 = vshrl.u32 %v2176, 7
    %v2178 = vsub.s32 3, %v2177
    %v2179 = vrot.slane %v2129, %v2178
    %v2192 = vadd.f32 %v2104, %v2135
    %v2193 = vadd.f32 %v2105, %v2139
    %v2194 = vadd.f32 %v2106, %v2143
    %v2195 = vadd.f32 %v2107, %v2147
    %v2196 = vadd.f32 %v2108, %v2151
    %v2197 = vadd.f32 %v2109, %v2155
    %v2198 = vadd.f32 %v2110, %v2159
    %v2199 = vadd.f32 %v2111, %v2163
    %v2200 = vadd.f32 %v2112, %v2167
    %v2201 = vadd.f32 %v2113, %v2171
    %v2202 = vadd.f32 %v2114, %v2175
    %v2203 = vadd.f32 %v2115, %v2179
    %v2204 = vadd.f32 %v2116, %v2135
    %v2205 = vadd.f32 %v2117, %v2139
    %v2206 = vadd.f32 %v2118, %v2143
    %v2207 = vadd.f32 %v2119, %v2147
    %v2208 = vadd.f32 %v2120, %v2151
    %v2209 = vadd.f32 %v2121, %v2155
    %v2210 = vadd.f32 %v2122, %v2159
    %v2211 = vadd.f32 %v2123, %v2163
    %v2212 = vadd.f32 %v2124, %v2167
    %v2213 = vadd.f32 %v2125, %v2171
    %v2214 = vadd.f32 %v2126, %v2175
    %v2215 = vadd.f32 %v2127, %v2179
    %v2216 = vmax.f32 %v2192, 0.0
    %v2217 = vmax.f32 %v2193, 0.0
    %v2218 = vmax.f32 %v2194, 0.0
    %v2219 = vmax.f32 %v2195, 0.0
    %v2220 = vmax.f32 %v2196, 0.0
    %v2221 = vmax.f32 %v2197, 0.0
    %v2222 = vmax.f32 %v2198, 0.0
    %v2223 = vmax.f32 %v2199, 0.0
    %v2224 = vmax.f32 %v2200, 0.0
    %v2225 = vmax.f32 %v2201, 0.0
    %v2226 = vmax.f32 %v2202, 0.0
    %v2227 = vmax.f32 %v2203, 0.0
    %v2228 = vmax.f32 %v2204, 0.0
    %v2229 = vmax.f32 %v2205, 0.0
    %v2230 = vmax.f32 %v2206, 0.0
    %v2231 = vmax.f32 %v2207, 0.0
    %v2232 = vmax.f32 %v2208, 0.0
    %v2233 = vmax.f32 %v2209, 0.0
    %v2234 = vmax.f32 %v2210, 0.0
    %v2235 = vmax.f32 %v2211, 0.0
    %v2236 = vmax.f32 %v2212, 0.0
    %v2237 = vmax.f32 %v2213, 0.0
    %v2238 = vmax.f32 %v2214, 0.0
    %v2239 = vmax.f32 %v2215, 0.0
    %v2240 = vmax.f32 %v2216, %v2219
    %v2241 = vmax.f32 %v2217, %v2220
    %v2242 = vmax.f32 %v2218, %v2221
    %v2243 = vmax.f32 %v2228, %v2231
    %v2244 = vmax.f32 %v2229, %v2232
    %v2245 = vmax.f32 %v2230, %v2233
    %v2246 = vmax.f32 %v2240, %v2222
    %v2247 = vmax.f32 %v2241, %v2223
    %v2248 = vmax.f32 %v2242, %v2224
    %v2249 = vmax.f32 %v2243, %v2234
    %v2250 = vmax.f32 %v2244, %v2235
    %v2251 = vmax.f32 %v2245, %v2236
    %v2252 = vmax.f32 %v2246, %v2225
    %v2253 = vmax.f32 %v2247, %v2226
    %v2254 = vmax.f32 %v2248, %v2227
    %v2255 = vmax.f32 %v2249, %v2237
    %v2256 = vmax.f32 %v2250, %v2238
    %v2257 = vmax.f32 %v2251, %v2239
    %v2261 = vrot.slane %v2252, 1
    %v2262 = vrot.slane %v2253, 1
    %v2263 = vrot.slane %v2254, 1
    %v2267 = vmax.f32 %v2252, %v2261
    %v2268 = vmax.f32 %v2253, %v2262
    %v2269 = vmax.f32 %v2254, %v2263
    %v2270 = vpack.c.bf16 %v2267, %v2267
    %v2271 = vpack.c.bf16 %v2268, %v2268
    %v2272 = vpack.c.bf16 %v2269, %v2269
    %v2273 = vld [vmem:[#allocation6] sm:$0xff]
    %v2274 = vld [vmem:[#allocation6 + $0x8] sm:$0xff]
    %v2275 = vld [vmem:[#allocation6 + $0x10] sm:$0xff]
    %v2276 = vld [vmem:[#allocation6 + $0x18] sm:$0xff]
    %v2277 = vld [vmem:[#allocation6 + $0x20] sm:$0xff]
    %v2278 = vld [vmem:[#allocation6 + $0x28] sm:$0xff]
    %v2279 = vld [vmem:[#allocation6 + $0x30] sm:$0xff]
    %v2280 = vld [vmem:[#allocation6 + $0x38] sm:$0xff]
    %v2281 = vld [vmem:[#allocation6 + $0x40] sm:$0xff]
    %v2282 = vld [vmem:[#allocation6 + $0x48] sm:$0xff]
    %v2283 = vld [vmem:[#allocation6 + $0x50] sm:$0xff]
    %v2284 = vld [vmem:[#allocation6 + $0x58] sm:$0xff]
    %v2285 = vld [vmem:[#allocation6 + $0x60] sm:$0xff]
    %v2286 = vld [vmem:[#allocation6 + $0x68] sm:$0xff]
    %v2287 = vld [vmem:[#allocation6 + $0x70] sm:$0xff]
    %v2288 = vld [vmem:[#allocation6 + $0x78] sm:$0xff]
    %v2289 = vld [vmem:[#allocation6 + $0x80] sm:$0xff]
    %v2290 = vld [vmem:[#allocation6 + $0x88] sm:$0xff]
    %v2291 = vld [vmem:[#allocation6 + $0x90] sm:$0xff]
    %v2292 = vld [vmem:[#allocation6 + $0x98] sm:$0xff]
    %v2293 = vld [vmem:[#allocation6 + $0xa0] sm:$0xff]
    %v2294 = vld [vmem:[#allocation6 + $0xa8] sm:$0xff]
    %v2295 = vld [vmem:[#allocation6 + $0xb0] sm:$0xff]
    %v2296 = vld [vmem:[#allocation6 + $0xb8] sm:$0xff]
    %v2297 = vld [vmem:[#allocation6 + $0xc0] sm:$0xff]
    %v2298 = vld [vmem:[#allocation6 + $0xc8] sm:$0xff]
    %v2299 = vld [vmem:[#allocation6 + $0xd0] sm:$0xff]
    %v2300 = vld [vmem:[#allocation6 + $0xd8] sm:$0xff]
    %v2301 = vld [vmem:[#allocation6 + $0xe0] sm:$0xff]
    %v2302 = vld [vmem:[#allocation6 + $0xe8] sm:$0xff]
    %v2303 = vld [vmem:[#allocation6 + $0xf0] sm:$0xff]
    %v2304 = vld [vmem:[#allocation6 + $0xf8] sm:$0xff]
    %v2305 = vld [vmem:[#allocation6 + $0x100] sm:$0xff]
    %v2306 = vld [vmem:[#allocation6 + $0x108] sm:$0xff]
    %v2307 = vld [vmem:[#allocation6 + $0x110] sm:$0xff]
    %v2308 = vld [vmem:[#allocation6 + $0x118] sm:$0xff]
    %v2309 = vld [vmem:[#allocation6 + $0x120] sm:$0xff]
    %v2310 = vld [vmem:[#allocation6 + $0x128] sm:$0xff]
    %v2311 = vld [vmem:[#allocation6 + $0x130] sm:$0xff]
    %v2312 = vld [vmem:[#allocation6 + $0x138] sm:$0xff]
    %v2313 = vld [vmem:[#allocation6 + $0x140] sm:$0xff]
    %v2314 = vld [vmem:[#allocation6 + $0x148] sm:$0xff]
    %v2315 = vld [vmem:[#allocation6 + $0x150] sm:$0xff]
    %v2316 = vld [vmem:[#allocation6 + $0x158] sm:$0xff]
    %v2317 = vld [vmem:[#allocation6 + $0x160] sm:$0xff]
    %v2318 = vld [vmem:[#allocation6 + $0x168] sm:$0xff]
    %v2319 = vld [vmem:[#allocation6 + $0x170] sm:$0xff]
    %v2320 = vld [vmem:[#allocation6 + $0x178] sm:$0xff]
    %v2321 = vld [vmem:[#allocation6 + $0x180] sm:$0xff]
    %v2322 = vld [vmem:[#allocation6 + $0x188] sm:$0xff]
    %v2323 = vld [vmem:[#allocation6 + $0x190] sm:$0xff]
    %v2324 = vld [vmem:[#allocation6 + $0x198] sm:$0xff]
    %v2325 = vld [vmem:[#allocation6 + $0x1a0] sm:$0xff]
    %v2326 = vld [vmem:[#allocation6 + $0x1a8] sm:$0xff]
    %v2327 = vld [vmem:[#allocation6 + $0x1b0] sm:$0xff]
    %v2328 = vld [vmem:[#allocation6 + $0x1b8] sm:$0xff]
    %v2329 = vld [vmem:[#allocation6 + $0x1c0] sm:$0xff]
    %v2330 = vld [vmem:[#allocation6 + $0x1c8] sm:$0xff]
    %v2331 = vld [vmem:[#allocation6 + $0x1d0] sm:$0xff]
    %v2332 = vld [vmem:[#allocation6 + $0x1d8] sm:$0xff]
    %v2333 = vld [vmem:[#allocation6 + $0x1e0] sm:$0xff]
    %v2334 = vld [vmem:[#allocation6 + $0x1e8] sm:$0xff]
    %v2335 = vld [vmem:[#allocation6 + $0x1f0] sm:$0xff]
    %v2336 = vld [vmem:[#allocation6 + $0x1f8] sm:$0xff]
    %v2337 = vld [vmem:[#allocation6 + $0x200] sm:$0xff]
    %v2338 = vld [vmem:[#allocation6 + $0x208] sm:$0xff]
    %v2339 = vld [vmem:[#allocation6 + $0x210] sm:$0xff]
    %v2340 = vld [vmem:[#allocation6 + $0x218] sm:$0xff]
    %v2341 = vld [vmem:[#allocation6 + $0x220] sm:$0xff]
    %v2342 = vld [vmem:[#allocation6 + $0x228] sm:$0xff]
    %v2343 = vld [vmem:[#allocation6 + $0x230] sm:$0xff]
    %v2344 = vld [vmem:[#allocation6 + $0x238] sm:$0xff]
    %v2345 = vld [vmem:[#allocation6 + $0x240] sm:$0xff]
    %v2346 = vld [vmem:[#allocation6 + $0x248] sm:$0xff]
    %v2347 = vld [vmem:[#allocation6 + $0x250] sm:$0xff]
    %v2348 = vld [vmem:[#allocation6 + $0x258] sm:$0xff]
    %v2349 = vld [vmem:[#allocation6 + $0x260] sm:$0xff]
    %v2350 = vld [vmem:[#allocation6 + $0x268] sm:$0xff]
    %v2351 = vld [vmem:[#allocation6 + $0x270] sm:$0xff]
    %v2352 = vld [vmem:[#allocation6 + $0x278] sm:$0xff]
    %v2353 = vld [vmem:[#allocation6 + $0x280] sm:$0xff]
    %v2354 = vld [vmem:[#allocation6 + $0x288] sm:$0xff]
    %v2355 = vld [vmem:[#allocation6 + $0x290] sm:$0xff]
    %v2356 = vld [vmem:[#allocation6 + $0x298] sm:$0xff]
    %v2357 = vld [vmem:[#allocation6 + $0x2a0] sm:$0xff]
    %v2358 = vld [vmem:[#allocation6 + $0x2a8] sm:$0xff]
    %v2359 = vld [vmem:[#allocation6 + $0x2b0] sm:$0xff]
    %v2360 = vld [vmem:[#allocation6 + $0x2b8] sm:$0xff]
    %v2361 = vld [vmem:[#allocation6 + $0x2c0] sm:$0xff]
    %v2362 = vld [vmem:[#allocation6 + $0x2c8] sm:$0xff]
    %v2363 = vld [vmem:[#allocation6 + $0x2d0] sm:$0xff]
    %v2364 = vld [vmem:[#allocation6 + $0x2d8] sm:$0xff]
    %v2365 = vld [vmem:[#allocation6 + $0x2e0] sm:$0xff]
    %v2366 = vld [vmem:[#allocation6 + $0x2e8] sm:$0xff]
    %v2367 = vld [vmem:[#allocation6 + $0x2f0] sm:$0xff]
    %v2368 = vld [vmem:[#allocation6 + $0x2f8] sm:$0xff]
    %s2369 = scalar_lea.vmem [#allocation6], 768
    %v2370 = vld [vmem:[%s2369] sm:$0xff]
    %v2371 = vld [vmem:[%s2369 + $0x8] sm:$0xff]
    %v2372 = vld [vmem:[%s2369 + $0x10] sm:$0xff]
    %v2373 = vld [vmem:[%s2369 + $0x18] sm:$0xff]
    %v2374 = vld [vmem:[%s2369 + $0x20] sm:$0xff]
    %v2375 = vld [vmem:[%s2369 + $0x28] sm:$0xff]
    %v2376 = vld [vmem:[%s2369 + $0x30] sm:$0xff]
    %v2377 = vld [vmem:[%s2369 + $0x38] sm:$0xff]
    %v2378 = vld [vmem:[%s2369 + $0x40] sm:$0xff]
    %v2379 = vld [vmem:[%s2369 + $0x48] sm:$0xff]
    %v2380 = vld [vmem:[%s2369 + $0x50] sm:$0xff]
    %v2381 = vld [vmem:[%s2369 + $0x58] sm:$0xff]
    %v2382 = vld [vmem:[%s2369 + $0x60] sm:$0xff]
    %v2383 = vld [vmem:[%s2369 + $0x68] sm:$0xff]
    %v2384 = vld [vmem:[%s2369 + $0x70] sm:$0xff]
    %v2385 = vld [vmem:[%s2369 + $0x78] sm:$0xff]
    %v2386 = vld [vmem:[%s2369 + $0x80] sm:$0xff]
    %v2387 = vld [vmem:[%s2369 + $0x88] sm:$0xff]
    %v2388 = vld [vmem:[%s2369 + $0x90] sm:$0xff]
    %v2389 = vld [vmem:[%s2369 + $0x98] sm:$0xff]
    %v2390 = vld [vmem:[%s2369 + $0xa0] sm:$0xff]
    %v2391 = vld [vmem:[%s2369 + $0xa8] sm:$0xff]
    %v2392 = vld [vmem:[%s2369 + $0xb0] sm:$0xff]
    %v2393 = vld [vmem:[%s2369 + $0xb8] sm:$0xff]
    %v2394 = vld [vmem:[%s2369 + $0xc0] sm:$0xff]
    %v2395 = vld [vmem:[%s2369 + $0xc8] sm:$0xff]
    %v2396 = vld [vmem:[%s2369 + $0xd0] sm:$0xff]
    %v2397 = vld [vmem:[%s2369 + $0xd8] sm:$0xff]
    %v2398 = vld [vmem:[%s2369 + $0xe0] sm:$0xff]
    %v2399 = vld [vmem:[%s2369 + $0xe8] sm:$0xff]
    %v2400 = vld [vmem:[%s2369 + $0xf0] sm:$0xff]
    %v2401 = vld [vmem:[%s2369 + $0xf8] sm:$0xff]
    %v2402 = vld [vmem:[%s2369 + $0x100] sm:$0xff]
    %v2403 = vld [vmem:[%s2369 + $0x108] sm:$0xff]
    %v2404 = vld [vmem:[%s2369 + $0x110] sm:$0xff]
    %v2405 = vld [vmem:[%s2369 + $0x118] sm:$0xff]
    %v2406 = vld [vmem:[%s2369 + $0x120] sm:$0xff]
    %v2407 = vld [vmem:[%s2369 + $0x128] sm:$0xff]
    %v2408 = vld [vmem:[%s2369 + $0x130] sm:$0xff]
    %v2409 = vld [vmem:[%s2369 + $0x138] sm:$0xff]
    %v2410 = vld [vmem:[%s2369 + $0x140] sm:$0xff]
    %v2411 = vld [vmem:[%s2369 + $0x148] sm:$0xff]
    %v2412 = vld [vmem:[%s2369 + $0x150] sm:$0xff]
    %v2413 = vld [vmem:[%s2369 + $0x158] sm:$0xff]
    %v2414 = vld [vmem:[%s2369 + $0x160] sm:$0xff]
    %v2415 = vld [vmem:[%s2369 + $0x168] sm:$0xff]
    %v2416 = vld [vmem:[%s2369 + $0x170] sm:$0xff]
    %v2417 = vld [vmem:[%s2369 + $0x178] sm:$0xff]
    %v2418 = vld [vmem:[%s2369 + $0x180] sm:$0xff]
    %v2419 = vld [vmem:[%s2369 + $0x188] sm:$0xff]
    %v2420 = vld [vmem:[%s2369 + $0x190] sm:$0xff]
    %v2421 = vld [vmem:[%s2369 + $0x198] sm:$0xff]
    %v2422 = vld [vmem:[%s2369 + $0x1a0] sm:$0xff]
    %v2423 = vld [vmem:[%s2369 + $0x1a8] sm:$0xff]
    %v2424 = vld [vmem:[%s2369 + $0x1b0] sm:$0xff]
    %v2425 = vld [vmem:[%s2369 + $0x1b8] sm:$0xff]
    %v2426 = vld [vmem:[%s2369 + $0x1c0] sm:$0xff]
    %v2427 = vld [vmem:[%s2369 + $0x1c8] sm:$0xff]
    %v2428 = vld [vmem:[%s2369 + $0x1d0] sm:$0xff]
    %v2429 = vld [vmem:[%s2369 + $0x1d8] sm:$0xff]
    %v2430 = vld [vmem:[%s2369 + $0x1e0] sm:$0xff]
    %v2431 = vld [vmem:[%s2369 + $0x1e8] sm:$0xff]
    %v2432 = vld [vmem:[%s2369 + $0x1f0] sm:$0xff]
    %v2433 = vld [vmem:[%s2369 + $0x1f8] sm:$0xff]
    %v2434 = vld [vmem:[%s2369 + $0x200] sm:$0xff]
    %v2435 = vld [vmem:[%s2369 + $0x208] sm:$0xff]
    %v2436 = vld [vmem:[%s2369 + $0x210] sm:$0xff]
    %v2437 = vld [vmem:[%s2369 + $0x218] sm:$0xff]
    %v2438 = vld [vmem:[%s2369 + $0x220] sm:$0xff]
    %v2439 = vld [vmem:[%s2369 + $0x228] sm:$0xff]
    %v2440 = vld [vmem:[%s2369 + $0x230] sm:$0xff]
    %v2441 = vld [vmem:[%s2369 + $0x238] sm:$0xff]
    %v2442 = vld [vmem:[%s2369 + $0x240] sm:$0xff]
    %v2443 = vld [vmem:[%s2369 + $0x248] sm:$0xff]
    %v2444 = vld [vmem:[%s2369 + $0x250] sm:$0xff]
    %v2445 = vld [vmem:[%s2369 + $0x258] sm:$0xff]
    %v2446 = vld [vmem:[%s2369 + $0x260] sm:$0xff]
    %v2447 = vld [vmem:[%s2369 + $0x268] sm:$0xff]
    %v2448 = vld [vmem:[%s2369 + $0x270] sm:$0xff]
    %v2449 = vld [vmem:[%s2369 + $0x278] sm:$0xff]
    %v2450 = vld [vmem:[%s2369 + $0x280] sm:$0xff]
    %v2451 = vld [vmem:[%s2369 + $0x288] sm:$0xff]
    %v2452 = vld [vmem:[%s2369 + $0x290] sm:$0xff]
    %v2453 = vld [vmem:[%s2369 + $0x298] sm:$0xff]
    %v2454 = vld [vmem:[%s2369 + $0x2a0] sm:$0xff]
    %v2455 = vld [vmem:[%s2369 + $0x2a8] sm:$0xff]
    %v2456 = vld [vmem:[%s2369 + $0x2b0] sm:$0xff]
    %v2457 = vld [vmem:[%s2369 + $0x2b8] sm:$0xff]
    %v2458 = vld [vmem:[%s2369 + $0x2c0] sm:$0xff]
    %v2459 = vld [vmem:[%s2369 + $0x2c8] sm:$0xff]
    %v2460 = vld [vmem:[%s2369 + $0x2d0] sm:$0xff]
    %v2461 = vld [vmem:[%s2369 + $0x2d8] sm:$0xff]
    %v2462 = vld [vmem:[%s2369 + $0x2e0] sm:$0xff]
    %v2463 = vld [vmem:[%s2369 + $0x2e8] sm:$0xff]
    %v2464 = vld [vmem:[%s2369 + $0x2f0] sm:$0xff]
    %v2465 = vld [vmem:[%s2369 + $0x2f8] sm:$0xff]
    %v2469 = vrot.slane %v2270, 1
    %v2470 = vrot.slane %v2271, 1
    %v2471 = vrot.slane %v2272, 1
    %v2571 = vunpack.c.l.b16 %v2370
    %v2572 = vunpack.c.h.b16 %v2370
    %v2573 = vunpack.c.l.b16 %v2371
    %v2574 = vunpack.c.h.b16 %v2371
    %v2575 = vunpack.c.l.b16 %v2372
    %v2576 = vunpack.c.h.b16 %v2372
    %v2577 = vunpack.c.l.b16 %v2373
    %v2578 = vunpack.c.h.b16 %v2373
    %v2579 = vunpack.c.l.b16 %v2374
    %v2580 = vunpack.c.h.b16 %v2374
    %v2581 = vunpack.c.l.b16 %v2375
    %v2582 = vunpack.c.h.b16 %v2375
    %v2583 = vunpack.c.l.b16 %v2376
    %v2584 = vunpack.c.h.b16 %v2376
    %v2585 = vunpack.c.l.b16 %v2377
    %v2586 = vunpack.c.h.b16 %v2377
    %v2587 = vunpack.c.l.b16 %v2378
    %v2588 = vunpack.c.h.b16 %v2378
    %v2589 = vunpack.c.l.b16 %v2379
    %v2590 = vunpack.c.h.b16 %v2379
    %v2591 = vunpack.c.l.b16 %v2380
    %v2592 = vunpack.c.h.b16 %v2380
    %v2593 = vunpack.c.l.b16 %v2381
    %v2594 = vunpack.c.h.b16 %v2381
    %v2595 = vunpack.c.l.b16 %v2382
    %v2596 = vunpack.c.h.b16 %v2382
    %v2597 = vunpack.c.l.b16 %v2383
    %v2598 = vunpack.c.h.b16 %v2383
    %v2599 = vunpack.c.l.b16 %v2384
    %v2600 = vunpack.c.h.b16 %v2384
    %v2601 = vunpack.c.l.b16 %v2385
    %v2602 = vunpack.c.h.b16 %v2385
    %v2603 = vunpack.c.l.b16 %v2386
    %v2604 = vunpack.c.h.b16 %v2386
    %v2605 = vunpack.c.l.b16 %v2387
    %v2606 = vunpack.c.h.b16 %v2387
    %v2607 = vunpack.c.l.b16 %v2388
    %v2608 = vunpack.c.h.b16 %v2388
    %v2609 = vunpack.c.l.b16 %v2389
    %v2610 = vunpack.c.h.b16 %v2389
    %v2611 = vunpack.c.l.b16 %v2390
    %v2612 = vunpack.c.h.b16 %v2390
    %v2613 = vunpack.c.l.b16 %v2391
    %v2614 = vunpack.c.h.b16 %v2391
    %v2615 = vunpack.c.l.b16 %v2392
    %v2616 = vunpack.c.h.b16 %v2392
    %v2617 = vunpack.c.l.b16 %v2393
    %v2618 = vunpack.c.h.b16 %v2393
    %v2619 = vunpack.c.l.b16 %v2394
    %v2620 = vunpack.c.h.b16 %v2394
    %v2621 = vunpack.c.l.b16 %v2395
    %v2622 = vunpack.c.h.b16 %v2395
    %v2623 = vunpack.c.l.b16 %v2396
    %v2624 = vunpack.c.h.b16 %v2396
    %v2625 = vunpack.c.l.b16 %v2397
    %v2626 = vunpack.c.h.b16 %v2397
    %v2627 = vunpack.c.l.b16 %v2398
    %v2628 = vunpack.c.h.b16 %v2398
    %v2629 = vunpack.c.l.b16 %v2399
    %v2630 = vunpack.c.h.b16 %v2399
    %v2631 = vunpack.c.l.b16 %v2400
    %v2632 = vunpack.c.h.b16 %v2400
    %v2633 = vunpack.c.l.b16 %v2401
    %v2634 = vunpack.c.h.b16 %v2401
    %v2635 = vunpack.c.l.b16 %v2402
    %v2636 = vunpack.c.h.b16 %v2402
    %v2637 = vunpack.c.l.b16 %v2403
    %v2638 = vunpack.c.h.b16 %v2403
    %v2639 = vunpack.c.l.b16 %v2404
    %v2640 = vunpack.c.h.b16 %v2404
    %v2641 = vunpack.c.l.b16 %v2405
    %v2642 = vunpack.c.h.b16 %v2405
    %v2643 = vunpack.c.l.b16 %v2406
    %v2644 = vunpack.c.h.b16 %v2406
    %v2645 = vunpack.c.l.b16 %v2407
    %v2646 = vunpack.c.h.b16 %v2407
    %v2647 = vunpack.c.l.b16 %v2408
    %v2648 = vunpack.c.h.b16 %v2408
    %v2649 = vunpack.c.l.b16 %v2409
    %v2650 = vunpack.c.h.b16 %v2409
    %v2651 = vunpack.c.l.b16 %v2410
    %v2652 = vunpack.c.h.b16 %v2410
    %v2653 = vunpack.c.l.b16 %v2411
    %v2654 = vunpack.c.h.b16 %v2411
    %v2655 = vunpack.c.l.b16 %v2412
    %v2656 = vunpack.c.h.b16 %v2412
    %v2657 = vunpack.c.l.b16 %v2413
    %v2658 = vunpack.c.h.b16 %v2413
    %v2659 = vunpack.c.l.b16 %v2414
    %v2660 = vunpack.c.h.b16 %v2414
    %v2661 = vunpack.c.l.b16 %v2415
    %v2662 = vunpack.c.h.b16 %v2415
    %v2663 = vunpack.c.l.b16 %v2416
    %v2664 = vunpack.c.h.b16 %v2416
    %v2665 = vunpack.c.l.b16 %v2417
    %v2666 = vunpack.c.h.b16 %v2417
    %v2667 = vunpack.c.l.b16 %v2418
    %v2668 = vunpack.c.h.b16 %v2418
    %v2669 = vunpack.c.l.b16 %v2419
    %v2670 = vunpack.c.h.b16 %v2419
    %v2671 = vunpack.c.l.b16 %v2420
    %v2672 = vunpack.c.h.b16 %v2420
    %v2673 = vunpack.c.l.b16 %v2421
    %v2674 = vunpack.c.h.b16 %v2421
    %v2675 = vunpack.c.l.b16 %v2422
    %v2676 = vunpack.c.h.b16 %v2422
    %v2677 = vunpack.c.l.b16 %v2423
    %v2678 = vunpack.c.h.b16 %v2423
    %v2679 = vunpack.c.l.b16 %v2424
    %v2680 = vunpack.c.h.b16 %v2424
    %v2681 = vunpack.c.l.b16 %v2425
    %v2682 = vunpack.c.h.b16 %v2425
    %v2683 = vunpack.c.l.b16 %v2426
    %v2684 = vunpack.c.h.b16 %v2426
    %v2685 = vunpack.c.l.b16 %v2427
    %v2686 = vunpack.c.h.b16 %v2427
    %v2687 = vunpack.c.l.b16 %v2428
    %v2688 = vunpack.c.h.b16 %v2428
    %v2689 = vunpack.c.l.b16 %v2429
    %v2690 = vunpack.c.h.b16 %v2429
    %v2691 = vunpack.c.l.b16 %v2430
    %v2692 = vunpack.c.h.b16 %v2430
    %v2693 = vunpack.c.l.b16 %v2431
    %v2694 = vunpack.c.h.b16 %v2431
    %v2695 = vunpack.c.l.b16 %v2432
    %v2696 = vunpack.c.h.b16 %v2432
    %v2697 = vunpack.c.l.b16 %v2433
    %v2698 = vunpack.c.h.b16 %v2433
    %v2699 = vunpack.c.l.b16 %v2434
    %v2700 = vunpack.c.h.b16 %v2434
    %v2701 = vunpack.c.l.b16 %v2435
    %v2702 = vunpack.c.h.b16 %v2435
    %v2703 = vunpack.c.l.b16 %v2436
    %v2704 = vunpack.c.h.b16 %v2436
    %v2705 = vunpack.c.l.b16 %v2437
    %v2706 = vunpack.c.h.b16 %v2437
    %v2707 = vunpack.c.l.b16 %v2438
    %v2708 = vunpack.c.h.b16 %v2438
    %v2709 = vunpack.c.l.b16 %v2439
    %v2710 = vunpack.c.h.b16 %v2439
    %v2711 = vunpack.c.l.b16 %v2440
    %v2712 = vunpack.c.h.b16 %v2440
    %v2713 = vunpack.c.l.b16 %v2441
    %v2714 = vunpack.c.h.b16 %v2441
    %v2715 = vunpack.c.l.b16 %v2442
    %v2716 = vunpack.c.h.b16 %v2442
    %v2717 = vunpack.c.l.b16 %v2443
    %v2718 = vunpack.c.h.b16 %v2443
    %v2719 = vunpack.c.l.b16 %v2444
    %v2720 = vunpack.c.h.b16 %v2444
    %v2721 = vunpack.c.l.b16 %v2445
    %v2722 = vunpack.c.h.b16 %v2445
    %v2723 = vunpack.c.l.b16 %v2446
    %v2724 = vunpack.c.h.b16 %v2446
    %v2725 = vunpack.c.l.b16 %v2447
    %v2726 = vunpack.c.h.b16 %v2447
    %v2727 = vunpack.c.l.b16 %v2448
    %v2728 = vunpack.c.h.b16 %v2448
    %v2729 = vunpack.c.l.b16 %v2449
    %v2730 = vunpack.c.h.b16 %v2449
    %v2731 = vunpack.c.l.b16 %v2450
    %v2732 = vunpack.c.h.b16 %v2450
    %v2733 = vunpack.c.l.b16 %v2451
    %v2734 = vunpack.c.h.b16 %v2451
    %v2735 = vunpack.c.l.b16 %v2452
    %v2736 = vunpack.c.h.b16 %v2452
    %v2737 = vunpack.c.l.b16 %v2453
    %v2738 = vunpack.c.h.b16 %v2453
    %v2739 = vunpack.c.l.b16 %v2454
    %v2740 = vunpack.c.h.b16 %v2454
    %v2741 = vunpack.c.l.b16 %v2455
    %v2742 = vunpack.c.h.b16 %v2455
    %v2743 = vunpack.c.l.b16 %v2456
    %v2744 = vunpack.c.h.b16 %v2456
    %v2745 = vunpack.c.l.b16 %v2457
    %v2746 = vunpack.c.h.b16 %v2457
    %v2747 = vunpack.c.l.b16 %v2458
    %v2748 = vunpack.c.h.b16 %v2458
    %v2749 = vunpack.c.l.b16 %v2459
    %v2750 = vunpack.c.h.b16 %v2459
    %v2751 = vunpack.c.l.b16 %v2460
    %v2752 = vunpack.c.h.b16 %v2460
    %v2753 = vunpack.c.l.b16 %v2461
    %v2754 = vunpack.c.h.b16 %v2461
    %v2755 = vunpack.c.l.b16 %v2462
    %v2756 = vunpack.c.h.b16 %v2462
    %v2757 = vunpack.c.l.b16 %v2463
    %v2758 = vunpack.c.h.b16 %v2463
    %v2759 = vunpack.c.l.b16 %v2464
    %v2760 = vunpack.c.h.b16 %v2464
    %v2761 = vunpack.c.l.b16 %v2465
    %v2762 = vunpack.c.h.b16 %v2465
    %v2763 = vpack.c.b16 %v2575, %v2571
    %v2764 = vpack.c.b16 %v2576, %v2572
    %v2765 = vpack.c.b16 %v2577, %v2573
    %v2766 = vpack.c.b16 %v2578, %v2574
    %v2767 = vpack.c.b16 %v2583, %v2579
    %v2768 = vpack.c.b16 %v2584, %v2580
    %v2769 = vpack.c.b16 %v2585, %v2581
    %v2770 = vpack.c.b16 %v2586, %v2582
    %v2771 = vpack.c.b16 %v2591, %v2587
    %v2772 = vpack.c.b16 %v2592, %v2588
    %v2773 = vpack.c.b16 %v2593, %v2589
    %v2774 = vpack.c.b16 %v2594, %v2590
    %v2775 = vpack.c.b16 %v2599, %v2595
    %v2776 = vpack.c.b16 %v2600, %v2596
    %v2777 = vpack.c.b16 %v2601, %v2597
    %v2778 = vpack.c.b16 %v2602, %v2598
    %v2779 = vpack.c.b16 %v2607, %v2603
    %v2780 = vpack.c.b16 %v2608, %v2604
    %v2781 = vpack.c.b16 %v2609, %v2605
    %v2782 = vpack.c.b16 %v2610, %v2606
    %v2783 = vpack.c.b16 %v2615, %v2611
    %v2784 = vpack.c.b16 %v2616, %v2612
    %v2785 = vpack.c.b16 %v2617, %v2613
    %v2786 = vpack.c.b16 %v2618, %v2614
    %v2787 = vpack.c.b16 %v2623, %v2619
    %v2788 = vpack.c.b16 %v2624, %v2620
    %v2789 = vpack.c.b16 %v2625, %v2621
    %v2790 = vpack.c.b16 %v2626, %v2622
    %v2791 = vpack.c.b16 %v2631, %v2627
    %v2792 = vpack.c.b16 %v2632, %v2628
    %v2793 = vpack.c.b16 %v2633, %v2629
    %v2794 = vpack.c.b16 %v2634, %v2630
    %v2795 = vpack.c.b16 %v2639, %v2635
    %v2796 = vpack.c.b16 %v2640, %v2636
    %v2797 = vpack.c.b16 %v2641, %v2637
    %v2798 = vpack.c.b16 %v2642, %v2638
    %v2799 = vpack.c.b16 %v2647, %v2643
    %v2800 = vpack.c.b16 %v2648, %v2644
    %v2801 = vpack.c.b16 %v2649, %v2645
    %v2802 = vpack.c.b16 %v2650, %v2646
    %v2803 = vpack.c.b16 %v2655, %v2651
    %v2804 = vpack.c.b16 %v2656, %v2652
    %v2805 = vpack.c.b16 %v2657, %v2653
    %v2806 = vpack.c.b16 %v2658, %v2654
    %v2807 = vpack.c.b16 %v2663, %v2659
    %v2808 = vpack.c.b16 %v2664, %v2660
    %v2809 = vpack.c.b16 %v2665, %v2661
    %v2810 = vpack.c.b16 %v2666, %v2662
    %v2811 = vpack.c.b16 %v2671, %v2667
    %v2812 = vpack.c.b16 %v2672, %v2668
    %v2813 = vpack.c.b16 %v2673, %v2669
    %v2814 = vpack.c.b16 %v2674, %v2670
    %v2815 = vpack.c.b16 %v2679, %v2675
    %v2816 = vpack.c.b16 %v2680, %v2676
    %v2817 = vpack.c.b16 %v2681, %v2677
    %v2818 = vpack.c.b16 %v2682, %v2678
    %v2819 = vpack.c.b16 %v2687, %v2683
    %v2820 = vpack.c.b16 %v2688, %v2684
    %v2821 = vpack.c.b16 %v2689, %v2685
    %v2822 = vpack.c.b16 %v2690, %v2686
    %v2823 = vpack.c.b16 %v2695, %v2691
    %v2824 = vpack.c.b16 %v2696, %v2692
    %v2825 = vpack.c.b16 %v2697, %v2693
    %v2826 = vpack.c.b16 %v2698, %v2694
    %v2827 = vpack.c.b16 %v2703, %v2699
    %v2828 = vpack.c.b16 %v2704, %v2700
    %v2829 = vpack.c.b16 %v2705, %v2701
    %v2830 = vpack.c.b16 %v2706, %v2702
    %v2831 = vpack.c.b16 %v2711, %v2707
    %v2832 = vpack.c.b16 %v2712, %v2708
    %v2833 = vpack.c.b16 %v2713, %v2709
    %v2834 = vpack.c.b16 %v2714, %v2710
    %v2835 = vpack.c.b16 %v2719, %v2715
    %v2836 = vpack.c.b16 %v2720, %v2716
    %v2837 = vpack.c.b16 %v2721, %v2717
    %v2838 = vpack.c.b16 %v2722, %v2718
    %v2839 = vpack.c.b16 %v2727, %v2723
    %v2840 = vpack.c.b16 %v2728, %v2724
    %v2841 = vpack.c.b16 %v2729, %v2725
    %v2842 = vpack.c.b16 %v2730, %v2726
    %v2843 = vpack.c.b16 %v2735, %v2731
    %v2844 = vpack.c.b16 %v2736, %v2732
    %v2845 = vpack.c.b16 %v2737, %v2733
    %v2846 = vpack.c.b16 %v2738, %v2734
    %v2847 = vpack.c.b16 %v2743, %v2739
    %v2848 = vpack.c.b16 %v2744, %v2740
    %v2849 = vpack.c.b16 %v2745, %v2741
    %v2850 = vpack.c.b16 %v2746, %v2742
    %v2851 = vpack.c.b16 %v2751, %v2747
    %v2852 = vpack.c.b16 %v2752, %v2748
    %v2853 = vpack.c.b16 %v2753, %v2749
    %v2854 = vpack.c.b16 %v2754, %v2750
    %v2855 = vpack.c.b16 %v2759, %v2755
    %v2856 = vpack.c.b16 %v2760, %v2756
    %v2857 = vpack.c.b16 %v2761, %v2757
    %v2858 = vpack.c.b16 %v2762, %v2758
    %2955 = vmatprep.subr.bf16.mxu0 %v2764
    %2956 = vmatpush1.bf16.msra.mxu0 %v2763
    %2957 = vmatprep.subr.bf16.mxu0 %v2768
    %2958 = vmatpush1.bf16.msra.mxu0 %v2767
    %2959 = vmatprep.subr.bf16.mxu0 %v2772
    %2960 = vmatpush1.bf16.msra.mxu0 %v2771
    %2961 = vmatprep.subr.bf16.mxu0 %v2776
    %2962 = vmatpush1.bf16.msra.mxu0 %v2775
    %2963 = vmatprep.subr.bf16.mxu0 %v2780
    %2964 = vmatpush1.bf16.msra.mxu0 %v2779
    %2965 = vmatprep.subr.bf16.mxu0 %v2784
    %2966 = vmatpush1.bf16.msra.mxu0 %v2783
    %2967 = vmatprep.subr.bf16.mxu0 %v2788
    %2968 = vmatpush1.bf16.msra.mxu0 %v2787
    %2969 = vmatprep.subr.bf16.mxu0 %v2792
    %2970 = vmatpush1.bf16.msra.mxu0 %v2791
    %2971 = vmatprep.subr.bf16.mxu0 %v2796
    %2972 = vmatpush1.bf16.msra.mxu0 %v2795
    %2973 = vmatprep.subr.bf16.mxu0 %v2800
    %2974 = vmatpush1.bf16.msra.mxu0 %v2799
    %2975 = vmatprep.subr.bf16.mxu0 %v2804
    %2976 = vmatpush1.bf16.msra.mxu0 %v2803
    %2977 = vmatprep.subr.bf16.mxu0 %v2808
    %2978 = vmatpush1.bf16.msra.mxu0 %v2807
    %2979 = vmatprep.subr.bf16.mxu0 %v2812
    %2980 = vmatpush1.bf16.msra.mxu0 %v2811
    %2981 = vmatprep.subr.bf16.mxu0 %v2816
    %2982 = vmatpush1.bf16.msra.mxu0 %v2815
    %2983 = vmatprep.subr.bf16.mxu0 %v2820
    %2984 = vmatpush1.bf16.msra.mxu0 %v2819
    %2985 = vmatprep.subr.bf16.mxu0 %v2824
    %2986 = vmatpush1.bf16.msra.mxu0 %v2823
    %2987 = vmatprep.mubr.bf16.mxu0 %v2470
    %2988 = vmatmul.mubr.bf16.gmra.mrb[0].mxu0 %v2469
    %v2989 = vpop.f32.mrb[0].mxu0
    %v2990 = vadd.f32 0.0, %v2989
    %v2991 = vpop.f32.mrb[0].mxu0
    %v2992 = vadd.f32 0.0, %v2991
    %v2993 = vpop.f32.mrb[0].mxu0
    %v2994 = vpop.f32.mrb[0].mxu0
    %2995 = vdwg.mxu0
    %2996 = vmatprep.subr.bf16.mxu0 %v2828
    %2997 = vmatpush1.bf16.msra.mxu0 %v2827
    %2998 = vmatprep.subr.bf16.mxu0 %v2832
    %2999 = vmatpush1.bf16.msra.mxu0 %v2831
    %3000 = vmatprep.subr.bf16.mxu0 %v2836
    %3001 = vmatpush1.bf16.msra.mxu0 %v2835
    %3002 = vmatprep.subr.bf16.mxu0 %v2840
    %3003 = vmatpush1.bf16.msra.mxu0 %v2839
    %3004 = vmatprep.subr.bf16.mxu0 %v2844
    %3005 = vmatpush1.bf16.msra.mxu0 %v2843
    %3006 = vmatprep.subr.bf16.mxu0 %v2848
    %3007 = vmatpush1.bf16.msra.mxu0 %v2847
    %3008 = vmatprep.subr.bf16.mxu0 %v2852
    %3009 = vmatpush1.bf16.msra.mxu0 %v2851
    %3010 = vmatprep.subr.bf16.mxu0 %v2856
    %3011 = vmatpush1.bf16.msra.mxu0 %v2855
    %3012 = vmatprep.subr.bf16.mxu0 0
    %3013 = vmatpush1.bf16.msra.mxu0 0
    %3014 = vmatprep.subr.bf16.mxu0 0
    %3015 = vmatpush1.bf16.msra.mxu0 0
    %3016 = vmatprep.subr.bf16.mxu0 0
    %3017 = vmatpush1.bf16.msra.mxu0 0
    %3018 = vmatprep.subr.bf16.mxu0 0
    %3019 = vmatpush1.bf16.msra.mxu0 0
    %3020 = vmatprep.subr.bf16.mxu0 0
    %3021 = vmatpush1.bf16.msra.mxu0 0
    %3022 = vmatprep.subr.bf16.mxu0 0
    %3023 = vmatpush1.bf16.msra.mxu0 0
    %3024 = vmatprep.subr.bf16.mxu0 0
    %3025 = vmatpush1.bf16.msra.mxu0 0
    %3026 = vmatprep.subr.bf16.mxu0 0
    %3027 = vmatpush1.bf16.msra.mxu0 0
    %3028 = vmatprep.mubr.bf16.mxu0 0
    %3029 = vmatmul.mubr.bf16.gmra.mrb[0].mxu0 %v2471
    %v3030 = vpop.f32.mrb[0].mxu0
    %v3031 = vadd.f32 %v2990, %v3030
    %v3032 = vpop.f32.mrb[0].mxu0
    %v3033 = vadd.f32 %v2992, %v3032
    %v3034 = vpop.f32.mrb[0].mxu0
    %v3035 = vpop.f32.mrb[0].mxu0
    %3036 = vdwg.mxu0
    %3037 = vmatprep.subr.bf16.mxu0 %v2766
    %3038 = vmatpush1.bf16.msra.mxu0 %v2765
    %3039 = vmatprep.subr.bf16.mxu0 %v2770
    %3040 = vmatpush1.bf16.msra.mxu0 %v2769
    %3041 = vmatprep.subr.bf16.mxu0 %v2774
    %3042 = vmatpush1.bf16.msra.mxu0 %v2773
    %3043 = vmatprep.subr.bf16.mxu0 %v2778
    %3044 = vmatpush1.bf16.msra.mxu0 %v2777
    %3045 = vmatprep.subr.bf16.mxu0 %v2782
    %3046 = vmatpush1.bf16.msra.mxu0 %v2781
    %3047 = vmatprep.subr.bf16.mxu0 %v2786
    %3048 = vmatpush1.bf16.msra.mxu0 %v2785
    %3049 = vmatprep.subr.bf16.mxu0 %v2790
    %3050 = vmatpush1.bf16.msra.mxu0 %v2789
    %3051 = vmatprep.subr.bf16.mxu0 %v2794
    %3052 = vmatpush1.bf16.msra.mxu0 %v2793
    %3053 = vmatprep.subr.bf16.mxu0 %v2798
    %3054 = vmatpush1.bf16.msra.mxu0 %v2797
    %3055 = vmatprep.subr.bf16.mxu0 %v2802
    %3056 = vmatpush1.bf16.msra.mxu0 %v2801
    %3057 = vmatprep.subr.bf16.mxu0 %v2806
    %3058 = vmatpush1.bf16.msra.mxu0 %v2805
    %3059 = vmatprep.subr.bf16.mxu0 %v2810
    %3060 = vmatpush1.bf16.msra.mxu0 %v2809
    %3061 = vmatprep.subr.bf16.mxu0 %v2814
    %3062 = vmatpush1.bf16.msra.mxu0 %v2813
    %3063 = vmatprep.subr.bf16.mxu0 %v2818
    %3064 = vmatpush1.bf16.msra.mxu0 %v2817
    %3065 = vmatprep.subr.bf16.mxu0 %v2822
    %3066 = vmatpush1.bf16.msra.mxu0 %v2821
    %3067 = vmatprep.subr.bf16.mxu0 %v2826
    %3068 = vmatpush1.bf16.msra.mxu0 %v2825
    %3069 = vmatprep.mubr.bf16.mxu0 %v2470
    %3070 = vmatmul.mubr.bf16.gmra.mrb[0].mxu0 %v2469
    %v3071 = vpop.f32.mrb[0].mxu0
    %v3072 = vadd.f32 0.0, %v3071
    %v3073 = vpop.f32.mrb[0].mxu0
    %v3074 = vadd.f32 0.0, %v3073
    %v3075 = vpop.f32.mrb[0].mxu0
    %v3076 = vpop.f32.mrb[0].mxu0
    %3077 = vdwg.mxu0
    %3078 = vmatprep.subr.bf16.mxu0 %v2830
    %3079 = vmatpush1.bf16.msra.mxu0 %v2829
    %3080 = vmatprep.subr.bf16.mxu0 %v2834
    %3081 = vmatpush1.bf16.msra.mxu0 %v2833
    %3082 = vmatprep.subr.bf16.mxu0 %v2838
    %3083 = vmatpush1.bf16.msra.mxu0 %v2837
    %3084 = vmatprep.subr.bf16.mxu0 %v2842
    %3085 = vmatpush1.bf16.msra.mxu0 %v2841
    %3086 = vmatprep.subr.bf16.mxu0 %v2846
    %3087 = vmatpush1.bf16.msra.mxu0 %v2845
    %3088 = vmatprep.subr.bf16.mxu0 %v2850
    %3089 = vmatpush1.bf16.msra.mxu0 %v2849
    %3090 = vmatprep.subr.bf16.mxu0 %v2854
    %3091 = vmatpush1.bf16.msra.mxu0 %v2853
    %3092 = vmatprep.subr.bf16.mxu0 %v2858
    %3093 = vmatpush1.bf16.msra.mxu0 %v2857
    %3094 = vmatprep.subr.bf16.mxu0 0
    %3095 = vmatpush1.bf16.msra.mxu0 0
    %3096 = vmatprep.subr.bf16.mxu0 0
    %3097 = vmatpush1.bf16.msra.mxu0 0
    %3098 = vmatprep.subr.bf16.mxu0 0
    %3099 = vmatpush1.bf16.msra.mxu0 0
    %3100 = vmatprep.subr.bf16.mxu0 0
    %3101 = vmatpush1.bf16.msra.mxu0 0
    %3102 = vmatprep.subr.bf16.mxu0 0
    %3103 = vmatpush1.bf16.msra.mxu0 0
    %3104 = vmatprep.subr.bf16.mxu0 0
    %3105 = vmatpush1.bf16.msra.mxu0 0
    %3106 = vmatprep.subr.bf16.mxu0 0
    %3107 = vmatpush1.bf16.msra.mxu0 0
    %3108 = vmatprep.subr.bf16.mxu0 0
    %3109 = vmatpush1.bf16.msra.mxu0 0
    %3110 = vmatprep.mubr.bf16.mxu0 0
    %3111 = vmatmul.mubr.bf16.gmra.mrb[0].mxu0 %v2471
    %v3112 = vpop.f32.mrb[0].mxu0
    %v3113 = vadd.f32 %v3072, %v3112
    %v3114 = vpop.f32.mrb[0].mxu0
    %v3115 = vadd.f32 %v3074, %v3114
    %v3116 = vpop.f32.mrb[0].mxu0
    %v3117 = vpop.f32.mrb[0].mxu0
    %3118 = vdwg.mxu0
    %v3215 = vunpack.c.l.b16 %v2273
    %v3216 = vunpack.c.h.b16 %v2273
    %v3217 = vunpack.c.l.b16 %v2274
    %v3218 = vunpack.c.h.b16 %v2274
    %v3219 = vunpack.c.l.b16 %v2275
    %v3220 = vunpack.c.h.b16 %v2275
    %v3221 = vunpack.c.l.b16 %v2276
    %v3222 = vunpack.c.h.b16 %v2276
    %v3223 = vunpack.c.l.b16 %v2277
    %v3224 = vunpack.c.h.b16 %v2277
    %v3225 = vunpack.c.l.b16 %v2278
    %v3226 = vunpack.c.h.b16 %v2278
    %v3227 = vunpack.c.l.b16 %v2279
    %v3228 = vunpack.c.h.b16 %v2279
    %v3229 = vunpack.c.l.b16 %v2280
    %v3230 = vunpack.c.h.b16 %v2280
    %v3231 = vunpack.c.l.b16 %v2281
    %v3232 = vunpack.c.h.b16 %v2281
    %v3233 = vunpack.c.l.b16 %v2282
    %v3234 = vunpack.c.h.b16 %v2282
    %v3235 = vunpack.c.l.b16 %v2283
    %v3236 = vunpack.c.h.b16 %v2283
    %v3237 = vunpack.c.l.b16 %v2284
    %v3238 = vunpack.c.h.b16 %v2284
    %v3239 = vunpack.c.l.b16 %v2285
    %v3240 = vunpack.c.h.b16 %v2285
    %v3241 = vunpack.c.l.b16 %v2286
    %v3242 = vunpack.c.h.b16 %v2286
    %v3243 = vunpack.c.l.b16 %v2287
    %v3244 = vunpack.c.h.b16 %v2287
    %v3245 = vunpack.c.l.b16 %v2288
    %v3246 = vunpack.c.h.b16 %v2288
    %v3247 = vunpack.c.l.b16 %v2289
    %v3248 = vunpack.c.h.b16 %v2289
    %v3249 = vunpack.c.l.b16 %v2290
    %v3250 = vunpack.c.h.b16 %v2290
    %v3251 = vunpack.c.l.b16 %v2291
    %v3252 = vunpack.c.h.b16 %v2291
    %v3253 = vunpack.c.l.b16 %v2292
    %v3254 = vunpack.c.h.b16 %v2292
    %v3255 = vunpack.c.l.b16 %v2293
    %v3256 = vunpack.c.h.b16 %v2293
    %v3257 = vunpack.c.l.b16 %v2294
    %v3258 = vunpack.c.h.b16 %v2294
    %v3259 = vunpack.c.l.b16 %v2295
    %v3260 = vunpack.c.h.b16 %v2295
    %v3261 = vunpack.c.l.b16 %v2296
    %v3262 = vunpack.c.h.b16 %v2296
    %v3263 = vunpack.c.l.b16 %v2297
    %v3264 = vunpack.c.h.b16 %v2297
    %v3265 = vunpack.c.l.b16 %v2298
    %v3266 = vunpack.c.h.b16 %v2298
    %v3267 = vunpack.c.l.b16 %v2299
    %v3268 = vunpack.c.h.b16 %v2299
    %v3269 = vunpack.c.l.b16 %v2300
    %v3270 = vunpack.c.h.b16 %v2300
    %v3271 = vunpack.c.l.b16 %v2301
    %v3272 = vunpack.c.h.b16 %v2301
    %v3273 = vunpack.c.l.b16 %v2302
    %v3274 = vunpack.c.h.b16 %v2302
    %v3275 = vunpack.c.l.b16 %v2303
    %v3276 = vunpack.c.h.b16 %v2303
    %v3277 = vunpack.c.l.b16 %v2304
    %v3278 = vunpack.c.h.b16 %v2304
    %v3279 = vunpack.c.l.b16 %v2305
    %v3280 = vunpack.c.h.b16 %v2305
    %v3281 = vunpack.c.l.b16 %v2306
    %v3282 = vunpack.c.h.b16 %v2306
    %v3283 = vunpack.c.l.b16 %v2307
    %v3284 = vunpack.c.h.b16 %v2307
    %v3285 = vunpack.c.l.b16 %v2308
    %v3286 = vunpack.c.h.b16 %v2308
    %v3287 = vunpack.c.l.b16 %v2309
    %v3288 = vunpack.c.h.b16 %v2309
    %v3289 = vunpack.c.l.b16 %v2310
    %v3290 = vunpack.c.h.b16 %v2310
    %v3291 = vunpack.c.l.b16 %v2311
    %v3292 = vunpack.c.h.b16 %v2311
    %v3293 = vunpack.c.l.b16 %v2312
    %v3294 = vunpack.c.h.b16 %v2312
    %v3295 = vunpack.c.l.b16 %v2313
    %v3296 = vunpack.c.h.b16 %v2313
    %v3297 = vunpack.c.l.b16 %v2314
    %v3298 = vunpack.c.h.b16 %v2314
    %v3299 = vunpack.c.l.b16 %v2315
    %v3300 = vunpack.c.h.b16 %v2315
    %v3301 = vunpack.c.l.b16 %v2316
    %v3302 = vunpack.c.h.b16 %v2316
    %v3303 = vunpack.c.l.b16 %v2317
    %v3304 = vunpack.c.h.b16 %v2317
    %v3305 = vunpack.c.l.b16 %v2318
    %v3306 = vunpack.c.h.b16 %v2318
    %v3307 = vunpack.c.l.b16 %v2319
    %v3308 = vunpack.c.h.b16 %v2319
    %v3309 = vunpack.c.l.b16 %v2320
    %v3310 = vunpack.c.h.b16 %v2320
    %v3311 = vunpack.c.l.b16 %v2321
    %v3312 = vunpack.c.h.b16 %v2321
    %v3313 = vunpack.c.l.b16 %v2322
    %v3314 = vunpack.c.h.b16 %v2322
    %v3315 = vunpack.c.l.b16 %v2323
    %v3316 = vunpack.c.h.b16 %v2323
    %v3317 = vunpack.c.l.b16 %v2324
    %v3318 = vunpack.c.h.b16 %v2324
    %v3319 = vunpack.c.l.b16 %v2325
    %v3320 = vunpack.c.h.b16 %v2325
    %v3321 = vunpack.c.l.b16 %v2326
    %v3322 = vunpack.c.h.b16 %v2326
    %v3323 = vunpack.c.l.b16 %v2327
    %v3324 = vunpack.c.h.b16 %v2327
    %v3325 = vunpack.c.l.b16 %v2328
    %v3326 = vunpack.c.h.b16 %v2328
    %v3327 = vunpack.c.l.b16 %v2329
    %v3328 = vunpack.c.h.b16 %v2329
    %v3329 = vunpack.c.l.b16 %v2330
    %v3330 = vunpack.c.h.b16 %v2330
    %v3331 = vunpack.c.l.b16 %v2331
    %v3332 = vunpack.c.h.b16 %v2331
    %v3333 = vunpack.c.l.b16 %v2332
    %v3334 = vunpack.c.h.b16 %v2332
    %v3335 = vunpack.c.l.b16 %v2333
    %v3336 = vunpack.c.h.b16 %v2333
    %v3337 = vunpack.c.l.b16 %v2334
    %v3338 = vunpack.c.h.b16 %v2334
    %v3339 = vunpack.c.l.b16 %v2335
    %v3340 = vunpack.c.h.b16 %v2335
    %v3341 = vunpack.c.l.b16 %v2336
    %v3342 = vunpack.c.h.b16 %v2336
    %v3343 = vunpack.c.l.b16 %v2337
    %v3344 = vunpack.c.h.b16 %v2337
    %v3345 = vunpack.c.l.b16 %v2338
    %v3346 = vunpack.c.h.b16 %v2338
    %v3347 = vunpack.c.l.b16 %v2339
    %v3348 = vunpack.c.h.b16 %v2339
    %v3349 = vunpack.c.l.b16 %v2340
    %v3350 = vunpack.c.h.b16 %v2340
    %v3351 = vunpack.c.l.b16 %v2341
    %v3352 = vunpack.c.h.b16 %v2341
    %v3353 = vunpack.c.l.b16 %v2342
    %v3354 = vunpack.c.h.b16 %v2342
    %v3355 = vunpack.c.l.b16 %v2343
    %v3356 = vunpack.c.h.b16 %v2343
    %v3357 = vunpack.c.l.b16 %v2344
    %v3358 = vunpack.c.h.b16 %v2344
    %v3359 = vunpack.c.l.b16 %v2345
    %v3360 = vunpack.c.h.b16 %v2345
    %v3361 = vunpack.c.l.b16 %v2346
    %v3362 = vunpack.c.h.b16 %v2346
    %v3363 = vunpack.c.l.b16 %v2347
    %v3364 = vunpack.c.h.b16 %v2347
    %v3365 = vunpack.c.l.b16 %v2348
    %v3366 = vunpack.c.h.b16 %v2348
    %v3367 = vunpack.c.l.b16 %v2349
    %v3368 = vunpack.c.h.b16 %v2349
    %v3369 = vunpack.c.l.b16 %v2350
    %v3370 = vunpack.c.h.b16 %v2350
    %v3371 = vunpack.c.l.b16 %v2351
    %v3372 = vunpack.c.h.b16 %v2351
    %v3373 = vunpack.c.l.b16 %v2352
    %v3374 = vunpack.c.h.b16 %v2352
    %v3375 = vunpack.c.l.b16 %v2353
    %v3376 = vunpack.c.h.b16 %v2353
    %v3377 = vunpack.c.l.b16 %v2354
    %v3378 = vunpack.c.h.b16 %v2354
    %v3379 = vunpack.c.l.b16 %v2355
    %v3380 = vunpack.c.h.b16 %v2355
    %v3381 = vunpack.c.l.b16 %v2356
    %v3382 = vunpack.c.h.b16 %v2356
    %v3383 = vunpack.c.l.b16 %v2357
    %v3384 = vunpack.c.h.b16 %v2357
    %v3385 = vunpack.c.l.b16 %v2358
    %v3386 = vunpack.c.h.b16 %v2358
    %v3387 = vunpack.c.l.b16 %v2359
    %v3388 = vunpack.c.h.b16 %v2359
    %v3389 = vunpack.c.l.b16 %v2360
    %v3390 = vunpack.c.h.b16 %v2360
    %v3391 = vunpack.c.l.b16 %v2361
    %v3392 = vunpack.c.h.b16 %v2361
    %v3393 = vunpack.c.l.b16 %v2362
    %v3394 = vunpack.c.h.b16 %v2362
    %v3395 = vunpack.c.l.b16 %v2363
    %v3396 = vunpack.c.h.b16 %v2363
    %v3397 = vunpack.c.l.b16 %v2364
    %v3398 = vunpack.c.h.b16 %v2364
    %v3399 = vunpack.c.l.b16 %v2365
    %v3400 = vunpack.c.h.b16 %v2365
    %v3401 = vunpack.c.l.b16 %v2366
    %v3402 = vunpack.c.h.b16 %v2366
    %v3403 = vunpack.c.l.b16 %v2367
    %v3404 = vunpack.c.h.b16 %v2367
    %v3405 = vunpack.c.l.b16 %v2368
    %v3406 = vunpack.c.h.b16 %v2368
    %v3407 = vpack.c.b16 %v3219, %v3215
    %v3408 = vpack.c.b16 %v3220, %v3216
    %v3409 = vpack.c.b16 %v3221, %v3217
    %v3410 = vpack.c.b16 %v3222, %v3218
    %v3411 = vpack.c.b16 %v3227, %v3223
    %v3412 = vpack.c.b16 %v3228, %v3224
    %v3413 = vpack.c.b16 %v3229, %v3225
    %v3414 = vpack.c.b16 %v3230, %v3226
    %v3415 = vpack.c.b16 %v3235, %v3231
    %v3416 = vpack.c.b16 %v3236, %v3232
    %v3417 = vpack.c.b16 %v3237, %v3233
    %v3418 = vpack.c.b16 %v3238, %v3234
    %v3419 = vpack.c.b16 %v3243, %v3239
    %v3420 = vpack.c.b16 %v3244, %v3240
    %v3421 = vpack.c.b16 %v3245, %v3241
    %v3422 = vpack.c.b16 %v3246, %v3242
    %v3423 = vpack.c.b16 %v3251, %v3247
    %v3424 = vpack.c.b16 %v3252, %v3248
    %v3425 = vpack.c.b16 %v3253, %v3249
    %v3426 = vpack.c.b16 %v3254, %v3250
    %v3427 = vpack.c.b16 %v3259, %v3255
    %v3428 = vpack.c.b16 %v3260, %v3256
    %v3429 = vpack.c.b16 %v3261, %v3257
    %v3430 = vpack.c.b16 %v3262, %v3258
    %v3431 = vpack.c.b16 %v3267, %v3263
    %v3432 = vpack.c.b16 %v3268, %v3264
    %v3433 = vpack.c.b16 %v3269, %v3265
    %v3434 = vpack.c.b16 %v3270, %v3266
    %v3435 = vpack.c.b16 %v3275, %v3271
    %v3436 = vpack.c.b16 %v3276, %v3272
    %v3437 = vpack.c.b16 %v3277, %v3273
    %v3438 = vpack.c.b16 %v3278, %v3274
    %v3439 = vpack.c.b16 %v3283, %v3279
    %v3440 = vpack.c.b16 %v3284, %v3280
    %v3441 = vpack.c.b16 %v3285, %v3281
    %v3442 = vpack.c.b16 %v3286, %v3282
    %v3443 = vpack.c.b16 %v3291, %v3287
    %v3444 = vpack.c.b16 %v3292, %v3288
    %v3445 = vpack.c.b16 %v3293, %v3289
    %v3446 = vpack.c.b16 %v3294, %v3290
    %v3447 = vpack.c.b16 %v3299, %v3295
    %v3448 = vpack.c.b16 %v3300, %v3296
    %v3449 = vpack.c.b16 %v3301, %v3297
    %v3450 = vpack.c.b16 %v3302, %v3298
    %v3451 = vpack.c.b16 %v3307, %v3303
    %v3452 = vpack.c.b16 %v3308, %v3304
    %v3453 = vpack.c.b16 %v3309, %v3305
    %v3454 = vpack.c.b16 %v3310, %v3306
    %v3455 = vpack.c.b16 %v3315, %v3311
    %v3456 = vpack.c.b16 %v3316, %v3312
    %v3457 = vpack.c.b16 %v3317, %v3313
    %v3458 = vpack.c.b16 %v3318, %v3314
    %v3459 = vpack.c.b16 %v3323, %v3319
    %v3460 = vpack.c.b16 %v3324, %v3320
    %v3461 = vpack.c.b16 %v3325, %v3321
    %v3462 = vpack.c.b16 %v3326, %v3322
    %v3463 = vpack.c.b16 %v3331, %v3327
    %v3464 = vpack.c.b16 %v3332, %v3328
    %v3465 = vpack.c.b16 %v3333, %v3329
    %v3466 = vpack.c.b16 %v3334, %v3330
    %v3467 = vpack.c.b16 %v3339, %v3335
    %v3468 = vpack.c.b16 %v3340, %v3336
    %v3469 = vpack.c.b16 %v3341, %v3337
    %v3470 = vpack.c.b16 %v3342, %v3338
    %v3471 = vpack.c.b16 %v3347, %v3343
    %v3472 = vpack.c.b16 %v3348, %v3344
    %v3473 = vpack.c.b16 %v3349, %v3345
    %v3474 = vpack.c.b16 %v3350, %v3346
    %v3475 = vpack.c.b16 %v3355, %v3351
    %v3476 = vpack.c.b16 %v3356, %v3352
    %v3477 = vpack.c.b16 %v3357, %v3353
    %v3478 = vpack.c.b16 %v3358, %v3354
    %v3479 = vpack.c.b16 %v3363, %v3359
    %v3480 = vpack.c.b16 %v3364, %v3360
    %v3481 = vpack.c.b16 %v3365, %v3361
    %v3482 = vpack.c.b16 %v3366, %v3362
    %v3483 = vpack.c.b16 %v3371, %v3367
    %v3484 = vpack.c.b16 %v3372, %v3368
    %v3485 = vpack.c.b16 %v3373, %v3369
    %v3486 = vpack.c.b16 %v3374, %v3370
    %v3487 = vpack.c.b16 %v3379, %v3375
    %v3488 = vpack.c.b16 %v3380, %v3376
    %v3489 = vpack.c.b16 %v3381, %v3377
    %v3490 = vpack.c.b16 %v3382, %v3378
    %v3491 = vpack.c.b16 %v3387, %v3383
    %v3492 = vpack.c.b16 %v3388, %v3384
    %v3493 = vpack.c.b16 %v3389, %v3385
    %v3494 = vpack.c.b16 %v3390, %v3386
    %v3495 = vpack.c.b16 %v3395, %v3391
    %v3496 = vpack.c.b16 %v3396, %v3392
    %v3497 = vpack.c.b16 %v3397, %v3393
    %v3498 = vpack.c.b16 %v3398, %v3394
    %v3499 = vpack.c.b16 %v3403, %v3399
    %v3500 = vpack.c.b16 %v3404, %v3400
    %v3501 = vpack.c.b16 %v3405, %v3401
    %v3502 = vpack.c.b16 %v3406, %v3402
    %3599 = vmatprep.subr.bf16.mxu0 %v3408
    %3600 = vmatpush1.bf16.msra.mxu0 %v3407
    %3601 = vmatprep.subr.bf16.mxu0 %v3412
    %3602 = vmatpush1.bf16.msra.mxu0 %v3411
    %3603 = vmatprep.subr.bf16.mxu0 %v3416
    %3604 = vmatpush1.bf16.msra.mxu0 %v3415
    %3605 = vmatprep.subr.bf16.mxu0 %v3420
    %3606 = vmatpush1.bf16.msra.mxu0 %v3419
    %3607 = vmatprep.subr.bf16.mxu0 %v3424
    %3608 = vmatpush1.bf16.msra.mxu0 %v3423
    %3609 = vmatprep.subr.bf16.mxu0 %v3428
    %3610 = vmatpush1.bf16.msra.mxu0 %v3427
    %3611 = vmatprep.subr.bf16.mxu0 %v3432
    %3612 = vmatpush1.bf16.msra.mxu0 %v3431
    %3613 = vmatprep.subr.bf16.mxu0 %v3436
    %3614 = vmatpush1.bf16.msra.mxu0 %v3435
    %3615 = vmatprep.subr.bf16.mxu0 %v3440
    %3616 = vmatpush1.bf16.msra.mxu0 %v3439
    %3617 = vmatprep.subr.bf16.mxu0 %v3444
    %3618 = vmatpush1.bf16.msra.mxu0 %v3443
    %3619 = vmatprep.subr.bf16.mxu0 %v3448
    %3620 = vmatpush1.bf16.msra.mxu0 %v3447
    %3621 = vmatprep.subr.bf16.mxu0 %v3452
    %3622 = vmatpush1.bf16.msra.mxu0 %v3451
    %3623 = vmatprep.subr.bf16.mxu0 %v3456
    %3624 = vmatpush1.bf16.msra.mxu0 %v3455
    %3625 = vmatprep.subr.bf16.mxu0 %v3460
    %3626 = vmatpush1.bf16.msra.mxu0 %v3459
    %3627 = vmatprep.subr.bf16.mxu0 %v3464
    %3628 = vmatpush1.bf16.msra.mxu0 %v3463
    %3629 = vmatprep.subr.bf16.mxu0 %v3468
    %3630 = vmatpush1.bf16.msra.mxu0 %v3467
    %3631 = vmatprep.mubr.bf16.mxu0 %v2271
    %3632 = vmatmul.mubr.bf16.gmra.mrb[0].mxu0 %v2270
    %v3633 = vpop.f32.mrb[0].mxu0
    %v3634 = vadd.f32 %v3031, %v3633
    %v3635 = vpop.f32.mrb[0].mxu0
    %v3636 = vadd.f32 %v3033, %v3635
    %v3637 = vpop.f32.mrb[0].mxu0
    %v3638 = vpop.f32.mrb[0].mxu0
    %3639 = vdwg.mxu0
    %3640 = vmatprep.subr.bf16.mxu0 %v3472
    %3641 = vmatpush1.bf16.msra.mxu0 %v3471
    %3642 = vmatprep.subr.bf16.mxu0 %v3476
    %3643 = vmatpush1.bf16.msra.mxu0 %v3475
    %3644 = vmatprep.subr.bf16.mxu0 %v3480
    %3645 = vmatpush1.bf16.msra.mxu0 %v3479
    %3646 = vmatprep.subr.bf16.mxu0 %v3484
    %3647 = vmatpush1.bf16.msra.mxu0 %v3483
    %3648 = vmatprep.subr.bf16.mxu0 %v3488
    %3649 = vmatpush1.bf16.msra.mxu0 %v3487
    %3650 = vmatprep.subr.bf16.mxu0 %v3492
    %3651 = vmatpush1.bf16.msra.mxu0 %v3491
    %3652 = vmatprep.subr.bf16.mxu0 %v3496
    %3653 = vmatpush1.bf16.msra.mxu0 %v3495
    %3654 = vmatprep.subr.bf16.mxu0 %v3500
    %3655 = vmatpush1.bf16.msra.mxu0 %v3499
    %3656 = vmatprep.subr.bf16.mxu0 0
    %3657 = vmatpush1.bf16.msra.mxu0 0
    %3658 = vmatprep.subr.bf16.mxu0 0
    %3659 = vmatpush1.bf16.msra.mxu0 0
    %3660 = vmatprep.subr.bf16.mxu0 0
    %3661 = vmatpush1.bf16.msra.mxu0 0
    %3662 = vmatprep.subr.bf16.mxu0 0
    %3663 = vmatpush1.bf16.msra.mxu0 0
    %3664 = vmatprep.subr.bf16.mxu0 0
    %3665 = vmatpush1.bf16.msra.mxu0 0
    %3666 = vmatprep.subr.bf16.mxu0 0
    %3667 = vmatpush1.bf16.msra.mxu0 0
    %3668 = vmatprep.subr.bf16.mxu0 0
    %3669 = vmatpush1.bf16.msra.mxu0 0
    %3670 = vmatprep.subr.bf16.mxu0 0
    %3671 = vmatpush1.bf16.msra.mxu0 0
    %3672 = vmatprep.mubr.bf16.mxu0 0
    %3673 = vmatmul.mubr.bf16.gmra.mrb[0].mxu0 %v2272
    %v3674 = vpop.f32.mrb[0].mxu0
    %v3675 = vadd.f32 %v3634, %v3674
    %v3676 = vpop.f32.mrb[0].mxu0
    %v3677 = vadd.f32 %v3636, %v3676
    %v3678 = vpop.f32.mrb[0].mxu0
    %v3679 = vpop.f32.mrb[0].mxu0
    %3680 = vdwg.mxu0
    %3681 = vmatprep.subr.bf16.mxu0 %v3410
    %3682 = vmatpush1.bf16.msra.mxu0 %v3409
    %3683 = vmatprep.subr.bf16.mxu0 %v3414
    %3684 = vmatpush1.bf16.msra.mxu0 %v3413
    %3685 = vmatprep.subr.bf16.mxu0 %v3418
    %3686 = vmatpush1.bf16.msra.mxu0 %v3417
    %3687 = vmatprep.subr.bf16.mxu0 %v3422
    %3688 = vmatpush1.bf16.msra.mxu0 %v3421
    %3689 = vmatprep.subr.bf16.mxu0 %v3426
    %3690 = vmatpush1.bf16.msra.mxu0 %v3425
    %3691 = vmatprep.subr.bf16.mxu0 %v3430
    %3692 = vmatpush1.bf16.msra.mxu0 %v3429
    %3693 = vmatprep.subr.bf16.mxu0 %v3434
    %3694 = vmatpush1.bf16.msra.mxu0 %v3433
    %3695 = vmatprep.subr.bf16.mxu0 %v3438
    %3696 = vmatpush1.bf16.msra.mxu0 %v3437
    %3697 = vmatprep.subr.bf16.mxu0 %v3442
    %3698 = vmatpush1.bf16.msra.mxu0 %v3441
    %3699 = vmatprep.subr.bf16.mxu0 %v3446
    %3700 = vmatpush1.bf16.msra.mxu0 %v3445
    %3701 = vmatprep.subr.bf16.mxu0 %v3450
    %3702 = vmatpush1.bf16.msra.mxu0 %v3449
    %3703 = vmatprep.subr.bf16.mxu0 %v3454
    %3704 = vmatpush1.bf16.msra.mxu0 %v3453
    %3705 = vmatprep.subr.bf16.mxu0 %v3458
    %3706 = vmatpush1.bf16.msra.mxu0 %v3457
    %3707 = vmatprep.subr.bf16.mxu0 %v3462
    %3708 = vmatpush1.bf16.msra.mxu0 %v3461
    %3709 = vmatprep.subr.bf16.mxu0 %v3466
    %3710 = vmatpush1.bf16.msra.mxu0 %v3465
    %3711 = vmatprep.subr.bf16.mxu0 %v3470
    %3712 = vmatpush1.bf16.msra.mxu0 %v3469
    %3713 = vmatprep.mubr.bf16.mxu0 %v2271
    %3714 = vmatmul.mubr.bf16.gmra.mrb[0].mxu0 %v2270
    %v3715 = vpop.f32.mrb[0].mxu0
    %v3716 = vadd.f32 %v3113, %v3715
    %v3717 = vpop.f32.mrb[0].mxu0
    %v3718 = vadd.f32 %v3115, %v3717
    %v3719 = vpop.f32.mrb[0].mxu0
    %v3720 = vpop.f32.mrb[0].mxu0
    %3721 = vdwg.mxu0
    %3722 = vmatprep.subr.bf16.mxu0 %v3474
    %3723 = vmatpush1.bf16.msra.mxu0 %v3473
    %3724 = vmatprep.subr.bf16.mxu0 %v3478
    %3725 = vmatpush1.bf16.msra.mxu0 %v3477
    %3726 = vmatprep.subr.bf16.mxu0 %v3482
    %3727 = vmatpush1.bf16.msra.mxu0 %v3481
    %3728 = vmatprep.subr.bf16.mxu0 %v3486
    %3729 = vmatpush1.bf16.msra.mxu0 %v3485
    %3730 = vmatprep.subr.bf16.mxu0 %v3490
    %3731 = vmatpush1.bf16.msra.mxu0 %v3489
    %3732 = vmatprep.subr.bf16.mxu0 %v3494
    %3733 = vmatpush1.bf16.msra.mxu0 %v3493
    %3734 = vmatprep.subr.bf16.mxu0 %v3498
    %3735 = vmatpush1.bf16.msra.mxu0 %v3497
    %3736 = vmatprep.subr.bf16.mxu0 %v3502
    %3737 = vmatpush1.bf16.msra.mxu0 %v3501
    %3738 = vmatprep.subr.bf16.mxu0 0
    %3739 = vmatpush1.bf16.msra.mxu0 0
    %3740 = vmatprep.subr.bf16.mxu0 0
    %3741 = vmatpush1.bf16.msra.mxu0 0
    %3742 = vmatprep.subr.bf16.mxu0 0
    %3743 = vmatpush1.bf16.msra.mxu0 0
    %3744 = vmatprep.subr.bf16.mxu0 0
    %3745 = vmatpush1.bf16.msra.mxu0 0
    %3746 = vmatprep.subr.bf16.mxu0 0
    %3747 = vmatpush1.bf16.msra.mxu0 0
    %3748 = vmatprep.subr.bf16.mxu0 0
    %3749 = vmatpush1.bf16.msra.mxu0 0
    %3750 = vmatprep.subr.bf16.mxu0 0
    %3751 = vmatpush1.bf16.msra.mxu0 0
    %3752 = vmatprep.subr.bf16.mxu0 0
    %3753 = vmatpush1.bf16.msra.mxu0 0
    %3754 = vmatprep.mubr.bf16.mxu0 0
    %3755 = vmatmul.mubr.bf16.gmra.mrb[0].mxu0 %v2272
    %v3756 = vpop.f32.mrb[0].mxu0
    %v3757 = vadd.f32 %v3716, %v3756
    %v3758 = vpop.f32.mrb[0].mxu0
    %v3759 = vadd.f32 %v3718, %v3758
    %v3760 = vpop.f32.mrb[0].mxu0
    %v3761 = vpop.f32.mrb[0].mxu0
    %3762 = vdwg.mxu0
    %s3763 = scalar_lea.vmem [#allocation6], 1536
    %v3764 = vld [vmem:[%s3763] sm:$0xff]
    %v3765 = vld [vmem:[%s3763 + $0x8] sm:$0xff]
    %v3766 = vld [vmem:[%s3763 + $0x10] sm:$0xff]
    %v3767 = vld [vmem:[%s3763 + $0x18] sm:$0xff]
    %v3768 = vld [vmem:[%s3763 + $0x20] sm:$0xff]
    %v3769 = vld [vmem:[%s3763 + $0x28] sm:$0xff]
    %v3770 = vld [vmem:[%s3763 + $0x30] sm:$0xff]
    %v3771 = vld [vmem:[%s3763 + $0x38] sm:$0xff]
    %v3772 = vld [vmem:[%s3763 + $0x40] sm:$0xff]
    %v3773 = vld [vmem:[%s3763 + $0x48] sm:$0xff]
    %v3774 = vld [vmem:[%s3763 + $0x50] sm:$0xff]
    %v3775 = vld [vmem:[%s3763 + $0x58] sm:$0xff]
    %v3776 = vld [vmem:[%s3763 + $0x60] sm:$0xff]
    %v3777 = vld [vmem:[%s3763 + $0x68] sm:$0xff]
    %v3778 = vld [vmem:[%s3763 + $0x70] sm:$0xff]
    %v3779 = vld [vmem:[%s3763 + $0x78] sm:$0xff]
    %v3780 = vld [vmem:[%s3763 + $0x80] sm:$0xff]
    %v3781 = vld [vmem:[%s3763 + $0x88] sm:$0xff]
    %v3782 = vld [vmem:[%s3763 + $0x90] sm:$0xff]
    %v3783 = vld [vmem:[%s3763 + $0x98] sm:$0xff]
    %v3784 = vld [vmem:[%s3763 + $0xa0] sm:$0xff]
    %v3785 = vld [vmem:[%s3763 + $0xa8] sm:$0xff]
    %v3786 = vld [vmem:[%s3763 + $0xb0] sm:$0xff]
    %v3787 = vld [vmem:[%s3763 + $0xb8] sm:$0xff]
    %v3788 = vld [vmem:[%s3763 + $0xc0] sm:$0xff]
    %v3789 = vld [vmem:[%s3763 + $0xc8] sm:$0xff]
    %v3790 = vld [vmem:[%s3763 + $0xd0] sm:$0xff]
    %v3791 = vld [vmem:[%s3763 + $0xd8] sm:$0xff]
    %v3792 = vld [vmem:[%s3763 + $0xe0] sm:$0xff]
    %v3793 = vld [vmem:[%s3763 + $0xe8] sm:$0xff]
    %v3794 = vld [vmem:[%s3763 + $0xf0] sm:$0xff]
    %v3795 = vld [vmem:[%s3763 + $0xf8] sm:$0xff]
    %v3796 = vld [vmem:[%s3763 + $0x100] sm:$0xff]
    %v3797 = vld [vmem:[%s3763 + $0x108] sm:$0xff]
    %v3798 = vld [vmem:[%s3763 + $0x110] sm:$0xff]
    %v3799 = vld [vmem:[%s3763 + $0x118] sm:$0xff]
    %v3800 = vld [vmem:[%s3763 + $0x120] sm:$0xff]
    %v3801 = vld [vmem:[%s3763 + $0x128] sm:$0xff]
    %v3802 = vld [vmem:[%s3763 + $0x130] sm:$0xff]
    %v3803 = vld [vmem:[%s3763 + $0x138] sm:$0xff]
    %v3804 = vld [vmem:[%s3763 + $0x140] sm:$0xff]
    %v3805 = vld [vmem:[%s3763 + $0x148] sm:$0xff]
    %v3806 = vld [vmem:[%s3763 + $0x150] sm:$0xff]
    %v3807 = vld [vmem:[%s3763 + $0x158] sm:$0xff]
    %v3808 = vld [vmem:[%s3763 + $0x160] sm:$0xff]
    %v3809 = vld [vmem:[%s3763 + $0x168] sm:$0xff]
    %v3810 = vld [vmem:[%s3763 + $0x170] sm:$0xff]
    %v3811 = vld [vmem:[%s3763 + $0x178] sm:$0xff]
    %v3812 = vld [vmem:[%s3763 + $0x180] sm:$0xff]
    %v3813 = vld [vmem:[%s3763 + $0x188] sm:$0xff]
    %v3814 = vld [vmem:[%s3763 + $0x190] sm:$0xff]
    %v3815 = vld [vmem:[%s3763 + $0x198] sm:$0xff]
    %v3816 = vld [vmem:[%s3763 + $0x1a0] sm:$0xff]
    %v3817 = vld [vmem:[%s3763 + $0x1a8] sm:$0xff]
    %v3818 = vld [vmem:[%s3763 + $0x1b0] sm:$0xff]
    %v3819 = vld [vmem:[%s3763 + $0x1b8] sm:$0xff]
    %v3820 = vld [vmem:[%s3763 + $0x1c0] sm:$0xff]
    %v3821 = vld [vmem:[%s3763 + $0x1c8] sm:$0xff]
    %v3822 = vld [vmem:[%s3763 + $0x1d0] sm:$0xff]
    %v3823 = vld [vmem:[%s3763 + $0x1d8] sm:$0xff]
    %v3824 = vld [vmem:[%s3763 + $0x1e0] sm:$0xff]
    %v3825 = vld [vmem:[%s3763 + $0x1e8] sm:$0xff]
    %v3826 = vld [vmem:[%s3763 + $0x1f0] sm:$0xff]
    %v3827 = vld [vmem:[%s3763 + $0x1f8] sm:$0xff]
    %v3828 = vld [vmem:[%s3763 + $0x200] sm:$0xff]
    %v3829 = vld [vmem:[%s3763 + $0x208] sm:$0xff]
    %v3830 = vld [vmem:[%s3763 + $0x210] sm:$0xff]
    %v3831 = vld [vmem:[%s3763 + $0x218] sm:$0xff]
    %v3832 = vld [vmem:[%s3763 + $0x220] sm:$0xff]
    %v3833 = vld [vmem:[%s3763 + $0x228] sm:$0xff]
    %v3834 = vld [vmem:[%s3763 + $0x230] sm:$0xff]
    %v3835 = vld [vmem:[%s3763 + $0x238] sm:$0xff]
    %v3836 = vld [vmem:[%s3763 + $0x240] sm:$0xff]
    %v3837 = vld [vmem:[%s3763 + $0x248] sm:$0xff]
    %v3838 = vld [vmem:[%s3763 + $0x250] sm:$0xff]
    %v3839 = vld [vmem:[%s3763 + $0x258] sm:$0xff]
    %v3840 = vld [vmem:[%s3763 + $0x260] sm:$0xff]
    %v3841 = vld [vmem:[%s3763 + $0x268] sm:$0xff]
    %v3842 = vld [vmem:[%s3763 + $0x270] sm:$0xff]
    %v3843 = vld [vmem:[%s3763 + $0x278] sm:$0xff]
    %v3844 = vld [vmem:[%s3763 + $0x280] sm:$0xff]
    %v3845 = vld [vmem:[%s3763 + $0x288] sm:$0xff]
    %v3846 = vld [vmem:[%s3763 + $0x290] sm:$0xff]
    %v3847 = vld [vmem:[%s3763 + $0x298] sm:$0xff]
    %v3848 = vld [vmem:[%s3763 + $0x2a0] sm:$0xff]
    %v3849 = vld [vmem:[%s3763 + $0x2a8] sm:$0xff]
    %v3850 = vld [vmem:[%s3763 + $0x2b0] sm:$0xff]
    %v3851 = vld [vmem:[%s3763 + $0x2b8] sm:$0xff]
    %v3852 = vld [vmem:[%s3763 + $0x2c0] sm:$0xff]
    %v3853 = vld [vmem:[%s3763 + $0x2c8] sm:$0xff]
    %v3854 = vld [vmem:[%s3763 + $0x2d0] sm:$0xff]
    %v3855 = vld [vmem:[%s3763 + $0x2d8] sm:$0xff]
    %v3856 = vld [vmem:[%s3763 + $0x2e0] sm:$0xff]
    %v3857 = vld [vmem:[%s3763 + $0x2e8] sm:$0xff]
    %v3858 = vld [vmem:[%s3763 + $0x2f0] sm:$0xff]
    %v3859 = vld [vmem:[%s3763 + $0x2f8] sm:$0xff]
    %v3860 = vrot.slane %v2270, 2
    %v3861 = vrot.slane %v2271, 2
    %v3862 = vrot.slane %v2272, 2
    %v3962 = vunpack.c.l.b16 %v3764
    %v3963 = vunpack.c.h.b16 %v3764
    %v3964 = vunpack.c.l.b16 %v3765
    %v3965 = vunpack.c.h.b16 %v3765
    %v3966 = vunpack.c.l.b16 %v3766
    %v3967 = vunpack.c.h.b16 %v3766
    %v3968 = vunpack.c.l.b16 %v3767
    %v3969 = vunpack.c.h.b16 %v3767
    %v3970 = vunpack.c.l.b16 %v3768
    %v3971 = vunpack.c.h.b16 %v3768
    %v3972 = vunpack.c.l.b16 %v3769
    %v3973 = vunpack.c.h.b16 %v3769
    %v3974 = vunpack.c.l.b16 %v3770
    %v3975 = vunpack.c.h.b16 %v3770
    %v3976 = vunpack.c.l.b16 %v3771
    %v3977 = vunpack.c.h.b16 %v3771
    %v3978 = vunpack.c.l.b16 %v3772
    %v3979 = vunpack.c.h.b16 %v3772
    %v3980 = vunpack.c.l.b16 %v3773
    %v3981 = vunpack.c.h.b16 %v3773
    %v3982 = vunpack.c.l.b16 %v3774
    %v3983 = vunpack.c.h.b16 %v3774
    %v3984 = vunpack.c.l.b16 %v3775
    %v3985 = vunpack.c.h.b16 %v3775
    %v3986 = vunpack.c.l.b16 %v3776
    %v3987 = vunpack.c.h.b16 %v3776
    %v3988 = vunpack.c.l.b16 %v3777
    %v3989 = vunpack.c.h.b16 %v3777
    %v3990 = vunpack.c.l.b16 %v3778
    %v3991 = vunpack.c.h.b16 %v3778
    %v3992 = vunpack.c.l.b16 %v3779
    %v3993 = vunpack.c.h.b16 %v3779
    %v3994 = vunpack.c.l.b16 %v3780
    %v3995 = vunpack.c.h.b16 %v3780
    %v3996 = vunpack.c.l.b16 %v3781
    %v3997 = vunpack.c.h.b16 %v3781
    %v3998 = vunpack.c.l.b16 %v3782
    %v3999 = vunpack.c.h.b16 %v3782
    %v4000 = vunpack.c.l.b16 %v3783
    %v4001 = vunpack.c.h.b16 %v3783
    %v4002 = vunpack.c.l.b16 %v3784
    %v4003 = vunpack.c.h.b16 %v3784
    %v4004 = vunpack.c.l.b16 %v3785
    %v4005 = vunpack.c.h.b16 %v3785
    %v4006 = vunpack.c.l.b16 %v3786
    %v4007 = vunpack.c.h.b16 %v3786
    %v4008 = vunpack.c.l.b16 %v3787
    %v4009 = vunpack.c.h.b16 %v3787
    %v4010 = vunpack.c.l.b16 %v3788
    %v4011 = vunpack.c.h.b16 %v3788
    %v4012 = vunpack.c.l.b16 %v3789
    %v4013 = vunpack.c.h.b16 %v3789
    %v4014 = vunpack.c.l.b16 %v3790
    %v4015 = vunpack.c.h.b16 %v3790
    %v4016 = vunpack.c.l.b16 %v3791
    %v4017 = vunpack.c.h.b16 %v3791
    %v4018 = vunpack.c.l.b16 %v3792
    %v4019 = vunpack.c.h.b16 %v3792
    %v4020 = vunpack.c.l.b16 %v3793
    %v4021 = vunpack.c.h.b16 %v3793
    %v4022 = vunpack.c.l.b16 %v3794
    %v4023 = vunpack.c.h.b16 %v3794
    %v4024 = vunpack.c.l.b16 %v3795
    %v4025 = vunpack.c.h.b16 %v3795
    %v4026 = vunpack.c.l.b16 %v3796
    %v4027 = vunpack.c.h.b16 %v3796
    %v4028 = vunpack.c.l.b16 %v3797
    %v4029 = vunpack.c.h.b16 %v3797
    %v4030 = vunpack.c.l.b16 %v3798
    %v4031 = vunpack.c.h.b16 %v3798
    %v4032 = vunpack.c.l.b16 %v3799
    %v4033 = vunpack.c.h.b16 %v3799
    %v4034 = vunpack.c.l.b16 %v3800
    %v4035 = vunpack.c.h.b16 %v3800
    %v4036 = vunpack.c.l.b16 %v3801
    %v4037 = vunpack.c.h.b16 %v3801
    %v4038 = vunpack.c.l.b16 %v3802
    %v4039 = vunpack.c.h.b16 %v3802
    %v4040 = vunpack.c.l.b16 %v3803
    %v4041 = vunpack.c.h.b16 %v3803
    %v4042 = vunpack.c.l.b16 %v3804
    %v4043 = vunpack.c.h.b16 %v3804
    %v4044 = vunpack.c.l.b16 %v3805
    %v4045 = vunpack.c.h.b16 %v3805
    %v4046 = vunpack.c.l.b16 %v3806
    %v4047 = vunpack.c.h.b16 %v3806
    %v4048 = vunpack.c.l.b16 %v3807
    %v4049 = vunpack.c.h.b16 %v3807
    %v4050 = vunpack.c.l.b16 %v3808
    %v4051 = vunpack.c.h.b16 %v3808
    %v4052 = vunpack.c.l.b16 %v3809
    %v4053 = vunpack.c.h.b16 %v3809
    %v4054 = vunpack.c.l.b16 %v3810
    %v4055 = vunpack.c.h.b16 %v3810
    %v4056 = vunpack.c.l.b16 %v3811
    %v4057 = vunpack.c.h.b16 %v3811
    %v4058 = vunpack.c.l.b16 %v3812
    %v4059 = vunpack.c.h.b16 %v3812
    %v4060 = vunpack.c.l.b16 %v3813
    %v4061 = vunpack.c.h.b16 %v3813
    %v4062 = vunpack.c.l.b16 %v3814
    %v4063 = vunpack.c.h.b16 %v3814
    %v4064 = vunpack.c.l.b16 %v3815
    %v4065 = vunpack.c.h.b16 %v3815
    %v4066 = vunpack.c.l.b16 %v3816
    %v4067 = vunpack.c.h.b16 %v3816
    %v4068 = vunpack.c.l.b16 %v3817
    %v4069 = vunpack.c.h.b16 %v3817
    %v4070 = vunpack.c.l.b16 %v3818
    %v4071 = vunpack.c.h.b16 %v3818
    %v4072 = vunpack.c.l.b16 %v3819
    %v4073 = vunpack.c.h.b16 %v3819
    %v4074 = vunpack.c.l.b16 %v3820
    %v4075 = vunpack.c.h.b16 %v3820
    %v4076 = vunpack.c.l.b16 %v3821
    %v4077 = vunpack.c.h.b16 %v3821
    %v4078 = vunpack.c.l.b16 %v3822
    %v4079 = vunpack.c.h.b16 %v3822
    %v4080 = vunpack.c.l.b16 %v3823
    %v4081 = vunpack.c.h.b16 %v3823
    %v4082 = vunpack.c.l.b16 %v3824
    %v4083 = vunpack.c.h.b16 %v3824
    %v4084 = vunpack.c.l.b16 %v3825
    %v4085 = vunpack.c.h.b16 %v3825
    %v4086 = vunpack.c.l.b16 %v3826
    %v4087 = vunpack.c.h.b16 %v3826
    %v4088 = vunpack.c.l.b16 %v3827
    %v4089 = vunpack.c.h.b16 %v3827
    %v4090 = vunpack.c.l.b16 %v3828
    %v4091 = vunpack.c.h.b16 %v3828
    %v4092 = vunpack.c.l.b16 %v3829
    %v4093 = vunpack.c.h.b16 %v3829
    %v4094 = vunpack.c.l.b16 %v3830
    %v4095 = vunpack.c.h.b16 %v3830
    %v4096 = vunpack.c.l.b16 %v3831
    %v4097 = vunpack.c.h.b16 %v3831
    %v4098 = vunpack.c.l.b16 %v3832
    %v4099 = vunpack.c.h.b16 %v3832
    %v4100 = vunpack.c.l.b16 %v3833
    %v4101 = vunpack.c.h.b16 %v3833
    %v4102 = vunpack.c.l.b16 %v3834
    %v4103 = vunpack.c.h.b16 %v3834
    %v4104 = vunpack.c.l.b16 %v3835
    %v4105 = vunpack.c.h.b16 %v3835
    %v4106 = vunpack.c.l.b16 %v3836
    %v4107 = vunpack.c.h.b16 %v3836
    %v4108 = vunpack.c.l.b16 %v3837
    %v4109 = vunpack.c.h.b16 %v3837
    %v4110 = vunpack.c.l.b16 %v3838
    %v4111 = vunpack.c.h.b16 %v3838
    %v4112 = vunpack.c.l.b16 %v3839
    %v4113 = vunpack.c.h.b16 %v3839
    %v4114 = vunpack.c.l.b16 %v3840
    %v4115 = vunpack.c.h.b16 %v3840
    %v4116 = vunpack.c.l.b16 %v3841
    %v4117 = vunpack.c.h.b16 %v3841
    %v4118 = vunpack.c.l.b16 %v3842
    %v4119 = vunpack.c.h.b16 %v3842
    %v4120 = vunpack.c.l.b16 %v3843
    %v4121 = vunpack.c.h.b16 %v3843
    %v4122 = vunpack.c.l.b16 %v3844
    %v4123 = vunpack.c.h.b16 %v3844
    %v4124 = vunpack.c.l.b16 %v3845
    %v4125 = vunpack.c.h.b16 %v3845
    %v4126 = vunpack.c.l.b16 %v3846
    %v4127 = vunpack.c.h.b16 %v3846
    %v4128 = vunpack.c.l.b16 %v3847
    %v4129 = vunpack.c.h.b16 %v3847
    %v4130 = vunpack.c.l.b16 %v3848
    %v4131 = vunpack.c.h.b16 %v3848
    %v4132 = vunpack.c.l.b16 %v3849
    %v4133 = vunpack.c.h.b16 %v3849
    %v4134 = vunpack.c.l.b16 %v3850
    %v4135 = vunpack.c.h.b16 %v3850
    %v4136 = vunpack.c.l.b16 %v3851
    %v4137 = vunpack.c.h.b16 %v3851
    %v4138 = vunpack.c.l.b16 %v3852
    %v4139 = vunpack.c.h.b16 %v3852
    %v4140 = vunpack.c.l.b16 %v3853
    %v4141 = vunpack.c.h.b16 %v3853
    %v4142 = vunpack.c.l.b16 %v3854
    %v4143 = vunpack.c.h.b16 %v3854
    %v4144 = vunpack.c.l.b16 %v3855
    %v4145 = vunpack.c.h.b16 %v3855
    %v4146 = vunpack.c.l.b16 %v3856
    %v4147 = vunpack.c.h.b16 %v3856
    %v4148 = vunpack.c.l.b16 %v3857
    %v4149 = vunpack.c.h.b16 %v3857
    %v4150 = vunpack.c.l.b16 %v3858
    %v4151 = vunpack.c.h.b16 %v3858
    %v4152 = vunpack.c.l.b16 %v3859
    %v4153 = vunpack.c.h.b16 %v3859
    %v4154 = vpack.c.b16 %v3966, %v3962
    %v4155 = vpack.c.b16 %v3967, %v3963
    %v4156 = vpack.c.b16 %v3968, %v3964
    %v4157 = vpack.c.b16 %v3969, %v3965
    %v4158 = vpack.c.b16 %v3974, %v3970
    %v4159 = vpack.c.b16 %v3975, %v3971
    %v4160 = vpack.c.b16 %v3976, %v3972
    %v4161 = vpack.c.b16 %v3977, %v3973
    %v4162 = vpack.c.b16 %v3982, %v3978
    %v4163 = vpack.c.b16 %v3983, %v3979
    %v4164 = vpack.c.b16 %v3984, %v3980
    %v4165 = vpack.c.b16 %v3985, %v3981
    %v4166 = vpack.c.b16 %v3990, %v3986
    %v4167 = vpack.c.b16 %v3991, %v3987
    %v4168 = vpack.c.b16 %v3992, %v3988
    %v4169 = vpack.c.b16 %v3993, %v3989
    %v4170 = vpack.c.b16 %v3998, %v3994
    %v4171 = vpack.c.b16 %v3999, %v3995
    %v4172 = vpack.c.b16 %v4000, %v3996
    %v4173 = vpack.c.b16 %v4001, %v3997
    %v4174 = vpack.c.b16 %v4006, %v4002
    %v4175 = vpack.c.b16 %v4007, %v4003
    %v4176 = vpack.c.b16 %v4008, %v4004
    %v4177 = vpack.c.b16 %v4009, %v4005
    %v4178 = vpack.c.b16 %v4014, %v4010
    %v4179 = vpack.c.b16 %v4015, %v4011
    %v4180 = vpack.c.b16 %v4016, %v4012
    %v4181 = vpack.c.b16 %v4017, %v4013
    %v4182 = vpack.c.b16 %v4022, %v4018
    %v4183 = vpack.c.b16 %v4023, %v4019
    %v4184 = vpack.c.b16 %v4024, %v4020
    %v4185 = vpack.c.b16 %v4025, %v4021
    %v4186 = vpack.c.b16 %v4030, %v4026
    %v4187 = vpack.c.b16 %v4031, %v4027
    %v4188 = vpack.c.b16 %v4032, %v4028
    %v4189 = vpack.c.b16 %v4033, %v4029
    %v4190 = vpack.c.b16 %v4038, %v4034
    %v4191 = vpack.c.b16 %v4039, %v4035
    %v4192 = vpack.c.b16 %v4040, %v4036
    %v4193 = vpack.c.b16 %v4041, %v4037
    %v4194 = vpack.c.b16 %v4046, %v4042
    %v4195 = vpack.c.b16 %v4047, %v4043
    %v4196 = vpack.c.b16 %v4048, %v4044
    %v4197 = vpack.c.b16 %v4049, %v4045
    %v4198 = vpack.c.b16 %v4054, %v4050
    %v4199 = vpack.c.b16 %v4055, %v4051
    %v4200 = vpack.c.b16 %v4056, %v4052
    %v4201 = vpack.c.b16 %v4057, %v4053
    %v4202 = vpack.c.b16 %v4062, %v4058
    %v4203 = vpack.c.b16 %v4063, %v4059
    %v4204 = vpack.c.b16 %v4064, %v4060
    %v4205 = vpack.c.b16 %v4065, %v4061
    %v4206 = vpack.c.b16 %v4070, %v4066
    %v4207 = vpack.c.b16 %v4071, %v4067
    %v4208 = vpack.c.b16 %v4072, %v4068
    %v4209 = vpack.c.b16 %v4073, %v4069
    %v4210 = vpack.c.b16 %v4078, %v4074
    %v4211 = vpack.c.b16 %v4079, %v4075
    %v4212 = vpack.c.b16 %v4080, %v4076
    %v4213 = vpack.c.b16 %v4081, %v4077
    %v4214 = vpack.c.b16 %v4086, %v4082
    %v4215 = vpack.c.b16 %v4087, %v4083
    %v4216 = vpack.c.b16 %v4088, %v4084
    %v4217 = vpack.c.b16 %v4089, %v4085
    %v4218 = vpack.c.b16 %v4094, %v4090
    %v4219 = vpack.c.b16 %v4095, %v4091
    %v4220 = vpack.c.b16 %v4096, %v4092
    %v4221 = vpack.c.b16 %v4097, %v4093
    %v4222 = vpack.c.b16 %v4102, %v4098
    %v4223 = vpack.c.b16 %v4103, %v4099
    %v4224 = vpack.c.b16 %v4104, %v4100
    %v4225 = vpack.c.b16 %v4105, %v4101
    %v4226 = vpack.c.b16 %v4110, %v4106
    %v4227 = vpack.c.b16 %v4111, %v4107
    %v4228 = vpack.c.b16 %v4112, %v4108
    %v4229 = vpack.c.b16 %v4113, %v4109
    %v4230 = vpack.c.b16 %v4118, %v4114
    %v4231 = vpack.c.b16 %v4119, %v4115
    %v4232 = vpack.c.b16 %v4120, %v4116
    %v4233 = vpack.c.b16 %v4121, %v4117
    %v4234 = vpack.c.b16 %v4126, %v4122
    %v4235 = vpack.c.b16 %v4127, %v4123
    %v4236 = vpack.c.b16 %v4128, %v4124
    %v4237 = vpack.c.b16 %v4129, %v4125
    %v4238 = vpack.c.b16 %v4134, %v4130
    %v4239 = vpack.c.b16 %v4135, %v4131
    %v4240 = vpack.c.b16 %v4136, %v4132
    %v4241 = vpack.c.b16 %v4137, %v4133
    %v4242 = vpack.c.b16 %v4142, %v4138
    %v4243 = vpack.c.b16 %v4143, %v4139
    %v4244 = vpack.c.b16 %v4144, %v4140
    %v4245 = vpack.c.b16 %v4145, %v4141
    %v4246 = vpack.c.b16 %v4150, %v4146
    %v4247 = vpack.c.b16 %v4151, %v4147
    %v4248 = vpack.c.b16 %v4152, %v4148
    %v4249 = vpack.c.b16 %v4153, %v4149
    %4346 = vmatprep.subr.bf16.mxu0 %v4155
    %4347 = vmatpush1.bf16.msra.mxu0 %v4154
    %4348 = vmatprep.subr.bf16.mxu0 %v4159
    %4349 = vmatpush1.bf16.msra.mxu0 %v4158
    %4350 = vmatprep.subr.bf16.mxu0 %v4163
    %4351 = vmatpush1.bf16.msra.mxu0 %v4162
    %4352 = vmatprep.subr.bf16.mxu0 %v4167
    %4353 = vmatpush1.bf16.msra.mxu0 %v4166
    %4354 = vmatprep.subr.bf16.mxu0 %v4171
    %4355 = vmatpush1.bf16.msra.mxu0 %v4170
    %4356 = vmatprep.subr.bf16.mxu0 %v4175
    %4357 = vmatpush1.bf16.msra.mxu0 %v4174
    %4358 = vmatprep.subr.bf16.mxu0 %v4179
    %4359 = vmatpush1.bf16.msra.mxu0 %v4178
    %4360 = vmatprep.subr.bf16.mxu0 %v4183
    %4361 = vmatpush1.bf16.msra.mxu0 %v4182
    %4362 = vmatprep.subr.bf16.mxu0 %v4187
    %4363 = vmatpush1.bf16.msra.mxu0 %v4186
    %4364 = vmatprep.subr.bf16.mxu0 %v4191
    %4365 = vmatpush1.bf16.msra.mxu0 %v4190
    %4366 = vmatprep.subr.bf16.mxu0 %v4195
    %4367 = vmatpush1.bf16.msra.mxu0 %v4194
    %4368 = vmatprep.subr.bf16.mxu0 %v4199
    %4369 = vmatpush1.bf16.msra.mxu0 %v4198
    %4370 = vmatprep.subr.bf16.mxu0 %v4203
    %4371 = vmatpush1.bf16.msra.mxu0 %v4202
    %4372 = vmatprep.subr.bf16.mxu0 %v4207
    %4373 = vmatpush1.bf16.msra.mxu0 %v4206
    %4374 = vmatprep.subr.bf16.mxu0 %v4211
    %4375 = vmatpush1.bf16.msra.mxu0 %v4210
    %4376 = vmatprep.subr.bf16.mxu0 %v4215
    %4377 = vmatpush1.bf16.msra.mxu0 %v4214
    %4378 = vmatprep.mubr.bf16.mxu0 %v3861
    %4379 = vmatmul.mubr.bf16.gmra.mrb[0].mxu0 %v3860
    %v4380 = vpop.f32.mrb[0].mxu0
    %v4381 = vadd.f32 0.0, %v4380
    %v4382 = vpop.f32.mrb[0].mxu0
    %v4383 = vadd.f32 0.0, %v4382
    %v4384 = vpop.f32.mrb[0].mxu0
    %v4385 = vpop.f32.mrb[0].mxu0
    %4386 = vdwg.mxu0
    %4387 = vmatprep.subr.bf16.mxu0 %v4219
    %4388 = vmatpush1.bf16.msra.mxu0 %v4218
    %4389 = vmatprep.subr.bf16.mxu0 %v4223
    %4390 = vmatpush1.bf16.msra.mxu0 %v4222
    %4391 = vmatprep.subr.bf16.mxu0 %v4227
    %4392 = vmatpush1.bf16.msra.mxu0 %v4226
    %4393 = vmatprep.subr.bf16.mxu0 %v4231
    %4394 = vmatpush1.bf16.msra.mxu0 %v4230
    %4395 = vmatprep.subr.bf16.mxu0 %v4235
    %4396 = vmatpush1.bf16.msra.mxu0 %v4234
    %4397 = vmatprep.subr.bf16.mxu0 %v4239
    %4398 = vmatpush1.bf16.msra.mxu0 %v4238
    %4399 = vmatprep.subr.bf16.mxu0 %v4243
    %4400 = vmatpush1.bf16.msra.mxu0 %v4242
    %4401 = vmatprep.subr.bf16.mxu0 %v4247
    %4402 = vmatpush1.bf16.msra.mxu0 %v4246
    %4403 = vmatprep.subr.bf16.mxu0 0
    %4404 = vmatpush1.bf16.msra.mxu0 0
    %4405 = vmatprep.subr.bf16.mxu0 0
    %4406 = vmatpush1.bf16.msra.mxu0 0
    %4407 = vmatprep.subr.bf16.mxu0 0
    %4408 = vmatpush1.bf16.msra.mxu0 0
    %4409 = vmatprep.subr.bf16.mxu0 0
    %4410 = vmatpush1.bf16.msra.mxu0 0
    %4411 = vmatprep.subr.bf16.mxu0 0
    %4412 = vmatpush1.bf16.msra.mxu0 0
    %4413 = vmatprep.subr.bf16.mxu0 0
    %4414 = vmatpush1.bf16.msra.mxu0 0
    %4415 = vmatprep.subr.bf16.mxu0 0
    %4416 = vmatpush1.bf16.msra.mxu0 0
    %4417 = vmatprep.subr.bf16.mxu0 0
    %4418 = vmatpush1.bf16.msra.mxu0 0
    %4419 = vmatprep.mubr.bf16.mxu0 0
    %4420 = vmatmul.mubr.bf16.gmra.mrb[0].mxu0 %v3862
    %v4421 = vpop.f32.mrb[0].mxu0
    %v4422 = vadd.f32 %v4381, %v4421
    %v4423 = vpop.f32.mrb[0].mxu0
    %v4424 = vadd.f32 %v4383, %v4423
    %v4425 = vpop.f32.mrb[0].mxu0
    %v4426 = vpop.f32.mrb[0].mxu0
    %4427 = vdwg.mxu0
    %4428 = vmatprep.subr.bf16.mxu0 %v4157
    %4429 = vmatpush1.bf16.msra.mxu0 %v4156
    %4430 = vmatprep.subr.bf16.mxu0 %v4161
    %4431 = vmatpush1.bf16.msra.mxu0 %v4160
    %4432 = vmatprep.subr.bf16.mxu0 %v4165
    %4433 = vmatpush1.bf16.msra.mxu0 %v4164
    %4434 = vmatprep.subr.bf16.mxu0 %v4169
    %4435 = vmatpush1.bf16.msra.mxu0 %v4168
    %4436 = vmatprep.subr.bf16.mxu0 %v4173
    %4437 = vmatpush1.bf16.msra.mxu0 %v4172
    %4438 = vmatprep.subr.bf16.mxu0 %v4177
    %4439 = vmatpush1.bf16.msra.mxu0 %v4176
    %4440 = vmatprep.subr.bf16.mxu0 %v4181
    %4441 = vmatpush1.bf16.msra.mxu0 %v4180
    %4442 = vmatprep.subr.bf16.mxu0 %v4185
    %4443 = vmatpush1.bf16.msra.mxu0 %v4184
    %4444 = vmatprep.subr.bf16.mxu0 %v4189
    %4445 = vmatpush1.bf16.msra.mxu0 %v4188
    %4446 = vmatprep.subr.bf16.mxu0 %v4193
    %4447 = vmatpush1.bf16.msra.mxu0 %v4192
    %4448 = vmatprep.subr.bf16.mxu0 %v4197
    %4449 = vmatpush1.bf16.msra.mxu0 %v4196
    %4450 = vmatprep.subr.bf16.mxu0 %v4201
    %4451 = vmatpush1.bf16.msra.mxu0 %v4200
    %4452 = vmatprep.subr.bf16.mxu0 %v4205
    %4453 = vmatpush1.bf16.msra.mxu0 %v4204
    %4454 = vmatprep.subr.bf16.mxu0 %v4209
    %4455 = vmatpush1.bf16.msra.mxu0 %v4208
    %4456 = vmatprep.subr.bf16.mxu0 %v4213
    %4457 = vmatpush1.bf16.msra.mxu0 %v4212
    %4458 = vmatprep.subr.bf16.mxu0 %v4217
    %4459 = vmatpush1.bf16.msra.mxu0 %v4216
    %4460 = vmatprep.mubr.bf16.mxu0 %v3861
    %4461 = vmatmul.mubr.bf16.gmra.mrb[0].mxu0 %v3860
    %v4462 = vpop.f32.mrb[0].mxu0
    %v4463 = vadd.f32 0.0, %v4462
    %v4464 = vpop.f32.mrb[0].mxu0
    %v4465 = vadd.f32 0.0, %v4464
    %v4466 = vpop.f32.mrb[0].mxu0
    %v4467 = vpop.f32.mrb[0].mxu0
    %4468 = vdwg.mxu0
    %4469 = vmatprep.subr.bf16.mxu0 %v4221
    %4470 = vmatpush1.bf16.msra.mxu0 %v4220
    %4471 = vmatprep.subr.bf16.mxu0 %v4225
    %4472 = vmatpush1.bf16.msra.mxu0 %v4224
    %4473 = vmatprep.subr.bf16.mxu0 %v4229
    %4474 = vmatpush1.bf16.msra.mxu0 %v4228
    %4475 = vmatprep.subr.bf16.mxu0 %v4233
    %4476 = vmatpush1.bf16.msra.mxu0 %v4232
    %4477 = vmatprep.subr.bf16.mxu0 %v4237
    %4478 = vmatpush1.bf16.msra.mxu0 %v4236
    %4479 = vmatprep.subr.bf16.mxu0 %v4241
    %4480 = vmatpush1.bf16.msra.mxu0 %v4240
    %4481 = vmatprep.subr.bf16.mxu0 %v4245
    %4482 = vmatpush1.bf16.msra.mxu0 %v4244
    %4483 = vmatprep.subr.bf16.mxu0 %v4249
    %4484 = vmatpush1.bf16.msra.mxu0 %v4248
    %4485 = vmatprep.subr.bf16.mxu0 0
    %4486 = vmatpush1.bf16.msra.mxu0 0
    %4487 = vmatprep.subr.bf16.mxu0 0
    %4488 = vmatpush1.bf16.msra.mxu0 0
    %4489 = vmatprep.subr.bf16.mxu0 0
    %4490 = vmatpush1.bf16.msra.mxu0 0
    %4491 = vmatprep.subr.bf16.mxu0 0
    %4492 = vmatpush1.bf16.msra.mxu0 0
    %4493 = vmatprep.subr.bf16.mxu0 0
    %4494 = vmatpush1.bf16.msra.mxu0 0
    %4495 = vmatprep.subr.bf16.mxu0 0
    %4496 = vmatpush1.bf16.msra.mxu0 0
    %4497 = vmatprep.subr.bf16.mxu0 0
    %4498 = vmatpush1.bf16.msra.mxu0 0
    %4499 = vmatprep.subr.bf16.mxu0 0
    %4500 = vmatpush1.bf16.msra.mxu0 0
    %4501 = vmatprep.mubr.bf16.mxu0 0
    %4502 = vmatmul.mubr.bf16.gmra.mrb[0].mxu0 %v3862
    %v4503 = vpop.f32.mrb[0].mxu0
    %v4504 = vadd.f32 %v4463, %v4503
    %v4505 = vpop.f32.mrb[0].mxu0
    %v4506 = vadd.f32 %v4465, %v4505
    %v4507 = vpop.f32.mrb[0].mxu0
    %v4508 = vpop.f32.mrb[0].mxu0
    %4509 = vdwg.mxu0
    %v4510 = vadd.f32 %v3675, %v4422
    %v4511 = vadd.f32 %v3677, %v4424
    %v4512 = vadd.f32 %v3757, %v4504
    %v4513 = vadd.f32 %v3759, %v4506
    %s4514 = scalar_lea.vmem [#allocation6], 2304
    %v4515 = vld [vmem:[%s4514] sm:$0xff]
    %v4516 = vld [vmem:[%s4514 + $0x8] sm:$0xff]
    %v4517 = vld [vmem:[%s4514 + $0x10] sm:$0xff]
    %v4518 = vld [vmem:[%s4514 + $0x18] sm:$0xff]
    %v4519 = vld [vmem:[%s4514 + $0x20] sm:$0xff]
    %v4520 = vld [vmem:[%s4514 + $0x28] sm:$0xff]
    %v4521 = vld [vmem:[%s4514 + $0x30] sm:$0xff]
    %v4522 = vld [vmem:[%s4514 + $0x38] sm:$0xff]
    %v4523 = vld [vmem:[%s4514 + $0x40] sm:$0xff]
    %v4524 = vld [vmem:[%s4514 + $0x48] sm:$0xff]
    %v4525 = vld [vmem:[%s4514 + $0x50] sm:$0xff]
    %v4526 = vld [vmem:[%s4514 + $0x58] sm:$0xff]
    %v4527 = vld [vmem:[%s4514 + $0x60] sm:$0xff]
    %v4528 = vld [vmem:[%s4514 + $0x68] sm:$0xff]
    %v4529 = vld [vmem:[%s4514 + $0x70] sm:$0xff]
    %v4530 = vld [vmem:[%s4514 + $0x78] sm:$0xff]
    %v4531 = vld [vmem:[%s4514 + $0x80] sm:$0xff]
    %v4532 = vld [vmem:[%s4514 + $0x88] sm:$0xff]
    %v4533 = vld [vmem:[%s4514 + $0x90] sm:$0xff]
    %v4534 = vld [vmem:[%s4514 + $0x98] sm:$0xff]
    %v4535 = vld [vmem:[%s4514 + $0xa0] sm:$0xff]
    %v4536 = vld [vmem:[%s4514 + $0xa8] sm:$0xff]
    %v4537 = vld [vmem:[%s4514 + $0xb0] sm:$0xff]
    %v4538 = vld [vmem:[%s4514 + $0xb8] sm:$0xff]
    %v4539 = vld [vmem:[%s4514 + $0xc0] sm:$0xff]
    %v4540 = vld [vmem:[%s4514 + $0xc8] sm:$0xff]
    %v4541 = vld [vmem:[%s4514 + $0xd0] sm:$0xff]
    %v4542 = vld [vmem:[%s4514 + $0xd8] sm:$0xff]
    %v4543 = vld [vmem:[%s4514 + $0xe0] sm:$0xff]
    %v4544 = vld [vmem:[%s4514 + $0xe8] sm:$0xff]
    %v4545 = vld [vmem:[%s4514 + $0xf0] sm:$0xff]
    %v4546 = vld [vmem:[%s4514 + $0xf8] sm:$0xff]
    %v4547 = vld [vmem:[%s4514 + $0x100] sm:$0xff]
    %v4548 = vld [vmem:[%s4514 + $0x108] sm:$0xff]
    %v4549 = vld [vmem:[%s4514 + $0x110] sm:$0xff]
    %v4550 = vld [vmem:[%s4514 + $0x118] sm:$0xff]
    %v4551 = vld [vmem:[%s4514 + $0x120] sm:$0xff]
    %v4552 = vld [vmem:[%s4514 + $0x128] sm:$0xff]
    %v4553 = vld [vmem:[%s4514 + $0x130] sm:$0xff]
    %v4554 = vld [vmem:[%s4514 + $0x138] sm:$0xff]
    %v4555 = vld [vmem:[%s4514 + $0x140] sm:$0xff]
    %v4556 = vld [vmem:[%s4514 + $0x148] sm:$0xff]
    %v4557 = vld [vmem:[%s4514 + $0x150] sm:$0xff]
    %v4558 = vld [vmem:[%s4514 + $0x158] sm:$0xff]
    %v4559 = vld [vmem:[%s4514 + $0x160] sm:$0xff]
    %v4560 = vld [vmem:[%s4514 + $0x168] sm:$0xff]
    %v4561 = vld [vmem:[%s4514 + $0x170] sm:$0xff]
    %v4562 = vld [vmem:[%s4514 + $0x178] sm:$0xff]
    %v4563 = vld [vmem:[%s4514 + $0x180] sm:$0xff]
    %v4564 = vld [vmem:[%s4514 + $0x188] sm:$0xff]
    %v4565 = vld [vmem:[%s4514 + $0x190] sm:$0xff]
    %v4566 = vld [vmem:[%s4514 + $0x198] sm:$0xff]
    %v4567 = vld [vmem:[%s4514 + $0x1a0] sm:$0xff]
    %v4568 = vld [vmem:[%s4514 + $0x1a8] sm:$0xff]
    %v4569 = vld [vmem:[%s4514 + $0x1b0] sm:$0xff]
    %v4570 = vld [vmem:[%s4514 + $0x1b8] sm:$0xff]
    %v4571 = vld [vmem:[%s4514 + $0x1c0] sm:$0xff]
    %v4572 = vld [vmem:[%s4514 + $0x1c8] sm:$0xff]
    %v4573 = vld [vmem:[%s4514 + $0x1d0] sm:$0xff]
    %v4574 = vld [vmem:[%s4514 + $0x1d8] sm:$0xff]
    %v4575 = vld [vmem:[%s4514 + $0x1e0] sm:$0xff]
    %v4576 = vld [vmem:[%s4514 + $0x1e8] sm:$0xff]
    %v4577 = vld [vmem:[%s4514 + $0x1f0] sm:$0xff]
    %v4578 = vld [vmem:[%s4514 + $0x1f8] sm:$0xff]
    %v4579 = vld [vmem:[%s4514 + $0x200] sm:$0xff]
    %v4580 = vld [vmem:[%s4514 + $0x208] sm:$0xff]
    %v4581 = vld [vmem:[%s4514 + $0x210] sm:$0xff]
    %v4582 = vld [vmem:[%s4514 + $0x218] sm:$0xff]
    %v4583 = vld [vmem:[%s4514 + $0x220] sm:$0xff]
    %v4584 = vld [vmem:[%s4514 + $0x228] sm:$0xff]
    %v4585 = vld [vmem:[%s4514 + $0x230] sm:$0xff]
    %v4586 = vld [vmem:[%s4514 + $0x238] sm:$0xff]
    %v4587 = vld [vmem:[%s4514 + $0x240] sm:$0xff]
    %v4588 = vld [vmem:[%s4514 + $0x248] sm:$0xff]
    %v4589 = vld [vmem:[%s4514 + $0x250] sm:$0xff]
    %v4590 = vld [vmem:[%s4514 + $0x258] sm:$0xff]
    %v4591 = vld [vmem:[%s4514 + $0x260] sm:$0xff]
    %v4592 = vld [vmem:[%s4514 + $0x268] sm:$0xff]
    %v4593 = vld [vmem:[%s4514 + $0x270] sm:$0xff]
    %v4594 = vld [vmem:[%s4514 + $0x278] sm:$0xff]
    %v4595 = vld [vmem:[%s4514 + $0x280] sm:$0xff]
    %v4596 = vld [vmem:[%s4514 + $0x288] sm:$0xff]
    %v4597 = vld [vmem:[%s4514 + $0x290] sm:$0xff]
    %v4598 = vld [vmem:[%s4514 + $0x298] sm:$0xff]
    %v4599 = vld [vmem:[%s4514 + $0x2a0] sm:$0xff]
    %v4600 = vld [vmem:[%s4514 + $0x2a8] sm:$0xff]
    %v4601 = vld [vmem:[%s4514 + $0x2b0] sm:$0xff]
    %v4602 = vld [vmem:[%s4514 + $0x2b8] sm:$0xff]
    %v4603 = vld [vmem:[%s4514 + $0x2c0] sm:$0xff]
    %v4604 = vld [vmem:[%s4514 + $0x2c8] sm:$0xff]
    %v4605 = vld [vmem:[%s4514 + $0x2d0] sm:$0xff]
    %v4606 = vld [vmem:[%s4514 + $0x2d8] sm:$0xff]
    %v4607 = vld [vmem:[%s4514 + $0x2e0] sm:$0xff]
    %v4608 = vld [vmem:[%s4514 + $0x2e8] sm:$0xff]
    %v4609 = vld [vmem:[%s4514 + $0x2f0] sm:$0xff]
    %v4610 = vld [vmem:[%s4514 + $0x2f8] sm:$0xff]
    %v4611 = vrot.slane %v2270, 3
    %v4612 = vrot.slane %v2271, 3
    %v4613 = vrot.slane %v2272, 3
    %v4713 = vunpack.c.l.b16 %v4515
    %v4714 = vunpack.c.h.b16 %v4515
    %v4715 = vunpack.c.l.b16 %v4516
    %v4716 = vunpack.c.h.b16 %v4516
    %v4717 = vunpack.c.l.b16 %v4517
    %v4718 = vunpack.c.h.b16 %v4517
    %v4719 = vunpack.c.l.b16 %v4518
    %v4720 = vunpack.c.h.b16 %v4518
    %v4721 = vunpack.c.l.b16 %v4519
    %v4722 = vunpack.c.h.b16 %v4519
    %v4723 = vunpack.c.l.b16 %v4520
    %v4724 = vunpack.c.h.b16 %v4520
    %v4725 = vunpack.c.l.b16 %v4521
    %v4726 = vunpack.c.h.b16 %v4521
    %v4727 = vunpack.c.l.b16 %v4522
    %v4728 = vunpack.c.h.b16 %v4522
    %v4729 = vunpack.c.l.b16 %v4523
    %v4730 = vunpack.c.h.b16 %v4523
    %v4731 = vunpack.c.l.b16 %v4524
    %v4732 = vunpack.c.h.b16 %v4524
    %v4733 = vunpack.c.l.b16 %v4525
    %v4734 = vunpack.c.h.b16 %v4525
    %v4735 = vunpack.c.l.b16 %v4526
    %v4736 = vunpack.c.h.b16 %v4526
    %v4737 = vunpack.c.l.b16 %v4527
    %v4738 = vunpack.c.h.b16 %v4527
    %v4739 = vunpack.c.l.b16 %v4528
    %v4740 = vunpack.c.h.b16 %v4528
    %v4741 = vunpack.c.l.b16 %v4529
    %v4742 = vunpack.c.h.b16 %v4529
    %v4743 = vunpack.c.l.b16 %v4530
    %v4744 = vunpack.c.h.b16 %v4530
    %v4745 = vunpack.c.l.b16 %v4531
    %v4746 = vunpack.c.h.b16 %v4531
    %v4747 = vunpack.c.l.b16 %v4532
    %v4748 = vunpack.c.h.b16 %v4532
    %v4749 = vunpack.c.l.b16 %v4533
    %v4750 = vunpack.c.h.b16 %v4533
    %v4751 = vunpack.c.l.b16 %v4534
    %v4752 = vunpack.c.h.b16 %v4534
    %v4753 = vunpack.c.l.b16 %v4535
    %v4754 = vunpack.c.h.b16 %v4535
    %v4755 = vunpack.c.l.b16 %v4536
    %v4756 = vunpack.c.h.b16 %v4536
    %v4757 = vunpack.c.l.b16 %v4537
    %v4758 = vunpack.c.h.b16 %v4537
    %v4759 = vunpack.c.l.b16 %v4538
    %v4760 = vunpack.c.h.b16 %v4538
    %v4761 = vunpack.c.l.b16 %v4539
    %v4762 = vunpack.c.h.b16 %v4539
    %v4763 = vunpack.c.l.b16 %v4540
    %v4764 = vunpack.c.h.b16 %v4540
    %v4765 = vunpack.c.l.b16 %v4541
    %v4766 = vunpack.c.h.b16 %v4541
    %v4767 = vunpack.c.l.b16 %v4542
    %v4768 = vunpack.c.h.b16 %v4542
    %v4769 = vunpack.c.l.b16 %v4543
    %v4770 = vunpack.c.h.b16 %v4543
    %v4771 = vunpack.c.l.b16 %v4544
    %v4772 = vunpack.c.h.b16 %v4544
    %v4773 = vunpack.c.l.b16 %v4545
    %v4774 = vunpack.c.h.b16 %v4545
    %v4775 = vunpack.c.l.b16 %v4546
    %v4776 = vunpack.c.h.b16 %v4546
    %v4777 = vunpack.c.l.b16 %v4547
    %v4778 = vunpack.c.h.b16 %v4547
    %v4779 = vunpack.c.l.b16 %v4548
    %v4780 = vunpack.c.h.b16 %v4548
    %v4781 = vunpack.c.l.b16 %v4549
    %v4782 = vunpack.c.h.b16 %v4549
    %v4783 = vunpack.c.l.b16 %v4550
    %v4784 = vunpack.c.h.b16 %v4550
    %v4785 = vunpack.c.l.b16 %v4551
    %v4786 = vunpack.c.h.b16 %v4551
    %v4787 = vunpack.c.l.b16 %v4552
    %v4788 = vunpack.c.h.b16 %v4552
    %v4789 = vunpack.c.l.b16 %v4553
    %v4790 = vunpack.c.h.b16 %v4553
    %v4791 = vunpack.c.l.b16 %v4554
    %v4792 = vunpack.c.h.b16 %v4554
    %v4793 = vunpack.c.l.b16 %v4555
    %v4794 = vunpack.c.h.b16 %v4555
    %v4795 = vunpack.c.l.b16 %v4556
    %v4796 = vunpack.c.h.b16 %v4556
    %v4797 = vunpack.c.l.b16 %v4557
    %v4798 = vunpack.c.h.b16 %v4557
    %v4799 = vunpack.c.l.b16 %v4558
    %v4800 = vunpack.c.h.b16 %v4558
    %v4801 = vunpack.c.l.b16 %v4559
    %v4802 = vunpack.c.h.b16 %v4559
    %v4803 = vunpack.c.l.b16 %v4560
    %v4804 = vunpack.c.h.b16 %v4560
    %v4805 = vunpack.c.l.b16 %v4561
    %v4806 = vunpack.c.h.b16 %v4561
    %v4807 = vunpack.c.l.b16 %v4562
    %v4808 = vunpack.c.h.b16 %v4562
    %v4809 = vunpack.c.l.b16 %v4563
    %v4810 = vunpack.c.h.b16 %v4563
    %v4811 = vunpack.c.l.b16 %v4564
    %v4812 = vunpack.c.h.b16 %v4564
    %v4813 = vunpack.c.l.b16 %v4565
    %v4814 = vunpack.c.h.b16 %v4565
    %v4815 = vunpack.c.l.b16 %v4566
    %v4816 = vunpack.c.h.b16 %v4566
    %v4817 = vunpack.c.l.b16 %v4567
    %v4818 = vunpack.c.h.b16 %v4567
    %v4819 = vunpack.c.l.b16 %v4568
    %v4820 = vunpack.c.h.b16 %v4568
    %v4821 = vunpack.c.l.b16 %v4569
    %v4822 = vunpack.c.h.b16 %v4569
    %v4823 = vunpack.c.l.b16 %v4570
    %v4824 = vunpack.c.h.b16 %v4570
    %v4825 = vunpack.c.l.b16 %v4571
    %v4826 = vunpack.c.h.b16 %v4571
    %v4827 = vunpack.c.l.b16 %v4572
    %v4828 = vunpack.c.h.b16 %v4572
    %v4829 = vunpack.c.l.b16 %v4573
    %v4830 = vunpack.c.h.b16 %v4573
    %v4831 = vunpack.c.l.b16 %v4574
    %v4832 = vunpack.c.h.b16 %v4574
    %v4833 = vunpack.c.l.b16 %v4575
    %v4834 = vunpack.c.h.b16 %v4575
    %v4835 = vunpack.c.l.b16 %v4576
    %v4836 = vunpack.c.h.b16 %v4576
    %v4837 = vunpack.c.l.b16 %v4577
    %v4838 = vunpack.c.h.b16 %v4577
    %v4839 = vunpack.c.l.b16 %v4578
    %v4840 = vunpack.c.h.b16 %v4578
    %v4841 = vunpack.c.l.b16 %v4579
    %v4842 = vunpack.c.h.b16 %v4579
    %v4843 = vunpack.c.l.b16 %v4580
    %v4844 = vunpack.c.h.b16 %v4580
    %v4845 = vunpack.c.l.b16 %v4581
    %v4846 = vunpack.c.h.b16 %v4581
    %v4847 = vunpack.c.l.b16 %v4582
    %v4848 = vunpack.c.h.b16 %v4582
    %v4849 = vunpack.c.l.b16 %v4583
    %v4850 = vunpack.c.h.b16 %v4583
    %v4851 = vunpack.c.l.b16 %v4584
    %v4852 = vunpack.c.h.b16 %v4584
    %v4853 = vunpack.c.l.b16 %v4585
    %v4854 = vunpack.c.h.b16 %v4585
    %v4855 = vunpack.c.l.b16 %v4586
    %v4856 = vunpack.c.h.b16 %v4586
    %v4857 = vunpack.c.l.b16 %v4587
    %v4858 = vunpack.c.h.b16 %v4587
    %v4859 = vunpack.c.l.b16 %v4588
    %v4860 = vunpack.c.h.b16 %v4588
    %v4861 = vunpack.c.l.b16 %v4589
    %v4862 = vunpack.c.h.b16 %v4589
    %v4863 = vunpack.c.l.b16 %v4590
    %v4864 = vunpack.c.h.b16 %v4590
    %v4865 = vunpack.c.l.b16 %v4591
    %v4866 = vunpack.c.h.b16 %v4591
    %v4867 = vunpack.c.l.b16 %v4592
    %v4868 = vunpack.c.h.b16 %v4592
    %v4869 = vunpack.c.l.b16 %v4593
    %v4870 = vunpack.c.h.b16 %v4593
    %v4871 = vunpack.c.l.b16 %v4594
    %v4872 = vunpack.c.h.b16 %v4594
    %v4873 = vunpack.c.l.b16 %v4595
    %v4874 = vunpack.c.h.b16 %v4595
    %v4875 = vunpack.c.l.b16 %v4596
    %v4876 = vunpack.c.h.b16 %v4596
    %v4877 = vunpack.c.l.b16 %v4597
    %v4878 = vunpack.c.h.b16 %v4597
    %v4879 = vunpack.c.l.b16 %v4598
    %v4880 = vunpack.c.h.b16 %v4598
    %v4881 = vunpack.c.l.b16 %v4599
    %v4882 = vunpack.c.h.b16 %v4599
    %v4883 = vunpack.c.l.b16 %v4600
    %v4884 = vunpack.c.h.b16 %v4600
    %v4885 = vunpack.c.l.b16 %v4601
    %v4886 = vunpack.c.h.b16 %v4601
    %v4887 = vunpack.c.l.b16 %v4602
    %v4888 = vunpack.c.h.b16 %v4602
    %v4889 = vunpack.c.l.b16 %v4603
    %v4890 = vunpack.c.h.b16 %v4603
    %v4891 = vunpack.c.l.b16 %v4604
    %v4892 = vunpack.c.h.b16 %v4604
    %v4893 = vunpack.c.l.b16 %v4605
    %v4894 = vunpack.c.h.b16 %v4605
    %v4895 = vunpack.c.l.b16 %v4606
    %v4896 = vunpack.c.h.b16 %v4606
    %v4897 = vunpack.c.l.b16 %v4607
    %v4898 = vunpack.c.h.b16 %v4607
    %v4899 = vunpack.c.l.b16 %v4608
    %v4900 = vunpack.c.h.b16 %v4608
    %v4901 = vunpack.c.l.b16 %v4609
    %v4902 = vunpack.c.h.b16 %v4609
    %v4903 = vunpack.c.l.b16 %v4610
    %v4904 = vunpack.c.h.b16 %v4610
    %v4905 = vpack.c.b16 %v4717, %v4713
    %v4906 = vpack.c.b16 %v4718, %v4714
    %v4907 = vpack.c.b16 %v4719, %v4715
    %v4908 = vpack.c.b16 %v4720, %v4716
    %v4909 = vpack.c.b16 %v4725, %v4721
    %v4910 = vpack.c.b16 %v4726, %v4722
    %v4911 = vpack.c.b16 %v4727, %v4723
    %v4912 = vpack.c.b16 %v4728, %v4724
    %v4913 = vpack.c.b16 %v4733, %v4729
    %v4914 = vpack.c.b16 %v4734, %v4730
    %v4915 = vpack.c.b16 %v4735, %v4731
    %v4916 = vpack.c.b16 %v4736, %v4732
    %v4917 = vpack.c.b16 %v4741, %v4737
    %v4918 = vpack.c.b16 %v4742, %v4738
    %v4919 = vpack.c.b16 %v4743, %v4739
    %v4920 = vpack.c.b16 %v4744, %v4740
    %v4921 = vpack.c.b16 %v4749, %v4745
    %v4922 = vpack.c.b16 %v4750, %v4746
    %v4923 = vpack.c.b16 %v4751, %v4747
    %v4924 = vpack.c.b16 %v4752, %v4748
    %v4925 = vpack.c.b16 %v4757, %v4753
    %v4926 = vpack.c.b16 %v4758, %v4754
    %v4927 = vpack.c.b16 %v4759, %v4755
    %v4928 = vpack.c.b16 %v4760, %v4756
    %v4929 = vpack.c.b16 %v4765, %v4761
    %v4930 = vpack.c.b16 %v4766, %v4762
    %v4931 = vpack.c.b16 %v4767, %v4763
    %v4932 = vpack.c.b16 %v4768, %v4764
    %v4933 = vpack.c.b16 %v4773, %v4769
    %v4934 = vpack.c.b16 %v4774, %v4770
    %v4935 = vpack.c.b16 %v4775, %v4771
    %v4936 = vpack.c.b16 %v4776, %v4772
    %v4937 = vpack.c.b16 %v4781, %v4777
    %v4938 = vpack.c.b16 %v4782, %v4778
    %v4939 = vpack.c.b16 %v4783, %v4779
    %v4940 = vpack.c.b16 %v4784, %v4780
    %v4941 = vpack.c.b16 %v4789, %v4785
    %v4942 = vpack.c.b16 %v4790, %v4786
    %v4943 = vpack.c.b16 %v4791, %v4787
    %v4944 = vpack.c.b16 %v4792, %v4788
    %v4945 = vpack.c.b16 %v4797, %v4793
    %v4946 = vpack.c.b16 %v4798, %v4794
    %v4947 = vpack.c.b16 %v4799, %v4795
    %v4948 = vpack.c.b16 %v4800, %v4796
    %v4949 = vpack.c.b16 %v4805, %v4801
    %v4950 = vpack.c.b16 %v4806, %v4802
    %v4951 = vpack.c.b16 %v4807, %v4803
    %v4952 = vpack.c.b16 %v4808, %v4804
    %v4953 = vpack.c.b16 %v4813, %v4809
    %v4954 = vpack.c.b16 %v4814, %v4810
    %v4955 = vpack.c.b16 %v4815, %v4811
    %v4956 = vpack.c.b16 %v4816, %v4812
    %v4957 = vpack.c.b16 %v4821, %v4817
    %v4958 = vpack.c.b16 %v4822, %v4818
    %v4959 = vpack.c.b16 %v4823, %v4819
    %v4960 = vpack.c.b16 %v4824, %v4820
    %v4961 = vpack.c.b16 %v4829, %v4825
    %v4962 = vpack.c.b16 %v4830, %v4826
    %v4963 = vpack.c.b16 %v4831, %v4827
    %v4964 = vpack.c.b16 %v4832, %v4828
    %v4965 = vpack.c.b16 %v4837, %v4833
    %v4966 = vpack.c.b16 %v4838, %v4834
    %v4967 = vpack.c.b16 %v4839, %v4835
    %v4968 = vpack.c.b16 %v4840, %v4836
    %v4969 = vpack.c.b16 %v4845, %v4841
    %v4970 = vpack.c.b16 %v4846, %v4842
    %v4971 = vpack.c.b16 %v4847, %v4843
    %v4972 = vpack.c.b16 %v4848, %v4844
    %v4973 = vpack.c.b16 %v4853, %v4849
    %v4974 = vpack.c.b16 %v4854, %v4850
    %v4975 = vpack.c.b16 %v4855, %v4851
    %v4976 = vpack.c.b16 %v4856, %v4852
    %v4977 = vpack.c.b16 %v4861, %v4857
    %v4978 = vpack.c.b16 %v4862, %v4858
    %v4979 = vpack.c.b16 %v4863, %v4859
    %v4980 = vpack.c.b16 %v4864, %v4860
    %v4981 = vpack.c.b16 %v4869, %v4865
    %v4982 = vpack.c.b16 %v4870, %v4866
    %v4983 = vpack.c.b16 %v4871, %v4867
    %v4984 = vpack.c.b16 %v4872, %v4868
    %v4985 = vpack.c.b16 %v4877, %v4873
    %v4986 = vpack.c.b16 %v4878, %v4874
    %v4987 = vpack.c.b16 %v4879, %v4875
    %v4988 = vpack.c.b16 %v4880, %v4876
    %v4989 = vpack.c.b16 %v4885, %v4881
    %v4990 = vpack.c.b16 %v4886, %v4882
    %v4991 = vpack.c.b16 %v4887, %v4883
    %v4992 = vpack.c.b16 %v4888, %v4884
    %v4993 = vpack.c.b16 %v4893, %v4889
    %v4994 = vpack.c.b16 %v4894, %v4890
    %v4995 = vpack.c.b16 %v4895, %v4891
    %v4996 = vpack.c.b16 %v4896, %v4892
    %v4997 = vpack.c.b16 %v4901, %v4897
    %v4998 = vpack.c.b16 %v4902, %v4898
    %v4999 = vpack.c.b16 %v4903, %v4899
    %v5000 = vpack.c.b16 %v4904, %v4900
    %5097 = vmatprep.subr.bf16.mxu0 %v4906
    %5098 = vmatpush1.bf16.msra.mxu0 %v4905
    %5099 = vmatprep.subr.bf16.mxu0 %v4910
    %5100 = vmatpush1.bf16.msra.mxu0 %v4909
    %5101 = vmatprep.subr.bf16.mxu0 %v4914
    %5102 = vmatpush1.bf16.msra.mxu0 %v4913
    %5103 = vmatprep.subr.bf16.mxu0 %v4918
    %5104 = vmatpush1.bf16.msra.mxu0 %v4917
    %5105 = vmatprep.subr.bf16.mxu0 %v4922
    %5106 = vmatpush1.bf16.msra.mxu0 %v4921
    %5107 = vmatprep.subr.bf16.mxu0 %v4926
    %5108 = vmatpush1.bf16.msra.mxu0 %v4925
    %5109 = vmatprep.subr.bf16.mxu0 %v4930
    %5110 = vmatpush1.bf16.msra.mxu0 %v4929
    %5111 = vmatprep.subr.bf16.mxu0 %v4934
    %5112 = vmatpush1.bf16.msra.mxu0 %v4933
    %5113 = vmatprep.subr.bf16.mxu0 %v4938
    %5114 = vmatpush1.bf16.msra.mxu0 %v4937
    %5115 = vmatprep.subr.bf16.mxu0 %v4942
    %5116 = vmatpush1.bf16.msra.mxu0 %v4941
    %5117 = vmatprep.subr.bf16.mxu0 %v4946
    %5118 = vmatpush1.bf16.msra.mxu0 %v4945
    %5119 = vmatprep.subr.bf16.mxu0 %v4950
    %5120 = vmatpush1.bf16.msra.mxu0 %v4949
    %5121 = vmatprep.subr.bf16.mxu0 %v4954
    %5122 = vmatpush1.bf16.msra.mxu0 %v4953
    %5123 = vmatprep.subr.bf16.mxu0 %v4958
    %5124 = vmatpush1.bf16.msra.mxu0 %v4957
    %5125 = vmatprep.subr.bf16.mxu0 %v4962
    %5126 = vmatpush1.bf16.msra.mxu0 %v4961
    %5127 = vmatprep.subr.bf16.mxu0 %v4966
    %5128 = vmatpush1.bf16.msra.mxu0 %v4965
    %5129 = vmatprep.mubr.bf16.mxu0 %v4612
    %5130 = vmatmul.mubr.bf16.gmra.mrb[0].mxu0 %v4611
    %v5131 = vpop.f32.mrb[0].mxu0
    %v5132 = vadd.f32 0.0, %v5131
    %v5133 = vpop.f32.mrb[0].mxu0
    %v5134 = vadd.f32 0.0, %v5133
    %v5135 = vpop.f32.mrb[0].mxu0
    %v5136 = vpop.f32.mrb[0].mxu0
    %5137 = vdwg.mxu0
    %5138 = vmatprep.subr.bf16.mxu0 %v4970
    %5139 = vmatpush1.bf16.msra.mxu0 %v4969
    %5140 = vmatprep.subr.bf16.mxu0 %v4974
    %5141 = vmatpush1.bf16.msra.mxu0 %v4973
    %5142 = vmatprep.subr.bf16.mxu0 %v4978
    %5143 = vmatpush1.bf16.msra.mxu0 %v4977
    %5144 = vmatprep.subr.bf16.mxu0 %v4982
    %5145 = vmatpush1.bf16.msra.mxu0 %v4981
    %5146 = vmatprep.subr.bf16.mxu0 %v4986
    %5147 = vmatpush1.bf16.msra.mxu0 %v4985
    %5148 = vmatprep.subr.bf16.mxu0 %v4990
    %5149 = vmatpush1.bf16.msra.mxu0 %v4989
    %5150 = vmatprep.subr.bf16.mxu0 %v4994
    %5151 = vmatpush1.bf16.msra.mxu0 %v4993
    %5152 = vmatprep.subr.bf16.mxu0 %v4998
    %5153 = vmatpush1.bf16.msra.mxu0 %v4997
    %5154 = vmatprep.subr.bf16.mxu0 0
    %5155 = vmatpush1.bf16.msra.mxu0 0
    %5156 = vmatprep.subr.bf16.mxu0 0
    %5157 = vmatpush1.bf16.msra.mxu0 0
    %5158 = vmatprep.subr.bf16.mxu0 0
    %5159 = vmatpush1.bf16.msra.mxu0 0
    %5160 = vmatprep.subr.bf16.mxu0 0
    %5161 = vmatpush1.bf16.msra.mxu0 0
    %5162 = vmatprep.subr.bf16.mxu0 0
    %5163 = vmatpush1.bf16.msra.mxu0 0
    %5164 = vmatprep.subr.bf16.mxu0 0
    %5165 = vmatpush1.bf16.msra.mxu0 0
    %5166 = vmatprep.subr.bf16.mxu0 0
    %5167 = vmatpush1.bf16.msra.mxu0 0
    %5168 = vmatprep.subr.bf16.mxu0 0
    %5169 = vmatpush1.bf16.msra.mxu0 0
    %5170 = vmatprep.mubr.bf16.mxu0 0
    %5171 = vmatmul.mubr.bf16.gmra.mrb[0].mxu0 %v4613
    %v5172 = vpop.f32.mrb[0].mxu0
    %v5173 = vadd.f32 %v5132, %v5172
    %v5174 = vpop.f32.mrb[0].mxu0
    %v5175 = vadd.f32 %v5134, %v5174
    %v5176 = vpop.f32.mrb[0].mxu0
    %v5177 = vpop.f32.mrb[0].mxu0
    %5178 = vdwg.mxu0
    %5179 = vmatprep.subr.bf16.mxu0 %v4908
    %5180 = vmatpush1.bf16.msra.mxu0 %v4907
    %5181 = vmatprep.subr.bf16.mxu0 %v4912
    %5182 = vmatpush1.bf16.msra.mxu0 %v4911
    %5183 = vmatprep.subr.bf16.mxu0 %v4916
    %5184 = vmatpush1.bf16.msra.mxu0 %v4915
    %5185 = vmatprep.subr.bf16.mxu0 %v4920
    %5186 = vmatpush1.bf16.msra.mxu0 %v4919
    %5187 = vmatprep.subr.bf16.mxu0 %v4924
    %5188 = vmatpush1.bf16.msra.mxu0 %v4923
    %5189 = vmatprep.subr.bf16.mxu0 %v4928
    %5190 = vmatpush1.bf16.msra.mxu0 %v4927
    %5191 = vmatprep.subr.bf16.mxu0 %v4932
    %5192 = vmatpush1.bf16.msra.mxu0 %v4931
    %5193 = vmatprep.subr.bf16.mxu0 %v4936
    %5194 = vmatpush1.bf16.msra.mxu0 %v4935
    %5195 = vmatprep.subr.bf16.mxu0 %v4940
    %5196 = vmatpush1.bf16.msra.mxu0 %v4939
    %5197 = vmatprep.subr.bf16.mxu0 %v4944
    %5198 = vmatpush1.bf16.msra.mxu0 %v4943
    %5199 = vmatprep.subr.bf16.mxu0 %v4948
    %5200 = vmatpush1.bf16.msra.mxu0 %v4947
    %5201 = vmatprep.subr.bf16.mxu0 %v4952
    %5202 = vmatpush1.bf16.msra.mxu0 %v4951
    %5203 = vmatprep.subr.bf16.mxu0 %v4956
    %5204 = vmatpush1.bf16.msra.mxu0 %v4955
    %5205 = vmatprep.subr.bf16.mxu0 %v4960
    %5206 = vmatpush1.bf16.msra.mxu0 %v4959
    %5207 = vmatprep.subr.bf16.mxu0 %v4964
    %5208 = vmatpush1.bf16.msra.mxu0 %v4963
    %5209 = vmatprep.subr.bf16.mxu0 %v4968
    %5210 = vmatpush1.bf16.msra.mxu0 %v4967
    %5211 = vmatprep.mubr.bf16.mxu0 %v4612
    %5212 = vmatmul.mubr.bf16.gmra.mrb[0].mxu0 %v4611
    %v5213 = vpop.f32.mrb[0].mxu0
    %v5214 = vadd.f32 0.0, %v5213
    %v5215 = vpop.f32.mrb[0].mxu0
    %v5216 = vadd.f32 0.0, %v5215
    %v5217 = vpop.f32.mrb[0].mxu0
    %v5218 = vpop.f32.mrb[0].mxu0
    %5219 = vdwg.mxu0
    %5220 = vmatprep.subr.bf16.mxu0 %v4972
    %5221 = vmatpush1.bf16.msra.mxu0 %v4971
    %5222 = vmatprep.subr.bf16.mxu0 %v4976
    %5223 = vmatpush1.bf16.msra.mxu0 %v4975
    %5224 = vmatprep.subr.bf16.mxu0 %v4980
    %5225 = vmatpush1.bf16.msra.mxu0 %v4979
    %5226 = vmatprep.subr.bf16.mxu0 %v4984
    %5227 = vmatpush1.bf16.msra.mxu0 %v4983
    %5228 = vmatprep.subr.bf16.mxu0 %v4988
    %5229 = vmatpush1.bf16.msra.mxu0 %v4987
    %5230 = vmatprep.subr.bf16.mxu0 %v4992
    %5231 = vmatpush1.bf16.msra.mxu0 %v4991
    %5232 = vmatprep.subr.bf16.mxu0 %v4996
    %5233 = vmatpush1.bf16.msra.mxu0 %v4995
    %5234 = vmatprep.subr.bf16.mxu0 %v5000
    %5235 = vmatpush1.bf16.msra.mxu0 %v4999
    %5236 = vmatprep.subr.bf16.mxu0 0
    %5237 = vmatpush1.bf16.msra.mxu0 0
    %5238 = vmatprep.subr.bf16.mxu0 0
    %5239 = vmatpush1.bf16.msra.mxu0 0
    %5240 = vmatprep.subr.bf16.mxu0 0
    %5241 = vmatpush1.bf16.msra.mxu0 0
    %5242 = vmatprep.subr.bf16.mxu0 0
    %5243 = vmatpush1.bf16.msra.mxu0 0
    %5244 = vmatprep.subr.bf16.mxu0 0
    %5245 = vmatpush1.bf16.msra.mxu0 0
    %5246 = vmatprep.subr.bf16.mxu0 0
    %5247 = vmatpush1.bf16.msra.mxu0 0
    %5248 = vmatprep.subr.bf16.mxu0 0
    %5249 = vmatpush1.bf16.msra.mxu0 0
    %5250 = vmatprep.subr.bf16.mxu0 0
    %5251 = vmatpush1.bf16.msra.mxu0 0
    %5252 = vmatprep.mubr.bf16.mxu0 0
    %5253 = vmatmul.mubr.bf16.gmra.mrb[0].mxu0 %v4613
    %v5254 = vpop.f32.mrb[0].mxu0
    %v5255 = vadd.f32 %v5214, %v5254
    %v5256 = vpop.f32.mrb[0].mxu0
    %v5257 = vadd.f32 %v5216, %v5256
    %v5258 = vpop.f32.mrb[0].mxu0
    %v5259 = vpop.f32.mrb[0].mxu0
    %5260 = vdwg.mxu0
    %v5261 = vadd.f32 %v4510, %v5173
    %v5262 = vadd.f32 %v4511, %v5175
    %v5263 = vadd.f32 %v4512, %v5255
    %v5264 = vadd.f32 %v4513, %v5257
    %v5268 = vrot.slane %v2255, 1
    %v5269 = vrot.slane %v2256, 1
    %v5270 = vrot.slane %v2257, 1
    %v5274 = vmax.f32 %v2255, %v5268
    %v5275 = vmax.f32 %v2256, %v5269
    %v5276 = vmax.f32 %v2257, %v5270
    %v5277 = vpack.c.bf16 %v5274, %v5274
    %v5278 = vpack.c.bf16 %v5275, %v5275
    %v5279 = vpack.c.bf16 %v5276, %v5276
    %s5280 = scalar_lea.vmem [#allocation6], 3072
    %v5281 = vld [vmem:[%s5280] sm:$0xff]
    %v5282 = vld [vmem:[%s5280 + $0x8] sm:$0xff]
    %v5283 = vld [vmem:[%s5280 + $0x10] sm:$0xff]
    %v5284 = vld [vmem:[%s5280 + $0x18] sm:$0xff]
    %v5285 = vld [vmem:[%s5280 + $0x20] sm:$0xff]
    %v5286 = vld [vmem:[%s5280 + $0x28] sm:$0xff]
    %v5287 = vld [vmem:[%s5280 + $0x30] sm:$0xff]
    %v5288 = vld [vmem:[%s5280 + $0x38] sm:$0xff]
    %v5289 = vld [vmem:[%s5280 + $0x40] sm:$0xff]
    %v5290 = vld [vmem:[%s5280 + $0x48] sm:$0xff]
    %v5291 = vld [vmem:[%s5280 + $0x50] sm:$0xff]
    %v5292 = vld [vmem:[%s5280 + $0x58] sm:$0xff]
    %v5293 = vld [vmem:[%s5280 + $0x60] sm:$0xff]
    %v5294 = vld [vmem:[%s5280 + $0x68] sm:$0xff]
    %v5295 = vld [vmem:[%s5280 + $0x70] sm:$0xff]
    %v5296 = vld [vmem:[%s5280 + $0x78] sm:$0xff]
    %v5297 = vld [vmem:[%s5280 + $0x80] sm:$0xff]
    %v5298 = vld [vmem:[%s5280 + $0x88] sm:$0xff]
    %v5299 = vld [vmem:[%s5280 + $0x90] sm:$0xff]
    %v5300 = vld [vmem:[%s5280 + $0x98] sm:$0xff]
    %v5301 = vld [vmem:[%s5280 + $0xa0] sm:$0xff]
    %v5302 = vld [vmem:[%s5280 + $0xa8] sm:$0xff]
    %v5303 = vld [vmem:[%s5280 + $0xb0] sm:$0xff]
    %v5304 = vld [vmem:[%s5280 + $0xb8] sm:$0xff]
    %v5305 = vld [vmem:[%s5280 + $0xc0] sm:$0xff]
    %v5306 = vld [vmem:[%s5280 + $0xc8] sm:$0xff]
    %v5307 = vld [vmem:[%s5280 + $0xd0] sm:$0xff]
    %v5308 = vld [vmem:[%s5280 + $0xd8] sm:$0xff]
    %v5309 = vld [vmem:[%s5280 + $0xe0] sm:$0xff]
    %v5310 = vld [vmem:[%s5280 + $0xe8] sm:$0xff]
    %v5311 = vld [vmem:[%s5280 + $0xf0] sm:$0xff]
    %v5312 = vld [vmem:[%s5280 + $0xf8] sm:$0xff]
    %v5313 = vld [vmem:[%s5280 + $0x100] sm:$0xff]
    %v5314 = vld [vmem:[%s5280 + $0x108] sm:$0xff]
    %v5315 = vld [vmem:[%s5280 + $0x110] sm:$0xff]
    %v5316 = vld [vmem:[%s5280 + $0x118] sm:$0xff]
    %v5317 = vld [vmem:[%s5280 + $0x120] sm:$0xff]
    %v5318 = vld [vmem:[%s5280 + $0x128] sm:$0xff]
    %v5319 = vld [vmem:[%s5280 + $0x130] sm:$0xff]
    %v5320 = vld [vmem:[%s5280 + $0x138] sm:$0xff]
    %v5321 = vld [vmem:[%s5280 + $0x140] sm:$0xff]
    %v5322 = vld [vmem:[%s5280 + $0x148] sm:$0xff]
    %v5323 = vld [vmem:[%s5280 + $0x150] sm:$0xff]
    %v5324 = vld [vmem:[%s5280 + $0x158] sm:$0xff]
    %v5325 = vld [vmem:[%s5280 + $0x160] sm:$0xff]
    %v5326 = vld [vmem:[%s5280 + $0x168] sm:$0xff]
    %v5327 = vld [vmem:[%s5280 + $0x170] sm:$0xff]
    %v5328 = vld [vmem:[%s5280 + $0x178] sm:$0xff]
    %v5329 = vld [vmem:[%s5280 + $0x180] sm:$0xff]
    %v5330 = vld [vmem:[%s5280 + $0x188] sm:$0xff]
    %v5331 = vld [vmem:[%s5280 + $0x190] sm:$0xff]
    %v5332 = vld [vmem:[%s5280 + $0x198] sm:$0xff]
    %v5333 = vld [vmem:[%s5280 + $0x1a0] sm:$0xff]
    %v5334 = vld [vmem:[%s5280 + $0x1a8] sm:$0xff]
    %v5335 = vld [vmem:[%s5280 + $0x1b0] sm:$0xff]
    %v5336 = vld [vmem:[%s5280 + $0x1b8] sm:$0xff]
    %v5337 = vld [vmem:[%s5280 + $0x1c0] sm:$0xff]
    %v5338 = vld [vmem:[%s5280 + $0x1c8] sm:$0xff]
    %v5339 = vld [vmem:[%s5280 + $0x1d0] sm:$0xff]
    %v5340 = vld [vmem:[%s5280 + $0x1d8] sm:$0xff]
    %v5341 = vld [vmem:[%s5280 + $0x1e0] sm:$0xff]
    %v5342 = vld [vmem:[%s5280 + $0x1e8] sm:$0xff]
    %v5343 = vld [vmem:[%s5280 + $0x1f0] sm:$0xff]
    %v5344 = vld [vmem:[%s5280 + $0x1f8] sm:$0xff]
    %v5345 = vld [vmem:[%s5280 + $0x200] sm:$0xff]
    %v5346 = vld [vmem:[%s5280 + $0x208] sm:$0xff]
    %v5347 = vld [vmem:[%s5280 + $0x210] sm:$0xff]
    %v5348 = vld [vmem:[%s5280 + $0x218] sm:$0xff]
    %v5349 = vld [vmem:[%s5280 + $0x220] sm:$0xff]
    %v5350 = vld [vmem:[%s5280 + $0x228] sm:$0xff]
    %v5351 = vld [vmem:[%s5280 + $0x230] sm:$0xff]
    %v5352 = vld [vmem:[%s5280 + $0x238] sm:$0xff]
    %v5353 = vld [vmem:[%s5280 + $0x240] sm:$0xff]
    %v5354 = vld [vmem:[%s5280 + $0x248] sm:$0xff]
    %v5355 = vld [vmem:[%s5280 + $0x250] sm:$0xff]
    %v5356 = vld [vmem:[%s5280 + $0x258] sm:$0xff]
    %v5357 = vld [vmem:[%s5280 + $0x260] sm:$0xff]
    %v5358 = vld [vmem:[%s5280 + $0x268] sm:$0xff]
    %v5359 = vld [vmem:[%s5280 + $0x270] sm:$0xff]
    %v5360 = vld [vmem:[%s5280 + $0x278] sm:$0xff]
    %v5361 = vld [vmem:[%s5280 + $0x280] sm:$0xff]
    %v5362 = vld [vmem:[%s5280 + $0x288] sm:$0xff]
    %v5363 = vld [vmem:[%s5280 + $0x290] sm:$0xff]
    %v5364 = vld [vmem:[%s5280 + $0x298] sm:$0xff]
    %v5365 = vld [vmem:[%s5280 + $0x2a0] sm:$0xff]
    %v5366 = vld [vmem:[%s5280 + $0x2a8] sm:$0xff]
    %v5367 = vld [vmem:[%s5280 + $0x2b0] sm:$0xff]
    %v5368 = vld [vmem:[%s5280 + $0x2b8] sm:$0xff]
    %v5369 = vld [vmem:[%s5280 + $0x2c0] sm:$0xff]
    %v5370 = vld [vmem:[%s5280 + $0x2c8] sm:$0xff]
    %v5371 = vld [vmem:[%s5280 + $0x2d0] sm:$0xff]
    %v5372 = vld [vmem:[%s5280 + $0x2d8] sm:$0xff]
    %v5373 = vld [vmem:[%s5280 + $0x2e0] sm:$0xff]
    %v5374 = vld [vmem:[%s5280 + $0x2e8] sm:$0xff]
    %v5375 = vld [vmem:[%s5280 + $0x2f0] sm:$0xff]
    %v5376 = vld [vmem:[%s5280 + $0x2f8] sm:$0xff]
    %v5473 = vunpack.c.l.b16 %v5281
    %v5474 = vunpack.c.h.b16 %v5281
    %v5475 = vunpack.c.l.b16 %v5282
    %v5476 = vunpack.c.h.b16 %v5282
    %v5477 = vunpack.c.l.b16 %v5283
    %v5478 = vunpack.c.h.b16 %v5283
    %v5479 = vunpack.c.l.b16 %v5284
    %v5480 = vunpack.c.h.b16 %v5284
    %v5481 = vunpack.c.l.b16 %v5285
    %v5482 = vunpack.c.h.b16 %v5285
    %v5483 = vunpack.c.l.b16 %v5286
    %v5484 = vunpack.c.h.b16 %v5286
    %v5485 = vunpack.c.l.b16 %v5287
    %v5486 = vunpack.c.h.b16 %v5287
    %v5487 = vunpack.c.l.b16 %v5288
    %v5488 = vunpack.c.h.b16 %v5288
    %v5489 = vunpack.c.l.b16 %v5289
    %v5490 = vunpack.c.h.b16 %v5289
    %v5491 = vunpack.c.l.b16 %v5290
    %v5492 = vunpack.c.h.b16 %v5290
    %v5493 = vunpack.c.l.b16 %v5291
    %v5494 = vunpack.c.h.b16 %v5291
    %v5495 = vunpack.c.l.b16 %v5292
    %v5496 = vunpack.c.h.b16 %v5292
    %v5497 = vunpack.c.l.b16 %v5293
    %v5498 = vunpack.c.h.b16 %v5293
    %v5499 = vunpack.c.l.b16 %v5294
    %v5500 = vunpack.c.h.b16 %v5294
    %v5501 = vunpack.c.l.b16 %v5295
    %v5502 = vunpack.c.h.b16 %v5295
    %v5503 = vunpack.c.l.b16 %v5296
    %v5504 = vunpack.c.h.b16 %v5296
    %v5505 = vunpack.c.l.b16 %v5297
    %v5506 = vunpack.c.h.b16 %v5297
    %v5507 = vunpack.c.l.b16 %v5298
    %v5508 = vunpack.c.h.b16 %v5298
    %v5509 = vunpack.c.l.b16 %v5299
    %v5510 = vunpack.c.h.b16 %v5299
    %v5511 = vunpack.c.l.b16 %v5300
    %v5512 = vunpack.c.h.b16 %v5300
    %v5513 = vunpack.c.l.b16 %v5301
    %v5514 = vunpack.c.h.b16 %v5301
    %v5515 = vunpack.c.l.b16 %v5302
    %v5516 = vunpack.c.h.b16 %v5302
    %v5517 = vunpack.c.l.b16 %v5303
    %v5518 = vunpack.c.h.b16 %v5303
    %v5519 = vunpack.c.l.b16 %v5304
    %v5520 = vunpack.c.h.b16 %v5304
    %v5521 = vunpack.c.l.b16 %v5305
    %v5522 = vunpack.c.h.b16 %v5305
    %v5523 = vunpack.c.l.b16 %v5306
    %v5524 = vunpack.c.h.b16 %v5306
    %v5525 = vunpack.c.l.b16 %v5307
    %v5526 = vunpack.c.h.b16 %v5307
    %v5527 = vunpack.c.l.b16 %v5308
    %v5528 = vunpack.c.h.b16 %v5308
    %v5529 = vunpack.c.l.b16 %v5309
    %v5530 = vunpack.c.h.b16 %v5309
    %v5531 = vunpack.c.l.b16 %v5310
    %v5532 = vunpack.c.h.b16 %v5310
    %v5533 = vunpack.c.l.b16 %v5311
    %v5534 = vunpack.c.h.b16 %v5311
    %v5535 = vunpack.c.l.b16 %v5312
    %v5536 = vunpack.c.h.b16 %v5312
    %v5537 = vunpack.c.l.b16 %v5313
    %v5538 = vunpack.c.h.b16 %v5313
    %v5539 = vunpack.c.l.b16 %v5314
    %v5540 = vunpack.c.h.b16 %v5314
    %v5541 = vunpack.c.l.b16 %v5315
    %v5542 = vunpack.c.h.b16 %v5315
    %v5543 = vunpack.c.l.b16 %v5316
    %v5544 = vunpack.c.h.b16 %v5316
    %v5545 = vunpack.c.l.b16 %v5317
    %v5546 = vunpack.c.h.b16 %v5317
    %v5547 = vunpack.c.l.b16 %v5318
    %v5548 = vunpack.c.h.b16 %v5318
    %v5549 = vunpack.c.l.b16 %v5319
    %v5550 = vunpack.c.h.b16 %v5319
    %v5551 = vunpack.c.l.b16 %v5320
    %v5552 = vunpack.c.h.b16 %v5320
    %v5553 = vunpack.c.l.b16 %v5321
    %v5554 = vunpack.c.h.b16 %v5321
    %v5555 = vunpack.c.l.b16 %v5322
    %v5556 = vunpack.c.h.b16 %v5322
    %v5557 = vunpack.c.l.b16 %v5323
    %v5558 = vunpack.c.h.b16 %v5323
    %v5559 = vunpack.c.l.b16 %v5324
    %v5560 = vunpack.c.h.b16 %v5324
    %v5561 = vunpack.c.l.b16 %v5325
    %v5562 = vunpack.c.h.b16 %v5325
    %v5563 = vunpack.c.l.b16 %v5326
    %v5564 = vunpack.c.h.b16 %v5326
    %v5565 = vunpack.c.l.b16 %v5327
    %v5566 = vunpack.c.h.b16 %v5327
    %v5567 = vunpack.c.l.b16 %v5328
    %v5568 = vunpack.c.h.b16 %v5328
    %v5569 = vunpack.c.l.b16 %v5329
    %v5570 = vunpack.c.h.b16 %v5329
    %v5571 = vunpack.c.l.b16 %v5330
    %v5572 = vunpack.c.h.b16 %v5330
    %v5573 = vunpack.c.l.b16 %v5331
    %v5574 = vunpack.c.h.b16 %v5331
    %v5575 = vunpack.c.l.b16 %v5332
    %v5576 = vunpack.c.h.b16 %v5332
    %v5577 = vunpack.c.l.b16 %v5333
    %v5578 = vunpack.c.h.b16 %v5333
    %v5579 = vunpack.c.l.b16 %v5334
    %v5580 = vunpack.c.h.b16 %v5334
    %v5581 = vunpack.c.l.b16 %v5335
    %v5582 = vunpack.c.h.b16 %v5335
    %v5583 = vunpack.c.l.b16 %v5336
    %v5584 = vunpack.c.h.b16 %v5336
    %v5585 = vunpack.c.l.b16 %v5337
    %v5586 = vunpack.c.h.b16 %v5337
    %v5587 = vunpack.c.l.b16 %v5338
    %v5588 = vunpack.c.h.b16 %v5338
    %v5589 = vunpack.c.l.b16 %v5339
    %v5590 = vunpack.c.h.b16 %v5339
    %v5591 = vunpack.c.l.b16 %v5340
    %v5592 = vunpack.c.h.b16 %v5340
    %v5593 = vunpack.c.l.b16 %v5341
    %v5594 = vunpack.c.h.b16 %v5341
    %v5595 = vunpack.c.l.b16 %v5342
    %v5596 = vunpack.c.h.b16 %v5342
    %v5597 = vunpack.c.l.b16 %v5343
    %v5598 = vunpack.c.h.b16 %v5343
    %v5599 = vunpack.c.l.b16 %v5344
    %v5600 = vunpack.c.h.b16 %v5344
    %v5601 = vunpack.c.l.b16 %v5345
    %v5602 = vunpack.c.h.b16 %v5345
    %v5603 = vunpack.c.l.b16 %v5346
    %v5604 = vunpack.c.h.b16 %v5346
    %v5605 = vunpack.c.l.b16 %v5347
    %v5606 = vunpack.c.h.b16 %v5347
    %v5607 = vunpack.c.l.b16 %v5348
    %v5608 = vunpack.c.h.b16 %v5348
    %v5609 = vunpack.c.l.b16 %v5349
    %v5610 = vunpack.c.h.b16 %v5349
    %v5611 = vunpack.c.l.b16 %v5350
    %v5612 = vunpack.c.h.b16 %v5350
    %v5613 = vunpack.c.l.b16 %v5351
    %v5614 = vunpack.c.h.b16 %v5351
    %v5615 = vunpack.c.l.b16 %v5352
    %v5616 = vunpack.c.h.b16 %v5352
    %v5617 = vunpack.c.l.b16 %v5353
    %v5618 = vunpack.c.h.b16 %v5353
    %v5619 = vunpack.c.l.b16 %v5354
    %v5620 = vunpack.c.h.b16 %v5354
    %v5621 = vunpack.c.l.b16 %v5355
    %v5622 = vunpack.c.h.b16 %v5355
    %v5623 = vunpack.c.l.b16 %v5356
    %v5624 = vunpack.c.h.b16 %v5356
    %v5625 = vunpack.c.l.b16 %v5357
    %v5626 = vunpack.c.h.b16 %v5357
    %v5627 = vunpack.c.l.b16 %v5358
    %v5628 = vunpack.c.h.b16 %v5358
    %v5629 = vunpack.c.l.b16 %v5359
    %v5630 = vunpack.c.h.b16 %v5359
    %v5631 = vunpack.c.l.b16 %v5360
    %v5632 = vunpack.c.h.b16 %v5360
    %v5633 = vunpack.c.l.b16 %v5361
    %v5634 = vunpack.c.h.b16 %v5361
    %v5635 = vunpack.c.l.b16 %v5362
    %v5636 = vunpack.c.h.b16 %v5362
    %v5637 = vunpack.c.l.b16 %v5363
    %v5638 = vunpack.c.h.b16 %v5363
    %v5639 = vunpack.c.l.b16 %v5364
    %v5640 = vunpack.c.h.b16 %v5364
    %v5641 = vunpack.c.l.b16 %v5365
    %v5642 = vunpack.c.h.b16 %v5365
    %v5643 = vunpack.c.l.b16 %v5366
    %v5644 = vunpack.c.h.b16 %v5366
    %v5645 = vunpack.c.l.b16 %v5367
    %v5646 = vunpack.c.h.b16 %v5367
    %v5647 = vunpack.c.l.b16 %v5368
    %v5648 = vunpack.c.h.b16 %v5368
    %v5649 = vunpack.c.l.b16 %v5369
    %v5650 = vunpack.c.h.b16 %v5369
    %v5651 = vunpack.c.l.b16 %v5370
    %v5652 = vunpack.c.h.b16 %v5370
    %v5653 = vunpack.c.l.b16 %v5371
    %v5654 = vunpack.c.h.b16 %v5371
    %v5655 = vunpack.c.l.b16 %v5372
    %v5656 = vunpack.c.h.b16 %v5372
    %v5657 = vunpack.c.l.b16 %v5373
    %v5658 = vunpack.c.h.b16 %v5373
    %v5659 = vunpack.c.l.b16 %v5374
    %v5660 = vunpack.c.h.b16 %v5374
    %v5661 = vunpack.c.l.b16 %v5375
    %v5662 = vunpack.c.h.b16 %v5375
    %v5663 = vunpack.c.l.b16 %v5376
    %v5664 = vunpack.c.h.b16 %v5376
    %v5665 = vpack.c.b16 %v5477, %v5473
    %v5666 = vpack.c.b16 %v5478, %v5474
    %v5667 = vpack.c.b16 %v5479, %v5475
    %v5668 = vpack.c.b16 %v5480, %v5476
    %v5669 = vpack.c.b16 %v5485, %v5481
    %v5670 = vpack.c.b16 %v5486, %v5482
    %v5671 = vpack.c.b16 %v5487, %v5483
    %v5672 = vpack.c.b16 %v5488, %v5484
    %v5673 = vpack.c.b16 %v5493, %v5489
    %v5674 = vpack.c.b16 %v5494, %v5490
    %v5675 = vpack.c.b16 %v5495, %v5491
    %v5676 = vpack.c.b16 %v5496, %v5492
    %v5677 = vpack.c.b16 %v5501, %v5497
    %v5678 = vpack.c.b16 %v5502, %v5498
    %v5679 = vpack.c.b16 %v5503, %v5499
    %v5680 = vpack.c.b16 %v5504, %v5500
    %v5681 = vpack.c.b16 %v5509, %v5505
    %v5682 = vpack.c.b16 %v5510, %v5506
    %v5683 = vpack.c.b16 %v5511, %v5507
    %v5684 = vpack.c.b16 %v5512, %v5508
    %v5685 = vpack.c.b16 %v5517, %v5513
    %v5686 = vpack.c.b16 %v5518, %v5514
    %v5687 = vpack.c.b16 %v5519, %v5515
    %v5688 = vpack.c.b16 %v5520, %v5516
    %v5689 = vpack.c.b16 %v5525, %v5521
    %v5690 = vpack.c.b16 %v5526, %v5522
    %v5691 = vpack.c.b16 %v5527, %v5523
    %v5692 = vpack.c.b16 %v5528, %v5524
    %v5693 = vpack.c.b16 %v5533, %v5529
    %v5694 = vpack.c.b16 %v5534, %v5530
    %v5695 = vpack.c.b16 %v5535, %v5531
    %v5696 = vpack.c.b16 %v5536, %v5532
    %v5697 = vpack.c.b16 %v5541, %v5537
    %v5698 = vpack.c.b16 %v5542, %v5538
    %v5699 = vpack.c.b16 %v5543, %v5539
    %v5700 = vpack.c.b16 %v5544, %v5540
    %v5701 = vpack.c.b16 %v5549, %v5545
    %v5702 = vpack.c.b16 %v5550, %v5546
    %v5703 = vpack.c.b16 %v5551, %v5547
    %v5704 = vpack.c.b16 %v5552, %v5548
    %v5705 = vpack.c.b16 %v5557, %v5553
    %v5706 = vpack.c.b16 %v5558, %v5554
    %v5707 = vpack.c.b16 %v5559, %v5555
    %v5708 = vpack.c.b16 %v5560, %v5556
    %v5709 = vpack.c.b16 %v5565, %v5561
    %v5710 = vpack.c.b16 %v5566, %v5562
    %v5711 = vpack.c.b16 %v5567, %v5563
    %v5712 = vpack.c.b16 %v5568, %v5564
    %v5713 = vpack.c.b16 %v5573, %v5569
    %v5714 = vpack.c.b16 %v5574, %v5570
    %v5715 = vpack.c.b16 %v5575, %v5571
    %v5716 = vpack.c.b16 %v5576, %v5572
    %v5717 = vpack.c.b16 %v5581, %v5577
    %v5718 = vpack.c.b16 %v5582, %v5578
    %v5719 = vpack.c.b16 %v5583, %v5579
    %v5720 = vpack.c.b16 %v5584, %v5580
    %v5721 = vpack.c.b16 %v5589, %v5585
    %v5722 = vpack.c.b16 %v5590, %v5586
    %v5723 = vpack.c.b16 %v5591, %v5587
    %v5724 = vpack.c.b16 %v5592, %v5588
    %v5725 = vpack.c.b16 %v5597, %v5593
    %v5726 = vpack.c.b16 %v5598, %v5594
    %v5727 = vpack.c.b16 %v5599, %v5595
    %v5728 = vpack.c.b16 %v5600, %v5596
    %v5729 = vpack.c.b16 %v5605, %v5601
    %v5730 = vpack.c.b16 %v5606, %v5602
    %v5731 = vpack.c.b16 %v5607, %v5603
    %v5732 = vpack.c.b16 %v5608, %v5604
    %v5733 = vpack.c.b16 %v5613, %v5609
    %v5734 = vpack.c.b16 %v5614, %v5610
    %v5735 = vpack.c.b16 %v5615, %v5611
    %v5736 = vpack.c.b16 %v5616, %v5612
    %v5737 = vpack.c.b16 %v5621, %v5617
    %v5738 = vpack.c.b16 %v5622, %v5618
    %v5739 = vpack.c.b16 %v5623, %v5619
    %v5740 = vpack.c.b16 %v5624, %v5620
    %v5741 = vpack.c.b16 %v5629, %v5625
    %v5742 = vpack.c.b16 %v5630, %v5626
    %v5743 = vpack.c.b16 %v5631, %v5627
    %v5744 = vpack.c.b16 %v5632, %v5628
    %v5745 = vpack.c.b16 %v5637, %v5633
    %v5746 = vpack.c.b16 %v5638, %v5634
    %v5747 = vpack.c.b16 %v5639, %v5635
    %v5748 = vpack.c.b16 %v5640, %v5636
    %v5749 = vpack.c.b16 %v5645, %v5641
    %v5750 = vpack.c.b16 %v5646, %v5642
    %v5751 = vpack.c.b16 %v5647, %v5643
    %v5752 = vpack.c.b16 %v5648, %v5644
    %v5753 = vpack.c.b16 %v5653, %v5649
    %v5754 = vpack.c.b16 %v5654, %v5650
    %v5755 = vpack.c.b16 %v5655, %v5651
    %v5756 = vpack.c.b16 %v5656, %v5652
    %v5757 = vpack.c.b16 %v5661, %v5657
    %v5758 = vpack.c.b16 %v5662, %v5658
    %v5759 = vpack.c.b16 %v5663, %v5659
    %v5760 = vpack.c.b16 %v5664, %v5660
    %5857 = vmatprep.subr.bf16.mxu0 %v5666
    %5858 = vmatpush1.bf16.msra.mxu0 %v5665
    %5859 = vmatprep.subr.bf16.mxu0 %v5670
    %5860 = vmatpush1.bf16.msra.mxu0 %v5669
    %5861 = vmatprep.subr.bf16.mxu0 %v5674
    %5862 = vmatpush1.bf16.msra.mxu0 %v5673
    %5863 = vmatprep.subr.bf16.mxu0 %v5678
    %5864 = vmatpush1.bf16.msra.mxu0 %v5677
    %5865 = vmatprep.subr.bf16.mxu0 %v5682
    %5866 = vmatpush1.bf16.msra.mxu0 %v5681
    %5867 = vmatprep.subr.bf16.mxu0 %v5686
    %5868 = vmatpush1.bf16.msra.mxu0 %v5685
    %5869 = vmatprep.subr.bf16.mxu0 %v5690
    %5870 = vmatpush1.bf16.msra.mxu0 %v5689
    %5871 = vmatprep.subr.bf16.mxu0 %v5694
    %5872 = vmatpush1.bf16.msra.mxu0 %v5693
    %5873 = vmatprep.subr.bf16.mxu0 %v5698
    %5874 = vmatpush1.bf16.msra.mxu0 %v5697
    %5875 = vmatprep.subr.bf16.mxu0 %v5702
    %5876 = vmatpush1.bf16.msra.mxu0 %v5701
    %5877 = vmatprep.subr.bf16.mxu0 %v5706
    %5878 = vmatpush1.bf16.msra.mxu0 %v5705
    %5879 = vmatprep.subr.bf16.mxu0 %v5710
    %5880 = vmatpush1.bf16.msra.mxu0 %v5709
    %5881 = vmatprep.subr.bf16.mxu0 %v5714
    %5882 = vmatpush1.bf16.msra.mxu0 %v5713
    %5883 = vmatprep.subr.bf16.mxu0 %v5718
    %5884 = vmatpush1.bf16.msra.mxu0 %v5717
    %5885 = vmatprep.subr.bf16.mxu0 %v5722
    %5886 = vmatpush1.bf16.msra.mxu0 %v5721
    %5887 = vmatprep.subr.bf16.mxu0 %v5726
    %5888 = vmatpush1.bf16.msra.mxu0 %v5725
    %5889 = vmatprep.mubr.bf16.mxu0 %v5278
    %5890 = vmatmul.mubr.bf16.gmra.mrb[0].mxu0 %v5277
    %v5891 = vpop.f32.mrb[0].mxu0
    %v5892 = vadd.f32 0.0, %v5891
    %v5893 = vpop.f32.mrb[0].mxu0
    %v5894 = vadd.f32 0.0, %v5893
    %v5895 = vpop.f32.mrb[0].mxu0
    %v5896 = vpop.f32.mrb[0].mxu0
    %5897 = vdwg.mxu0
    %5898 = vmatprep.subr.bf16.mxu0 %v5730
    %5899 = vmatpush1.bf16.msra.mxu0 %v5729
    %5900 = vmatprep.subr.bf16.mxu0 %v5734
    %5901 = vmatpush1.bf16.msra.mxu0 %v5733
    %5902 = vmatprep.subr.bf16.mxu0 %v5738
    %5903 = vmatpush1.bf16.msra.mxu0 %v5737
    %5904 = vmatprep.subr.bf16.mxu0 %v5742
    %5905 = vmatpush1.bf16.msra.mxu0 %v5741
    %5906 = vmatprep.subr.bf16.mxu0 %v5746
    %5907 = vmatpush1.bf16.msra.mxu0 %v5745
    %5908 = vmatprep.subr.bf16.mxu0 %v5750
    %5909 = vmatpush1.bf16.msra.mxu0 %v5749
    %5910 = vmatprep.subr.bf16.mxu0 %v5754
    %5911 = vmatpush1.bf16.msra.mxu0 %v5753
    %5912 = vmatprep.subr.bf16.mxu0 %v5758
    %5913 = vmatpush1.bf16.msra.mxu0 %v5757
    %5914 = vmatprep.subr.bf16.mxu0 0
    %5915 = vmatpush1.bf16.msra.mxu0 0
    %5916 = vmatprep.subr.bf16.mxu0 0
    %5917 = vmatpush1.bf16.msra.mxu0 0
    %5918 = vmatprep.subr.bf16.mxu0 0
    %5919 = vmatpush1.bf16.msra.mxu0 0
    %5920 = vmatprep.subr.bf16.mxu0 0
    %5921 = vmatpush1.bf16.msra.mxu0 0
    %5922 = vmatprep.subr.bf16.mxu0 0
    %5923 = vmatpush1.bf16.msra.mxu0 0
    %5924 = vmatprep.subr.bf16.mxu0 0
    %5925 = vmatpush1.bf16.msra.mxu0 0
    %5926 = vmatprep.subr.bf16.mxu0 0
    %5927 = vmatpush1.bf16.msra.mxu0 0
    %5928 = vmatprep.subr.bf16.mxu0 0
    %5929 = vmatpush1.bf16.msra.mxu0 0
    %5930 = vmatprep.mubr.bf16.mxu0 0
    %5931 = vmatmul.mubr.bf16.gmra.mrb[0].mxu0 %v5279
    %v5932 = vpop.f32.mrb[0].mxu0
    %v5933 = vadd.f32 %v5892, %v5932
    %v5934 = vpop.f32.mrb[0].mxu0
    %v5935 = vadd.f32 %v5894, %v5934
    %v5936 = vpop.f32.mrb[0].mxu0
    %v5937 = vpop.f32.mrb[0].mxu0
    %5938 = vdwg.mxu0
    %5939 = vmatprep.subr.bf16.mxu0 %v5668
    %5940 = vmatpush1.bf16.msra.mxu0 %v5667
    %5941 = vmatprep.subr.bf16.mxu0 %v5672
    %5942 = vmatpush1.bf16.msra.mxu0 %v5671
    %5943 = vmatprep.subr.bf16.mxu0 %v5676
    %5944 = vmatpush1.bf16.msra.mxu0 %v5675
    %5945 = vmatprep.subr.bf16.mxu0 %v5680
    %5946 = vmatpush1.bf16.msra.mxu0 %v5679
    %5947 = vmatprep.subr.bf16.mxu0 %v5684
    %5948 = vmatpush1.bf16.msra.mxu0 %v5683
    %5949 = vmatprep.subr.bf16.mxu0 %v5688
    %5950 = vmatpush1.bf16.msra.mxu0 %v5687
    %5951 = vmatprep.subr.bf16.mxu0 %v5692
    %5952 = vmatpush1.bf16.msra.mxu0 %v5691
    %5953 = vmatprep.subr.bf16.mxu0 %v5696
    %5954 = vmatpush1.bf16.msra.mxu0 %v5695
    %5955 = vmatprep.subr.bf16.mxu0 %v5700
    %5956 = vmatpush1.bf16.msra.mxu0 %v5699
    %5957 = vmatprep.subr.bf16.mxu0 %v5704
    %5958 = vmatpush1.bf16.msra.mxu0 %v5703
    %5959 = vmatprep.subr.bf16.mxu0 %v5708
    %5960 = vmatpush1.bf16.msra.mxu0 %v5707
    %5961 = vmatprep.subr.bf16.mxu0 %v5712
    %5962 = vmatpush1.bf16.msra.mxu0 %v5711
    %5963 = vmatprep.subr.bf16.mxu0 %v5716
    %5964 = vmatpush1.bf16.msra.mxu0 %v5715
    %5965 = vmatprep.subr.bf16.mxu0 %v5720
    %5966 = vmatpush1.bf16.msra.mxu0 %v5719
    %5967 = vmatprep.subr.bf16.mxu0 %v5724
    %5968 = vmatpush1.bf16.msra.mxu0 %v5723
    %5969 = vmatprep.subr.bf16.mxu0 %v5728
    %5970 = vmatpush1.bf16.msra.mxu0 %v5727
    %5971 = vmatprep.mubr.bf16.mxu0 %v5278
    %5972 = vmatmul.mubr.bf16.gmra.mrb[0].mxu0 %v5277
    %v5973 = vpop.f32.mrb[0].mxu0
    %v5974 = vadd.f32 0.0, %v5973
    %v5975 = vpop.f32.mrb[0].mxu0
    %v5976 = vadd.f32 0.0, %v5975
    %v5977 = vpop.f32.mrb[0].mxu0
    %v5978 = vpop.f32.mrb[0].mxu0
    %5979 = vdwg.mxu0
    %5980 = vmatprep.subr.bf16.mxu0 %v5732
    %5981 = vmatpush1.bf16.msra.mxu0 %v5731
    %5982 = vmatprep.subr.bf16.mxu0 %v5736
    %5983 = vmatpush1.bf16.msra.mxu0 %v5735
    %5984 = vmatprep.subr.bf16.mxu0 %v5740
    %5985 = vmatpush1.bf16.msra.mxu0 %v5739
    %5986 = vmatprep.subr.bf16.mxu0 %v5744
    %5987 = vmatpush1.bf16.msra.mxu0 %v5743
    %5988 = vmatprep.subr.bf16.mxu0 %v5748
    %5989 = vmatpush1.bf16.msra.mxu0 %v5747
    %5990 = vmatprep.subr.bf16.mxu0 %v5752
    %5991 = vmatpush1.bf16.msra.mxu0 %v5751
    %5992 = vmatprep.subr.bf16.mxu0 %v5756
    %5993 = vmatpush1.bf16.msra.mxu0 %v5755
    %5994 = vmatprep.subr.bf16.mxu0 %v5760
    %5995 = vmatpush1.bf16.msra.mxu0 %v5759
    %5996 = vmatprep.subr.bf16.mxu0 0
    %5997 = vmatpush1.bf16.msra.mxu0 0
    %5998 = vmatprep.subr.bf16.mxu0 0
    %5999 = vmatpush1.bf16.msra.mxu0 0
    %6000 = vmatprep.subr.bf16.mxu0 0
    %6001 = vmatpush1.bf16.msra.mxu0 0
    %6002 = vmatprep.subr.bf16.mxu0 0
    %6003 = vmatpush1.bf16.msra.mxu0 0
    %6004 = vmatprep.subr.bf16.mxu0 0
    %6005 = vmatpush1.bf16.msra.mxu0 0
    %6006 = vmatprep.subr.bf16.mxu0 0
    %6007 = vmatpush1.bf16.msra.mxu0 0
    %6008 = vmatprep.subr.bf16.mxu0 0
    %6009 = vmatpush1.bf16.msra.mxu0 0
    %6010 = vmatprep.subr.bf16.mxu0 0
    %6011 = vmatpush1.bf16.msra.mxu0 0
    %6012 = vmatprep.mubr.bf16.mxu0 0
    %6013 = vmatmul.mubr.bf16.gmra.mrb[0].mxu0 %v5279
    %v6014 = vpop.f32.mrb[0].mxu0
    %v6015 = vadd.f32 %v5974, %v6014
    %v6016 = vpop.f32.mrb[0].mxu0
    %v6017 = vadd.f32 %v5976, %v6016
    %v6018 = vpop.f32.mrb[0].mxu0
    %v6019 = vpop.f32.mrb[0].mxu0
    %6020 = vdwg.mxu0
    %v6021 = vadd.f32 %v5261, %v5933
    %v6022 = vadd.f32 %v5262, %v5935
    %v6023 = vadd.f32 %v5263, %v6015
    %v6024 = vadd.f32 %v5264, %v6017
    %v6025 = vld [vmem:[#allocation8] sm:$0xf]
    %v6027 = vlaneseq
    %v6028 = vshrl.u32 %v6027, 7
    %v6029 = vsub.s32 0, %v6028
    %v6030 = vrot.slane %v6025, %v6029
    %v6031 = vlaneseq
    %v6032 = vshrl.u32 %v6031, 7
    %v6033 = vsub.s32 1, %v6032
    %v6034 = vrot.slane %v6025, %v6033
    %v6035 = vlaneseq
    %v6036 = vshrl.u32 %v6035, 7
    %v6037 = vsub.s32 2, %v6036
    %v6038 = vrot.slane %v6025, %v6037
    %v6039 = vlaneseq
    %v6040 = vshrl.u32 %v6039, 7
    %v6041 = vsub.s32 3, %v6040
    %v6042 = vrot.slane %v6025, %v6041
    %v6047 = vadd.f32 %v6021, %v6030
    %v6048 = vadd.f32 %v6022, %v6034
    %v6049 = vadd.f32 %v6023, %v6038
    %v6050 = vadd.f32 %v6024, %v6042
    %v6051 = vmax.f32 %v6047, 0.0
    %v6052 = vmax.f32 %v6048, 0.0
    %v6053 = vmax.f32 %v6049, 0.0
    %v6054 = vmax.f32 %v6050, 0.0
    %v6059 = vcombine.low %v6051, %v6052
    %v6060 = vcombine.low %v6053, %v6054
    %v6062 = vunpack.c.l.s4 1966171168
    %v6063 = vunpack.c.0.s8 %v6062
    %v6064 = vlaneseq
    %v6065 = vshrl.u32 %v6064, 7
    %v6066 = vsub.s32 %v6063, %v6065
    %v6067 = vrot.slane %v6059, %v6066
    %v6069 = vunpack.c.l.s4 1966171168
    %v6070 = vunpack.c.0.s8 %v6069
    %v6071 = vlaneseq
    %v6072 = vshrl.u32 %v6071, 7
    %v6073 = vsub.s32 %v6070, %v6072
    %v6074 = vrot.slane %v6060, %v6073
    %v6075 = vcombine.low %v6067, %v6074
    %v6077 = vunpack.c.l.s4 1966171168
    %v6078 = vunpack.c.0.s8 %v6077
    %v6079 = vlaneseq
    %v6080 = vshrl.u32 %v6079, 7
    %v6081 = vsub.s32 %v6078, %v6080
    %v6082 = vrot.slane %v6075, %v6081
    %v6084 = vlaneseq
    %vm6085 = vcmp.ge.s32.totalorder %v6084, 0
    %vm6086 = vcmp.lt.s32.totalorder %v6084, 512
    %vm6087 = vmand %vm6085, %vm6086
    %6088 = vst.msk [vmem:[#allocation2] ss:$2 sm:$0xf] %vm6087, %v6082
    %s6089 = scalar_lea.vmem %s0, 16
    %v6090 = vld [vmem:[%s6089] sm:$0xff]
    %v6091 = vld [vmem:[%s6089 + $0x8] sm:$0x3]
    %v6092 = vpack.c.bf16 %v6091, %v6090
    %v6093 = vld [vmem:[%s1] sm:$0xff]
    %v6094 = vld [vmem:[%s1 + $0x8] sm:$0xff]
    %v6095 = vld [vmem:[%s1 + $0x10] sm:$0xff]
    %v6096 = vld [vmem:[%s1 + $0x18] sm:$0xff]
    %v6097 = vld [vmem:[%s1 + $0x20] sm:$0xff]
    %v6098 = vld [vmem:[%s1 + $0x28] sm:$0xff]
    %v6099 = vld [vmem:[%s1 + $0x30] sm:$0xff]
    %v6100 = vld [vmem:[%s1 + $0x38] sm:$0xff]
    %v6101 = vld [vmem:[%s1 + $0x40] sm:$0xff]
    %v6102 = vld [vmem:[%s1 + $0x48] sm:$0xff]
    %v6103 = vld [vmem:[%s1 + $0x50] sm:$0xff]
    %v6104 = vld [vmem:[%s1 + $0x58] sm:$0xff]
    %v6105 = vld [vmem:[%s1 + $0x60] sm:$0xff]
    %v6106 = vld [vmem:[%s1 + $0x68] sm:$0xff]
    %v6107 = vld [vmem:[%s1 + $0x70] sm:$0xff]
    %v6108 = vld [vmem:[%s1 + $0x78] sm:$0xff]
    %v6109 = vld [vmem:[%s1 + $0x80] sm:$0xff]
    %v6110 = vld [vmem:[%s1 + $0x88] sm:$0xff]
    %v6111 = vld [vmem:[%s1 + $0x90] sm:$0xff]
    %v6112 = vld [vmem:[%s1 + $0x98] sm:$0xff]
    %v6113 = vld [vmem:[%s1 + $0xa0] sm:$0xff]
    %v6114 = vld [vmem:[%s1 + $0xa8] sm:$0xff]
    %v6115 = vld [vmem:[%s1 + $0xb0] sm:$0xff]
    %v6116 = vld [vmem:[%s1 + $0xb8] sm:$0xff]
    %v6117 = vld [vmem:[%s1 + $0xc0] sm:$0xff]
    %v6118 = vld [vmem:[%s1 + $0xc8] sm:$0xff]
    %v6119 = vld [vmem:[%s1 + $0xd0] sm:$0xff]
    %v6120 = vld [vmem:[%s1 + $0xd8] sm:$0xff]
    %v6121 = vld [vmem:[%s1 + $0xe0] sm:$0xff]
    %v6122 = vld [vmem:[%s1 + $0xe8] sm:$0xff]
    %v6123 = vld [vmem:[%s6089 + $0x1] sm:$0xff]
    %v6124 = vld [vmem:[%s6089 + $0x9] sm:$0x3]
    %v6125 = vpack.c.bf16 %v6124, %v6123
    %v6126 = vld [vmem:[%s188] sm:$0xff]
    %v6127 = vld [vmem:[%s188 + $0x8] sm:$0xff]
    %v6128 = vld [vmem:[%s188 + $0x10] sm:$0xff]
    %v6129 = vld [vmem:[%s188 + $0x18] sm:$0xff]
    %v6130 = vld [vmem:[%s188 + $0x20] sm:$0xff]
    %v6131 = vld [vmem:[%s188 + $0x28] sm:$0xff]
    %v6132 = vld [vmem:[%s188 + $0x30] sm:$0xff]
    %v6133 = vld [vmem:[%s188 + $0x38] sm:$0xff]
    %v6134 = vld [vmem:[%s188 + $0x40] sm:$0xff]
    %v6135 = vld [vmem:[%s188 + $0x48] sm:$0xff]
    %v6136 = vld [vmem:[%s188 + $0x50] sm:$0xff]
    %v6137 = vld [vmem:[%s188 + $0x58] sm:$0xff]
    %v6138 = vld [vmem:[%s188 + $0x60] sm:$0xff]
    %v6139 = vld [vmem:[%s188 + $0x68] sm:$0xff]
    %v6140 = vld [vmem:[%s188 + $0x70] sm:$0xff]
    %v6141 = vld [vmem:[%s188 + $0x78] sm:$0xff]
    %v6142 = vld [vmem:[%s188 + $0x80] sm:$0xff]
    %v6143 = vld [vmem:[%s188 + $0x88] sm:$0xff]
    %v6144 = vld [vmem:[%s188 + $0x90] sm:$0xff]
    %v6145 = vld [vmem:[%s188 + $0x98] sm:$0xff]
    %v6146 = vld [vmem:[%s188 + $0xa0] sm:$0xff]
    %v6147 = vld [vmem:[%s188 + $0xa8] sm:$0xff]
    %v6148 = vld [vmem:[%s188 + $0xb0] sm:$0xff]
    %v6149 = vld [vmem:[%s188 + $0xb8] sm:$0xff]
    %v6150 = vld [vmem:[%s188 + $0xc0] sm:$0xff]
    %v6151 = vld [vmem:[%s188 + $0xc8] sm:$0xff]
    %v6152 = vld [vmem:[%s188 + $0xd0] sm:$0xff]
    %v6153 = vld [vmem:[%s188 + $0xd8] sm:$0xff]
    %v6154 = vld [vmem:[%s188 + $0xe0] sm:$0xff]
    %v6155 = vld [vmem:[%s188 + $0xe8] sm:$0xff]
    %v6186 = vunpack.c.l.b16 %v6126
    %v6187 = vunpack.c.h.b16 %v6126
    %v6188 = vunpack.c.l.b16 %v6127
    %v6189 = vunpack.c.h.b16 %v6127
    %v6190 = vunpack.c.l.b16 %v6128
    %v6191 = vunpack.c.h.b16 %v6128
    %v6192 = vunpack.c.l.b16 %v6129
    %v6193 = vunpack.c.h.b16 %v6129
    %v6194 = vunpack.c.l.b16 %v6130
    %v6195 = vunpack.c.h.b16 %v6130
    %v6196 = vunpack.c.l.b16 %v6131
    %v6197 = vunpack.c.h.b16 %v6131
    %v6198 = vunpack.c.l.b16 %v6132
    %v6199 = vunpack.c.h.b16 %v6132
    %v6200 = vunpack.c.l.b16 %v6133
    %v6201 = vunpack.c.h.b16 %v6133
    %v6202 = vunpack.c.l.b16 %v6134
    %v6203 = vunpack.c.h.b16 %v6134
    %v6204 = vunpack.c.l.b16 %v6135
    %v6205 = vunpack.c.h.b16 %v6135
    %v6206 = vunpack.c.l.b16 %v6136
    %v6207 = vunpack.c.h.b16 %v6136
    %v6208 = vunpack.c.l.b16 %v6137
    %v6209 = vunpack.c.h.b16 %v6137
    %v6210 = vunpack.c.l.b16 %v6138
    %v6211 = vunpack.c.h.b16 %v6138
    %v6212 = vunpack.c.l.b16 %v6139
    %v6213 = vunpack.c.h.b16 %v6139
    %v6214 = vunpack.c.l.b16 %v6140
    %v6215 = vunpack.c.h.b16 %v6140
    %v6216 = vunpack.c.l.b16 %v6141
    %v6217 = vunpack.c.h.b16 %v6141
    %v6218 = vunpack.c.l.b16 %v6142
    %v6219 = vunpack.c.h.b16 %v6142
    %v6220 = vunpack.c.l.b16 %v6143
    %v6221 = vunpack.c.h.b16 %v6143
    %v6222 = vunpack.c.l.b16 %v6144
    %v6223 = vunpack.c.h.b16 %v6144
    %v6224 = vunpack.c.l.b16 %v6145
    %v6225 = vunpack.c.h.b16 %v6145
    %v6226 = vunpack.c.l.b16 %v6146
    %v6227 = vunpack.c.h.b16 %v6146
    %v6228 = vunpack.c.l.b16 %v6147
    %v6229 = vunpack.c.h.b16 %v6147
    %v6230 = vunpack.c.l.b16 %v6148
    %v6231 = vunpack.c.h.b16 %v6148
    %v6232 = vunpack.c.l.b16 %v6149
    %v6233 = vunpack.c.h.b16 %v6149
    %v6234 = vunpack.c.l.b16 %v6150
    %v6235 = vunpack.c.h.b16 %v6150
    %v6236 = vunpack.c.l.b16 %v6151
    %v6237 = vunpack.c.h.b16 %v6151
    %v6238 = vunpack.c.l.b16 %v6152
    %v6239 = vunpack.c.h.b16 %v6152
    %v6240 = vunpack.c.l.b16 %v6153
    %v6241 = vunpack.c.h.b16 %v6153
    %v6242 = vunpack.c.l.b16 %v6154
    %v6243 = vunpack.c.h.b16 %v6154
    %v6244 = vunpack.c.l.b16 %v6155
    %v6245 = vunpack.c.h.b16 %v6155
    %v6246 = vpack.c.b16 %v6198, %v6186
    %v6247 = vpack.c.b16 %v6199, %v6187
    %v6248 = vpack.c.b16 %v6200, %v6188
    %v6249 = vpack.c.b16 %v6201, %v6189
    %v6250 = vpack.c.b16 %v6202, %v6190
    %v6251 = vpack.c.b16 %v6203, %v6191
    %v6252 = vpack.c.b16 %v6204, %v6192
    %v6253 = vpack.c.b16 %v6205, %v6193
    %v6254 = vpack.c.b16 %v6206, %v6194
    %v6255 = vpack.c.b16 %v6207, %v6195
    %v6256 = vpack.c.b16 %v6208, %v6196
    %v6257 = vpack.c.b16 %v6209, %v6197
    %v6258 = vpack.c.b16 %v6222, %v6210
    %v6259 = vpack.c.b16 %v6223, %v6211
    %v6260 = vpack.c.b16 %v6224, %v6212
    %v6261 = vpack.c.b16 %v6225, %v6213
    %v6262 = vpack.c.b16 %v6226, %v6214
    %v6263 = vpack.c.b16 %v6227, %v6215
    %v6264 = vpack.c.b16 %v6228, %v6216
    %v6265 = vpack.c.b16 %v6229, %v6217
    %v6266 = vpack.c.b16 %v6230, %v6218
    %v6267 = vpack.c.b16 %v6231, %v6219
    %v6268 = vpack.c.b16 %v6232, %v6220
    %v6269 = vpack.c.b16 %v6233, %v6221
    %v6270 = vpack.c.b16 %v6234, %v6234
    %v6271 = vpack.c.b16 %v6235, %v6235
    %v6272 = vpack.c.b16 %v6236, %v6236
    %v6273 = vpack.c.b16 %v6237, %v6237
    %v6274 = vpack.c.b16 %v6238, %v6238
    %v6275 = vpack.c.b16 %v6239, %v6239
    %v6276 = vpack.c.b16 %v6240, %v6240
    %v6277 = vpack.c.b16 %v6241, %v6241
    %v6278 = vpack.c.b16 %v6242, %v6242
    %v6279 = vpack.c.b16 %v6243, %v6243
    %v6280 = vpack.c.b16 %v6244, %v6244
    %v6281 = vpack.c.b16 %v6245, %v6245
    %v6307 = vsel %vm369, %v6125, 0
    %v6310 = vand.u32 %v6270, %v376
    %v6313 = vand.u32 %v6271, %v376
    %v6316 = vand.u32 %v6272, %v376
    %v6319 = vand.u32 %v6273, %v376
    %v6322 = vand.u32 %v6274, %v376
    %v6325 = vand.u32 %v6275, %v376
    %v6328 = vand.u32 %v6276, %v376
    %v6331 = vand.u32 %v6277, %v376
    %v6334 = vand.u32 %v6278, %v376
    %v6337 = vand.u32 %v6279, %v376
    %v6340 = vand.u32 %v6280, %v376
    %v6343 = vand.u32 %v6281, %v376
    %6345 = vmatprep.subr.bf16.mxu0 %v6247
    %6346 = vmatpush1.bf16.msra.mxu0 %v6246
    %6347 = vmatprep.subr.bf16.mxu0 %v6259
    %6348 = vmatpush1.bf16.msra.mxu0 %v6258
    %6349 = vmatprep.subr.bf16.mxu0 %v6313
    %6350 = vmatpush1.bf16.msra.mxu0 %v6310
    %6351 = vmatprep.subr.bf16.mxu0 0
    %6352 = vmatpush1.bf16.msra.mxu0 0
    %6353 = vmatprep.subr.bf16.mxu0 0
    %6354 = vmatpush1.bf16.msra.mxu0 0
    %6355 = vmatprep.subr.bf16.mxu0 0
    %6356 = vmatpush1.bf16.msra.mxu0 0
    %6357 = vmatprep.subr.bf16.mxu0 0
    %6358 = vmatpush1.bf16.msra.mxu0 0
    %6359 = vmatprep.subr.bf16.mxu0 0
    %6360 = vmatpush1.bf16.msra.mxu0 0
    %6361 = vmatprep.subr.bf16.mxu0 0
    %6362 = vmatpush1.bf16.msra.mxu0 0
    %6363 = vmatprep.subr.bf16.mxu0 0
    %6364 = vmatpush1.bf16.msra.mxu0 0
    %6365 = vmatprep.subr.bf16.mxu0 0
    %6366 = vmatpush1.bf16.msra.mxu0 0
    %6367 = vmatprep.subr.bf16.mxu0 0
    %6368 = vmatpush1.bf16.msra.mxu0 0
    %6369 = vmatprep.subr.bf16.mxu0 0
    %6370 = vmatpush1.bf16.msra.mxu0 0
    %6371 = vmatprep.subr.bf16.mxu0 0
    %6372 = vmatpush1.bf16.msra.mxu0 0
    %6373 = vmatprep.subr.bf16.mxu0 0
    %6374 = vmatpush1.bf16.msra.mxu0 0
    %6375 = vmatprep.subr.bf16.mxu0 0
    %6376 = vmatpush1.bf16.msra.mxu0 0
    %6377 = vmatprep.mubr.bf16.mxu0 0
    %6378 = vmatmul.mubr.bf16.gmra.mrb[0].mxu0 %v6307
    %v6379 = vpop.f32.mrb[0].mxu0
    %v6380 = vadd.f32 0.0, %v6379
    %v6381 = vpop.f32.mrb[0].mxu0
    %v6382 = vadd.f32 0.0, %v6381
    %v6383 = vpop.f32.mrb[0].mxu0
    %v6384 = vadd.f32 0.0, %v6383
    %v6385 = vpop.f32.mrb[0].mxu0
    %v6386 = vadd.f32 0.0, %v6385
    %6387 = vdwg.mxu0
    %6388 = vmatprep.subr.bf16.mxu0 %v6249
    %6389 = vmatpush1.bf16.msra.mxu0 %v6248
    %6390 = vmatprep.subr.bf16.mxu0 %v6261
    %6391 = vmatpush1.bf16.msra.mxu0 %v6260
    %6392 = vmatprep.subr.bf16.mxu0 %v6319
    %6393 = vmatpush1.bf16.msra.mxu0 %v6316
    %6394 = vmatprep.subr.bf16.mxu0 0
    %6395 = vmatpush1.bf16.msra.mxu0 0
    %6396 = vmatprep.subr.bf16.mxu0 0
    %6397 = vmatpush1.bf16.msra.mxu0 0
    %6398 = vmatprep.subr.bf16.mxu0 0
    %6399 = vmatpush1.bf16.msra.mxu0 0
    %6400 = vmatprep.subr.bf16.mxu0 0
    %6401 = vmatpush1.bf16.msra.mxu0 0
    %6402 = vmatprep.subr.bf16.mxu0 0
    %6403 = vmatpush1.bf16.msra.mxu0 0
    %6404 = vmatprep.subr.bf16.mxu0 0
    %6405 = vmatpush1.bf16.msra.mxu0 0
    %6406 = vmatprep.subr.bf16.mxu0 0
    %6407 = vmatpush1.bf16.msra.mxu0 0
    %6408 = vmatprep.subr.bf16.mxu0 0
    %6409 = vmatpush1.bf16.msra.mxu0 0
    %6410 = vmatprep.subr.bf16.mxu0 0
    %6411 = vmatpush1.bf16.msra.mxu0 0
    %6412 = vmatprep.subr.bf16.mxu0 0
    %6413 = vmatpush1.bf16.msra.mxu0 0
    %6414 = vmatprep.subr.bf16.mxu0 0
    %6415 = vmatpush1.bf16.msra.mxu0 0
    %6416 = vmatprep.subr.bf16.mxu0 0
    %6417 = vmatpush1.bf16.msra.mxu0 0
    %6418 = vmatprep.subr.bf16.mxu0 0
    %6419 = vmatpush1.bf16.msra.mxu0 0
    %6420 = vmatprep.mubr.bf16.mxu0 0
    %6421 = vmatmul.mubr.bf16.gmra.mrb[0].mxu0 %v6307
    %v6422 = vpop.f32.mrb[0].mxu0
    %v6423 = vadd.f32 0.0, %v6422
    %v6424 = vpop.f32.mrb[0].mxu0
    %v6425 = vadd.f32 0.0, %v6424
    %v6426 = vpop.f32.mrb[0].mxu0
    %v6427 = vadd.f32 0.0, %v6426
    %v6428 = vpop.f32.mrb[0].mxu0
    %v6429 = vadd.f32 0.0, %v6428
    %6430 = vdwg.mxu0
    %6431 = vmatprep.subr.bf16.mxu0 %v6251
    %6432 = vmatpush1.bf16.msra.mxu0 %v6250
    %6433 = vmatprep.subr.bf16.mxu0 %v6263
    %6434 = vmatpush1.bf16.msra.mxu0 %v6262
    %6435 = vmatprep.subr.bf16.mxu0 %v6325
    %6436 = vmatpush1.bf16.msra.mxu0 %v6322
    %6437 = vmatprep.subr.bf16.mxu0 0
    %6438 = vmatpush1.bf16.msra.mxu0 0
    %6439 = vmatprep.subr.bf16.mxu0 0
    %6440 = vmatpush1.bf16.msra.mxu0 0
    %6441 = vmatprep.subr.bf16.mxu0 0
    %6442 = vmatpush1.bf16.msra.mxu0 0
    %6443 = vmatprep.subr.bf16.mxu0 0
    %6444 = vmatpush1.bf16.msra.mxu0 0
    %6445 = vmatprep.subr.bf16.mxu0 0
    %6446 = vmatpush1.bf16.msra.mxu0 0
    %6447 = vmatprep.subr.bf16.mxu0 0
    %6448 = vmatpush1.bf16.msra.mxu0 0
    %6449 = vmatprep.subr.bf16.mxu0 0
    %6450 = vmatpush1.bf16.msra.mxu0 0
    %6451 = vmatprep.subr.bf16.mxu0 0
    %6452 = vmatpush1.bf16.msra.mxu0 0
    %6453 = vmatprep.subr.bf16.mxu0 0
    %6454 = vmatpush1.bf16.msra.mxu0 0
    %6455 = vmatprep.subr.bf16.mxu0 0
    %6456 = vmatpush1.bf16.msra.mxu0 0
    %6457 = vmatprep.subr.bf16.mxu0 0
    %6458 = vmatpush1.bf16.msra.mxu0 0
    %6459 = vmatprep.subr.bf16.mxu0 0
    %6460 = vmatpush1.bf16.msra.mxu0 0
    %6461 = vmatprep.subr.bf16.mxu0 0
    %6462 = vmatpush1.bf16.msra.mxu0 0
    %6463 = vmatprep.mubr.bf16.mxu0 0
    %6464 = vmatmul.mubr.bf16.gmra.mrb[0].mxu0 %v6307
    %v6465 = vpop.f32.mrb[0].mxu0
    %v6466 = vadd.f32 0.0, %v6465
    %v6467 = vpop.f32.mrb[0].mxu0
    %v6468 = vadd.f32 0.0, %v6467
    %v6469 = vpop.f32.mrb[0].mxu0
    %v6470 = vadd.f32 0.0, %v6469
    %v6471 = vpop.f32.mrb[0].mxu0
    %v6472 = vadd.f32 0.0, %v6471
    %6473 = vdwg.mxu0
    %6474 = vmatprep.subr.bf16.mxu0 %v6253
    %6475 = vmatpush1.bf16.msra.mxu0 %v6252
    %6476 = vmatprep.subr.bf16.mxu0 %v6265
    %6477 = vmatpush1.bf16.msra.mxu0 %v6264
    %6478 = vmatprep.subr.bf16.mxu0 %v6331
    %6479 = vmatpush1.bf16.msra.mxu0 %v6328
    %6480 = vmatprep.subr.bf16.mxu0 0
    %6481 = vmatpush1.bf16.msra.mxu0 0
    %6482 = vmatprep.subr.bf16.mxu0 0
    %6483 = vmatpush1.bf16.msra.mxu0 0
    %6484 = vmatprep.subr.bf16.mxu0 0
    %6485 = vmatpush1.bf16.msra.mxu0 0
    %6486 = vmatprep.subr.bf16.mxu0 0
    %6487 = vmatpush1.bf16.msra.mxu0 0
    %6488 = vmatprep.subr.bf16.mxu0 0
    %6489 = vmatpush1.bf16.msra.mxu0 0
    %6490 = vmatprep.subr.bf16.mxu0 0
    %6491 = vmatpush1.bf16.msra.mxu0 0
    %6492 = vmatprep.subr.bf16.mxu0 0
    %6493 = vmatpush1.bf16.msra.mxu0 0
    %6494 = vmatprep.subr.bf16.mxu0 0
    %6495 = vmatpush1.bf16.msra.mxu0 0
    %6496 = vmatprep.subr.bf16.mxu0 0
    %6497 = vmatpush1.bf16.msra.mxu0 0
    %6498 = vmatprep.subr.bf16.mxu0 0
    %6499 = vmatpush1.bf16.msra.mxu0 0
    %6500 = vmatprep.subr.bf16.mxu0 0
    %6501 = vmatpush1.bf16.msra.mxu0 0
    %6502 = vmatprep.subr.bf16.mxu0 0
    %6503 = vmatpush1.bf16.msra.mxu0 0
    %6504 = vmatprep.subr.bf16.mxu0 0
    %6505 = vmatpush1.bf16.msra.mxu0 0
    %6506 = vmatprep.mubr.bf16.mxu0 0
    %6507 = vmatmul.mubr.bf16.gmra.mrb[0].mxu0 %v6307
    %v6508 = vpop.f32.mrb[0].mxu0
    %v6509 = vadd.f32 0.0, %v6508
    %v6510 = vpop.f32.mrb[0].mxu0
    %v6511 = vadd.f32 0.0, %v6510
    %v6512 = vpop.f32.mrb[0].mxu0
    %v6513 = vadd.f32 0.0, %v6512
    %v6514 = vpop.f32.mrb[0].mxu0
    %v6515 = vadd.f32 0.0, %v6514
    %6516 = vdwg.mxu0
    %6517 = vmatprep.subr.bf16.mxu0 %v6255
    %6518 = vmatpush1.bf16.msra.mxu0 %v6254
    %6519 = vmatprep.subr.bf16.mxu0 %v6267
    %6520 = vmatpush1.bf16.msra.mxu0 %v6266
    %6521 = vmatprep.subr.bf16.mxu0 %v6337
    %6522 = vmatpush1.bf16.msra.mxu0 %v6334
    %6523 = vmatprep.subr.bf16.mxu0 0
    %6524 = vmatpush1.bf16.msra.mxu0 0
    %6525 = vmatprep.subr.bf16.mxu0 0
    %6526 = vmatpush1.bf16.msra.mxu0 0
    %6527 = vmatprep.subr.bf16.mxu0 0
    %6528 = vmatpush1.bf16.msra.mxu0 0
    %6529 = vmatprep.subr.bf16.mxu0 0
    %6530 = vmatpush1.bf16.msra.mxu0 0
    %6531 = vmatprep.subr.bf16.mxu0 0
    %6532 = vmatpush1.bf16.msra.mxu0 0
    %6533 = vmatprep.subr.bf16.mxu0 0
    %6534 = vmatpush1.bf16.msra.mxu0 0
    %6535 = vmatprep.subr.bf16.mxu0 0
    %6536 = vmatpush1.bf16.msra.mxu0 0
    %6537 = vmatprep.subr.bf16.mxu0 0
    %6538 = vmatpush1.bf16.msra.mxu0 0
    %6539 = vmatprep.subr.bf16.mxu0 0
    %6540 = vmatpush1.bf16.msra.mxu0 0
    %6541 = vmatprep.subr.bf16.mxu0 0
    %6542 = vmatpush1.bf16.msra.mxu0 0
    %6543 = vmatprep.subr.bf16.mxu0 0
    %6544 = vmatpush1.bf16.msra.mxu0 0
    %6545 = vmatprep.subr.bf16.mxu0 0
    %6546 = vmatpush1.bf16.msra.mxu0 0
    %6547 = vmatprep.subr.bf16.mxu0 0
    %6548 = vmatpush1.bf16.msra.mxu0 0
    %6549 = vmatprep.mubr.bf16.mxu0 0
    %6550 = vmatmul.mubr.bf16.gmra.mrb[0].mxu0 %v6307
    %v6551 = vpop.f32.mrb[0].mxu0
    %v6552 = vadd.f32 0.0, %v6551
    %v6553 = vpop.f32.mrb[0].mxu0
    %v6554 = vadd.f32 0.0, %v6553
    %v6555 = vpop.f32.mrb[0].mxu0
    %v6556 = vadd.f32 0.0, %v6555
    %v6557 = vpop.f32.mrb[0].mxu0
    %v6558 = vadd.f32 0.0, %v6557
    %6559 = vdwg.mxu0
    %6560 = vmatprep.subr.bf16.mxu0 %v6257
    %6561 = vmatpush1.bf16.msra.mxu0 %v6256
    %6562 = vmatprep.subr.bf16.mxu0 %v6269
    %6563 = vmatpush1.bf16.msra.mxu0 %v6268
    %6564 = vmatprep.subr.bf16.mxu0 %v6343
    %6565 = vmatpush1.bf16.msra.mxu0 %v6340
    %6566 = vmatprep.subr.bf16.mxu0 0
    %6567 = vmatpush1.bf16.msra.mxu0 0
    %6568 = vmatprep.subr.bf16.mxu0 0
    %6569 = vmatpush1.bf16.msra.mxu0 0
    %6570 = vmatprep.subr.bf16.mxu0 0
    %6571 = vmatpush1.bf16.msra.mxu0 0
    %6572 = vmatprep.subr.bf16.mxu0 0
    %6573 = vmatpush1.bf16.msra.mxu0 0
    %6574 = vmatprep.subr.bf16.mxu0 0
    %6575 = vmatpush1.bf16.msra.mxu0 0
    %6576 = vmatprep.subr.bf16.mxu0 0
    %6577 = vmatpush1.bf16.msra.mxu0 0
    %6578 = vmatprep.subr.bf16.mxu0 0
    %6579 = vmatpush1.bf16.msra.mxu0 0
    %6580 = vmatprep.subr.bf16.mxu0 0
    %6581 = vmatpush1.bf16.msra.mxu0 0
    %6582 = vmatprep.subr.bf16.mxu0 0
    %6583 = vmatpush1.bf16.msra.mxu0 0
    %6584 = vmatprep.subr.bf16.mxu0 0
    %6585 = vmatpush1.bf16.msra.mxu0 0
    %6586 = vmatprep.subr.bf16.mxu0 0
    %6587 = vmatpush1.bf16.msra.mxu0 0
    %6588 = vmatprep.subr.bf16.mxu0 0
    %6589 = vmatpush1.bf16.msra.mxu0 0
    %6590 = vmatprep.subr.bf16.mxu0 0
    %6591 = vmatpush1.bf16.msra.mxu0 0
    %6592 = vmatprep.mubr.bf16.mxu0 0
    %6593 = vmatmul.mubr.bf16.gmra.mrb[0].mxu0 %v6307
    %v6594 = vpop.f32.mrb[0].mxu0
    %v6595 = vadd.f32 0.0, %v6594
    %v6596 = vpop.f32.mrb[0].mxu0
    %v6597 = vadd.f32 0.0, %v6596
    %v6598 = vpop.f32.mrb[0].mxu0
    %v6599 = vadd.f32 0.0, %v6598
    %v6600 = vpop.f32.mrb[0].mxu0
    %v6601 = vadd.f32 0.0, %v6600
    %6602 = vdwg.mxu0
    %v6633 = vunpack.c.l.b16 %v6093
    %v6634 = vunpack.c.h.b16 %v6093
    %v6635 = vunpack.c.l.b16 %v6094
    %v6636 = vunpack.c.h.b16 %v6094
    %v6637 = vunpack.c.l.b16 %v6095
    %v6638 = vunpack.c.h.b16 %v6095
    %v6639 = vunpack.c.l.b16 %v6096
    %v6640 = vunpack.c.h.b16 %v6096
    %v6641 = vunpack.c.l.b16 %v6097
    %v6642 = vunpack.c.h.b16 %v6097
    %v6643 = vunpack.c.l.b16 %v6098
    %v6644 = vunpack.c.h.b16 %v6098
    %v6645 = vunpack.c.l.b16 %v6099
    %v6646 = vunpack.c.h.b16 %v6099
    %v6647 = vunpack.c.l.b16 %v6100
    %v6648 = vunpack.c.h.b16 %v6100
    %v6649 = vunpack.c.l.b16 %v6101
    %v6650 = vunpack.c.h.b16 %v6101
    %v6651 = vunpack.c.l.b16 %v6102
    %v6652 = vunpack.c.h.b16 %v6102
    %v6653 = vunpack.c.l.b16 %v6103
    %v6654 = vunpack.c.h.b16 %v6103
    %v6655 = vunpack.c.l.b16 %v6104
    %v6656 = vunpack.c.h.b16 %v6104
    %v6657 = vunpack.c.l.b16 %v6105
    %v6658 = vunpack.c.h.b16 %v6105
    %v6659 = vunpack.c.l.b16 %v6106
    %v6660 = vunpack.c.h.b16 %v6106
    %v6661 = vunpack.c.l.b16 %v6107
    %v6662 = vunpack.c.h.b16 %v6107
    %v6663 = vunpack.c.l.b16 %v6108
    %v6664 = vunpack.c.h.b16 %v6108
    %v6665 = vunpack.c.l.b16 %v6109
    %v6666 = vunpack.c.h.b16 %v6109
    %v6667 = vunpack.c.l.b16 %v6110
    %v6668 = vunpack.c.h.b16 %v6110
    %v6669 = vunpack.c.l.b16 %v6111
    %v6670 = vunpack.c.h.b16 %v6111
    %v6671 = vunpack.c.l.b16 %v6112
    %v6672 = vunpack.c.h.b16 %v6112
    %v6673 = vunpack.c.l.b16 %v6113
    %v6674 = vunpack.c.h.b16 %v6113
    %v6675 = vunpack.c.l.b16 %v6114
    %v6676 = vunpack.c.h.b16 %v6114
    %v6677 = vunpack.c.l.b16 %v6115
    %v6678 = vunpack.c.h.b16 %v6115
    %v6679 = vunpack.c.l.b16 %v6116
    %v6680 = vunpack.c.h.b16 %v6116
    %v6681 = vunpack.c.l.b16 %v6117
    %v6682 = vunpack.c.h.b16 %v6117
    %v6683 = vunpack.c.l.b16 %v6118
    %v6684 = vunpack.c.h.b16 %v6118
    %v6685 = vunpack.c.l.b16 %v6119
    %v6686 = vunpack.c.h.b16 %v6119
    %v6687 = vunpack.c.l.b16 %v6120
    %v6688 = vunpack.c.h.b16 %v6120
    %v6689 = vunpack.c.l.b16 %v6121
    %v6690 = vunpack.c.h.b16 %v6121
    %v6691 = vunpack.c.l.b16 %v6122
    %v6692 = vunpack.c.h.b16 %v6122
    %v6693 = vpack.c.b16 %v6645, %v6633
    %v6694 = vpack.c.b16 %v6646, %v6634
    %v6695 = vpack.c.b16 %v6647, %v6635
    %v6696 = vpack.c.b16 %v6648, %v6636
    %v6697 = vpack.c.b16 %v6649, %v6637
    %v6698 = vpack.c.b16 %v6650, %v6638
    %v6699 = vpack.c.b16 %v6651, %v6639
    %v6700 = vpack.c.b16 %v6652, %v6640
    %v6701 = vpack.c.b16 %v6653, %v6641
    %v6702 = vpack.c.b16 %v6654, %v6642
    %v6703 = vpack.c.b16 %v6655, %v6643
    %v6704 = vpack.c.b16 %v6656, %v6644
    %v6705 = vpack.c.b16 %v6669, %v6657
    %v6706 = vpack.c.b16 %v6670, %v6658
    %v6707 = vpack.c.b16 %v6671, %v6659
    %v6708 = vpack.c.b16 %v6672, %v6660
    %v6709 = vpack.c.b16 %v6673, %v6661
    %v6710 = vpack.c.b16 %v6674, %v6662
    %v6711 = vpack.c.b16 %v6675, %v6663
    %v6712 = vpack.c.b16 %v6676, %v6664
    %v6713 = vpack.c.b16 %v6677, %v6665
    %v6714 = vpack.c.b16 %v6678, %v6666
    %v6715 = vpack.c.b16 %v6679, %v6667
    %v6716 = vpack.c.b16 %v6680, %v6668
    %v6717 = vpack.c.b16 %v6681, %v6681
    %v6718 = vpack.c.b16 %v6682, %v6682
    %v6719 = vpack.c.b16 %v6683, %v6683
    %v6720 = vpack.c.b16 %v6684, %v6684
    %v6721 = vpack.c.b16 %v6685, %v6685
    %v6722 = vpack.c.b16 %v6686, %v6686
    %v6723 = vpack.c.b16 %v6687, %v6687
    %v6724 = vpack.c.b16 %v6688, %v6688
    %v6725 = vpack.c.b16 %v6689, %v6689
    %v6726 = vpack.c.b16 %v6690, %v6690
    %v6727 = vpack.c.b16 %v6691, %v6691
    %v6728 = vpack.c.b16 %v6692, %v6692
    %v6754 = vsel %vm369, %v6092, 0
    %v6757 = vand.u32 %v6717, %v376
    %v6760 = vand.u32 %v6718, %v376
    %v6763 = vand.u32 %v6719, %v376
    %v6766 = vand.u32 %v6720, %v376
    %v6769 = vand.u32 %v6721, %v376
    %v6772 = vand.u32 %v6722, %v376
    %v6775 = vand.u32 %v6723, %v376
    %v6778 = vand.u32 %v6724, %v376
    %v6781 = vand.u32 %v6725, %v376
    %v6784 = vand.u32 %v6726, %v376
    %v6787 = vand.u32 %v6727, %v376
    %v6790 = vand.u32 %v6728, %v376
    %6792 = vmatprep.subr.bf16.mxu0 %v6694
    %6793 = vmatpush1.bf16.msra.mxu0 %v6693
    %6794 = vmatprep.subr.bf16.mxu0 %v6706
    %6795 = vmatpush1.bf16.msra.mxu0 %v6705
    %6796 = vmatprep.subr.bf16.mxu0 %v6760
    %6797 = vmatpush1.bf16.msra.mxu0 %v6757
    %6798 = vmatprep.subr.bf16.mxu0 0
    %6799 = vmatpush1.bf16.msra.mxu0 0
    %6800 = vmatprep.subr.bf16.mxu0 0
    %6801 = vmatpush1.bf16.msra.mxu0 0
    %6802 = vmatprep.subr.bf16.mxu0 0
    %6803 = vmatpush1.bf16.msra.mxu0 0
    %6804 = vmatprep.subr.bf16.mxu0 0
    %6805 = vmatpush1.bf16.msra.mxu0 0
    %6806 = vmatprep.subr.bf16.mxu0 0
    %6807 = vmatpush1.bf16.msra.mxu0 0
    %6808 = vmatprep.subr.bf16.mxu0 0
    %6809 = vmatpush1.bf16.msra.mxu0 0
    %6810 = vmatprep.subr.bf16.mxu0 0
    %6811 = vmatpush1.bf16.msra.mxu0 0
    %6812 = vmatprep.subr.bf16.mxu0 0
    %6813 = vmatpush1.bf16.msra.mxu0 0
    %6814 = vmatprep.subr.bf16.mxu0 0
    %6815 = vmatpush1.bf16.msra.mxu0 0
    %6816 = vmatprep.subr.bf16.mxu0 0
    %6817 = vmatpush1.bf16.msra.mxu0 0
    %6818 = vmatprep.subr.bf16.mxu0 0
    %6819 = vmatpush1.bf16.msra.mxu0 0
    %6820 = vmatprep.subr.bf16.mxu0 0
    %6821 = vmatpush1.bf16.msra.mxu0 0
    %6822 = vmatprep.subr.bf16.mxu0 0
    %6823 = vmatpush1.bf16.msra.mxu0 0
    %6824 = vmatprep.mubr.bf16.mxu0 0
    %6825 = vmatmul.mubr.bf16.gmra.mrb[0].mxu0 %v6754
    %v6826 = vpop.f32.mrb[0].mxu0
    %v6827 = vadd.f32 %v6380, %v6826
    %v6828 = vpop.f32.mrb[0].mxu0
    %v6829 = vadd.f32 %v6382, %v6828
    %v6830 = vpop.f32.mrb[0].mxu0
    %v6831 = vadd.f32 %v6384, %v6830
    %v6832 = vpop.f32.mrb[0].mxu0
    %v6833 = vadd.f32 %v6386, %v6832
    %6834 = vdwg.mxu0
    %6835 = vmatprep.subr.bf16.mxu0 %v6696
    %6836 = vmatpush1.bf16.msra.mxu0 %v6695
    %6837 = vmatprep.subr.bf16.mxu0 %v6708
    %6838 = vmatpush1.bf16.msra.mxu0 %v6707
    %6839 = vmatprep.subr.bf16.mxu0 %v6766
    %6840 = vmatpush1.bf16.msra.mxu0 %v6763
    %6841 = vmatprep.subr.bf16.mxu0 0
    %6842 = vmatpush1.bf16.msra.mxu0 0
    %6843 = vmatprep.subr.bf16.mxu0 0
    %6844 = vmatpush1.bf16.msra.mxu0 0
    %6845 = vmatprep.subr.bf16.mxu0 0
    %6846 = vmatpush1.bf16.msra.mxu0 0
    %6847 = vmatprep.subr.bf16.mxu0 0
    %6848 = vmatpush1.bf16.msra.mxu0 0
    %6849 = vmatprep.subr.bf16.mxu0 0
    %6850 = vmatpush1.bf16.msra.mxu0 0
    %6851 = vmatprep.subr.bf16.mxu0 0
    %6852 = vmatpush1.bf16.msra.mxu0 0
    %6853 = vmatprep.subr.bf16.mxu0 0
    %6854 = vmatpush1.bf16.msra.mxu0 0
    %6855 = vmatprep.subr.bf16.mxu0 0
    %6856 = vmatpush1.bf16.msra.mxu0 0
    %6857 = vmatprep.subr.bf16.mxu0 0
    %6858 = vmatpush1.bf16.msra.mxu0 0
    %6859 = vmatprep.subr.bf16.mxu0 0
    %6860 = vmatpush1.bf16.msra.mxu0 0
    %6861 = vmatprep.subr.bf16.mxu0 0
    %6862 = vmatpush1.bf16.msra.mxu0 0
    %6863 = vmatprep.subr.bf16.mxu0 0
    %6864 = vmatpush1.bf16.msra.mxu0 0
    %6865 = vmatprep.subr.bf16.mxu0 0
    %6866 = vmatpush1.bf16.msra.mxu0 0
    %6867 = vmatprep.mubr.bf16.mxu0 0
    %6868 = vmatmul.mubr.bf16.gmra.mrb[0].mxu0 %v6754
    %v6869 = vpop.f32.mrb[0].mxu0
    %v6870 = vadd.f32 %v6423, %v6869
    %v6871 = vpop.f32.mrb[0].mxu0
    %v6872 = vadd.f32 %v6425, %v6871
    %v6873 = vpop.f32.mrb[0].mxu0
    %v6874 = vadd.f32 %v6427, %v6873
    %v6875 = vpop.f32.mrb[0].mxu0
    %v6876 = vadd.f32 %v6429, %v6875
    %6877 = vdwg.mxu0
    %6878 = vmatprep.subr.bf16.mxu0 %v6698
    %6879 = vmatpush1.bf16.msra.mxu0 %v6697
    %6880 = vmatprep.subr.bf16.mxu0 %v6710
    %6881 = vmatpush1.bf16.msra.mxu0 %v6709
    %6882 = vmatprep.subr.bf16.mxu0 %v6772
    %6883 = vmatpush1.bf16.msra.mxu0 %v6769
    %6884 = vmatprep.subr.bf16.mxu0 0
    %6885 = vmatpush1.bf16.msra.mxu0 0
    %6886 = vmatprep.subr.bf16.mxu0 0
    %6887 = vmatpush1.bf16.msra.mxu0 0
    %6888 = vmatprep.subr.bf16.mxu0 0
    %6889 = vmatpush1.bf16.msra.mxu0 0
    %6890 = vmatprep.subr.bf16.mxu0 0
    %6891 = vmatpush1.bf16.msra.mxu0 0
    %6892 = vmatprep.subr.bf16.mxu0 0
    %6893 = vmatpush1.bf16.msra.mxu0 0
    %6894 = vmatprep.subr.bf16.mxu0 0
    %6895 = vmatpush1.bf16.msra.mxu0 0
    %6896 = vmatprep.subr.bf16.mxu0 0
    %6897 = vmatpush1.bf16.msra.mxu0 0
    %6898 = vmatprep.subr.bf16.mxu0 0
    %6899 = vmatpush1.bf16.msra.mxu0 0
    %6900 = vmatprep.subr.bf16.mxu0 0
    %6901 = vmatpush1.bf16.msra.mxu0 0
    %6902 = vmatprep.subr.bf16.mxu0 0
    %6903 = vmatpush1.bf16.msra.mxu0 0
    %6904 = vmatprep.subr.bf16.mxu0 0
    %6905 = vmatpush1.bf16.msra.mxu0 0
    %6906 = vmatprep.subr.bf16.mxu0 0
    %6907 = vmatpush1.bf16.msra.mxu0 0
    %6908 = vmatprep.subr.bf16.mxu0 0
    %6909 = vmatpush1.bf16.msra.mxu0 0
    %6910 = vmatprep.mubr.bf16.mxu0 0
    %6911 = vmatmul.mubr.bf16.gmra.mrb[0].mxu0 %v6754
    %v6912 = vpop.f32.mrb[0].mxu0
    %v6913 = vadd.f32 %v6466, %v6912
    %v6914 = vpop.f32.mrb[0].mxu0
    %v6915 = vadd.f32 %v6468, %v6914
    %v6916 = vpop.f32.mrb[0].mxu0
    %v6917 = vadd.f32 %v6470, %v6916
    %v6918 = vpop.f32.mrb[0].mxu0
    %v6919 = vadd.f32 %v6472, %v6918
    %6920 = vdwg.mxu0
    %6921 = vmatprep.subr.bf16.mxu0 %v6700
    %6922 = vmatpush1.bf16.msra.mxu0 %v6699
    %6923 = vmatprep.subr.bf16.mxu0 %v6712
    %6924 = vmatpush1.bf16.msra.mxu0 %v6711
    %6925 = vmatprep.subr.bf16.mxu0 %v6778
    %6926 = vmatpush1.bf16.msra.mxu0 %v6775
    %6927 = vmatprep.subr.bf16.mxu0 0
    %6928 = vmatpush1.bf16.msra.mxu0 0
    %6929 = vmatprep.subr.bf16.mxu0 0
    %6930 = vmatpush1.bf16.msra.mxu0 0
    %6931 = vmatprep.subr.bf16.mxu0 0
    %6932 = vmatpush1.bf16.msra.mxu0 0
    %6933 = vmatprep.subr.bf16.mxu0 0
    %6934 = vmatpush1.bf16.msra.mxu0 0
    %6935 = vmatprep.subr.bf16.mxu0 0
    %6936 = vmatpush1.bf16.msra.mxu0 0
    %6937 = vmatprep.subr.bf16.mxu0 0
    %6938 = vmatpush1.bf16.msra.mxu0 0
    %6939 = vmatprep.subr.bf16.mxu0 0
    %6940 = vmatpush1.bf16.msra.mxu0 0
    %6941 = vmatprep.subr.bf16.mxu0 0
    %6942 = vmatpush1.bf16.msra.mxu0 0
    %6943 = vmatprep.subr.bf16.mxu0 0
    %6944 = vmatpush1.bf16.msra.mxu0 0
    %6945 = vmatprep.subr.bf16.mxu0 0
    %6946 = vmatpush1.bf16.msra.mxu0 0
    %6947 = vmatprep.subr.bf16.mxu0 0
    %6948 = vmatpush1.bf16.msra.mxu0 0
    %6949 = vmatprep.subr.bf16.mxu0 0
    %6950 = vmatpush1.bf16.msra.mxu0 0
    %6951 = vmatprep.subr.bf16.mxu0 0
    %6952 = vmatpush1.bf16.msra.mxu0 0
    %6953 = vmatprep.mubr.bf16.mxu0 0
    %6954 = vmatmul.mubr.bf16.gmra.mrb[0].mxu0 %v6754
    %v6955 = vpop.f32.mrb[0].mxu0
    %v6956 = vadd.f32 %v6509, %v6955
    %v6957 = vpop.f32.mrb[0].mxu0
    %v6958 = vadd.f32 %v6511, %v6957
    %v6959 = vpop.f32.mrb[0].mxu0
    %v6960 = vadd.f32 %v6513, %v6959
    %v6961 = vpop.f32.mrb[0].mxu0
    %v6962 = vadd.f32 %v6515, %v6961
    %6963 = vdwg.mxu0
    %6964 = vmatprep.subr.bf16.mxu0 %v6702
    %6965 = vmatpush1.bf16.msra.mxu0 %v6701
    %6966 = vmatprep.subr.bf16.mxu0 %v6714
    %6967 = vmatpush1.bf16.msra.mxu0 %v6713
    %6968 = vmatprep.subr.bf16.mxu0 %v6784
    %6969 = vmatpush1.bf16.msra.mxu0 %v6781
    %6970 = vmatprep.subr.bf16.mxu0 0
    %6971 = vmatpush1.bf16.msra.mxu0 0
    %6972 = vmatprep.subr.bf16.mxu0 0
    %6973 = vmatpush1.bf16.msra.mxu0 0
    %6974 = vmatprep.subr.bf16.mxu0 0
    %6975 = vmatpush1.bf16.msra.mxu0 0
    %6976 = vmatprep.subr.bf16.mxu0 0
    %6977 = vmatpush1.bf16.msra.mxu0 0
    %6978 = vmatprep.subr.bf16.mxu0 0
    %6979 = vmatpush1.bf16.msra.mxu0 0
    %6980 = vmatprep.subr.bf16.mxu0 0
    %6981 = vmatpush1.bf16.msra.mxu0 0
    %6982 = vmatprep.subr.bf16.mxu0 0
    %6983 = vmatpush1.bf16.msra.mxu0 0
    %6984 = vmatprep.subr.bf16.mxu0 0
    %6985 = vmatpush1.bf16.msra.mxu0 0
    %6986 = vmatprep.subr.bf16.mxu0 0
    %6987 = vmatpush1.bf16.msra.mxu0 0
    %6988 = vmatprep.subr.bf16.mxu0 0
    %6989 = vmatpush1.bf16.msra.mxu0 0
    %6990 = vmatprep.subr.bf16.mxu0 0
    %6991 = vmatpush1.bf16.msra.mxu0 0
    %6992 = vmatprep.subr.bf16.mxu0 0
    %6993 = vmatpush1.bf16.msra.mxu0 0
    %6994 = vmatprep.subr.bf16.mxu0 0
    %6995 = vmatpush1.bf16.msra.mxu0 0
    %6996 = vmatprep.mubr.bf16.mxu0 0
    %6997 = vmatmul.mubr.bf16.gmra.mrb[0].mxu0 %v6754
    %v6998 = vpop.f32.mrb[0].mxu0
    %v6999 = vadd.f32 %v6552, %v6998
    %v7000 = vpop.f32.mrb[0].mxu0
    %v7001 = vadd.f32 %v6554, %v7000
    %v7002 = vpop.f32.mrb[0].mxu0
    %v7003 = vadd.f32 %v6556, %v7002
    %v7004 = vpop.f32.mrb[0].mxu0
    %v7005 = vadd.f32 %v6558, %v7004
    %7006 = vdwg.mxu0
    %7007 = vmatprep.subr.bf16.mxu0 %v6704
    %7008 = vmatpush1.bf16.msra.mxu0 %v6703
    %7009 = vmatprep.subr.bf16.mxu0 %v6716
    %7010 = vmatpush1.bf16.msra.mxu0 %v6715
    %7011 = vmatprep.subr.bf16.mxu0 %v6790
    %7012 = vmatpush1.bf16.msra.mxu0 %v6787
    %7013 = vmatprep.subr.bf16.mxu0 0
    %7014 = vmatpush1.bf16.msra.mxu0 0
    %7015 = vmatprep.subr.bf16.mxu0 0
    %7016 = vmatpush1.bf16.msra.mxu0 0
    %7017 = vmatprep.subr.bf16.mxu0 0
    %7018 = vmatpush1.bf16.msra.mxu0 0
    %7019 = vmatprep.subr.bf16.mxu0 0
    %7020 = vmatpush1.bf16.msra.mxu0 0
    %7021 = vmatprep.subr.bf16.mxu0 0
    %7022 = vmatpush1.bf16.msra.mxu0 0
    %7023 = vmatprep.subr.bf16.mxu0 0
    %7024 = vmatpush1.bf16.msra.mxu0 0
    %7025 = vmatprep.subr.bf16.mxu0 0
    %7026 = vmatpush1.bf16.msra.mxu0 0
    %7027 = vmatprep.subr.bf16.mxu0 0
    %7028 = vmatpush1.bf16.msra.mxu0 0
    %7029 = vmatprep.subr.bf16.mxu0 0
    %7030 = vmatpush1.bf16.msra.mxu0 0
    %7031 = vmatprep.subr.bf16.mxu0 0
    %7032 = vmatpush1.bf16.msra.mxu0 0
    %7033 = vmatprep.subr.bf16.mxu0 0
    %7034 = vmatpush1.bf16.msra.mxu0 0
    %7035 = vmatprep.subr.bf16.mxu0 0
    %7036 = vmatpush1.bf16.msra.mxu0 0
    %7037 = vmatprep.subr.bf16.mxu0 0
    %7038 = vmatpush1.bf16.msra.mxu0 0
    %7039 = vmatprep.mubr.bf16.mxu0 0
    %7040 = vmatmul.mubr.bf16.gmra.mrb[0].mxu0 %v6754
    %v7041 = vpop.f32.mrb[0].mxu0
    %v7042 = vadd.f32 %v6595, %v7041
    %v7043 = vpop.f32.mrb[0].mxu0
    %v7044 = vadd.f32 %v6597, %v7043
    %v7045 = vpop.f32.mrb[0].mxu0
    %v7046 = vadd.f32 %v6599, %v7045
    %v7047 = vpop.f32.mrb[0].mxu0
    %v7048 = vadd.f32 %v6601, %v7047
    %7049 = vdwg.mxu0
    %v7050 = vld [vmem:[%s6089 + $0x2] sm:$0xff]
    %v7051 = vld [vmem:[%s6089 + $0xa] sm:$0x3]
    %v7052 = vpack.c.bf16 %v7051, %v7050
    %v7053 = vld [vmem:[%s1121] sm:$0xff]
    %v7054 = vld [vmem:[%s1121 + $0x8] sm:$0xff]
    %v7055 = vld [vmem:[%s1121 + $0x10] sm:$0xff]
    %v7056 = vld [vmem:[%s1121 + $0x18] sm:$0xff]
    %v7057 = vld [vmem:[%s1121 + $0x20] sm:$0xff]
    %v7058 = vld [vmem:[%s1121 + $0x28] sm:$0xff]
    %v7059 = vld [vmem:[%s1121 + $0x30] sm:$0xff]
    %v7060 = vld [vmem:[%s1121 + $0x38] sm:$0xff]
    %v7061 = vld [vmem:[%s1121 + $0x40] sm:$0xff]
    %v7062 = vld [vmem:[%s1121 + $0x48] sm:$0xff]
    %v7063 = vld [vmem:[%s1121 + $0x50] sm:$0xff]
    %v7064 = vld [vmem:[%s1121 + $0x58] sm:$0xff]
    %v7065 = vld [vmem:[%s1121 + $0x60] sm:$0xff]
    %v7066 = vld [vmem:[%s1121 + $0x68] sm:$0xff]
    %v7067 = vld [vmem:[%s1121 + $0x70] sm:$0xff]
    %v7068 = vld [vmem:[%s1121 + $0x78] sm:$0xff]
    %v7069 = vld [vmem:[%s1121 + $0x80] sm:$0xff]
    %v7070 = vld [vmem:[%s1121 + $0x88] sm:$0xff]
    %v7071 = vld [vmem:[%s1121 + $0x90] sm:$0xff]
    %v7072 = vld [vmem:[%s1121 + $0x98] sm:$0xff]
    %v7073 = vld [vmem:[%s1121 + $0xa0] sm:$0xff]
    %v7074 = vld [vmem:[%s1121 + $0xa8] sm:$0xff]
    %v7075 = vld [vmem:[%s1121 + $0xb0] sm:$0xff]
    %v7076 = vld [vmem:[%s1121 + $0xb8] sm:$0xff]
    %v7077 = vld [vmem:[%s1121 + $0xc0] sm:$0xff]
    %v7078 = vld [vmem:[%s1121 + $0xc8] sm:$0xff]
    %v7079 = vld [vmem:[%s1121 + $0xd0] sm:$0xff]
    %v7080 = vld [vmem:[%s1121 + $0xd8] sm:$0xff]
    %v7081 = vld [vmem:[%s1121 + $0xe0] sm:$0xff]
    %v7082 = vld [vmem:[%s1121 + $0xe8] sm:$0xff]
    %v7113 = vunpack.c.l.b16 %v7053
    %v7114 = vunpack.c.h.b16 %v7053
    %v7115 = vunpack.c.l.b16 %v7054
    %v7116 = vunpack.c.h.b16 %v7054
    %v7117 = vunpack.c.l.b16 %v7055
    %v7118 = vunpack.c.h.b16 %v7055
    %v7119 = vunpack.c.l.b16 %v7056
    %v7120 = vunpack.c.h.b16 %v7056
    %v7121 = vunpack.c.l.b16 %v7057
    %v7122 = vunpack.c.h.b16 %v7057
    %v7123 = vunpack.c.l.b16 %v7058
    %v7124 = vunpack.c.h.b16 %v7058
    %v7125 = vunpack.c.l.b16 %v7059
    %v7126 = vunpack.c.h.b16 %v7059
    %v7127 = vunpack.c.l.b16 %v7060
    %v7128 = vunpack.c.h.b16 %v7060
    %v7129 = vunpack.c.l.b16 %v7061
    %v7130 = vunpack.c.h.b16 %v7061
    %v7131 = vunpack.c.l.b16 %v7062
    %v7132 = vunpack.c.h.b16 %v7062
    %v7133 = vunpack.c.l.b16 %v7063
    %v7134 = vunpack.c.h.b16 %v7063
    %v7135 = vunpack.c.l.b16 %v7064
    %v7136 = vunpack.c.h.b16 %v7064
    %v7137 = vunpack.c.l.b16 %v7065
    %v7138 = vunpack.c.h.b16 %v7065
    %v7139 = vunpack.c.l.b16 %v7066
    %v7140 = vunpack.c.h.b16 %v7066
    %v7141 = vunpack.c.l.b16 %v7067
    %v7142 = vunpack.c.h.b16 %v7067
    %v7143 = vunpack.c.l.b16 %v7068
    %v7144 = vunpack.c.h.b16 %v7068
    %v7145 = vunpack.c.l.b16 %v7069
    %v7146 = vunpack.c.h.b16 %v7069
    %v7147 = vunpack.c.l.b16 %v7070
    %v7148 = vunpack.c.h.b16 %v7070
    %v7149 = vunpack.c.l.b16 %v7071
    %v7150 = vunpack.c.h.b16 %v7071
    %v7151 = vunpack.c.l.b16 %v7072
    %v7152 = vunpack.c.h.b16 %v7072
    %v7153 = vunpack.c.l.b16 %v7073
    %v7154 = vunpack.c.h.b16 %v7073
    %v7155 = vunpack.c.l.b16 %v7074
    %v7156 = vunpack.c.h.b16 %v7074
    %v7157 = vunpack.c.l.b16 %v7075
    %v7158 = vunpack.c.h.b16 %v7075
    %v7159 = vunpack.c.l.b16 %v7076
    %v7160 = vunpack.c.h.b16 %v7076
    %v7161 = vunpack.c.l.b16 %v7077
    %v7162 = vunpack.c.h.b16 %v7077
    %v7163 = vunpack.c.l.b16 %v7078
    %v7164 = vunpack.c.h.b16 %v7078
    %v7165 = vunpack.c.l.b16 %v7079
    %v7166 = vunpack.c.h.b16 %v7079
    %v7167 = vunpack.c.l.b16 %v7080
    %v7168 = vunpack.c.h.b16 %v7080
    %v7169 = vunpack.c.l.b16 %v7081
    %v7170 = vunpack.c.h.b16 %v7081
    %v7171 = vunpack.c.l.b16 %v7082
    %v7172 = vunpack.c.h.b16 %v7082
    %v7173 = vpack.c.b16 %v7125, %v7113
    %v7174 = vpack.c.b16 %v7126, %v7114
    %v7175 = vpack.c.b16 %v7127, %v7115
    %v7176 = vpack.c.b16 %v7128, %v7116
    %v7177 = vpack.c.b16 %v7129, %v7117
    %v7178 = vpack.c.b16 %v7130, %v7118
    %v7179 = vpack.c.b16 %v7131, %v7119
    %v7180 = vpack.c.b16 %v7132, %v7120
    %v7181 = vpack.c.b16 %v7133, %v7121
    %v7182 = vpack.c.b16 %v7134, %v7122
    %v7183 = vpack.c.b16 %v7135, %v7123
    %v7184 = vpack.c.b16 %v7136, %v7124
    %v7185 = vpack.c.b16 %v7149, %v7137
    %v7186 = vpack.c.b16 %v7150, %v7138
    %v7187 = vpack.c.b16 %v7151, %v7139
    %v7188 = vpack.c.b16 %v7152, %v7140
    %v7189 = vpack.c.b16 %v7153, %v7141
    %v7190 = vpack.c.b16 %v7154, %v7142
    %v7191 = vpack.c.b16 %v7155, %v7143
    %v7192 = vpack.c.b16 %v7156, %v7144
    %v7193 = vpack.c.b16 %v7157, %v7145
    %v7194 = vpack.c.b16 %v7158, %v7146
    %v7195 = vpack.c.b16 %v7159, %v7147
    %v7196 = vpack.c.b16 %v7160, %v7148
    %v7197 = vpack.c.b16 %v7161, %v7161
    %v7198 = vpack.c.b16 %v7162, %v7162
    %v7199 = vpack.c.b16 %v7163, %v7163
    %v7200 = vpack.c.b16 %v7164, %v7164
    %v7201 = vpack.c.b16 %v7165, %v7165
    %v7202 = vpack.c.b16 %v7166, %v7166
    %v7203 = vpack.c.b16 %v7167, %v7167
    %v7204 = vpack.c.b16 %v7168, %v7168
    %v7205 = vpack.c.b16 %v7169, %v7169
    %v7206 = vpack.c.b16 %v7170, %v7170
    %v7207 = vpack.c.b16 %v7171, %v7171
    %v7208 = vpack.c.b16 %v7172, %v7172
    %v7234 = vsel %vm369, %v7052, 0
    %v7237 = vand.u32 %v7197, %v376
    %v7240 = vand.u32 %v7198, %v376
    %v7243 = vand.u32 %v7199, %v376
    %v7246 = vand.u32 %v7200, %v376
    %v7249 = vand.u32 %v7201, %v376
    %v7252 = vand.u32 %v7202, %v376
    %v7255 = vand.u32 %v7203, %v376
    %v7258 = vand.u32 %v7204, %v376
    %v7261 = vand.u32 %v7205, %v376
    %v7264 = vand.u32 %v7206, %v376
    %v7267 = vand.u32 %v7207, %v376
    %v7270 = vand.u32 %v7208, %v376
    %7272 = vmatprep.subr.bf16.mxu0 %v7174
    %7273 = vmatpush1.bf16.msra.mxu0 %v7173
    %7274 = vmatprep.subr.bf16.mxu0 %v7186
    %7275 = vmatpush1.bf16.msra.mxu0 %v7185
    %7276 = vmatprep.subr.bf16.mxu0 %v7240
    %7277 = vmatpush1.bf16.msra.mxu0 %v7237
    %7278 = vmatprep.subr.bf16.mxu0 0
    %7279 = vmatpush1.bf16.msra.mxu0 0
    %7280 = vmatprep.subr.bf16.mxu0 0
    %7281 = vmatpush1.bf16.msra.mxu0 0
    %7282 = vmatprep.subr.bf16.mxu0 0
    %7283 = vmatpush1.bf16.msra.mxu0 0
    %7284 = vmatprep.subr.bf16.mxu0 0
    %7285 = vmatpush1.bf16.msra.mxu0 0
    %7286 = vmatprep.subr.bf16.mxu0 0
    %7287 = vmatpush1.bf16.msra.mxu0 0
    %7288 = vmatprep.subr.bf16.mxu0 0
    %7289 = vmatpush1.bf16.msra.mxu0 0
    %7290 = vmatprep.subr.bf16.mxu0 0
    %7291 = vmatpush1.bf16.msra.mxu0 0
    %7292 = vmatprep.subr.bf16.mxu0 0
    %7293 = vmatpush1.bf16.msra.mxu0 0
    %7294 = vmatprep.subr.bf16.mxu0 0
    %7295 = vmatpush1.bf16.msra.mxu0 0
    %7296 = vmatprep.subr.bf16.mxu0 0
    %7297 = vmatpush1.bf16.msra.mxu0 0
    %7298 = vmatprep.subr.bf16.mxu0 0
    %7299 = vmatpush1.bf16.msra.mxu0 0
    %7300 = vmatprep.subr.bf16.mxu0 0
    %7301 = vmatpush1.bf16.msra.mxu0 0
    %7302 = vmatprep.subr.bf16.mxu0 0
    %7303 = vmatpush1.bf16.msra.mxu0 0
    %7304 = vmatprep.mubr.bf16.mxu0 0
    %7305 = vmatmul.mubr.bf16.gmra.mrb[0].mxu0 %v7234
    %v7306 = vpop.f32.mrb[0].mxu0
    %v7307 = vadd.f32 0.0, %v7306
    %v7308 = vpop.f32.mrb[0].mxu0
    %v7309 = vadd.f32 0.0, %v7308
    %v7310 = vpop.f32.mrb[0].mxu0
    %v7311 = vadd.f32 0.0, %v7310
    %v7312 = vpop.f32.mrb[0].mxu0
    %v7313 = vadd.f32 0.0, %v7312
    %7314 = vdwg.mxu0
    %7315 = vmatprep.subr.bf16.mxu0 %v7176
    %7316 = vmatpush1.bf16.msra.mxu0 %v7175
    %7317 = vmatprep.subr.bf16.mxu0 %v7188
    %7318 = vmatpush1.bf16.msra.mxu0 %v7187
    %7319 = vmatprep.subr.bf16.mxu0 %v7246
    %7320 = vmatpush1.bf16.msra.mxu0 %v7243
    %7321 = vmatprep.subr.bf16.mxu0 0
    %7322 = vmatpush1.bf16.msra.mxu0 0
    %7323 = vmatprep.subr.bf16.mxu0 0
    %7324 = vmatpush1.bf16.msra.mxu0 0
    %7325 = vmatprep.subr.bf16.mxu0 0
    %7326 = vmatpush1.bf16.msra.mxu0 0
    %7327 = vmatprep.subr.bf16.mxu0 0
    %7328 = vmatpush1.bf16.msra.mxu0 0
    %7329 = vmatprep.subr.bf16.mxu0 0
    %7330 = vmatpush1.bf16.msra.mxu0 0
    %7331 = vmatprep.subr.bf16.mxu0 0
    %7332 = vmatpush1.bf16.msra.mxu0 0
    %7333 = vmatprep.subr.bf16.mxu0 0
    %7334 = vmatpush1.bf16.msra.mxu0 0
    %7335 = vmatprep.subr.bf16.mxu0 0
    %7336 = vmatpush1.bf16.msra.mxu0 0
    %7337 = vmatprep.subr.bf16.mxu0 0
    %7338 = vmatpush1.bf16.msra.mxu0 0
    %7339 = vmatprep.subr.bf16.mxu0 0
    %7340 = vmatpush1.bf16.msra.mxu0 0
    %7341 = vmatprep.subr.bf16.mxu0 0
    %7342 = vmatpush1.bf16.msra.mxu0 0
    %7343 = vmatprep.subr.bf16.mxu0 0
    %7344 = vmatpush1.bf16.msra.mxu0 0
    %7345 = vmatprep.subr.bf16.mxu0 0
    %7346 = vmatpush1.bf16.msra.mxu0 0
    %7347 = vmatprep.mubr.bf16.mxu0 0
    %7348 = vmatmul.mubr.bf16.gmra.mrb[0].mxu0 %v7234
    %v7349 = vpop.f32.mrb[0].mxu0
    %v7350 = vadd.f32 0.0, %v7349
    %v7351 = vpop.f32.mrb[0].mxu0
    %v7352 = vadd.f32 0.0, %v7351
    %v7353 = vpop.f32.mrb[0].mxu0
    %v7354 = vadd.f32 0.0, %v7353
    %v7355 = vpop.f32.mrb[0].mxu0
    %v7356 = vadd.f32 0.0, %v7355
    %7357 = vdwg.mxu0
    %7358 = vmatprep.subr.bf16.mxu0 %v7178
    %7359 = vmatpush1.bf16.msra.mxu0 %v7177
    %7360 = vmatprep.subr.bf16.mxu0 %v7190
    %7361 = vmatpush1.bf16.msra.mxu0 %v7189
    %7362 = vmatprep.subr.bf16.mxu0 %v7252
    %7363 = vmatpush1.bf16.msra.mxu0 %v7249
    %7364 = vmatprep.subr.bf16.mxu0 0
    %7365 = vmatpush1.bf16.msra.mxu0 0
    %7366 = vmatprep.subr.bf16.mxu0 0
    %7367 = vmatpush1.bf16.msra.mxu0 0
    %7368 = vmatprep.subr.bf16.mxu0 0
    %7369 = vmatpush1.bf16.msra.mxu0 0
    %7370 = vmatprep.subr.bf16.mxu0 0
    %7371 = vmatpush1.bf16.msra.mxu0 0
    %7372 = vmatprep.subr.bf16.mxu0 0
    %7373 = vmatpush1.bf16.msra.mxu0 0
    %7374 = vmatprep.subr.bf16.mxu0 0
    %7375 = vmatpush1.bf16.msra.mxu0 0
    %7376 = vmatprep.subr.bf16.mxu0 0
    %7377 = vmatpush1.bf16.msra.mxu0 0
    %7378 = vmatprep.subr.bf16.mxu0 0
    %7379 = vmatpush1.bf16.msra.mxu0 0
    %7380 = vmatprep.subr.bf16.mxu0 0
    %7381 = vmatpush1.bf16.msra.mxu0 0
    %7382 = vmatprep.subr.bf16.mxu0 0
    %7383 = vmatpush1.bf16.msra.mxu0 0
    %7384 = vmatprep.subr.bf16.mxu0 0
    %7385 = vmatpush1.bf16.msra.mxu0 0
    %7386 = vmatprep.subr.bf16.mxu0 0
    %7387 = vmatpush1.bf16.msra.mxu0 0
    %7388 = vmatprep.subr.bf16.mxu0 0
    %7389 = vmatpush1.bf16.msra.mxu0 0
    %7390 = vmatprep.mubr.bf16.mxu0 0
    %7391 = vmatmul.mubr.bf16.gmra.mrb[0].mxu0 %v7234
    %v7392 = vpop.f32.mrb[0].mxu0
    %v7393 = vadd.f32 0.0, %v7392
    %v7394 = vpop.f32.mrb[0].mxu0
    %v7395 = vadd.f32 0.0, %v7394
    %v7396 = vpop.f32.mrb[0].mxu0
    %v7397 = vadd.f32 0.0, %v7396
    %v7398 = vpop.f32.mrb[0].mxu0
    %v7399 = vadd.f32 0.0, %v7398
    %7400 = vdwg.mxu0
    %7401 = vmatprep.subr.bf16.mxu0 %v7180
    %7402 = vmatpush1.bf16.msra.mxu0 %v7179
    %7403 = vmatprep.subr.bf16.mxu0 %v7192
    %7404 = vmatpush1.bf16.msra.mxu0 %v7191
    %7405 = vmatprep.subr.bf16.mxu0 %v7258
    %7406 = vmatpush1.bf16.msra.mxu0 %v7255
    %7407 = vmatprep.subr.bf16.mxu0 0
    %7408 = vmatpush1.bf16.msra.mxu0 0
    %7409 = vmatprep.subr.bf16.mxu0 0
    %7410 = vmatpush1.bf16.msra.mxu0 0
    %7411 = vmatprep.subr.bf16.mxu0 0
    %7412 = vmatpush1.bf16.msra.mxu0 0
    %7413 = vmatprep.subr.bf16.mxu0 0
    %7414 = vmatpush1.bf16.msra.mxu0 0
    %7415 = vmatprep.subr.bf16.mxu0 0
    %7416 = vmatpush1.bf16.msra.mxu0 0
    %7417 = vmatprep.subr.bf16.mxu0 0
    %7418 = vmatpush1.bf16.msra.mxu0 0
    %7419 = vmatprep.subr.bf16.mxu0 0
    %7420 = vmatpush1.bf16.msra.mxu0 0
    %7421 = vmatprep.subr.bf16.mxu0 0
    %7422 = vmatpush1.bf16.msra.mxu0 0
    %7423 = vmatprep.subr.bf16.mxu0 0
    %7424 = vmatpush1.bf16.msra.mxu0 0
    %7425 = vmatprep.subr.bf16.mxu0 0
    %7426 = vmatpush1.bf16.msra.mxu0 0
    %7427 = vmatprep.subr.bf16.mxu0 0
    %7428 = vmatpush1.bf16.msra.mxu0 0
    %7429 = vmatprep.subr.bf16.mxu0 0
    %7430 = vmatpush1.bf16.msra.mxu0 0
    %7431 = vmatprep.subr.bf16.mxu0 0
    %7432 = vmatpush1.bf16.msra.mxu0 0
    %7433 = vmatprep.mubr.bf16.mxu0 0
    %7434 = vmatmul.mubr.bf16.gmra.mrb[0].mxu0 %v7234
    %v7435 = vpop.f32.mrb[0].mxu0
    %v7436 = vadd.f32 0.0, %v7435
    %v7437 = vpop.f32.mrb[0].mxu0
    %v7438 = vadd.f32 0.0, %v7437
    %v7439 = vpop.f32.mrb[0].mxu0
    %v7440 = vadd.f32 0.0, %v7439
    %v7441 = vpop.f32.mrb[0].mxu0
    %v7442 = vadd.f32 0.0, %v7441
    %7443 = vdwg.mxu0
    %7444 = vmatprep.subr.bf16.mxu0 %v7182
    %7445 = vmatpush1.bf16.msra.mxu0 %v7181
    %7446 = vmatprep.subr.bf16.mxu0 %v7194
    %7447 = vmatpush1.bf16.msra.mxu0 %v7193
    %7448 = vmatprep.subr.bf16.mxu0 %v7264
    %7449 = vmatpush1.bf16.msra.mxu0 %v7261
    %7450 = vmatprep.subr.bf16.mxu0 0
    %7451 = vmatpush1.bf16.msra.mxu0 0
    %7452 = vmatprep.subr.bf16.mxu0 0
    %7453 = vmatpush1.bf16.msra.mxu0 0
    %7454 = vmatprep.subr.bf16.mxu0 0
    %7455 = vmatpush1.bf16.msra.mxu0 0
    %7456 = vmatprep.subr.bf16.mxu0 0
    %7457 = vmatpush1.bf16.msra.mxu0 0
    %7458 = vmatprep.subr.bf16.mxu0 0
    %7459 = vmatpush1.bf16.msra.mxu0 0
    %7460 = vmatprep.subr.bf16.mxu0 0
    %7461 = vmatpush1.bf16.msra.mxu0 0
    %7462 = vmatprep.subr.bf16.mxu0 0
    %7463 = vmatpush1.bf16.msra.mxu0 0
    %7464 = vmatprep.subr.bf16.mxu0 0
    %7465 = vmatpush1.bf16.msra.mxu0 0
    %7466 = vmatprep.subr.bf16.mxu0 0
    %7467 = vmatpush1.bf16.msra.mxu0 0
    %7468 = vmatprep.subr.bf16.mxu0 0
    %7469 = vmatpush1.bf16.msra.mxu0 0
    %7470 = vmatprep.subr.bf16.mxu0 0
    %7471 = vmatpush1.bf16.msra.mxu0 0
    %7472 = vmatprep.subr.bf16.mxu0 0
    %7473 = vmatpush1.bf16.msra.mxu0 0
    %7474 = vmatprep.subr.bf16.mxu0 0
    %7475 = vmatpush1.bf16.msra.mxu0 0
    %7476 = vmatprep.mubr.bf16.mxu0 0
    %7477 = vmatmul.mubr.bf16.gmra.mrb[0].mxu0 %v7234
    %v7478 = vpop.f32.mrb[0].mxu0
    %v7479 = vadd.f32 0.0, %v7478
    %v7480 = vpop.f32.mrb[0].mxu0
    %v7481 = vadd.f32 0.0, %v7480
    %v7482 = vpop.f32.mrb[0].mxu0
    %v7483 = vadd.f32 0.0, %v7482
    %v7484 = vpop.f32.mrb[0].mxu0
    %v7485 = vadd.f32 0.0, %v7484
    %7486 = vdwg.mxu0
    %7487 = vmatprep.subr.bf16.mxu0 %v7184
    %7488 = vmatpush1.bf16.msra.mxu0 %v7183
    %7489 = vmatprep.subr.bf16.mxu0 %v7196
    %7490 = vmatpush1.bf16.msra.mxu0 %v7195
    %7491 = vmatprep.subr.bf16.mxu0 %v7270
    %7492 = vmatpush1.bf16.msra.mxu0 %v7267
    %7493 = vmatprep.subr.bf16.mxu0 0
    %7494 = vmatpush1.bf16.msra.mxu0 0
    %7495 = vmatprep.subr.bf16.mxu0 0
    %7496 = vmatpush1.bf16.msra.mxu0 0
    %7497 = vmatprep.subr.bf16.mxu0 0
    %7498 = vmatpush1.bf16.msra.mxu0 0
    %7499 = vmatprep.subr.bf16.mxu0 0
    %7500 = vmatpush1.bf16.msra.mxu0 0
    %7501 = vmatprep.subr.bf16.mxu0 0
    %7502 = vmatpush1.bf16.msra.mxu0 0
    %7503 = vmatprep.subr.bf16.mxu0 0
    %7504 = vmatpush1.bf16.msra.mxu0 0
    %7505 = vmatprep.subr.bf16.mxu0 0
    %7506 = vmatpush1.bf16.msra.mxu0 0
    %7507 = vmatprep.subr.bf16.mxu0 0
    %7508 = vmatpush1.bf16.msra.mxu0 0
    %7509 = vmatprep.subr.bf16.mxu0 0
    %7510 = vmatpush1.bf16.msra.mxu0 0
    %7511 = vmatprep.subr.bf16.mxu0 0
    %7512 = vmatpush1.bf16.msra.mxu0 0
    %7513 = vmatprep.subr.bf16.mxu0 0
    %7514 = vmatpush1.bf16.msra.mxu0 0
    %7515 = vmatprep.subr.bf16.mxu0 0
    %7516 = vmatpush1.bf16.msra.mxu0 0
    %7517 = vmatprep.subr.bf16.mxu0 0
    %7518 = vmatpush1.bf16.msra.mxu0 0
    %7519 = vmatprep.mubr.bf16.mxu0 0
    %7520 = vmatmul.mubr.bf16.gmra.mrb[0].mxu0 %v7234
    %v7521 = vpop.f32.mrb[0].mxu0
    %v7522 = vadd.f32 0.0, %v7521
    %v7523 = vpop.f32.mrb[0].mxu0
    %v7524 = vadd.f32 0.0, %v7523
    %v7525 = vpop.f32.mrb[0].mxu0
    %v7526 = vadd.f32 0.0, %v7525
    %v7527 = vpop.f32.mrb[0].mxu0
    %v7528 = vadd.f32 0.0, %v7527
    %7529 = vdwg.mxu0
    %v7530 = vadd.f32 %v6827, %v7307
    %v7531 = vadd.f32 %v6829, %v7309
    %v7532 = vadd.f32 %v6870, %v7350
    %v7533 = vadd.f32 %v6872, %v7352
    %v7534 = vadd.f32 %v6913, %v7393
    %v7535 = vadd.f32 %v6915, %v7395
    %v7536 = vadd.f32 %v6956, %v7436
    %v7537 = vadd.f32 %v6958, %v7438
    %v7538 = vadd.f32 %v6999, %v7479
    %v7539 = vadd.f32 %v7001, %v7481
    %v7540 = vadd.f32 %v7042, %v7522
    %v7541 = vadd.f32 %v7044, %v7524
    %v7542 = vadd.f32 %v6831, %v7311
    %v7543 = vadd.f32 %v6833, %v7313
    %v7544 = vadd.f32 %v6874, %v7354
    %v7545 = vadd.f32 %v6876, %v7356
    %v7546 = vadd.f32 %v6917, %v7397
    %v7547 = vadd.f32 %v6919, %v7399
    %v7548 = vadd.f32 %v6960, %v7440
    %v7549 = vadd.f32 %v6962, %v7442
    %v7550 = vadd.f32 %v7003, %v7483
    %v7551 = vadd.f32 %v7005, %v7485
    %v7552 = vadd.f32 %v7046, %v7526
    %v7553 = vadd.f32 %v7048, %v7528
    %v7554 = vld [vmem:[%s6089 + $0x3] sm:$0xff]
    %v7555 = vld [vmem:[%s6089 + $0xb] sm:$0x3]
    %v7556 = vpack.c.bf16 %v7555, %v7554
    %v7557 = vld [vmem:[%s1626] sm:$0xff]
    %v7558 = vld [vmem:[%s1626 + $0x8] sm:$0xff]
    %v7559 = vld [vmem:[%s1626 + $0x10] sm:$0xff]
    %v7560 = vld [vmem:[%s1626 + $0x18] sm:$0xff]
    %v7561 = vld [vmem:[%s1626 + $0x20] sm:$0xff]
    %v7562 = vld [vmem:[%s1626 + $0x28] sm:$0xff]
    %v7563 = vld [vmem:[%s1626 + $0x30] sm:$0xff]
    %v7564 = vld [vmem:[%s1626 + $0x38] sm:$0xff]
    %v7565 = vld [vmem:[%s1626 + $0x40] sm:$0xff]
    %v7566 = vld [vmem:[%s1626 + $0x48] sm:$0xff]
    %v7567 = vld [vmem:[%s1626 + $0x50] sm:$0xff]
    %v7568 = vld [vmem:[%s1626 + $0x58] sm:$0xff]
    %v7569 = vld [vmem:[%s1626 + $0x60] sm:$0xff]
    %v7570 = vld [vmem:[%s1626 + $0x68] sm:$0xff]
    %v7571 = vld [vmem:[%s1626 + $0x70] sm:$0xff]
    %v7572 = vld [vmem:[%s1626 + $0x78] sm:$0xff]
    %v7573 = vld [vmem:[%s1626 + $0x80] sm:$0xff]
    %v7574 = vld [vmem:[%s1626 + $0x88] sm:$0xff]
    %v7575 = vld [vmem:[%s1626 + $0x90] sm:$0xff]
    %v7576 = vld [vmem:[%s1626 + $0x98] sm:$0xff]
    %v7577 = vld [vmem:[%s1626 + $0xa0] sm:$0xff]
    %v7578 = vld [vmem:[%s1626 + $0xa8] sm:$0xff]
    %v7579 = vld [vmem:[%s1626 + $0xb0] sm:$0xff]
    %v7580 = vld [vmem:[%s1626 + $0xb8] sm:$0xff]
    %v7581 = vld [vmem:[%s1626 + $0xc0] sm:$0xff]
    %v7582 = vld [vmem:[%s1626 + $0xc8] sm:$0xff]
    %v7583 = vld [vmem:[%s1626 + $0xd0] sm:$0xff]
    %v7584 = vld [vmem:[%s1626 + $0xd8] sm:$0xff]
    %v7585 = vld [vmem:[%s1626 + $0xe0] sm:$0xff]
    %v7586 = vld [vmem:[%s1626 + $0xe8] sm:$0xff]
    %v7617 = vunpack.c.l.b16 %v7557
    %v7618 = vunpack.c.h.b16 %v7557
    %v7619 = vunpack.c.l.b16 %v7558
    %v7620 = vunpack.c.h.b16 %v7558
    %v7621 = vunpack.c.l.b16 %v7559
    %v7622 = vunpack.c.h.b16 %v7559
    %v7623 = vunpack.c.l.b16 %v7560
    %v7624 = vunpack.c.h.b16 %v7560
    %v7625 = vunpack.c.l.b16 %v7561
    %v7626 = vunpack.c.h.b16 %v7561
    %v7627 = vunpack.c.l.b16 %v7562
    %v7628 = vunpack.c.h.b16 %v7562
    %v7629 = vunpack.c.l.b16 %v7563
    %v7630 = vunpack.c.h.b16 %v7563
    %v7631 = vunpack.c.l.b16 %v7564
    %v7632 = vunpack.c.h.b16 %v7564
    %v7633 = vunpack.c.l.b16 %v7565
    %v7634 = vunpack.c.h.b16 %v7565
    %v7635 = vunpack.c.l.b16 %v7566
    %v7636 = vunpack.c.h.b16 %v7566
    %v7637 = vunpack.c.l.b16 %v7567
    %v7638 = vunpack.c.h.b16 %v7567
    %v7639 = vunpack.c.l.b16 %v7568
    %v7640 = vunpack.c.h.b16 %v7568
    %v7641 = vunpack.c.l.b16 %v7569
    %v7642 = vunpack.c.h.b16 %v7569
    %v7643 = vunpack.c.l.b16 %v7570
    %v7644 = vunpack.c.h.b16 %v7570
    %v7645 = vunpack.c.l.b16 %v7571
    %v7646 = vunpack.c.h.b16 %v7571
    %v7647 = vunpack.c.l.b16 %v7572
    %v7648 = vunpack.c.h.b16 %v7572
    %v7649 = vunpack.c.l.b16 %v7573
    %v7650 = vunpack.c.h.b16 %v7573
    %v7651 = vunpack.c.l.b16 %v7574
    %v7652 = vunpack.c.h.b16 %v7574
    %v7653 = vunpack.c.l.b16 %v7575
    %v7654 = vunpack.c.h.b16 %v7575
    %v7655 = vunpack.c.l.b16 %v7576
    %v7656 = vunpack.c.h.b16 %v7576
    %v7657 = vunpack.c.l.b16 %v7577
    %v7658 = vunpack.c.h.b16 %v7577
    %v7659 = vunpack.c.l.b16 %v7578
    %v7660 = vunpack.c.h.b16 %v7578
    %v7661 = vunpack.c.l.b16 %v7579
    %v7662 = vunpack.c.h.b16 %v7579
    %v7663 = vunpack.c.l.b16 %v7580
    %v7664 = vunpack.c.h.b16 %v7580
    %v7665 = vunpack.c.l.b16 %v7581
    %v7666 = vunpack.c.h.b16 %v7581
    %v7667 = vunpack.c.l.b16 %v7582
    %v7668 = vunpack.c.h.b16 %v7582
    %v7669 = vunpack.c.l.b16 %v7583
    %v7670 = vunpack.c.h.b16 %v7583
    %v7671 = vunpack.c.l.b16 %v7584
    %v7672 = vunpack.c.h.b16 %v7584
    %v7673 = vunpack.c.l.b16 %v7585
    %v7674 = vunpack.c.h.b16 %v7585
    %v7675 = vunpack.c.l.b16 %v7586
    %v7676 = vunpack.c.h.b16 %v7586
    %v7677 = vpack.c.b16 %v7629, %v7617
    %v7678 = vpack.c.b16 %v7630, %v7618
    %v7679 = vpack.c.b16 %v7631, %v7619
    %v7680 = vpack.c.b16 %v7632, %v7620
    %v7681 = vpack.c.b16 %v7633, %v7621
    %v7682 = vpack.c.b16 %v7634, %v7622
    %v7683 = vpack.c.b16 %v7635, %v7623
    %v7684 = vpack.c.b16 %v7636, %v7624
    %v7685 = vpack.c.b16 %v7637, %v7625
    %v7686 = vpack.c.b16 %v7638, %v7626
    %v7687 = vpack.c.b16 %v7639, %v7627
    %v7688 = vpack.c.b16 %v7640, %v7628
    %v7689 = vpack.c.b16 %v7653, %v7641
    %v7690 = vpack.c.b16 %v7654, %v7642
    %v7691 = vpack.c.b16 %v7655, %v7643
    %v7692 = vpack.c.b16 %v7656, %v7644
    %v7693 = vpack.c.b16 %v7657, %v7645
    %v7694 = vpack.c.b16 %v7658, %v7646
    %v7695 = vpack.c.b16 %v7659, %v7647
    %v7696 = vpack.c.b16 %v7660, %v7648
    %v7697 = vpack.c.b16 %v7661, %v7649
    %v7698 = vpack.c.b16 %v7662, %v7650
    %v7699 = vpack.c.b16 %v7663, %v7651
    %v7700 = vpack.c.b16 %v7664, %v7652
    %v7701 = vpack.c.b16 %v7665, %v7665
    %v7702 = vpack.c.b16 %v7666, %v7666
    %v7703 = vpack.c.b16 %v7667, %v7667
    %v7704 = vpack.c.b16 %v7668, %v7668
    %v7705 = vpack.c.b16 %v7669, %v7669
    %v7706 = vpack.c.b16 %v7670, %v7670
    %v7707 = vpack.c.b16 %v7671, %v7671
    %v7708 = vpack.c.b16 %v7672, %v7672
    %v7709 = vpack.c.b16 %v7673, %v7673
    %v7710 = vpack.c.b16 %v7674, %v7674
    %v7711 = vpack.c.b16 %v7675, %v7675
    %v7712 = vpack.c.b16 %v7676, %v7676
    %v7738 = vsel %vm369, %v7556, 0
    %v7741 = vand.u32 %v7701, %v376
    %v7744 = vand.u32 %v7702, %v376
    %v7747 = vand.u32 %v7703, %v376
    %v7750 = vand.u32 %v7704, %v376
    %v7753 = vand.u32 %v7705, %v376
    %v7756 = vand.u32 %v7706, %v376
    %v7759 = vand.u32 %v7707, %v376
    %v7762 = vand.u32 %v7708, %v376
    %v7765 = vand.u32 %v7709, %v376
    %v7768 = vand.u32 %v7710, %v376
    %v7771 = vand.u32 %v7711, %v376
    %v7774 = vand.u32 %v7712, %v376
    %7776 = vmatprep.subr.bf16.mxu0 %v7678
    %7777 = vmatpush1.bf16.msra.mxu0 %v7677
    %7778 = vmatprep.subr.bf16.mxu0 %v7690
    %7779 = vmatpush1.bf16.msra.mxu0 %v7689
    %7780 = vmatprep.subr.bf16.mxu0 %v7744
    %7781 = vmatpush1.bf16.msra.mxu0 %v7741
    %7782 = vmatprep.subr.bf16.mxu0 0
    %7783 = vmatpush1.bf16.msra.mxu0 0
    %7784 = vmatprep.subr.bf16.mxu0 0
    %7785 = vmatpush1.bf16.msra.mxu0 0
    %7786 = vmatprep.subr.bf16.mxu0 0
    %7787 = vmatpush1.bf16.msra.mxu0 0
    %7788 = vmatprep.subr.bf16.mxu0 0
    %7789 = vmatpush1.bf16.msra.mxu0 0
    %7790 = vmatprep.subr.bf16.mxu0 0
    %7791 = vmatpush1.bf16.msra.mxu0 0
    %7792 = vmatprep.subr.bf16.mxu0 0
    %7793 = vmatpush1.bf16.msra.mxu0 0
    %7794 = vmatprep.subr.bf16.mxu0 0
    %7795 = vmatpush1.bf16.msra.mxu0 0
    %7796 = vmatprep.subr.bf16.mxu0 0
    %7797 = vmatpush1.bf16.msra.mxu0 0
    %7798 = vmatprep.subr.bf16.mxu0 0
    %7799 = vmatpush1.bf16.msra.mxu0 0
    %7800 = vmatprep.subr.bf16.mxu0 0
    %7801 = vmatpush1.bf16.msra.mxu0 0
    %7802 = vmatprep.subr.bf16.mxu0 0
    %7803 = vmatpush1.bf16.msra.mxu0 0
    %7804 = vmatprep.subr.bf16.mxu0 0
    %7805 = vmatpush1.bf16.msra.mxu0 0
    %7806 = vmatprep.subr.bf16.mxu0 0
    %7807 = vmatpush1.bf16.msra.mxu0 0
    %7808 = vmatprep.mubr.bf16.mxu0 0
    %7809 = vmatmul.mubr.bf16.gmra.mrb[0].mxu0 %v7738
    %v7810 = vpop.f32.mrb[0].mxu0
    %v7811 = vadd.f32 0.0, %v7810
    %v7812 = vpop.f32.mrb[0].mxu0
    %v7813 = vadd.f32 0.0, %v7812
    %v7814 = vpop.f32.mrb[0].mxu0
    %v7815 = vadd.f32 0.0, %v7814
    %v7816 = vpop.f32.mrb[0].mxu0
    %v7817 = vadd.f32 0.0, %v7816
    %7818 = vdwg.mxu0
    %7819 = vmatprep.subr.bf16.mxu0 %v7680
    %7820 = vmatpush1.bf16.msra.mxu0 %v7679
    %7821 = vmatprep.subr.bf16.mxu0 %v7692
    %7822 = vmatpush1.bf16.msra.mxu0 %v7691
    %7823 = vmatprep.subr.bf16.mxu0 %v7750
    %7824 = vmatpush1.bf16.msra.mxu0 %v7747
    %7825 = vmatprep.subr.bf16.mxu0 0
    %7826 = vmatpush1.bf16.msra.mxu0 0
    %7827 = vmatprep.subr.bf16.mxu0 0
    %7828 = vmatpush1.bf16.msra.mxu0 0
    %7829 = vmatprep.subr.bf16.mxu0 0
    %7830 = vmatpush1.bf16.msra.mxu0 0
    %7831 = vmatprep.subr.bf16.mxu0 0
    %7832 = vmatpush1.bf16.msra.mxu0 0
    %7833 = vmatprep.subr.bf16.mxu0 0
    %7834 = vmatpush1.bf16.msra.mxu0 0
    %7835 = vmatprep.subr.bf16.mxu0 0
    %7836 = vmatpush1.bf16.msra.mxu0 0
    %7837 = vmatprep.subr.bf16.mxu0 0
    %7838 = vmatpush1.bf16.msra.mxu0 0
    %7839 = vmatprep.subr.bf16.mxu0 0
    %7840 = vmatpush1.bf16.msra.mxu0 0
    %7841 = vmatprep.subr.bf16.mxu0 0
    %7842 = vmatpush1.bf16.msra.mxu0 0
    %7843 = vmatprep.subr.bf16.mxu0 0
    %7844 = vmatpush1.bf16.msra.mxu0 0
    %7845 = vmatprep.subr.bf16.mxu0 0
    %7846 = vmatpush1.bf16.msra.mxu0 0
    %7847 = vmatprep.subr.bf16.mxu0 0
    %7848 = vmatpush1.bf16.msra.mxu0 0
    %7849 = vmatprep.subr.bf16.mxu0 0
    %7850 = vmatpush1.bf16.msra.mxu0 0
    %7851 = vmatprep.mubr.bf16.mxu0 0
    %7852 = vmatmul.mubr.bf16.gmra.mrb[0].mxu0 %v7738
    %v7853 = vpop.f32.mrb[0].mxu0
    %v7854 = vadd.f32 0.0, %v7853
    %v7855 = vpop.f32.mrb[0].mxu0
    %v7856 = vadd.f32 0.0, %v7855
    %v7857 = vpop.f32.mrb[0].mxu0
    %v7858 = vadd.f32 0.0, %v7857
    %v7859 = vpop.f32.mrb[0].mxu0
    %v7860 = vadd.f32 0.0, %v7859
    %7861 = vdwg.mxu0
    %7862 = vmatprep.subr.bf16.mxu0 %v7682
    %7863 = vmatpush1.bf16.msra.mxu0 %v7681
    %7864 = vmatprep.subr.bf16.mxu0 %v7694
    %7865 = vmatpush1.bf16.msra.mxu0 %v7693
    %7866 = vmatprep.subr.bf16.mxu0 %v7756
    %7867 = vmatpush1.bf16.msra.mxu0 %v7753
    %7868 = vmatprep.subr.bf16.mxu0 0
    %7869 = vmatpush1.bf16.msra.mxu0 0
    %7870 = vmatprep.subr.bf16.mxu0 0
    %7871 = vmatpush1.bf16.msra.mxu0 0
    %7872 = vmatprep.subr.bf16.mxu0 0
    %7873 = vmatpush1.bf16.msra.mxu0 0
    %7874 = vmatprep.subr.bf16.mxu0 0
    %7875 = vmatpush1.bf16.msra.mxu0 0
    %7876 = vmatprep.subr.bf16.mxu0 0
    %7877 = vmatpush1.bf16.msra.mxu0 0
    %7878 = vmatprep.subr.bf16.mxu0 0
    %7879 = vmatpush1.bf16.msra.mxu0 0
    %7880 = vmatprep.subr.bf16.mxu0 0
    %7881 = vmatpush1.bf16.msra.mxu0 0
    %7882 = vmatprep.subr.bf16.mxu0 0
    %7883 = vmatpush1.bf16.msra.mxu0 0
    %7884 = vmatprep.subr.bf16.mxu0 0
    %7885 = vmatpush1.bf16.msra.mxu0 0
    %7886 = vmatprep.subr.bf16.mxu0 0
    %7887 = vmatpush1.bf16.msra.mxu0 0
    %7888 = vmatprep.subr.bf16.mxu0 0
    %7889 = vmatpush1.bf16.msra.mxu0 0
    %7890 = vmatprep.subr.bf16.mxu0 0
    %7891 = vmatpush1.bf16.msra.mxu0 0
    %7892 = vmatprep.subr.bf16.mxu0 0
    %7893 = vmatpush1.bf16.msra.mxu0 0
    %7894 = vmatprep.mubr.bf16.mxu0 0
    %7895 = vmatmul.mubr.bf16.gmra.mrb[0].mxu0 %v7738
    %v7896 = vpop.f32.mrb[0].mxu0
    %v7897 = vadd.f32 0.0, %v7896
    %v7898 = vpop.f32.mrb[0].mxu0
    %v7899 = vadd.f32 0.0, %v7898
    %v7900 = vpop.f32.mrb[0].mxu0
    %v7901 = vadd.f32 0.0, %v7900
    %v7902 = vpop.f32.mrb[0].mxu0
    %v7903 = vadd.f32 0.0, %v7902
    %7904 = vdwg.mxu0
    %7905 = vmatprep.subr.bf16.mxu0 %v7684
    %7906 = vmatpush1.bf16.msra.mxu0 %v7683
    %7907 = vmatprep.subr.bf16.mxu0 %v7696
    %7908 = vmatpush1.bf16.msra.mxu0 %v7695
    %7909 = vmatprep.subr.bf16.mxu0 %v7762
    %7910 = vmatpush1.bf16.msra.mxu0 %v7759
    %7911 = vmatprep.subr.bf16.mxu0 0
    %7912 = vmatpush1.bf16.msra.mxu0 0
    %7913 = vmatprep.subr.bf16.mxu0 0
    %7914 = vmatpush1.bf16.msra.mxu0 0
    %7915 = vmatprep.subr.bf16.mxu0 0
    %7916 = vmatpush1.bf16.msra.mxu0 0
    %7917 = vmatprep.subr.bf16.mxu0 0
    %7918 = vmatpush1.bf16.msra.mxu0 0
    %7919 = vmatprep.subr.bf16.mxu0 0
    %7920 = vmatpush1.bf16.msra.mxu0 0
    %7921 = vmatprep.subr.bf16.mxu0 0
    %7922 = vmatpush1.bf16.msra.mxu0 0
    %7923 = vmatprep.subr.bf16.mxu0 0
    %7924 = vmatpush1.bf16.msra.mxu0 0
    %7925 = vmatprep.subr.bf16.mxu0 0
    %7926 = vmatpush1.bf16.msra.mxu0 0
    %7927 = vmatprep.subr.bf16.mxu0 0
    %7928 = vmatpush1.bf16.msra.mxu0 0
    %7929 = vmatprep.subr.bf16.mxu0 0
    %7930 = vmatpush1.bf16.msra.mxu0 0
    %7931 = vmatprep.subr.bf16.mxu0 0
    %7932 = vmatpush1.bf16.msra.mxu0 0
    %7933 = vmatprep.subr.bf16.mxu0 0
    %7934 = vmatpush1.bf16.msra.mxu0 0
    %7935 = vmatprep.subr.bf16.mxu0 0
    %7936 = vmatpush1.bf16.msra.mxu0 0
    %7937 = vmatprep.mubr.bf16.mxu0 0
    %7938 = vmatmul.mubr.bf16.gmra.mrb[0].mxu0 %v7738
    %v7939 = vpop.f32.mrb[0].mxu0
    %v7940 = vadd.f32 0.0, %v7939
    %v7941 = vpop.f32.mrb[0].mxu0
    %v7942 = vadd.f32 0.0, %v7941
    %v7943 = vpop.f32.mrb[0].mxu0
    %v7944 = vadd.f32 0.0, %v7943
    %v7945 = vpop.f32.mrb[0].mxu0
    %v7946 = vadd.f32 0.0, %v7945
    %7947 = vdwg.mxu0
    %7948 = vmatprep.subr.bf16.mxu0 %v7686
    %7949 = vmatpush1.bf16.msra.mxu0 %v7685
    %7950 = vmatprep.subr.bf16.mxu0 %v7698
    %7951 = vmatpush1.bf16.msra.mxu0 %v7697
    %7952 = vmatprep.subr.bf16.mxu0 %v7768
    %7953 = vmatpush1.bf16.msra.mxu0 %v7765
    %7954 = vmatprep.subr.bf16.mxu0 0
    %7955 = vmatpush1.bf16.msra.mxu0 0
    %7956 = vmatprep.subr.bf16.mxu0 0
    %7957 = vmatpush1.bf16.msra.mxu0 0
    %7958 = vmatprep.subr.bf16.mxu0 0
    %7959 = vmatpush1.bf16.msra.mxu0 0
    %7960 = vmatprep.subr.bf16.mxu0 0
    %7961 = vmatpush1.bf16.msra.mxu0 0
    %7962 = vmatprep.subr.bf16.mxu0 0
    %7963 = vmatpush1.bf16.msra.mxu0 0
    %7964 = vmatprep.subr.bf16.mxu0 0
    %7965 = vmatpush1.bf16.msra.mxu0 0
    %7966 = vmatprep.subr.bf16.mxu0 0
    %7967 = vmatpush1.bf16.msra.mxu0 0
    %7968 = vmatprep.subr.bf16.mxu0 0
    %7969 = vmatpush1.bf16.msra.mxu0 0
    %7970 = vmatprep.subr.bf16.mxu0 0
    %7971 = vmatpush1.bf16.msra.mxu0 0
    %7972 = vmatprep.subr.bf16.mxu0 0
    %7973 = vmatpush1.bf16.msra.mxu0 0
    %7974 = vmatprep.subr.bf16.mxu0 0
    %7975 = vmatpush1.bf16.msra.mxu0 0
    %7976 = vmatprep.subr.bf16.mxu0 0
    %7977 = vmatpush1.bf16.msra.mxu0 0
    %7978 = vmatprep.subr.bf16.mxu0 0
    %7979 = vmatpush1.bf16.msra.mxu0 0
    %7980 = vmatprep.mubr.bf16.mxu0 0
    %7981 = vmatmul.mubr.bf16.gmra.mrb[0].mxu0 %v7738
    %v7982 = vpop.f32.mrb[0].mxu0
    %v7983 = vadd.f32 0.0, %v7982
    %v7984 = vpop.f32.mrb[0].mxu0
    %v7985 = vadd.f32 0.0, %v7984
    %v7986 = vpop.f32.mrb[0].mxu0
    %v7987 = vadd.f32 0.0, %v7986
    %v7988 = vpop.f32.mrb[0].mxu0
    %v7989 = vadd.f32 0.0, %v7988
    %7990 = vdwg.mxu0
    %7991 = vmatprep.subr.bf16.mxu0 %v7688
    %7992 = vmatpush1.bf16.msra.mxu0 %v7687
    %7993 = vmatprep.subr.bf16.mxu0 %v7700
    %7994 = vmatpush1.bf16.msra.mxu0 %v7699
    %7995 = vmatprep.subr.bf16.mxu0 %v7774
    %7996 = vmatpush1.bf16.msra.mxu0 %v7771
    %7997 = vmatprep.subr.bf16.mxu0 0
    %7998 = vmatpush1.bf16.msra.mxu0 0
    %7999 = vmatprep.subr.bf16.mxu0 0
    %8000 = vmatpush1.bf16.msra.mxu0 0
    %8001 = vmatprep.subr.bf16.mxu0 0
    %8002 = vmatpush1.bf16.msra.mxu0 0
    %8003 = vmatprep.subr.bf16.mxu0 0
    %8004 = vmatpush1.bf16.msra.mxu0 0
    %8005 = vmatprep.subr.bf16.mxu0 0
    %8006 = vmatpush1.bf16.msra.mxu0 0
    %8007 = vmatprep.subr.bf16.mxu0 0
    %8008 = vmatpush1.bf16.msra.mxu0 0
    %8009 = vmatprep.subr.bf16.mxu0 0
    %8010 = vmatpush1.bf16.msra.mxu0 0
    %8011 = vmatprep.subr.bf16.mxu0 0
    %8012 = vmatpush1.bf16.msra.mxu0 0
    %8013 = vmatprep.subr.bf16.mxu0 0
    %8014 = vmatpush1.bf16.msra.mxu0 0
    %8015 = vmatprep.subr.bf16.mxu0 0
    %8016 = vmatpush1.bf16.msra.mxu0 0
    %8017 = vmatprep.subr.bf16.mxu0 0
    %8018 = vmatpush1.bf16.msra.mxu0 0
    %8019 = vmatprep.subr.bf16.mxu0 0
    %8020 = vmatpush1.bf16.msra.mxu0 0
    %8021 = vmatprep.subr.bf16.mxu0 0
    %8022 = vmatpush1.bf16.msra.mxu0 0
    %8023 = vmatprep.mubr.bf16.mxu0 0
    %8024 = vmatmul.mubr.bf16.gmra.mrb[0].mxu0 %v7738
    %v8025 = vpop.f32.mrb[0].mxu0
    %v8026 = vadd.f32 0.0, %v8025
    %v8027 = vpop.f32.mrb[0].mxu0
    %v8028 = vadd.f32 0.0, %v8027
    %v8029 = vpop.f32.mrb[0].mxu0
    %v8030 = vadd.f32 0.0, %v8029
    %v8031 = vpop.f32.mrb[0].mxu0
    %v8032 = vadd.f32 0.0, %v8031
    %8033 = vdwg.mxu0
    %v8034 = vadd.f32 %v7530, %v7811
    %v8035 = vadd.f32 %v7531, %v7813
    %v8036 = vadd.f32 %v7532, %v7854
    %v8037 = vadd.f32 %v7533, %v7856
    %v8038 = vadd.f32 %v7534, %v7897
    %v8039 = vadd.f32 %v7535, %v7899
    %v8040 = vadd.f32 %v7536, %v7940
    %v8041 = vadd.f32 %v7537, %v7942
    %v8042 = vadd.f32 %v7538, %v7983
    %v8043 = vadd.f32 %v7539, %v7985
    %v8044 = vadd.f32 %v7540, %v8026
    %v8045 = vadd.f32 %v7541, %v8028
    %v8046 = vadd.f32 %v7542, %v7815
    %v8047 = vadd.f32 %v7543, %v7817
    %v8048 = vadd.f32 %v7544, %v7858
    %v8049 = vadd.f32 %v7545, %v7860
    %v8050 = vadd.f32 %v7546, %v7901
    %v8051 = vadd.f32 %v7547, %v7903
    %v8052 = vadd.f32 %v7548, %v7944
    %v8053 = vadd.f32 %v7549, %v7946
    %v8054 = vadd.f32 %v7550, %v7987
    %v8055 = vadd.f32 %v7551, %v7989
    %v8056 = vadd.f32 %v7552, %v8030
    %v8057 = vadd.f32 %v7553, %v8032
    %v8058 = vld [vmem:[#allocation3] sm:$0xff]
    %v8059 = vld [vmem:[#allocation3 + $0x8] sm:$0xf]
    %v8062 = vlaneseq
    %v8063 = vshrl.u32 %v8062, 7
    %v8064 = vsub.s32 0, %v8063
    %v8065 = vrot.slane %v8058, %v8064
    %v8066 = vlaneseq
    %v8067 = vshrl.u32 %v8066, 7
    %v8068 = vsub.s32 1, %v8067
    %v8069 = vrot.slane %v8058, %v8068
    %v8070 = vlaneseq
    %v8071 = vshrl.u32 %v8070, 7
    %v8072 = vsub.s32 2, %v8071
    %v8073 = vrot.slane %v8058, %v8072
    %v8074 = vlaneseq
    %v8075 = vshrl.u32 %v8074, 7
    %v8076 = vsub.s32 3, %v8075
    %v8077 = vrot.slane %v8058, %v8076
    %v8078 = vlaneseq
    %v8079 = vshrl.u32 %v8078, 7
    %v8080 = vsub.s32 4, %v8079
    %v8081 = vrot.slane %v8058, %v8080
    %v8082 = vlaneseq
    %v8083 = vshrl.u32 %v8082, 7
    %v8084 = vsub.s32 5, %v8083
    %v8085 = vrot.slane %v8058, %v8084
    %v8086 = vlaneseq
    %v8087 = vshrl.u32 %v8086, 7
    %v8088 = vsub.s32 6, %v8087
    %v8089 = vrot.slane %v8058, %v8088
    %v8090 = vlaneseq
    %v8091 = vshrl.u32 %v8090, 7
    %v8092 = vsub.s32 7, %v8091
    %v8093 = vrot.slane %v8058, %v8092
    %v8094 = vlaneseq
    %v8095 = vshrl.u32 %v8094, 7
    %v8096 = vsub.s32 0, %v8095
    %v8097 = vrot.slane %v8059, %v8096
    %v8098 = vlaneseq
    %v8099 = vshrl.u32 %v8098, 7
    %v8100 = vsub.s32 1, %v8099
    %v8101 = vrot.slane %v8059, %v8100
    %v8102 = vlaneseq
    %v8103 = vshrl.u32 %v8102, 7
    %v8104 = vsub.s32 2, %v8103
    %v8105 = vrot.slane %v8059, %v8104
    %v8106 = vlaneseq
    %v8107 = vshrl.u32 %v8106, 7
    %v8108 = vsub.s32 3, %v8107
    %v8109 = vrot.slane %v8059, %v8108
    %v8122 = vadd.f32 %v8034, %v8065
    %v8123 = vadd.f32 %v8035, %v8069
    %v8124 = vadd.f32 %v8036, %v8073
    %v8125 = vadd.f32 %v8037, %v8077
    %v8126 = vadd.f32 %v8038, %v8081
    %v8127 = vadd.f32 %v8039, %v8085
    %v8128 = vadd.f32 %v8040, %v8089
    %v8129 = vadd.f32 %v8041, %v8093
    %v8130 = vadd.f32 %v8042, %v8097
    %v8131 = vadd.f32 %v8043, %v8101
    %v8132 = vadd.f32 %v8044, %v8105
    %v8133 = vadd.f32 %v8045, %v8109
    %v8134 = vadd.f32 %v8046, %v8065
    %v8135 = vadd.f32 %v8047, %v8069
    %v8136 = vadd.f32 %v8048, %v8073
    %v8137 = vadd.f32 %v8049, %v8077
    %v8138 = vadd.f32 %v8050, %v8081
    %v8139 = vadd.f32 %v8051, %v8085
    %v8140 = vadd.f32 %v8052, %v8089
    %v8141 = vadd.f32 %v8053, %v8093
    %v8142 = vadd.f32 %v8054, %v8097
    %v8143 = vadd.f32 %v8055, %v8101
    %v8144 = vadd.f32 %v8056, %v8105
    %v8145 = vadd.f32 %v8057, %v8109
    %v8146 = vmax.f32 %v8122, 0.0
    %v8147 = vmax.f32 %v8123, 0.0
    %v8148 = vmax.f32 %v8124, 0.0
    %v8149 = vmax.f32 %v8125, 0.0
    %v8150 = vmax.f32 %v8126, 0.0
    %v8151 = vmax.f32 %v8127, 0.0
    %v8152 = vmax.f32 %v8128, 0.0
    %v8153 = vmax.f32 %v8129, 0.0
    %v8154 = vmax.f32 %v8130, 0.0
    %v8155 = vmax.f32 %v8131, 0.0
    %v8156 = vmax.f32 %v8132, 0.0
    %v8157 = vmax.f32 %v8133, 0.0
    %v8158 = vmax.f32 %v8134, 0.0
    %v8159 = vmax.f32 %v8135, 0.0
    %v8160 = vmax.f32 %v8136, 0.0
    %v8161 = vmax.f32 %v8137, 0.0
    %v8162 = vmax.f32 %v8138, 0.0
    %v8163 = vmax.f32 %v8139, 0.0
    %v8164 = vmax.f32 %v8140, 0.0
    %v8165 = vmax.f32 %v8141, 0.0
    %v8166 = vmax.f32 %v8142, 0.0
    %v8167 = vmax.f32 %v8143, 0.0
    %v8168 = vmax.f32 %v8144, 0.0
    %v8169 = vmax.f32 %v8145, 0.0
    %v8170 = vmax.f32 %v8146, %v8149
    %v8171 = vmax.f32 %v8147, %v8150
    %v8172 = vmax.f32 %v8148, %v8151
    %v8173 = vmax.f32 %v8158, %v8161
    %v8174 = vmax.f32 %v8159, %v8162
    %v8175 = vmax.f32 %v8160, %v8163
    %v8176 = vmax.f32 %v8170, %v8152
    %v8177 = vmax.f32 %v8171, %v8153
    %v8178 = vmax.f32 %v8172, %v8154
    %v8179 = vmax.f32 %v8173, %v8164
    %v8180 = vmax.f32 %v8174, %v8165
    %v8181 = vmax.f32 %v8175, %v8166
    %v8182 = vmax.f32 %v8176, %v8155
    %v8183 = vmax.f32 %v8177, %v8156
    %v8184 = vmax.f32 %v8178, %v8157
    %v8185 = vmax.f32 %v8179, %v8167
    %v8186 = vmax.f32 %v8180, %v8168
    %v8187 = vmax.f32 %v8181, %v8169
    %v8191 = vrot.slane %v8182, 1
    %v8192 = vrot.slane %v8183, 1
    %v8193 = vrot.slane %v8184, 1
    %v8197 = vmax.f32 %v8182, %v8191
    %v8198 = vmax.f32 %v8183, %v8192
    %v8199 = vmax.f32 %v8184, %v8193
    %v8200 = vpack.c.bf16 %v8197, %v8197
    %v8201 = vpack.c.bf16 %v8198, %v8198
    %v8202 = vpack.c.bf16 %v8199, %v8199
    %v8203 = vld [vmem:[#allocation6] sm:$0xff]
    %v8204 = vld [vmem:[#allocation6 + $0x8] sm:$0xff]
    %v8205 = vld [vmem:[#allocation6 + $0x10] sm:$0xff]
    %v8206 = vld [vmem:[#allocation6 + $0x18] sm:$0xff]
    %v8207 = vld [vmem:[#allocation6 + $0x20] sm:$0xff]
    %v8208 = vld [vmem:[#allocation6 + $0x28] sm:$0xff]
    %v8209 = vld [vmem:[#allocation6 + $0x30] sm:$0xff]
    %v8210 = vld [vmem:[#allocation6 + $0x38] sm:$0xff]
    %v8211 = vld [vmem:[#allocation6 + $0x40] sm:$0xff]
    %v8212 = vld [vmem:[#allocation6 + $0x48] sm:$0xff]
    %v8213 = vld [vmem:[#allocation6 + $0x50] sm:$0xff]
    %v8214 = vld [vmem:[#allocation6 + $0x58] sm:$0xff]
    %v8215 = vld [vmem:[#allocation6 + $0x60] sm:$0xff]
    %v8216 = vld [vmem:[#allocation6 + $0x68] sm:$0xff]
    %v8217 = vld [vmem:[#allocation6 + $0x70] sm:$0xff]
    %v8218 = vld [vmem:[#allocation6 + $0x78] sm:$0xff]
    %v8219 = vld [vmem:[#allocation6 + $0x80] sm:$0xff]
    %v8220 = vld [vmem:[#allocation6 + $0x88] sm:$0xff]
    %v8221 = vld [vmem:[#allocation6 + $0x90] sm:$0xff]
    %v8222 = vld [vmem:[#allocation6 + $0x98] sm:$0xff]
    %v8223 = vld [vmem:[#allocation6 + $0xa0] sm:$0xff]
    %v8224 = vld [vmem:[#allocation6 + $0xa8] sm:$0xff]
    %v8225 = vld [vmem:[#allocation6 + $0xb0] sm:$0xff]
    %v8226 = vld [vmem:[#allocation6 + $0xb8] sm:$0xff]
    %v8227 = vld [vmem:[#allocation6 + $0xc0] sm:$0xff]
    %v8228 = vld [vmem:[#allocation6 + $0xc8] sm:$0xff]
    %v8229 = vld [vmem:[#allocation6 + $0xd0] sm:$0xff]
    %v8230 = vld [vmem:[#allocation6 + $0xd8] sm:$0xff]
    %v8231 = vld [vmem:[#allocation6 + $0xe0] sm:$0xff]
    %v8232 = vld [vmem:[#allocation6 + $0xe8] sm:$0xff]
    %v8233 = vld [vmem:[#allocation6 + $0xf0] sm:$0xff]
    %v8234 = vld [vmem:[#allocation6 + $0xf8] sm:$0xff]
    %v8235 = vld [vmem:[#allocation6 + $0x100] sm:$0xff]
    %v8236 = vld [vmem:[#allocation6 + $0x108] sm:$0xff]
    %v8237 = vld [vmem:[#allocation6 + $0x110] sm:$0xff]
    %v8238 = vld [vmem:[#allocation6 + $0x118] sm:$0xff]
    %v8239 = vld [vmem:[#allocation6 + $0x120] sm:$0xff]
    %v8240 = vld [vmem:[#allocation6 + $0x128] sm:$0xff]
    %v8241 = vld [vmem:[#allocation6 + $0x130] sm:$0xff]
    %v8242 = vld [vmem:[#allocation6 + $0x138] sm:$0xff]
    %v8243 = vld [vmem:[#allocation6 + $0x140] sm:$0xff]
    %v8244 = vld [vmem:[#allocation6 + $0x148] sm:$0xff]
    %v8245 = vld [vmem:[#allocation6 + $0x150] sm:$0xff]
    %v8246 = vld [vmem:[#allocation6 + $0x158] sm:$0xff]
    %v8247 = vld [vmem:[#allocation6 + $0x160] sm:$0xff]
    %v8248 = vld [vmem:[#allocation6 + $0x168] sm:$0xff]
    %v8249 = vld [vmem:[#allocation6 + $0x170] sm:$0xff]
    %v8250 = vld [vmem:[#allocation6 + $0x178] sm:$0xff]
    %v8251 = vld [vmem:[#allocation6 + $0x180] sm:$0xff]
    %v8252 = vld [vmem:[#allocation6 + $0x188] sm:$0xff]
    %v8253 = vld [vmem:[#allocation6 + $0x190] sm:$0xff]
    %v8254 = vld [vmem:[#allocation6 + $0x198] sm:$0xff]
    %v8255 = vld [vmem:[#allocation6 + $0x1a0] sm:$0xff]
    %v8256 = vld [vmem:[#allocation6 + $0x1a8] sm:$0xff]
    %v8257 = vld [vmem:[#allocation6 + $0x1b0] sm:$0xff]
    %v8258 = vld [vmem:[#allocation6 + $0x1b8] sm:$0xff]
    %v8259 = vld [vmem:[#allocation6 + $0x1c0] sm:$0xff]
    %v8260 = vld [vmem:[#allocation6 + $0x1c8] sm:$0xff]
    %v8261 = vld [vmem:[#allocation6 + $0x1d0] sm:$0xff]
    %v8262 = vld [vmem:[#allocation6 + $0x1d8] sm:$0xff]
    %v8263 = vld [vmem:[#allocation6 + $0x1e0] sm:$0xff]
    %v8264 = vld [vmem:[#allocation6 + $0x1e8] sm:$0xff]
    %v8265 = vld [vmem:[#allocation6 + $0x1f0] sm:$0xff]
    %v8266 = vld [vmem:[#allocation6 + $0x1f8] sm:$0xff]
    %v8267 = vld [vmem:[#allocation6 + $0x200] sm:$0xff]
    %v8268 = vld [vmem:[#allocation6 + $0x208] sm:$0xff]
    %v8269 = vld [vmem:[#allocation6 + $0x210] sm:$0xff]
    %v8270 = vld [vmem:[#allocation6 + $0x218] sm:$0xff]
    %v8271 = vld [vmem:[#allocation6 + $0x220] sm:$0xff]
    %v8272 = vld [vmem:[#allocation6 + $0x228] sm:$0xff]
    %v8273 = vld [vmem:[#allocation6 + $0x230] sm:$0xff]
    %v8274 = vld [vmem:[#allocation6 + $0x238] sm:$0xff]
    %v8275 = vld [vmem:[#allocation6 + $0x240] sm:$0xff]
    %v8276 = vld [vmem:[#allocation6 + $0x248] sm:$0xff]
    %v8277 = vld [vmem:[#allocation6 + $0x250] sm:$0xff]
    %v8278 = vld [vmem:[#allocation6 + $0x258] sm:$0xff]
    %v8279 = vld [vmem:[#allocation6 + $0x260] sm:$0xff]
    %v8280 = vld [vmem:[#allocation6 + $0x268] sm:$0xff]
    %v8281 = vld [vmem:[#allocation6 + $0x270] sm:$0xff]
    %v8282 = vld [vmem:[#allocation6 + $0x278] sm:$0xff]
    %v8283 = vld [vmem:[#allocation6 + $0x280] sm:$0xff]
    %v8284 = vld [vmem:[#allocation6 + $0x288] sm:$0xff]
    %v8285 = vld [vmem:[#allocation6 + $0x290] sm:$0xff]
    %v8286 = vld [vmem:[#allocation6 + $0x298] sm:$0xff]
    %v8287 = vld [vmem:[#allocation6 + $0x2a0] sm:$0xff]
    %v8288 = vld [vmem:[#allocation6 + $0x2a8] sm:$0xff]
    %v8289 = vld [vmem:[#allocation6 + $0x2b0] sm:$0xff]
    %v8290 = vld [vmem:[#allocation6 + $0x2b8] sm:$0xff]
    %v8291 = vld [vmem:[#allocation6 + $0x2c0] sm:$0xff]
    %v8292 = vld [vmem:[#allocation6 + $0x2c8] sm:$0xff]
    %v8293 = vld [vmem:[#allocation6 + $0x2d0] sm:$0xff]
    %v8294 = vld [vmem:[#allocation6 + $0x2d8] sm:$0xff]
    %v8295 = vld [vmem:[#allocation6 + $0x2e0] sm:$0xff]
    %v8296 = vld [vmem:[#allocation6 + $0x2e8] sm:$0xff]
    %v8297 = vld [vmem:[#allocation6 + $0x2f0] sm:$0xff]
    %v8298 = vld [vmem:[#allocation6 + $0x2f8] sm:$0xff]
    %v8299 = vld [vmem:[%s2369] sm:$0xff]
    %v8300 = vld [vmem:[%s2369 + $0x8] sm:$0xff]
    %v8301 = vld [vmem:[%s2369 + $0x10] sm:$0xff]
    %v8302 = vld [vmem:[%s2369 + $0x18] sm:$0xff]
    %v8303 = vld [vmem:[%s2369 + $0x20] sm:$0xff]
    %v8304 = vld [vmem:[%s2369 + $0x28] sm:$0xff]
    %v8305 = vld [vmem:[%s2369 + $0x30] sm:$0xff]
    %v8306 = vld [vmem:[%s2369 + $0x38] sm:$0xff]
    %v8307 = vld [vmem:[%s2369 + $0x40] sm:$0xff]
    %v8308 = vld [vmem:[%s2369 + $0x48] sm:$0xff]
    %v8309 = vld [vmem:[%s2369 + $0x50] sm:$0xff]
    %v8310 = vld [vmem:[%s2369 + $0x58] sm:$0xff]
    %v8311 = vld [vmem:[%s2369 + $0x60] sm:$0xff]
    %v8312 = vld [vmem:[%s2369 + $0x68] sm:$0xff]
    %v8313 = vld [vmem:[%s2369 + $0x70] sm:$0xff]
    %v8314 = vld [vmem:[%s2369 + $0x78] sm:$0xff]
    %v8315 = vld [vmem:[%s2369 + $0x80] sm:$0xff]
    %v8316 = vld [vmem:[%s2369 + $0x88] sm:$0xff]
    %v8317 = vld [vmem:[%s2369 + $0x90] sm:$0xff]
    %v8318 = vld [vmem:[%s2369 + $0x98] sm:$0xff]
    %v8319 = vld [vmem:[%s2369 + $0xa0] sm:$0xff]
    %v8320 = vld [vmem:[%s2369 + $0xa8] sm:$0xff]
    %v8321 = vld [vmem:[%s2369 + $0xb0] sm:$0xff]
    %v8322 = vld [vmem:[%s2369 + $0xb8] sm:$0xff]
    %v8323 = vld [vmem:[%s2369 + $0xc0] sm:$0xff]
    %v8324 = vld [vmem:[%s2369 + $0xc8] sm:$0xff]
    %v8325 = vld [vmem:[%s2369 + $0xd0] sm:$0xff]
    %v8326 = vld [vmem:[%s2369 + $0xd8] sm:$0xff]
    %v8327 = vld [vmem:[%s2369 + $0xe0] sm:$0xff]
    %v8328 = vld [vmem:[%s2369 + $0xe8] sm:$0xff]
    %v8329 = vld [vmem:[%s2369 + $0xf0] sm:$0xff]
    %v8330 = vld [vmem:[%s2369 + $0xf8] sm:$0xff]
    %v8331 = vld [vmem:[%s2369 + $0x100] sm:$0xff]
    %v8332 = vld [vmem:[%s2369 + $0x108] sm:$0xff]
    %v8333 = vld [vmem:[%s2369 + $0x110] sm:$0xff]
    %v8334 = vld [vmem:[%s2369 + $0x118] sm:$0xff]
    %v8335 = vld [vmem:[%s2369 + $0x120] sm:$0xff]
    %v8336 = vld [vmem:[%s2369 + $0x128] sm:$0xff]
    %v8337 = vld [vmem:[%s2369 + $0x130] sm:$0xff]
    %v8338 = vld [vmem:[%s2369 + $0x138] sm:$0xff]
    %v8339 = vld [vmem:[%s2369 + $0x140] sm:$0xff]
    %v8340 = vld [vmem:[%s2369 + $0x148] sm:$0xff]
    %v8341 = vld [vmem:[%s2369 + $0x150] sm:$0xff]
    %v8342 = vld [vmem:[%s2369 + $0x158] sm:$0xff]
    %v8343 = vld [vmem:[%s2369 + $0x160] sm:$0xff]
    %v8344 = vld [vmem:[%s2369 + $0x168] sm:$0xff]
    %v8345 = vld [vmem:[%s2369 + $0x170] sm:$0xff]
    %v8346 = vld [vmem:[%s2369 + $0x178] sm:$0xff]
    %v8347 = vld [vmem:[%s2369 + $0x180] sm:$0xff]
    %v8348 = vld [vmem:[%s2369 + $0x188] sm:$0xff]
    %v8349 = vld [vmem:[%s2369 + $0x190] sm:$0xff]
    %v8350 = vld [vmem:[%s2369 + $0x198] sm:$0xff]
    %v8351 = vld [vmem:[%s2369 + $0x1a0] sm:$0xff]
    %v8352 = vld [vmem:[%s2369 + $0x1a8] sm:$0xff]
    %v8353 = vld [vmem:[%s2369 + $0x1b0] sm:$0xff]
    %v8354 = vld [vmem:[%s2369 + $0x1b8] sm:$0xff]
    %v8355 = vld [vmem:[%s2369 + $0x1c0] sm:$0xff]
    %v8356 = vld [vmem:[%s2369 + $0x1c8] sm:$0xff]
    %v8357 = vld [vmem:[%s2369 + $0x1d0] sm:$0xff]
    %v8358 = vld [vmem:[%s2369 + $0x1d8] sm:$0xff]
    %v8359 = vld [vmem:[%s2369 + $0x1e0] sm:$0xff]
    %v8360 = vld [vmem:[%s2369 + $0x1e8] sm:$0xff]
    %v8361 = vld [vmem:[%s2369 + $0x1f0] sm:$0xff]
    %v8362 = vld [vmem:[%s2369 + $0x1f8] sm:$0xff]
    %v8363 = vld [vmem:[%s2369 + $0x200] sm:$0xff]
    %v8364 = vld [vmem:[%s2369 + $0x208] sm:$0xff]
    %v8365 = vld [vmem:[%s2369 + $0x210] sm:$0xff]
    %v8366 = vld [vmem:[%s2369 + $0x218] sm:$0xff]
    %v8367 = vld [vmem:[%s2369 + $0x220] sm:$0xff]
    %v8368 = vld [vmem:[%s2369 + $0x228] sm:$0xff]
    %v8369 = vld [vmem:[%s2369 + $0x230] sm:$0xff]
    %v8370 = vld [vmem:[%s2369 + $0x238] sm:$0xff]
    %v8371 = vld [vmem:[%s2369 + $0x240] sm:$0xff]
    %v8372 = vld [vmem:[%s2369 + $0x248] sm:$0xff]
    %v8373 = vld [vmem:[%s2369 + $0x250] sm:$0xff]
    %v8374 = vld [vmem:[%s2369 + $0x258] sm:$0xff]
    %v8375 = vld [vmem:[%s2369 + $0x260] sm:$0xff]
    %v8376 = vld [vmem:[%s2369 + $0x268] sm:$0xff]
    %v8377 = vld [vmem:[%s2369 + $0x270] sm:$0xff]
    %v8378 = vld [vmem:[%s2369 + $0x278] sm:$0xff]
    %v8379 = vld [vmem:[%s2369 + $0x280] sm:$0xff]
    %v8380 = vld [vmem:[%s2369 + $0x288] sm:$0xff]
    %v8381 = vld [vmem:[%s2369 + $0x290] sm:$0xff]
    %v8382 = vld [vmem:[%s2369 + $0x298] sm:$0xff]
    %v8383 = vld [vmem:[%s2369 + $0x2a0] sm:$0xff]
    %v8384 = vld [vmem:[%s2369 + $0x2a8] sm:$0xff]
    %v8385 = vld [vmem:[%s2369 + $0x2b0] sm:$0xff]
    %v8386 = vld [vmem:[%s2369 + $0x2b8] sm:$0xff]
    %v8387 = vld [vmem:[%s2369 + $0x2c0] sm:$0xff]
    %v8388 = vld [vmem:[%s2369 + $0x2c8] sm:$0xff]
    %v8389 = vld [vmem:[%s2369 + $0x2d0] sm:$0xff]
    %v8390 = vld [vmem:[%s2369 + $0x2d8] sm:$0xff]
    %v8391 = vld [vmem:[%s2369 + $0x2e0] sm:$0xff]
    %v8392 = vld [vmem:[%s2369 + $0x2e8] sm:$0xff]
    %v8393 = vld [vmem:[%s2369 + $0x2f0] sm:$0xff]
    %v8394 = vld [vmem:[%s2369 + $0x2f8] sm:$0xff]
    %v8398 = vrot.slane %v8200, 1
    %v8399 = vrot.slane %v8201, 1
    %v8400 = vrot.slane %v8202, 1
    %v8500 = vunpack.c.l.b16 %v8299
    %v8501 = vunpack.c.h.b16 %v8299
    %v8502 = vunpack.c.l.b16 %v8300
    %v8503 = vunpack.c.h.b16 %v8300
    %v8504 = vunpack.c.l.b16 %v8301
    %v8505 = vunpack.c.h.b16 %v8301
    %v8506 = vunpack.c.l.b16 %v8302
    %v8507 = vunpack.c.h.b16 %v8302
    %v8508 = vunpack.c.l.b16 %v8303
    %v8509 = vunpack.c.h.b16 %v8303
    %v8510 = vunpack.c.l.b16 %v8304
    %v8511 = vunpack.c.h.b16 %v8304
    %v8512 = vunpack.c.l.b16 %v8305
    %v8513 = vunpack.c.h.b16 %v8305
    %v8514 = vunpack.c.l.b16 %v8306
    %v8515 = vunpack.c.h.b16 %v8306
    %v8516 = vunpack.c.l.b16 %v8307
    %v8517 = vunpack.c.h.b16 %v8307
    %v8518 = vunpack.c.l.b16 %v8308
    %v8519 = vunpack.c.h.b16 %v8308
    %v8520 = vunpack.c.l.b16 %v8309
    %v8521 = vunpack.c.h.b16 %v8309
    %v8522 = vunpack.c.l.b16 %v8310
    %v8523 = vunpack.c.h.b16 %v8310
    %v8524 = vunpack.c.l.b16 %v8311
    %v8525 = vunpack.c.h.b16 %v8311
    %v8526 = vunpack.c.l.b16 %v8312
    %v8527 = vunpack.c.h.b16 %v8312
    %v8528 = vunpack.c.l.b16 %v8313
    %v8529 = vunpack.c.h.b16 %v8313
    %v8530 = vunpack.c.l.b16 %v8314
    %v8531 = vunpack.c.h.b16 %v8314
    %v8532 = vunpack.c.l.b16 %v8315
    %v8533 = vunpack.c.h.b16 %v8315
    %v8534 = vunpack.c.l.b16 %v8316
    %v8535 = vunpack.c.h.b16 %v8316
    %v8536 = vunpack.c.l.b16 %v8317
    %v8537 = vunpack.c.h.b16 %v8317
    %v8538 = vunpack.c.l.b16 %v8318
    %v8539 = vunpack.c.h.b16 %v8318
    %v8540 = vunpack.c.l.b16 %v8319
    %v8541 = vunpack.c.h.b16 %v8319
    %v8542 = vunpack.c.l.b16 %v8320
    %v8543 = vunpack.c.h.b16 %v8320
    %v8544 = vunpack.c.l.b16 %v8321
    %v8545 = vunpack.c.h.b16 %v8321
    %v8546 = vunpack.c.l.b16 %v8322
    %v8547 = vunpack.c.h.b16 %v8322
    %v8548 = vunpack.c.l.b16 %v8323
    %v8549 = vunpack.c.h.b16 %v8323
    %v8550 = vunpack.c.l.b16 %v8324
    %v8551 = vunpack.c.h.b16 %v8324
    %v8552 = vunpack.c.l.b16 %v8325
    %v8553 = vunpack.c.h.b16 %v8325
    %v8554 = vunpack.c.l.b16 %v8326
    %v8555 = vunpack.c.h.b16 %v8326
    %v8556 = vunpack.c.l.b16 %v8327
    %v8557 = vunpack.c.h.b16 %v8327
    %v8558 = vunpack.c.l.b16 %v8328
    %v8559 = vunpack.c.h.b16 %v8328
    %v8560 = vunpack.c.l.b16 %v8329
    %v8561 = vunpack.c.h.b16 %v8329
    %v8562 = vunpack.c.l.b16 %v8330
    %v8563 = vunpack.c.h.b16 %v8330
    %v8564 = vunpack.c.l.b16 %v8331
    %v8565 = vunpack.c.h.b16 %v8331
    %v8566 = vunpack.c.l.b16 %v8332
    %v8567 = vunpack.c.h.b16 %v8332
    %v8568 = vunpack.c.l.b16 %v8333
    %v8569 = vunpack.c.h.b16 %v8333
    %v8570 = vunpack.c.l.b16 %v8334
    %v8571 = vunpack.c.h.b16 %v8334
    %v8572 = vunpack.c.l.b16 %v8335
    %v8573 = vunpack.c.h.b16 %v8335
    %v8574 = vunpack.c.l.b16 %v8336
    %v8575 = vunpack.c.h.b16 %v8336
    %v8576 = vunpack.c.l.b16 %v8337
    %v8577 = vunpack.c.h.b16 %v8337
    %v8578 = vunpack.c.l.b16 %v8338
    %v8579 = vunpack.c.h.b16 %v8338
    %v8580 = vunpack.c.l.b16 %v8339
    %v8581 = vunpack.c.h.b16 %v8339
    %v8582 = vunpack.c.l.b16 %v8340
    %v8583 = vunpack.c.h.b16 %v8340
    %v8584 = vunpack.c.l.b16 %v8341
    %v8585 = vunpack.c.h.b16 %v8341
    %v8586 = vunpack.c.l.b16 %v8342
    %v8587 = vunpack.c.h.b16 %v8342
    %v8588 = vunpack.c.l.b16 %v8343
    %v8589 = vunpack.c.h.b16 %v8343
    %v8590 = vunpack.c.l.b16 %v8344
    %v8591 = vunpack.c.h.b16 %v8344
    %v8592 = vunpack.c.l.b16 %v8345
    %v8593 = vunpack.c.h.b16 %v8345
    %v8594 = vunpack.c.l.b16 %v8346
    %v8595 = vunpack.c.h.b16 %v8346
    %v8596 = vunpack.c.l.b16 %v8347
    %v8597 = vunpack.c.h.b16 %v8347
    %v8598 = vunpack.c.l.b16 %v8348
    %v8599 = vunpack.c.h.b16 %v8348
    %v8600 = vunpack.c.l.b16 %v8349
    %v8601 = vunpack.c.h.b16 %v8349
    %v8602 = vunpack.c.l.b16 %v8350
    %v8603 = vunpack.c.h.b16 %v8350
    %v8604 = vunpack.c.l.b16 %v8351
    %v8605 = vunpack.c.h.b16 %v8351
    %v8606 = vunpack.c.l.b16 %v8352
    %v8607 = vunpack.c.h.b16 %v8352
    %v8608 = vunpack.c.l.b16 %v8353
    %v8609 = vunpack.c.h.b16 %v8353
    %v8610 = vunpack.c.l.b16 %v8354
    %v8611 = vunpack.c.h.b16 %v8354
    %v8612 = vunpack.c.l.b16 %v8355
    %v8613 = vunpack.c.h.b16 %v8355
    %v8614 = vunpack.c.l.b16 %v8356
    %v8615 = vunpack.c.h.b16 %v8356
    %v8616 = vunpack.c.l.b16 %v8357
    %v8617 = vunpack.c.h.b16 %v8357
    %v8618 = vunpack.c.l.b16 %v8358
    %v8619 = vunpack.c.h.b16 %v8358
    %v8620 = vunpack.c.l.b16 %v8359
    %v8621 = vunpack.c.h.b16 %v8359
    %v8622 = vunpack.c.l.b16 %v8360
    %v8623 = vunpack.c.h.b16 %v8360
    %v8624 = vunpack.c.l.b16 %v8361
    %v8625 = vunpack.c.h.b16 %v8361
    %v8626 = vunpack.c.l.b16 %v8362
    %v8627 = vunpack.c.h.b16 %v8362
    %v8628 = vunpack.c.l.b16 %v8363
    %v8629 = vunpack.c.h.b16 %v8363
    %v8630 = vunpack.c.l.b16 %v8364
    %v8631 = vunpack.c.h.b16 %v8364
    %v8632 = vunpack.c.l.b16 %v8365
    %v8633 = vunpack.c.h.b16 %v8365
    %v8634 = vunpack.c.l.b16 %v8366
    %v8635 = vunpack.c.h.b16 %v8366
    %v8636 = vunpack.c.l.b16 %v8367
    %v8637 = vunpack.c.h.b16 %v8367
    %v8638 = vunpack.c.l.b16 %v8368
    %v8639 = vunpack.c.h.b16 %v8368
    %v8640 = vunpack.c.l.b16 %v8369
    %v8641 = vunpack.c.h.b16 %v8369
    %v8642 = vunpack.c.l.b16 %v8370
    %v8643 = vunpack.c.h.b16 %v8370
    %v8644 = vunpack.c.l.b16 %v8371
    %v8645 = vunpack.c.h.b16 %v8371
    %v8646 = vunpack.c.l.b16 %v8372
    %v8647 = vunpack.c.h.b16 %v8372
    %v8648 = vunpack.c.l.b16 %v8373
    %v8649 = vunpack.c.h.b16 %v8373
    %v8650 = vunpack.c.l.b16 %v8374
    %v8651 = vunpack.c.h.b16 %v8374
    %v8652 = vunpack.c.l.b16 %v8375
    %v8653 = vunpack.c.h.b16 %v8375
    %v8654 = vunpack.c.l.b16 %v8376
    %v8655 = vunpack.c.h.b16 %v8376
    %v8656 = vunpack.c.l.b16 %v8377
    %v8657 = vunpack.c.h.b16 %v8377
    %v8658 = vunpack.c.l.b16 %v8378
    %v8659 = vunpack.c.h.b16 %v8378
    %v8660 = vunpack.c.l.b16 %v8379
    %v8661 = vunpack.c.h.b16 %v8379
    %v8662 = vunpack.c.l.b16 %v8380
    %v8663 = vunpack.c.h.b16 %v8380
    %v8664 = vunpack.c.l.b16 %v8381
    %v8665 = vunpack.c.h.b16 %v8381
    %v8666 = vunpack.c.l.b16 %v8382
    %v8667 = vunpack.c.h.b16 %v8382
    %v8668 = vunpack.c.l.b16 %v8383
    %v8669 = vunpack.c.h.b16 %v8383
    %v8670 = vunpack.c.l.b16 %v8384
    %v8671 = vunpack.c.h.b16 %v8384
    %v8672 = vunpack.c.l.b16 %v8385
    %v8673 = vunpack.c.h.b16 %v8385
    %v8674 = vunpack.c.l.b16 %v8386
    %v8675 = vunpack.c.h.b16 %v8386
    %v8676 = vunpack.c.l.b16 %v8387
    %v8677 = vunpack.c.h.b16 %v8387
    %v8678 = vunpack.c.l.b16 %v8388
    %v8679 = vunpack.c.h.b16 %v8388
    %v8680 = vunpack.c.l.b16 %v8389
    %v8681 = vunpack.c.h.b16 %v8389
    %v8682 = vunpack.c.l.b16 %v8390
    %v8683 = vunpack.c.h.b16 %v8390
    %v8684 = vunpack.c.l.b16 %v8391
    %v8685 = vunpack.c.h.b16 %v8391
    %v8686 = vunpack.c.l.b16 %v8392
    %v8687 = vunpack.c.h.b16 %v8392
    %v8688 = vunpack.c.l.b16 %v8393
    %v8689 = vunpack.c.h.b16 %v8393
    %v8690 = vunpack.c.l.b16 %v8394
    %v8691 = vunpack.c.h.b16 %v8394
    %v8692 = vpack.c.b16 %v8504, %v8500
    %v8693 = vpack.c.b16 %v8505, %v8501
    %v8694 = vpack.c.b16 %v8506, %v8502
    %v8695 = vpack.c.b16 %v8507, %v8503
    %v8696 = vpack.c.b16 %v8512, %v8508
    %v8697 = vpack.c.b16 %v8513, %v8509
    %v8698 = vpack.c.b16 %v8514, %v8510
    %v8699 = vpack.c.b16 %v8515, %v8511
    %v8700 = vpack.c.b16 %v8520, %v8516
    %v8701 = vpack.c.b16 %v8521, %v8517
    %v8702 = vpack.c.b16 %v8522, %v8518
    %v8703 = vpack.c.b16 %v8523, %v8519
    %v8704 = vpack.c.b16 %v8528, %v8524
    %v8705 = vpack.c.b16 %v8529, %v8525
    %v8706 = vpack.c.b16 %v8530, %v8526
    %v8707 = vpack.c.b16 %v8531, %v8527
    %v8708 = vpack.c.b16 %v8536, %v8532
    %v8709 = vpack.c.b16 %v8537, %v8533
    %v8710 = vpack.c.b16 %v8538, %v8534
    %v8711 = vpack.c.b16 %v8539, %v8535
    %v8712 = vpack.c.b16 %v8544, %v8540
    %v8713 = vpack.c.b16 %v8545, %v8541
    %v8714 = vpack.c.b16 %v8546, %v8542
    %v8715 = vpack.c.b16 %v8547, %v8543
    %v8716 = vpack.c.b16 %v8552, %v8548
    %v8717 = vpack.c.b16 %v8553, %v8549
    %v8718 = vpack.c.b16 %v8554, %v8550
    %v8719 = vpack.c.b16 %v8555, %v8551
    %v8720 = vpack.c.b16 %v8560, %v8556
    %v8721 = vpack.c.b16 %v8561, %v8557
    %v8722 = vpack.c.b16 %v8562, %v8558
    %v8723 = vpack.c.b16 %v8563, %v8559
    %v8724 = vpack.c.b16 %v8568, %v8564
    %v8725 = vpack.c.b16 %v8569, %v8565
    %v8726 = vpack.c.b16 %v8570, %v8566
    %v8727 = vpack.c.b16 %v8571, %v8567
    %v8728 = vpack.c.b16 %v8576, %v8572
    %v8729 = vpack.c.b16 %v8577, %v8573
    %v8730 = vpack.c.b16 %v8578, %v8574
    %v8731 = vpack.c.b16 %v8579, %v8575
    %v8732 = vpack.c.b16 %v8584, %v8580
    %v8733 = vpack.c.b16 %v8585, %v8581
    %v8734 = vpack.c.b16 %v8586, %v8582
    %v8735 = vpack.c.b16 %v8587, %v8583
    %v8736 = vpack.c.b16 %v8592, %v8588
    %v8737 = vpack.c.b16 %v8593, %v8589
    %v8738 = vpack.c.b16 %v8594, %v8590
    %v8739 = vpack.c.b16 %v8595, %v8591
    %v8740 = vpack.c.b16 %v8600, %v8596
    %v8741 = vpack.c.b16 %v8601, %v8597
    %v8742 = vpack.c.b16 %v8602, %v8598
    %v8743 = vpack.c.b16 %v8603, %v8599
    %v8744 = vpack.c.b16 %v8608, %v8604
    %v8745 = vpack.c.b16 %v8609, %v8605
    %v8746 = vpack.c.b16 %v8610, %v8606
    %v8747 = vpack.c.b16 %v8611, %v8607
    %v8748 = vpack.c.b16 %v8616, %v8612
    %v8749 = vpack.c.b16 %v8617, %v8613
    %v8750 = vpack.c.b16 %v8618, %v8614
    %v8751 = vpack.c.b16 %v8619, %v8615
    %v8752 = vpack.c.b16 %v8624, %v8620
    %v8753 = vpack.c.b16 %v8625, %v8621
    %v8754 = vpack.c.b16 %v8626, %v8622
    %v8755 = vpack.c.b16 %v8627, %v8623
    %v8756 = vpack.c.b16 %v8632, %v8628
    %v8757 = vpack.c.b16 %v8633, %v8629
    %v8758 = vpack.c.b16 %v8634, %v8630
    %v8759 = vpack.c.b16 %v8635, %v8631
    %v8760 = vpack.c.b16 %v8640, %v8636
    %v8761 = vpack.c.b16 %v8641, %v8637
    %v8762 = vpack.c.b16 %v8642, %v8638
    %v8763 = vpack.c.b16 %v8643, %v8639
    %v8764 = vpack.c.b16 %v8648, %v8644
    %v8765 = vpack.c.b16 %v8649, %v8645
    %v8766 = vpack.c.b16 %v8650, %v8646
    %v8767 = vpack.c.b16 %v8651, %v8647
    %v8768 = vpack.c.b16 %v8656, %v8652
    %v8769 = vpack.c.b16 %v8657, %v8653
    %v8770 = vpack.c.b16 %v8658, %v8654
    %v8771 = vpack.c.b16 %v8659, %v8655
    %v8772 = vpack.c.b16 %v8664, %v8660
    %v8773 = vpack.c.b16 %v8665, %v8661
    %v8774 = vpack.c.b16 %v8666, %v8662
    %v8775 = vpack.c.b16 %v8667, %v8663
    %v8776 = vpack.c.b16 %v8672, %v8668
    %v8777 = vpack.c.b16 %v8673, %v8669
    %v8778 = vpack.c.b16 %v8674, %v8670
    %v8779 = vpack.c.b16 %v8675, %v8671
    %v8780 = vpack.c.b16 %v8680, %v8676
    %v8781 = vpack.c.b16 %v8681, %v8677
    %v8782 = vpack.c.b16 %v8682, %v8678
    %v8783 = vpack.c.b16 %v8683, %v8679
    %v8784 = vpack.c.b16 %v8688, %v8684
    %v8785 = vpack.c.b16 %v8689, %v8685
    %v8786 = vpack.c.b16 %v8690, %v8686
    %v8787 = vpack.c.b16 %v8691, %v8687
    %8884 = vmatprep.subr.bf16.mxu0 %v8693
    %8885 = vmatpush1.bf16.msra.mxu0 %v8692
    %8886 = vmatprep.subr.bf16.mxu0 %v8697
    %8887 = vmatpush1.bf16.msra.mxu0 %v8696
    %8888 = vmatprep.subr.bf16.mxu0 %v8701
    %8889 = vmatpush1.bf16.msra.mxu0 %v8700
    %8890 = vmatprep.subr.bf16.mxu0 %v8705
    %8891 = vmatpush1.bf16.msra.mxu0 %v8704
    %8892 = vmatprep.subr.bf16.mxu0 %v8709
    %8893 = vmatpush1.bf16.msra.mxu0 %v8708
    %8894 = vmatprep.subr.bf16.mxu0 %v8713
    %8895 = vmatpush1.bf16.msra.mxu0 %v8712
    %8896 = vmatprep.subr.bf16.mxu0 %v8717
    %8897 = vmatpush1.bf16.msra.mxu0 %v8716
    %8898 = vmatprep.subr.bf16.mxu0 %v8721
    %8899 = vmatpush1.bf16.msra.mxu0 %v8720
    %8900 = vmatprep.subr.bf16.mxu0 %v8725
    %8901 = vmatpush1.bf16.msra.mxu0 %v8724
    %8902 = vmatprep.subr.bf16.mxu0 %v8729
    %8903 = vmatpush1.bf16.msra.mxu0 %v8728
    %8904 = vmatprep.subr.bf16.mxu0 %v8733
    %8905 = vmatpush1.bf16.msra.mxu0 %v8732
    %8906 = vmatprep.subr.bf16.mxu0 %v8737
    %8907 = vmatpush1.bf16.msra.mxu0 %v8736
    %8908 = vmatprep.subr.bf16.mxu0 %v8741
    %8909 = vmatpush1.bf16.msra.mxu0 %v8740
    %8910 = vmatprep.subr.bf16.mxu0 %v8745
    %8911 = vmatpush1.bf16.msra.mxu0 %v8744
    %8912 = vmatprep.subr.bf16.mxu0 %v8749
    %8913 = vmatpush1.bf16.msra.mxu0 %v8748
    %8914 = vmatprep.subr.bf16.mxu0 %v8753
    %8915 = vmatpush1.bf16.msra.mxu0 %v8752
    %8916 = vmatprep.mubr.bf16.mxu0 %v8399
    %8917 = vmatmul.mubr.bf16.gmra.mrb[0].mxu0 %v8398
    %v8918 = vpop.f32.mrb[0].mxu0
    %v8919 = vadd.f32 0.0, %v8918
    %v8920 = vpop.f32.mrb[0].mxu0
    %v8921 = vadd.f32 0.0, %v8920
    %v8922 = vpop.f32.mrb[0].mxu0
    %v8923 = vpop.f32.mrb[0].mxu0
    %8924 = vdwg.mxu0
    %8925 = vmatprep.subr.bf16.mxu0 %v8757
    %8926 = vmatpush1.bf16.msra.mxu0 %v8756
    %8927 = vmatprep.subr.bf16.mxu0 %v8761
    %8928 = vmatpush1.bf16.msra.mxu0 %v8760
    %8929 = vmatprep.subr.bf16.mxu0 %v8765
    %8930 = vmatpush1.bf16.msra.mxu0 %v8764
    %8931 = vmatprep.subr.bf16.mxu0 %v8769
    %8932 = vmatpush1.bf16.msra.mxu0 %v8768
    %8933 = vmatprep.subr.bf16.mxu0 %v8773
    %8934 = vmatpush1.bf16.msra.mxu0 %v8772
    %8935 = vmatprep.subr.bf16.mxu0 %v8777
    %8936 = vmatpush1.bf16.msra.mxu0 %v8776
    %8937 = vmatprep.subr.bf16.mxu0 %v8781
    %8938 = vmatpush1.bf16.msra.mxu0 %v8780
    %8939 = vmatprep.subr.bf16.mxu0 %v8785
    %8940 = vmatpush1.bf16.msra.mxu0 %v8784
    %8941 = vmatprep.subr.bf16.mxu0 0
    %8942 = vmatpush1.bf16.msra.mxu0 0
    %8943 = vmatprep.subr.bf16.mxu0 0
    %8944 = vmatpush1.bf16.msra.mxu0 0
    %8945 = vmatprep.subr.bf16.mxu0 0
    %8946 = vmatpush1.bf16.msra.mxu0 0
    %8947 = vmatprep.subr.bf16.mxu0 0
    %8948 = vmatpush1.bf16.msra.mxu0 0
    %8949 = vmatprep.subr.bf16.mxu0 0
    %8950 = vmatpush1.bf16.msra.mxu0 0
    %8951 = vmatprep.subr.bf16.mxu0 0
    %8952 = vmatpush1.bf16.msra.mxu0 0
    %8953 = vmatprep.subr.bf16.mxu0 0
    %8954 = vmatpush1.bf16.msra.mxu0 0
    %8955 = vmatprep.subr.bf16.mxu0 0
    %8956 = vmatpush1.bf16.msra.mxu0 0
    %8957 = vmatprep.mubr.bf16.mxu0 0
    %8958 = vmatmul.mubr.bf16.gmra.mrb[0].mxu0 %v8400
    %v8959 = vpop.f32.mrb[0].mxu0
    %v8960 = vadd.f32 %v8919, %v8959
    %v8961 = vpop.f32.mrb[0].mxu0
    %v8962 = vadd.f32 %v8921, %v8961
    %v8963 = vpop.f32.mrb[0].mxu0
    %v8964 = vpop.f32.mrb[0].mxu0
    %8965 = vdwg.mxu0
    %8966 = vmatprep.subr.bf16.mxu0 %v8695
    %8967 = vmatpush1.bf16.msra.mxu0 %v8694
    %8968 = vmatprep.subr.bf16.mxu0 %v8699
    %8969 = vmatpush1.bf16.msra.mxu0 %v8698
    %8970 = vmatprep.subr.bf16.mxu0 %v8703
    %8971 = vmatpush1.bf16.msra.mxu0 %v8702
    %8972 = vmatprep.subr.bf16.mxu0 %v8707
    %8973 = vmatpush1.bf16.msra.mxu0 %v8706
    %8974 = vmatprep.subr.bf16.mxu0 %v8711
    %8975 = vmatpush1.bf16.msra.mxu0 %v8710
    %8976 = vmatprep.subr.bf16.mxu0 %v8715
    %8977 = vmatpush1.bf16.msra.mxu0 %v8714
    %8978 = vmatprep.subr.bf16.mxu0 %v8719
    %8979 = vmatpush1.bf16.msra.mxu0 %v8718
    %8980 = vmatprep.subr.bf16.mxu0 %v8723
    %8981 = vmatpush1.bf16.msra.mxu0 %v8722
    %8982 = vmatprep.subr.bf16.mxu0 %v8727
    %8983 = vmatpush1.bf16.msra.mxu0 %v8726
    %8984 = vmatprep.subr.bf16.mxu0 %v8731
    %8985 = vmatpush1.bf16.msra.mxu0 %v8730
    %8986 = vmatprep.subr.bf16.mxu0 %v8735
    %8987 = vmatpush1.bf16.msra.mxu0 %v8734
    %8988 = vmatprep.subr.bf16.mxu0 %v8739
    %8989 = vmatpush1.bf16.msra.mxu0 %v8738
    %8990 = vmatprep.subr.bf16.mxu0 %v8743
    %8991 = vmatpush1.bf16.msra.mxu0 %v8742
    %8992 = vmatprep.subr.bf16.mxu0 %v8747
    %8993 = vmatpush1.bf16.msra.mxu0 %v8746
    %8994 = vmatprep.subr.bf16.mxu0 %v8751
    %8995 = vmatpush1.bf16.msra.mxu0 %v8750
    %8996 = vmatprep.subr.bf16.mxu0 %v8755
    %8997 = vmatpush1.bf16.msra.mxu0 %v8754
    %8998 = vmatprep.mubr.bf16.mxu0 %v8399
    %8999 = vmatmul.mubr.bf16.gmra.mrb[0].mxu0 %v8398
    %v9000 = vpop.f32.mrb[0].mxu0
    %v9001 = vadd.f32 0.0, %v9000
    %v9002 = vpop.f32.mrb[0].mxu0
    %v9003 = vadd.f32 0.0, %v9002
    %v9004 = vpop.f32.mrb[0].mxu0
    %v9005 = vpop.f32.mrb[0].mxu0
    %9006 = vdwg.mxu0
    %9007 = vmatprep.subr.bf16.mxu0 %v8759
    %9008 = vmatpush1.bf16.msra.mxu0 %v8758
    %9009 = vmatprep.subr.bf16.mxu0 %v8763
    %9010 = vmatpush1.bf16.msra.mxu0 %v8762
    %9011 = vmatprep.subr.bf16.mxu0 %v8767
    %9012 = vmatpush1.bf16.msra.mxu0 %v8766
    %9013 = vmatprep.subr.bf16.mxu0 %v8771
    %9014 = vmatpush1.bf16.msra.mxu0 %v8770
    %9015 = vmatprep.subr.bf16.mxu0 %v8775
    %9016 = vmatpush1.bf16.msra.mxu0 %v8774
    %9017 = vmatprep.subr.bf16.mxu0 %v8779
    %9018 = vmatpush1.bf16.msra.mxu0 %v8778
    %9019 = vmatprep.subr.bf16.mxu0 %v8783
    %9020 = vmatpush1.bf16.msra.mxu0 %v8782
    %9021 = vmatprep.subr.bf16.mxu0 %v8787
    %9022 = vmatpush1.bf16.msra.mxu0 %v8786
    %9023 = vmatprep.subr.bf16.mxu0 0
    %9024 = vmatpush1.bf16.msra.mxu0 0
    %9025 = vmatprep.subr.bf16.mxu0 0
    %9026 = vmatpush1.bf16.msra.mxu0 0
    %9027 = vmatprep.subr.bf16.mxu0 0
    %9028 = vmatpush1.bf16.msra.mxu0 0
    %9029 = vmatprep.subr.bf16.mxu0 0
    %9030 = vmatpush1.bf16.msra.mxu0 0
    %9031 = vmatprep.subr.bf16.mxu0 0
    %9032 = vmatpush1.bf16.msra.mxu0 0
    %9033 = vmatprep.subr.bf16.mxu0 0
    %9034 = vmatpush1.bf16.msra.mxu0 0
    %9035 = vmatprep.subr.bf16.mxu0 0
    %9036 = vmatpush1.bf16.msra.mxu0 0
    %9037 = vmatprep.subr.bf16.mxu0 0
    %9038 = vmatpush1.bf16.msra.mxu0 0
    %9039 = vmatprep.mubr.bf16.mxu0 0
    %9040 = vmatmul.mubr.bf16.gmra.mrb[0].mxu0 %v8400
    %v9041 = vpop.f32.mrb[0].mxu0
    %v9042 = vadd.f32 %v9001, %v9041
    %v9043 = vpop.f32.mrb[0].mxu0
    %v9044 = vadd.f32 %v9003, %v9043
    %v9045 = vpop.f32.mrb[0].mxu0
    %v9046 = vpop.f32.mrb[0].mxu0
    %9047 = vdwg.mxu0
    %v9144 = vunpack.c.l.b16 %v8203
    %v9145 = vunpack.c.h.b16 %v8203
    %v9146 = vunpack.c.l.b16 %v8204
    %v9147 = vunpack.c.h.b16 %v8204
    %v9148 = vunpack.c.l.b16 %v8205
    %v9149 = vunpack.c.h.b16 %v8205
    %v9150 = vunpack.c.l.b16 %v8206
    %v9151 = vunpack.c.h.b16 %v8206
    %v9152 = vunpack.c.l.b16 %v8207
    %v9153 = vunpack.c.h.b16 %v8207
    %v9154 = vunpack.c.l.b16 %v8208
    %v9155 = vunpack.c.h.b16 %v8208
    %v9156 = vunpack.c.l.b16 %v8209
    %v9157 = vunpack.c.h.b16 %v8209
    %v9158 = vunpack.c.l.b16 %v8210
    %v9159 = vunpack.c.h.b16 %v8210
    %v9160 = vunpack.c.l.b16 %v8211
    %v9161 = vunpack.c.h.b16 %v8211
    %v9162 = vunpack.c.l.b16 %v8212
    %v9163 = vunpack.c.h.b16 %v8212
    %v9164 = vunpack.c.l.b16 %v8213
    %v9165 = vunpack.c.h.b16 %v8213
    %v9166 = vunpack.c.l.b16 %v8214
    %v9167 = vunpack.c.h.b16 %v8214
    %v9168 = vunpack.c.l.b16 %v8215
    %v9169 = vunpack.c.h.b16 %v8215
    %v9170 = vunpack.c.l.b16 %v8216
    %v9171 = vunpack.c.h.b16 %v8216
    %v9172 = vunpack.c.l.b16 %v8217
    %v9173 = vunpack.c.h.b16 %v8217
    %v9174 = vunpack.c.l.b16 %v8218
    %v9175 = vunpack.c.h.b16 %v8218
    %v9176 = vunpack.c.l.b16 %v8219
    %v9177 = vunpack.c.h.b16 %v8219
    %v9178 = vunpack.c.l.b16 %v8220
    %v9179 = vunpack.c.h.b16 %v8220
    %v9180 = vunpack.c.l.b16 %v8221
    %v9181 = vunpack.c.h.b16 %v8221
    %v9182 = vunpack.c.l.b16 %v8222
    %v9183 = vunpack.c.h.b16 %v8222
    %v9184 = vunpack.c.l.b16 %v8223
    %v9185 = vunpack.c.h.b16 %v8223
    %v9186 = vunpack.c.l.b16 %v8224
    %v9187 = vunpack.c.h.b16 %v8224
    %v9188 = vunpack.c.l.b16 %v8225
    %v9189 = vunpack.c.h.b16 %v8225
    %v9190 = vunpack.c.l.b16 %v8226
    %v9191 = vunpack.c.h.b16 %v8226
    %v9192 = vunpack.c.l.b16 %v8227
    %v9193 = vunpack.c.h.b16 %v8227
    %v9194 = vunpack.c.l.b16 %v8228
    %v9195 = vunpack.c.h.b16 %v8228
    %v9196 = vunpack.c.l.b16 %v8229
    %v9197 = vunpack.c.h.b16 %v8229
    %v9198 = vunpack.c.l.b16 %v8230
    %v9199 = vunpack.c.h.b16 %v8230
    %v9200 = vunpack.c.l.b16 %v8231
    %v9201 = vunpack.c.h.b16 %v8231
    %v9202 = vunpack.c.l.b16 %v8232
    %v9203 = vunpack.c.h.b16 %v8232
    %v9204 = vunpack.c.l.b16 %v8233
    %v9205 = vunpack.c.h.b16 %v8233
    %v9206 = vunpack.c.l.b16 %v8234
    %v9207 = vunpack.c.h.b16 %v8234
    %v9208 = vunpack.c.l.b16 %v8235
    %v9209 = vunpack.c.h.b16 %v8235
    %v9210 = vunpack.c.l.b16 %v8236
    %v9211 = vunpack.c.h.b16 %v8236
    %v9212 = vunpack.c.l.b16 %v8237
    %v9213 = vunpack.c.h.b16 %v8237
    %v9214 = vunpack.c.l.b16 %v8238
    %v9215 = vunpack.c.h.b16 %v8238
    %v9216 = vunpack.c.l.b16 %v8239
    %v9217 = vunpack.c.h.b16 %v8239
    %v9218 = vunpack.c.l.b16 %v8240
    %v9219 = vunpack.c.h.b16 %v8240
    %v9220 = vunpack.c.l.b16 %v8241
    %v9221 = vunpack.c.h.b16 %v8241
    %v9222 = vunpack.c.l.b16 %v8242
    %v9223 = vunpack.c.h.b16 %v8242
    %v9224 = vunpack.c.l.b16 %v8243
    %v9225 = vunpack.c.h.b16 %v8243
    %v9226 = vunpack.c.l.b16 %v8244
    %v9227 = vunpack.c.h.b16 %v8244
    %v9228 = vunpack.c.l.b16 %v8245
    %v9229 = vunpack.c.h.b16 %v8245
    %v9230 = vunpack.c.l.b16 %v8246
    %v9231 = vunpack.c.h.b16 %v8246
    %v9232 = vunpack.c.l.b16 %v8247
    %v9233 = vunpack.c.h.b16 %v8247
    %v9234 = vunpack.c.l.b16 %v8248
    %v9235 = vunpack.c.h.b16 %v8248
    %v9236 = vunpack.c.l.b16 %v8249
    %v9237 = vunpack.c.h.b16 %v8249
    %v9238 = vunpack.c.l.b16 %v8250
    %v9239 = vunpack.c.h.b16 %v8250
    %v9240 = vunpack.c.l.b16 %v8251
    %v9241 = vunpack.c.h.b16 %v8251
    %v9242 = vunpack.c.l.b16 %v8252
    %v9243 = vunpack.c.h.b16 %v8252
    %v9244 = vunpack.c.l.b16 %v8253
    %v9245 = vunpack.c.h.b16 %v8253
    %v9246 = vunpack.c.l.b16 %v8254
    %v9247 = vunpack.c.h.b16 %v8254
    %v9248 = vunpack.c.l.b16 %v8255
    %v9249 = vunpack.c.h.b16 %v8255
    %v9250 = vunpack.c.l.b16 %v8256
    %v9251 = vunpack.c.h.b16 %v8256
    %v9252 = vunpack.c.l.b16 %v8257
    %v9253 = vunpack.c.h.b16 %v8257
    %v9254 = vunpack.c.l.b16 %v8258
    %v9255 = vunpack.c.h.b16 %v8258
    %v9256 = vunpack.c.l.b16 %v8259
    %v9257 = vunpack.c.h.b16 %v8259
    %v9258 = vunpack.c.l.b16 %v8260
    %v9259 = vunpack.c.h.b16 %v8260
    %v9260 = vunpack.c.l.b16 %v8261
    %v9261 = vunpack.c.h.b16 %v8261
    %v9262 = vunpack.c.l.b16 %v8262
    %v9263 = vunpack.c.h.b16 %v8262
    %v9264 = vunpack.c.l.b16 %v8263
    %v9265 = vunpack.c.h.b16 %v8263
    %v9266 = vunpack.c.l.b16 %v8264
    %v9267 = vunpack.c.h.b16 %v8264
    %v9268 = vunpack.c.l.b16 %v8265
    %v9269 = vunpack.c.h.b16 %v8265
    %v9270 = vunpack.c.l.b16 %v8266
    %v9271 = vunpack.c.h.b16 %v8266
    %v9272 = vunpack.c.l.b16 %v8267
    %v9273 = vunpack.c.h.b16 %v8267
    %v9274 = vunpack.c.l.b16 %v8268
    %v9275 = vunpack.c.h.b16 %v8268
    %v9276 = vunpack.c.l.b16 %v8269
    %v9277 = vunpack.c.h.b16 %v8269
    %v9278 = vunpack.c.l.b16 %v8270
    %v9279 = vunpack.c.h.b16 %v8270
    %v9280 = vunpack.c.l.b16 %v8271
    %v9281 = vunpack.c.h.b16 %v8271
    %v9282 = vunpack.c.l.b16 %v8272
    %v9283 = vunpack.c.h.b16 %v8272
    %v9284 = vunpack.c.l.b16 %v8273
    %v9285 = vunpack.c.h.b16 %v8273
    %v9286 = vunpack.c.l.b16 %v8274
    %v9287 = vunpack.c.h.b16 %v8274
    %v9288 = vunpack.c.l.b16 %v8275
    %v9289 = vunpack.c.h.b16 %v8275
    %v9290 = vunpack.c.l.b16 %v8276
    %v9291 = vunpack.c.h.b16 %v8276
    %v9292 = vunpack.c.l.b16 %v8277
    %v9293 = vunpack.c.h.b16 %v8277
    %v9294 = vunpack.c.l.b16 %v8278
    %v9295 = vunpack.c.h.b16 %v8278
    %v9296 = vunpack.c.l.b16 %v8279
    %v9297 = vunpack.c.h.b16 %v8279
    %v9298 = vunpack.c.l.b16 %v8280
    %v9299 = vunpack.c.h.b16 %v8280
    %v9300 = vunpack.c.l.b16 %v8281
    %v9301 = vunpack.c.h.b16 %v8281
    %v9302 = vunpack.c.l.b16 %v8282
    %v9303 = vunpack.c.h.b16 %v8282
    %v9304 = vunpack.c.l.b16 %v8283
    %v9305 = vunpack.c.h.b16 %v8283
    %v9306 = vunpack.c.l.b16 %v8284
    %v9307 = vunpack.c.h.b16 %v8284
    %v9308 = vunpack.c.l.b16 %v8285
    %v9309 = vunpack.c.h.b16 %v8285
    %v9310 = vunpack.c.l.b16 %v8286
    %v9311 = vunpack.c.h.b16 %v8286
    %v9312 = vunpack.c.l.b16 %v8287
    %v9313 = vunpack.c.h.b16 %v8287
    %v9314 = vunpack.c.l.b16 %v8288
    %v9315 = vunpack.c.h.b16 %v8288
    %v9316 = vunpack.c.l.b16 %v8289
    %v9317 = vunpack.c.h.b16 %v8289
    %v9318 = vunpack.c.l.b16 %v8290
    %v9319 = vunpack.c.h.b16 %v8290
    %v9320 = vunpack.c.l.b16 %v8291
    %v9321 = vunpack.c.h.b16 %v8291
    %v9322 = vunpack.c.l.b16 %v8292
    %v9323 = vunpack.c.h.b16 %v8292
    %v9324 = vunpack.c.l.b16 %v8293
    %v9325 = vunpack.c.h.b16 %v8293
    %v9326 = vunpack.c.l.b16 %v8294
    %v9327 = vunpack.c.h.b16 %v8294
    %v9328 = vunpack.c.l.b16 %v8295
    %v9329 = vunpack.c.h.b16 %v8295
    %v9330 = vunpack.c.l.b16 %v8296
    %v9331 = vunpack.c.h.b16 %v8296
    %v9332 = vunpack.c.l.b16 %v8297
    %v9333 = vunpack.c.h.b16 %v8297
    %v9334 = vunpack.c.l.b16 %v8298
    %v9335 = vunpack.c.h.b16 %v8298
    %v9336 = vpack.c.b16 %v9148, %v9144
    %v9337 = vpack.c.b16 %v9149, %v9145
    %v9338 = vpack.c.b16 %v9150, %v9146
    %v9339 = vpack.c.b16 %v9151, %v9147
    %v9340 = vpack.c.b16 %v9156, %v9152
    %v9341 = vpack.c.b16 %v9157, %v9153
    %v9342 = vpack.c.b16 %v9158, %v9154
    %v9343 = vpack.c.b16 %v9159, %v9155
    %v9344 = vpack.c.b16 %v9164, %v9160
    %v9345 = vpack.c.b16 %v9165, %v9161
    %v9346 = vpack.c.b16 %v9166, %v9162
    %v9347 = vpack.c.b16 %v9167, %v9163
    %v9348 = vpack.c.b16 %v9172, %v9168
    %v9349 = vpack.c.b16 %v9173, %v9169
    %v9350 = vpack.c.b16 %v9174, %v9170
    %v9351 = vpack.c.b16 %v9175, %v9171
    %v9352 = vpack.c.b16 %v9180, %v9176
    %v9353 = vpack.c.b16 %v9181, %v9177
    %v9354 = vpack.c.b16 %v9182, %v9178
    %v9355 = vpack.c.b16 %v9183, %v9179
    %v9356 = vpack.c.b16 %v9188, %v9184
    %v9357 = vpack.c.b16 %v9189, %v9185
    %v9358 = vpack.c.b16 %v9190, %v9186
    %v9359 = vpack.c.b16 %v9191, %v9187
    %v9360 = vpack.c.b16 %v9196, %v9192
    %v9361 = vpack.c.b16 %v9197, %v9193
    %v9362 = vpack.c.b16 %v9198, %v9194
    %v9363 = vpack.c.b16 %v9199, %v9195
    %v9364 = vpack.c.b16 %v9204, %v9200
    %v9365 = vpack.c.b16 %v9205, %v9201
    %v9366 = vpack.c.b16 %v9206, %v9202
    %v9367 = vpack.c.b16 %v9207, %v9203
    %v9368 = vpack.c.b16 %v9212, %v9208
    %v9369 = vpack.c.b16 %v9213, %v9209
    %v9370 = vpack.c.b16 %v9214, %v9210
    %v9371 = vpack.c.b16 %v9215, %v9211
    %v9372 = vpack.c.b16 %v9220, %v9216
    %v9373 = vpack.c.b16 %v9221, %v9217
    %v9374 = vpack.c.b16 %v9222, %v9218
    %v9375 = vpack.c.b16 %v9223, %v9219
    %v9376 = vpack.c.b16 %v9228, %v9224
    %v9377 = vpack.c.b16 %v9229, %v9225
    %v9378 = vpack.c.b16 %v9230, %v9226
    %v9379 = vpack.c.b16 %v9231, %v9227
    %v9380 = vpack.c.b16 %v9236, %v9232
    %v9381 = vpack.c.b16 %v9237, %v9233
    %v9382 = vpack.c.b16 %v9238, %v9234
    %v9383 = vpack.c.b16 %v9239, %v9235
    %v9384 = vpack.c.b16 %v9244, %v9240
    %v9385 = vpack.c.b16 %v9245, %v9241
    %v9386 = vpack.c.b16 %v9246, %v9242
    %v9387 = vpack.c.b16 %v9247, %v9243
    %v9388 = vpack.c.b16 %v9252, %v9248
    %v9389 = vpack.c.b16 %v9253, %v9249
    %v9390 = vpack.c.b16 %v9254, %v9250
    %v9391 = vpack.c.b16 %v9255, %v9251
    %v9392 = vpack.c.b16 %v9260, %v9256
    %v9393 = vpack.c.b16 %v9261, %v9257
    %v9394 = vpack.c.b16 %v9262, %v9258
    %v9395 = vpack.c.b16 %v9263, %v9259
    %v9396 = vpack.c.b16 %v9268, %v9264
    %v9397 = vpack.c.b16 %v9269, %v9265
    %v9398 = vpack.c.b16 %v9270, %v9266
    %v9399 = vpack.c.b16 %v9271, %v9267
    %v9400 = vpack.c.b16 %v9276, %v9272
    %v9401 = vpack.c.b16 %v9277, %v9273
    %v9402 = vpack.c.b16 %v9278, %v9274
    %v9403 = vpack.c.b16 %v9279, %v9275
    %v9404 = vpack.c.b16 %v9284, %v9280
    %v9405 = vpack.c.b16 %v9285, %v9281
    %v9406 = vpack.c.b16 %v9286, %v9282
    %v9407 = vpack.c.b16 %v9287, %v9283
    %v9408 = vpack.c.b16 %v9292, %v9288
    %v9409 = vpack.c.b16 %v9293, %v9289
    %v9410 = vpack.c.b16 %v9294, %v9290
    %v9411 = vpack.c.b16 %v9295, %v9291
    %v9412 = vpack.c.b16 %v9300, %v9296
    %v9413 = vpack.c.b16 %v9301, %v9297
    %v9414 = vpack.c.b16 %v9302, %v9298
    %v9415 = vpack.c.b16 %v9303, %v9299
    %v9416 = vpack.c.b16 %v9308, %v9304
    %v9417 = vpack.c.b16 %v9309, %v9305
    %v9418 = vpack.c.b16 %v9310, %v9306
    %v9419 = vpack.c.b16 %v9311, %v9307
    %v9420 = vpack.c.b16 %v9316, %v9312
    %v9421 = vpack.c.b16 %v9317, %v9313
    %v9422 = vpack.c.b16 %v9318, %v9314
    %v9423 = vpack.c.b16 %v9319, %v9315
    %v9424 = vpack.c.b16 %v9324, %v9320
    %v9425 = vpack.c.b16 %v9325, %v9321
    %v9426 = vpack.c.b16 %v9326, %v9322
    %v9427 = vpack.c.b16 %v9327, %v9323
    %v9428 = vpack.c.b16 %v9332, %v9328
    %v9429 = vpack.c.b16 %v9333, %v9329
    %v9430 = vpack.c.b16 %v9334, %v9330
    %v9431 = vpack.c.b16 %v9335, %v9331
    %9528 = vmatprep.subr.bf16.mxu0 %v9337
    %9529 = vmatpush1.bf16.msra.mxu0 %v9336
    %9530 = vmatprep.subr.bf16.mxu0 %v9341
    %9531 = vmatpush1.bf16.msra.mxu0 %v9340
    %9532 = vmatprep.subr.bf16.mxu0 %v9345
    %9533 = vmatpush1.bf16.msra.mxu0 %v9344
    %9534 = vmatprep.subr.bf16.mxu0 %v9349
    %9535 = vmatpush1.bf16.msra.mxu0 %v9348
    %9536 = vmatprep.subr.bf16.mxu0 %v9353
    %9537 = vmatpush1.bf16.msra.mxu0 %v9352
    %9538 = vmatprep.subr.bf16.mxu0 %v9357
    %9539 = vmatpush1.bf16.msra.mxu0 %v9356
    %9540 = vmatprep.subr.bf16.mxu0 %v9361
    %9541 = vmatpush1.bf16.msra.mxu0 %v9360
    %9542 = vmatprep.subr.bf16.mxu0 %v9365
    %9543 = vmatpush1.bf16.msra.mxu0 %v9364
    %9544 = vmatprep.subr.bf16.mxu0 %v9369
    %9545 = vmatpush1.bf16.msra.mxu0 %v9368
    %9546 = vmatprep.subr.bf16.mxu0 %v9373
    %9547 = vmatpush1.bf16.msra.mxu0 %v9372
    %9548 = vmatprep.subr.bf16.mxu0 %v9377
    %9549 = vmatpush1.bf16.msra.mxu0 %v9376
    %9550 = vmatprep.subr.bf16.mxu0 %v9381
    %9551 = vmatpush1.bf16.msra.mxu0 %v9380
    %9552 = vmatprep.subr.bf16.mxu0 %v9385
    %9553 = vmatpush1.bf16.msra.mxu0 %v9384
    %9554 = vmatprep.subr.bf16.mxu0 %v9389
    %9555 = vmatpush1.bf16.msra.mxu0 %v9388
    %9556 = vmatprep.subr.bf16.mxu0 %v9393
    %9557 = vmatpush1.bf16.msra.mxu0 %v9392
    %9558 = vmatprep.subr.bf16.mxu0 %v9397
    %9559 = vmatpush1.bf16.msra.mxu0 %v9396
    %9560 = vmatprep.mubr.bf16.mxu0 %v8201
    %9561 = vmatmul.mubr.bf16.gmra.mrb[0].mxu0 %v8200
    %v9562 = vpop.f32.mrb[0].mxu0
    %v9563 = vadd.f32 %v8960, %v9562
    %v9564 = vpop.f32.mrb[0].mxu0
    %v9565 = vadd.f32 %v8962, %v9564
    %v9566 = vpop.f32.mrb[0].mxu0
    %v9567 = vpop.f32.mrb[0].mxu0
    %9568 = vdwg.mxu0
    %9569 = vmatprep.subr.bf16.mxu0 %v9401
    %9570 = vmatpush1.bf16.msra.mxu0 %v9400
    %9571 = vmatprep.subr.bf16.mxu0 %v9405
    %9572 = vmatpush1.bf16.msra.mxu0 %v9404
    %9573 = vmatprep.subr.bf16.mxu0 %v9409
    %9574 = vmatpush1.bf16.msra.mxu0 %v9408
    %9575 = vmatprep.subr.bf16.mxu0 %v9413
    %9576 = vmatpush1.bf16.msra.mxu0 %v9412
    %9577 = vmatprep.subr.bf16.mxu0 %v9417
    %9578 = vmatpush1.bf16.msra.mxu0 %v9416
    %9579 = vmatprep.subr.bf16.mxu0 %v9421
    %9580 = vmatpush1.bf16.msra.mxu0 %v9420
    %9581 = vmatprep.subr.bf16.mxu0 %v9425
    %9582 = vmatpush1.bf16.msra.mxu0 %v9424
    %9583 = vmatprep.subr.bf16.mxu0 %v9429
    %9584 = vmatpush1.bf16.msra.mxu0 %v9428
    %9585 = vmatprep.subr.bf16.mxu0 0
    %9586 = vmatpush1.bf16.msra.mxu0 0
    %9587 = vmatprep.subr.bf16.mxu0 0
    %9588 = vmatpush1.bf16.msra.mxu0 0
    %9589 = vmatprep.subr.bf16.mxu0 0
    %9590 = vmatpush1.bf16.msra.mxu0 0
    %9591 = vmatprep.subr.bf16.mxu0 0
    %9592 = vmatpush1.bf16.msra.mxu0 0
    %9593 = vmatprep.subr.bf16.mxu0 0
    %9594 = vmatpush1.bf16.msra.mxu0 0
    %9595 = vmatprep.subr.bf16.mxu0 0
    %9596 = vmatpush1.bf16.msra.mxu0 0
    %9597 = vmatprep.subr.bf16.mxu0 0
    %9598 = vmatpush1.bf16.msra.mxu0 0
    %9599 = vmatprep.subr.bf16.mxu0 0
    %9600 = vmatpush1.bf16.msra.mxu0 0
    %9601 = vmatprep.mubr.bf16.mxu0 0
    %9602 = vmatmul.mubr.bf16.gmra.mrb[0].mxu0 %v8202
    %v9603 = vpop.f32.mrb[0].mxu0
    %v9604 = vadd.f32 %v9563, %v9603
    %v9605 = vpop.f32.mrb[0].mxu0
    %v9606 = vadd.f32 %v9565, %v9605
    %v9607 = vpop.f32.mrb[0].mxu0
    %v9608 = vpop.f32.mrb[0].mxu0
    %9609 = vdwg.mxu0
    %9610 = vmatprep.subr.bf16.mxu0 %v9339
    %9611 = vmatpush1.bf16.msra.mxu0 %v9338
    %9612 = vmatprep.subr.bf16.mxu0 %v9343
    %9613 = vmatpush1.bf16.msra.mxu0 %v9342
    %9614 = vmatprep.subr.bf16.mxu0 %v9347
    %9615 = vmatpush1.bf16.msra.mxu0 %v9346
    %9616 = vmatprep.subr.bf16.mxu0 %v9351
    %9617 = vmatpush1.bf16.msra.mxu0 %v9350
    %9618 = vmatprep.subr.bf16.mxu0 %v9355
    %9619 = vmatpush1.bf16.msra.mxu0 %v9354
    %9620 = vmatprep.subr.bf16.mxu0 %v9359
    %9621 = vmatpush1.bf16.msra.mxu0 %v9358
    %9622 = vmatprep.subr.bf16.mxu0 %v9363
    %9623 = vmatpush1.bf16.msra.mxu0 %v9362
    %9624 = vmatprep.subr.bf16.mxu0 %v9367
    %9625 = vmatpush1.bf16.msra.mxu0 %v9366
    %9626 = vmatprep.subr.bf16.mxu0 %v9371
    %9627 = vmatpush1.bf16.msra.mxu0 %v9370
    %9628 = vmatprep.subr.bf16.mxu0 %v9375
    %9629 = vmatpush1.bf16.msra.mxu0 %v9374
    %9630 = vmatprep.subr.bf16.mxu0 %v9379
    %9631 = vmatpush1.bf16.msra.mxu0 %v9378
    %9632 = vmatprep.subr.bf16.mxu0 %v9383
    %9633 = vmatpush1.bf16.msra.mxu0 %v9382
    %9634 = vmatprep.subr.bf16.mxu0 %v9387
    %9635 = vmatpush1.bf16.msra.mxu0 %v9386
    %9636 = vmatprep.subr.bf16.mxu0 %v9391
    %9637 = vmatpush1.bf16.msra.mxu0 %v9390
    %9638 = vmatprep.subr.bf16.mxu0 %v9395
    %9639 = vmatpush1.bf16.msra.mxu0 %v9394
    %9640 = vmatprep.subr.bf16.mxu0 %v9399
    %9641 = vmatpush1.bf16.msra.mxu0 %v9398
    %9642 = vmatprep.mubr.bf16.mxu0 %v8201
    %9643 = vmatmul.mubr.bf16.gmra.mrb[0].mxu0 %v8200
    %v9644 = vpop.f32.mrb[0].mxu0
    %v9645 = vadd.f32 %v9042, %v9644
    %v9646 = vpop.f32.mrb[0].mxu0
    %v9647 = vadd.f32 %v9044, %v9646
    %v9648 = vpop.f32.mrb[0].mxu0
    %v9649 = vpop.f32.mrb[0].mxu0
    %9650 = vdwg.mxu0
    %9651 = vmatprep.subr.bf16.mxu0 %v9403
    %9652 = vmatpush1.bf16.msra.mxu0 %v9402
    %9653 = vmatprep.subr.bf16.mxu0 %v9407
    %9654 = vmatpush1.bf16.msra.mxu0 %v9406
    %9655 = vmatprep.subr.bf16.mxu0 %v9411
    %9656 = vmatpush1.bf16.msra.mxu0 %v9410
    %9657 = vmatprep.subr.bf16.mxu0 %v9415
    %9658 = vmatpush1.bf16.msra.mxu0 %v9414
    %9659 = vmatprep.subr.bf16.mxu0 %v9419
    %9660 = vmatpush1.bf16.msra.mxu0 %v9418
    %9661 = vmatprep.subr.bf16.mxu0 %v9423
    %9662 = vmatpush1.bf16.msra.mxu0 %v9422
    %9663 = vmatprep.subr.bf16.mxu0 %v9427
    %9664 = vmatpush1.bf16.msra.mxu0 %v9426
    %9665 = vmatprep.subr.bf16.mxu0 %v9431
    %9666 = vmatpush1.bf16.msra.mxu0 %v9430
    %9667 = vmatprep.subr.bf16.mxu0 0
    %9668 = vmatpush1.bf16.msra.mxu0 0
    %9669 = vmatprep.subr.bf16.mxu0 0
    %9670 = vmatpush1.bf16.msra.mxu0 0
    %9671 = vmatprep.subr.bf16.mxu0 0
    %9672 = vmatpush1.bf16.msra.mxu0 0
    %9673 = vmatprep.subr.bf16.mxu0 0
    %9674 = vmatpush1.bf16.msra.mxu0 0
    %9675 = vmatprep.subr.bf16.mxu0 0
    %9676 = vmatpush1.bf16.msra.mxu0 0
    %9677 = vmatprep.subr.bf16.mxu0 0
    %9678 = vmatpush1.bf16.msra.mxu0 0
    %9679 = vmatprep.subr.bf16.mxu0 0
    %9680 = vmatpush1.bf16.msra.mxu0 0
    %9681 = vmatprep.subr.bf16.mxu0 0
    %9682 = vmatpush1.bf16.msra.mxu0 0
    %9683 = vmatprep.mubr.bf16.mxu0 0
    %9684 = vmatmul.mubr.bf16.gmra.mrb[0].mxu0 %v8202
    %v9685 = vpop.f32.mrb[0].mxu0
    %v9686 = vadd.f32 %v9645, %v9685
    %v9687 = vpop.f32.mrb[0].mxu0
    %v9688 = vadd.f32 %v9647, %v9687
    %v9689 = vpop.f32.mrb[0].mxu0
    %v9690 = vpop.f32.mrb[0].mxu0
    %9691 = vdwg.mxu0
    %v9692 = vld [vmem:[%s3763] sm:$0xff]
    %v9693 = vld [vmem:[%s3763 + $0x8] sm:$0xff]
    %v9694 = vld [vmem:[%s3763 + $0x10] sm:$0xff]
    %v9695 = vld [vmem:[%s3763 + $0x18] sm:$0xff]
    %v9696 = vld [vmem:[%s3763 + $0x20] sm:$0xff]
    %v9697 = vld [vmem:[%s3763 + $0x28] sm:$0xff]
    %v9698 = vld [vmem:[%s3763 + $0x30] sm:$0xff]
    %v9699 = vld [vmem:[%s3763 + $0x38] sm:$0xff]
    %v9700 = vld [vmem:[%s3763 + $0x40] sm:$0xff]
    %v9701 = vld [vmem:[%s3763 + $0x48] sm:$0xff]
    %v9702 = vld [vmem:[%s3763 + $0x50] sm:$0xff]
    %v9703 = vld [vmem:[%s3763 + $0x58] sm:$0xff]
    %v9704 = vld [vmem:[%s3763 + $0x60] sm:$0xff]
    %v9705 = vld [vmem:[%s3763 + $0x68] sm:$0xff]
    %v9706 = vld [vmem:[%s3763 + $0x70] sm:$0xff]
    %v9707 = vld [vmem:[%s3763 + $0x78] sm:$0xff]
    %v9708 = vld [vmem:[%s3763 + $0x80] sm:$0xff]
    %v9709 = vld [vmem:[%s3763 + $0x88] sm:$0xff]
    %v9710 = vld [vmem:[%s3763 + $0x90] sm:$0xff]
    %v9711 = vld [vmem:[%s3763 + $0x98] sm:$0xff]
    %v9712 = vld [vmem:[%s3763 + $0xa0] sm:$0xff]
    %v9713 = vld [vmem:[%s3763 + $0xa8] sm:$0xff]
    %v9714 = vld [vmem:[%s3763 + $0xb0] sm:$0xff]
    %v9715 = vld [vmem:[%s3763 + $0xb8] sm:$0xff]
    %v9716 = vld [vmem:[%s3763 + $0xc0] sm:$0xff]
    %v9717 = vld [vmem:[%s3763 + $0xc8] sm:$0xff]
    %v9718 = vld [vmem:[%s3763 + $0xd0] sm:$0xff]
    %v9719 = vld [vmem:[%s3763 + $0xd8] sm:$0xff]
    %v9720 = vld [vmem:[%s3763 + $0xe0] sm:$0xff]
    %v9721 = vld [vmem:[%s3763 + $0xe8] sm:$0xff]
    %v9722 = vld [vmem:[%s3763 + $0xf0] sm:$0xff]
    %v9723 = vld [vmem:[%s3763 + $0xf8] sm:$0xff]
    %v9724 = vld [vmem:[%s3763 + $0x100] sm:$0xff]
    %v9725 = vld [vmem:[%s3763 + $0x108] sm:$0xff]
    %v9726 = vld [vmem:[%s3763 + $0x110] sm:$0xff]
    %v9727 = vld [vmem:[%s3763 + $0x118] sm:$0xff]
    %v9728 = vld [vmem:[%s3763 + $0x120] sm:$0xff]
    %v9729 = vld [vmem:[%s3763 + $0x128] sm:$0xff]
    %v9730 = vld [vmem:[%s3763 + $0x130] sm:$0xff]
    %v9731 = vld [vmem:[%s3763 + $0x138] sm:$0xff]
    %v9732 = vld [vmem:[%s3763 + $0x140] sm:$0xff]
    %v9733 = vld [vmem:[%s3763 + $0x148] sm:$0xff]
    %v9734 = vld [vmem:[%s3763 + $0x150] sm:$0xff]
    %v9735 = vld [vmem:[%s3763 + $0x158] sm:$0xff]
    %v9736 = vld [vmem:[%s3763 + $0x160] sm:$0xff]
    %v9737 = vld [vmem:[%s3763 + $0x168] sm:$0xff]
    %v9738 = vld [vmem:[%s3763 + $0x170] sm:$0xff]
    %v9739 = vld [vmem:[%s3763 + $0x178] sm:$0xff]
    %v9740 = vld [vmem:[%s3763 + $0x180] sm:$0xff]
    %v9741 = vld [vmem:[%s3763 + $0x188] sm:$0xff]
    %v9742 = vld [vmem:[%s3763 + $0x190] sm:$0xff]
    %v9743 = vld [vmem:[%s3763 + $0x198] sm:$0xff]
    %v9744 = vld [vmem:[%s3763 + $0x1a0] sm:$0xff]
    %v9745 = vld [vmem:[%s3763 + $0x1a8] sm:$0xff]
    %v9746 = vld [vmem:[%s3763 + $0x1b0] sm:$0xff]
    %v9747 = vld [vmem:[%s3763 + $0x1b8] sm:$0xff]
    %v9748 = vld [vmem:[%s3763 + $0x1c0] sm:$0xff]
    %v9749 = vld [vmem:[%s3763 + $0x1c8] sm:$0xff]
    %v9750 = vld [vmem:[%s3763 + $0x1d0] sm:$0xff]
    %v9751 = vld [vmem:[%s3763 + $0x1d8] sm:$0xff]
    %v9752 = vld [vmem:[%s3763 + $0x1e0] sm:$0xff]
    %v9753 = vld [vmem:[%s3763 + $0x1e8] sm:$0xff]
    %v9754 = vld [vmem:[%s3763 + $0x1f0] sm:$0xff]
    %v9755 = vld [vmem:[%s3763 + $0x1f8] sm:$0xff]
    %v9756 = vld [vmem:[%s3763 + $0x200] sm:$0xff]
    %v9757 = vld [vmem:[%s3763 + $0x208] sm:$0xff]
    %v9758 = vld [vmem:[%s3763 + $0x210] sm:$0xff]
    %v9759 = vld [vmem:[%s3763 + $0x218] sm:$0xff]
    %v9760 = vld [vmem:[%s3763 + $0x220] sm:$0xff]
    %v9761 = vld [vmem:[%s3763 + $0x228] sm:$0xff]
    %v9762 = vld [vmem:[%s3763 + $0x230] sm:$0xff]
    %v9763 = vld [vmem:[%s3763 + $0x238] sm:$0xff]
    %v9764 = vld [vmem:[%s3763 + $0x240] sm:$0xff]
    %v9765 = vld [vmem:[%s3763 + $0x248] sm:$0xff]
    %v9766 = vld [vmem:[%s3763 + $0x250] sm:$0xff]
    %v9767 = vld [vmem:[%s3763 + $0x258] sm:$0xff]
    %v9768 = vld [vmem:[%s3763 + $0x260] sm:$0xff]
    %v9769 = vld [vmem:[%s3763 + $0x268] sm:$0xff]
    %v9770 = vld [vmem:[%s3763 + $0x270] sm:$0xff]
    %v9771 = vld [vmem:[%s3763 + $0x278] sm:$0xff]
    %v9772 = vld [vmem:[%s3763 + $0x280] sm:$0xff]
    %v9773 = vld [vmem:[%s3763 + $0x288] sm:$0xff]
    %v9774 = vld [vmem:[%s3763 + $0x290] sm:$0xff]
    %v9775 = vld [vmem:[%s3763 + $0x298] sm:$0xff]
    %v9776 = vld [vmem:[%s3763 + $0x2a0] sm:$0xff]
    %v9777 = vld [vmem:[%s3763 + $0x2a8] sm:$0xff]
    %v9778 = vld [vmem:[%s3763 + $0x2b0] sm:$0xff]
    %v9779 = vld [vmem:[%s3763 + $0x2b8] sm:$0xff]
    %v9780 = vld [vmem:[%s3763 + $0x2c0] sm:$0xff]
    %v9781 = vld [vmem:[%s3763 + $0x2c8] sm:$0xff]
    %v9782 = vld [vmem:[%s3763 + $0x2d0] sm:$0xff]
    %v9783 = vld [vmem:[%s3763 + $0x2d8] sm:$0xff]
    %v9784 = vld [vmem:[%s3763 + $0x2e0] sm:$0xff]
    %v9785 = vld [vmem:[%s3763 + $0x2e8] sm:$0xff]
    %v9786 = vld [vmem:[%s3763 + $0x2f0] sm:$0xff]
    %v9787 = vld [vmem:[%s3763 + $0x2f8] sm:$0xff]
    %v9788 = vrot.slane %v8200, 2
    %v9789 = vrot.slane %v8201, 2
    %v9790 = vrot.slane %v8202, 2
    %v9890 = vunpack.c.l.b16 %v9692
    %v9891 = vunpack.c.h.b16 %v9692
    %v9892 = vunpack.c.l.b16 %v9693
    %v9893 = vunpack.c.h.b16 %v9693
    %v9894 = vunpack.c.l.b16 %v9694
    %v9895 = vunpack.c.h.b16 %v9694
    %v9896 = vunpack.c.l.b16 %v9695
    %v9897 = vunpack.c.h.b16 %v9695
    %v9898 = vunpack.c.l.b16 %v9696
    %v9899 = vunpack.c.h.b16 %v9696
    %v9900 = vunpack.c.l.b16 %v9697
    %v9901 = vunpack.c.h.b16 %v9697
    %v9902 = vunpack.c.l.b16 %v9698
    %v9903 = vunpack.c.h.b16 %v9698
    %v9904 = vunpack.c.l.b16 %v9699
    %v9905 = vunpack.c.h.b16 %v9699
    %v9906 = vunpack.c.l.b16 %v9700
    %v9907 = vunpack.c.h.b16 %v9700
    %v9908 = vunpack.c.l.b16 %v9701
    %v9909 = vunpack.c.h.b16 %v9701
    %v9910 = vunpack.c.l.b16 %v9702
    %v9911 = vunpack.c.h.b16 %v9702
    %v9912 = vunpack.c.l.b16 %v9703
    %v9913 = vunpack.c.h.b16 %v9703
    %v9914 = vunpack.c.l.b16 %v9704
    %v9915 = vunpack.c.h.b16 %v9704
    %v9916 = vunpack.c.l.b16 %v9705
    %v9917 = vunpack.c.h.b16 %v9705
    %v9918 = vunpack.c.l.b16 %v9706
    %v9919 = vunpack.c.h.b16 %v9706
    %v9920 = vunpack.c.l.b16 %v9707
    %v9921 = vunpack.c.h.b16 %v9707
    %v9922 = vunpack.c.l.b16 %v9708
    %v9923 = vunpack.c.h.b16 %v9708
    %v9924 = vunpack.c.l.b16 %v9709
    %v9925 = vunpack.c.h.b16 %v9709
    %v9926 = vunpack.c.l.b16 %v9710
    %v9927 = vunpack.c.h.b16 %v9710
    %v9928 = vunpack.c.l.b16 %v9711
    %v9929 = vunpack.c.h.b16 %v9711
    %v9930 = vunpack.c.l.b16 %v9712
    %v9931 = vunpack.c.h.b16 %v9712
    %v9932 = vunpack.c.l.b16 %v9713
    %v9933 = vunpack.c.h.b16 %v9713
    %v9934 = vunpack.c.l.b16 %v9714
    %v9935 = vunpack.c.h.b16 %v9714
    %v9936 = vunpack.c.l.b16 %v9715
    %v9937 = vunpack.c.h.b16 %v9715
    %v9938 = vunpack.c.l.b16 %v9716
    %v9939 = vunpack.c.h.b16 %v9716
    %v9940 = vunpack.c.l.b16 %v9717
    %v9941 = vunpack.c.h.b16 %v9717
    %v9942 = vunpack.c.l.b16 %v9718
    %v9943 = vunpack.c.h.b16 %v9718
    %v9944 = vunpack.c.l.b16 %v9719
    %v9945 = vunpack.c.h.b16 %v9719
    %v9946 = vunpack.c.l.b16 %v9720
    %v9947 = vunpack.c.h.b16 %v9720
    %v9948 = vunpack.c.l.b16 %v9721
    %v9949 = vunpack.c.h.b16 %v9721
    %v9950 = vunpack.c.l.b16 %v9722
    %v9951 = vunpack.c.h.b16 %v9722
    %v9952 = vunpack.c.l.b16 %v9723
    %v9953 = vunpack.c.h.b16 %v9723
    %v9954 = vunpack.c.l.b16 %v9724
    %v9955 = vunpack.c.h.b16 %v9724
    %v9956 = vunpack.c.l.b16 %v9725
    %v9957 = vunpack.c.h.b16 %v9725
    %v9958 = vunpack.c.l.b16 %v9726
    %v9959 = vunpack.c.h.b16 %v9726
    %v9960 = vunpack.c.l.b16 %v9727
    %v9961 = vunpack.c.h.b16 %v9727
    %v9962 = vunpack.c.l.b16 %v9728
    %v9963 = vunpack.c.h.b16 %v9728
    %v9964 = vunpack.c.l.b16 %v9729
    %v9965 = vunpack.c.h.b16 %v9729
    %v9966 = vunpack.c.l.b16 %v9730
    %v9967 = vunpack.c.h.b16 %v9730
    %v9968 = vunpack.c.l.b16 %v9731
    %v9969 = vunpack.c.h.b16 %v9731
    %v9970 = vunpack.c.l.b16 %v9732
    %v9971 = vunpack.c.h.b16 %v9732
    %v9972 = vunpack.c.l.b16 %v9733
    %v9973 = vunpack.c.h.b16 %v9733
    %v9974 = vunpack.c.l.b16 %v9734
    %v9975 = vunpack.c.h.b16 %v9734
    %v9976 = vunpack.c.l.b16 %v9735
    %v9977 = vunpack.c.h.b16 %v9735
    %v9978 = vunpack.c.l.b16 %v9736
    %v9979 = vunpack.c.h.b16 %v9736
    %v9980 = vunpack.c.l.b16 %v9737
    %v9981 = vunpack.c.h.b16 %v9737
    %v9982 = vunpack.c.l.b16 %v9738
    %v9983 = vunpack.c.h.b16 %v9738
    %v9984 = vunpack.c.l.b16 %v9739
    %v9985 = vunpack.c.h.b16 %v9739
    %v9986 = vunpack.c.l.b16 %v9740
    %v9987 = vunpack.c.h.b16 %v9740
    %v9988 = vunpack.c.l.b16 %v9741
    %v9989 = vunpack.c.h.b16 %v9741
    %v9990 = vunpack.c.l.b16 %v9742
    %v9991 = vunpack.c.h.b16 %v9742
    %v9992 = vunpack.c.l.b16 %v9743
    %v9993 = vunpack.c.h.b16 %v9743
    %v9994 = vunpack.c.l.b16 %v9744
    %v9995 = vunpack.c.h.b16 %v9744
    %v9996 = vunpack.c.l.b16 %v9745
    %v9997 = vunpack.c.h.b16 %v9745
    %v9998 = vunpack.c.l.b16 %v9746
    %v9999 = vunpack.c.h.b16 %v9746
    %v10000 = vunpack.c.l.b16 %v9747
    %v10001 = vunpack.c.h.b16 %v9747
    %v10002 = vunpack.c.l.b16 %v9748
    %v10003 = vunpack.c.h.b16 %v9748
    %v10004 = vunpack.c.l.b16 %v9749
    %v10005 = vunpack.c.h.b16 %v9749
    %v10006 = vunpack.c.l.b16 %v9750
    %v10007 = vunpack.c.h.b16 %v9750
    %v10008 = vunpack.c.l.b16 %v9751
    %v10009 = vunpack.c.h.b16 %v9751
    %v10010 = vunpack.c.l.b16 %v9752
    %v10011 = vunpack.c.h.b16 %v9752
    %v10012 = vunpack.c.l.b16 %v9753
    %v10013 = vunpack.c.h.b16 %v9753
    %v10014 = vunpack.c.l.b16 %v9754
    %v10015 = vunpack.c.h.b16 %v9754
    %v10016 = vunpack.c.l.b16 %v9755
    %v10017 = vunpack.c.h.b16 %v9755
    %v10018 = vunpack.c.l.b16 %v9756
    %v10019 = vunpack.c.h.b16 %v9756
    %v10020 = vunpack.c.l.b16 %v9757
    %v10021 = vunpack.c.h.b16 %v9757
    %v10022 = vunpack.c.l.b16 %v9758
    %v10023 = vunpack.c.h.b16 %v9758
    %v10024 = vunpack.c.l.b16 %v9759
    %v10025 = vunpack.c.h.b16 %v9759
    %v10026 = vunpack.c.l.b16 %v9760
    %v10027 = vunpack.c.h.b16 %v9760
    %v10028 = vunpack.c.l.b16 %v9761
    %v10029 = vunpack.c.h.b16 %v9761
    %v10030 = vunpack.c.l.b16 %v9762
    %v10031 = vunpack.c.h.b16 %v9762
    %v10032 = vunpack.c.l.b16 %v9763
    %v10033 = vunpack.c.h.b16 %v9763
    %v10034 = vunpack.c.l.b16 %v9764
    %v10035 = vunpack.c.h.b16 %v9764
    %v10036 = vunpack.c.l.b16 %v9765
    %v10037 = vunpack.c.h.b16 %v9765
    %v10038 = vunpack.c.l.b16 %v9766
    %v10039 = vunpack.c.h.b16 %v9766
    %v10040 = vunpack.c.l.b16 %v9767
    %v10041 = vunpack.c.h.b16 %v9767
    %v10042 = vunpack.c.l.b16 %v9768
    %v10043 = vunpack.c.h.b16 %v9768
    %v10044 = vunpack.c.l.b16 %v9769
    %v10045 = vunpack.c.h.b16 %v9769
    %v10046 = vunpack.c.l.b16 %v9770
    %v10047 = vunpack.c.h.b16 %v9770
    %v10048 = vunpack.c.l.b16 %v9771
    %v10049 = vunpack.c.h.b16 %v9771
    %v10050 = vunpack.c.l.b16 %v9772
    %v10051 = vunpack.c.h.b16 %v9772
    %v10052 = vunpack.c.l.b16 %v9773
    %v10053 = vunpack.c.h.b16 %v9773
    %v10054 = vunpack.c.l.b16 %v9774
    %v10055 = vunpack.c.h.b16 %v9774
    %v10056 = vunpack.c.l.b16 %v9775
    %v10057 = vunpack.c.h.b16 %v9775
    %v10058 = vunpack.c.l.b16 %v9776
    %v10059 = vunpack.c.h.b16 %v9776
    %v10060 = vunpack.c.l.b16 %v9777
    %v10061 = vunpack.c.h.b16 %v9777
    %v10062 = vunpack.c.l.b16 %v9778
    %v10063 = vunpack.c.h.b16 %v9778
    %v10064 = vunpack.c.l.b16 %v9779
    %v10065 = vunpack.c.h.b16 %v9779
    %v10066 = vunpack.c.l.b16 %v9780
    %v10067 = vunpack.c.h.b16 %v9780
    %v10068 = vunpack.c.l.b16 %v9781
    %v10069 = vunpack.c.h.b16 %v9781
    %v10070 = vunpack.c.l.b16 %v9782
    %v10071 = vunpack.c.h.b16 %v9782
    %v10072 = vunpack.c.l.b16 %v9783
    %v10073 = vunpack.c.h.b16 %v9783
    %v10074 = vunpack.c.l.b16 %v9784
    %v10075 = vunpack.c.h.b16 %v9784
    %v10076 = vunpack.c.l.b16 %v9785
    %v10077 = vunpack.c.h.b16 %v9785
    %v10078 = vunpack.c.l.b16 %v9786
    %v10079 = vunpack.c.h.b16 %v9786
    %v10080 = vunpack.c.l.b16 %v9787
    %v10081 = vunpack.c.h.b16 %v9787
    %v10082 = vpack.c.b16 %v9894, %v9890
    %v10083 = vpack.c.b16 %v9895, %v9891
    %v10084 = vpack.c.b16 %v9896, %v9892
    %v10085 = vpack.c.b16 %v9897, %v9893
    %v10086 = vpack.c.b16 %v9902, %v9898
    %v10087 = vpack.c.b16 %v9903, %v9899
    %v10088 = vpack.c.b16 %v9904, %v9900
    %v10089 = vpack.c.b16 %v9905, %v9901
    %v10090 = vpack.c.b16 %v9910, %v9906
    %v10091 = vpack.c.b16 %v9911, %v9907
    %v10092 = vpack.c.b16 %v9912, %v9908
    %v10093 = vpack.c.b16 %v9913, %v9909
    %v10094 = vpack.c.b16 %v9918, %v9914
    %v10095 = vpack.c.b16 %v9919, %v9915
    %v10096 = vpack.c.b16 %v9920, %v9916
    %v10097 = vpack.c.b16 %v9921, %v9917
    %v10098 = vpack.c.b16 %v9926, %v9922
    %v10099 = vpack.c.b16 %v9927, %v9923
    %v10100 = vpack.c.b16 %v9928, %v9924
    %v10101 = vpack.c.b16 %v9929, %v9925
    %v10102 = vpack.c.b16 %v9934, %v9930
    %v10103 = vpack.c.b16 %v9935, %v9931
    %v10104 = vpack.c.b16 %v9936, %v9932
    %v10105 = vpack.c.b16 %v9937, %v9933
    %v10106 = vpack.c.b16 %v9942, %v9938
    %v10107 = vpack.c.b16 %v9943, %v9939
    %v10108 = vpack.c.b16 %v9944, %v9940
    %v10109 = vpack.c.b16 %v9945, %v9941
    %v10110 = vpack.c.b16 %v9950, %v9946
    %v10111 = vpack.c.b16 %v9951, %v9947
    %v10112 = vpack.c.b16 %v9952, %v9948
    %v10113 = vpack.c.b16 %v9953, %v9949
    %v10114 = vpack.c.b16 %v9958, %v9954
    %v10115 = vpack.c.b16 %v9959, %v9955
    %v10116 = vpack.c.b16 %v9960, %v9956
    %v10117 = vpack.c.b16 %v9961, %v9957
    %v10118 = vpack.c.b16 %v9966, %v9962
    %v10119 = vpack.c.b16 %v9967, %v9963
    %v10120 = vpack.c.b16 %v9968, %v9964
    %v10121 = vpack.c.b16 %v9969, %v9965
    %v10122 = vpack.c.b16 %v9974, %v9970
    %v10123 = vpack.c.b16 %v9975, %v9971
    %v10124 = vpack.c.b16 %v9976, %v9972
    %v10125 = vpack.c.b16 %v9977, %v9973
    %v10126 = vpack.c.b16 %v9982, %v9978
    %v10127 = vpack.c.b16 %v9983, %v9979
    %v10128 = vpack.c.b16 %v9984, %v9980
    %v10129 = vpack.c.b16 %v9985, %v9981
    %v10130 = vpack.c.b16 %v9990, %v9986
    %v10131 = vpack.c.b16 %v9991, %v9987
    %v10132 = vpack.c.b16 %v9992, %v9988
    %v10133 = vpack.c.b16 %v9993, %v9989
    %v10134 = vpack.c.b16 %v9998, %v9994
    %v10135 = vpack.c.b16 %v9999, %v9995
    %v10136 = vpack.c.b16 %v10000, %v9996
    %v10137 = vpack.c.b16 %v10001, %v9997
    %v10138 = vpack.c.b16 %v10006, %v10002
    %v10139 = vpack.c.b16 %v10007, %v10003
    %v10140 = vpack.c.b16 %v10008, %v10004
    %v10141 = vpack.c.b16 %v10009, %v10005
    %v10142 = vpack.c.b16 %v10014, %v10010
    %v10143 = vpack.c.b16 %v10015, %v10011
    %v10144 = vpack.c.b16 %v10016, %v10012
    %v10145 = vpack.c.b16 %v10017, %v10013
    %v10146 = vpack.c.b16 %v10022, %v10018
    %v10147 = vpack.c.b16 %v10023, %v10019
    %v10148 = vpack.c.b16 %v10024, %v10020
    %v10149 = vpack.c.b16 %v10025, %v10021
    %v10150 = vpack.c.b16 %v10030, %v10026
    %v10151 = vpack.c.b16 %v10031, %v10027
    %v10152 = vpack.c.b16 %v10032, %v10028
    %v10153 = vpack.c.b16 %v10033, %v10029
    %v10154 = vpack.c.b16 %v10038, %v10034
    %v10155 = vpack.c.b16 %v10039, %v10035
    %v10156 = vpack.c.b16 %v10040, %v10036
    %v10157 = vpack.c.b16 %v10041, %v10037
    %v10158 = vpack.c.b16 %v10046, %v10042
    %v10159 = vpack.c.b16 %v10047, %v10043
    %v10160 = vpack.c.b16 %v10048, %v10044
    %v10161 = vpack.c.b16 %v10049, %v10045
    %v10162 = vpack.c.b16 %v10054, %v10050
    %v10163 = vpack.c.b16 %v10055, %v10051
    %v10164 = vpack.c.b16 %v10056, %v10052
    %v10165 = vpack.c.b16 %v10057, %v10053
    %v10166 = vpack.c.b16 %v10062, %v10058
    %v10167 = vpack.c.b16 %v10063, %v10059
    %v10168 = vpack.c.b16 %v10064, %v10060
    %v10169 = vpack.c.b16 %v10065, %v10061
    %v10170 = vpack.c.b16 %v10070, %v10066
    %v10171 = vpack.c.b16 %v10071, %v10067
    %v10172 = vpack.c.b16 %v10072, %v10068
    %v10173 = vpack.c.b16 %v10073, %v10069
    %v10174 = vpack.c.b16 %v10078, %v10074
    %v10175 = vpack.c.b16 %v10079, %v10075
    %v10176 = vpack.c.b16 %v10080, %v10076
    %v10177 = vpack.c.b16 %v10081, %v10077
    %10274 = vmatprep.subr.bf16.mxu0 %v10083
    %10275 = vmatpush1.bf16.msra.mxu0 %v10082
    %10276 = vmatprep.subr.bf16.mxu0 %v10087
    %10277 = vmatpush1.bf16.msra.mxu0 %v10086
    %10278 = vmatprep.subr.bf16.mxu0 %v10091
    %10279 = vmatpush1.bf16.msra.mxu0 %v10090
    %10280 = vmatprep.subr.bf16.mxu0 %v10095
    %10281 = vmatpush1.bf16.msra.mxu0 %v10094
    %10282 = vmatprep.subr.bf16.mxu0 %v10099
    %10283 = vmatpush1.bf16.msra.mxu0 %v10098
    %10284 = vmatprep.subr.bf16.mxu0 %v10103
    %10285 = vmatpush1.bf16.msra.mxu0 %v10102
    %10286 = vmatprep.subr.bf16.mxu0 %v10107
    %10287 = vmatpush1.bf16.msra.mxu0 %v10106
    %10288 = vmatprep.subr.bf16.mxu0 %v10111
    %10289 = vmatpush1.bf16.msra.mxu0 %v10110
    %10290 = vmatprep.subr.bf16.mxu0 %v10115
    %10291 = vmatpush1.bf16.msra.mxu0 %v10114
    %10292 = vmatprep.subr.bf16.mxu0 %v10119
    %10293 = vmatpush1.bf16.msra.mxu0 %v10118
    %10294 = vmatprep.subr.bf16.mxu0 %v10123
    %10295 = vmatpush1.bf16.msra.mxu0 %v10122
    %10296 = vmatprep.subr.bf16.mxu0 %v10127
    %10297 = vmatpush1.bf16.msra.mxu0 %v10126
    %10298 = vmatprep.subr.bf16.mxu0 %v10131
    %10299 = vmatpush1.bf16.msra.mxu0 %v10130
    %10300 = vmatprep.subr.bf16.mxu0 %v10135
    %10301 = vmatpush1.bf16.msra.mxu0 %v10134
    %10302 = vmatprep.subr.bf16.mxu0 %v10139
    %10303 = vmatpush1.bf16.msra.mxu0 %v10138
    %10304 = vmatprep.subr.bf16.mxu0 %v10143
    %10305 = vmatpush1.bf16.msra.mxu0 %v10142
    %10306 = vmatprep.mubr.bf16.mxu0 %v9789
    %10307 = vmatmul.mubr.bf16.gmra.mrb[0].mxu0 %v9788
    %v10308 = vpop.f32.mrb[0].mxu0
    %v10309 = vadd.f32 0.0, %v10308
    %v10310 = vpop.f32.mrb[0].mxu0
    %v10311 = vadd.f32 0.0, %v10310
    %v10312 = vpop.f32.mrb[0].mxu0
    %v10313 = vpop.f32.mrb[0].mxu0
    %10314 = vdwg.mxu0
    %10315 = vmatprep.subr.bf16.mxu0 %v10147
    %10316 = vmatpush1.bf16.msra.mxu0 %v10146
    %10317 = vmatprep.subr.bf16.mxu0 %v10151
    %10318 = vmatpush1.bf16.msra.mxu0 %v10150
    %10319 = vmatprep.subr.bf16.mxu0 %v10155
    %10320 = vmatpush1.bf16.msra.mxu0 %v10154
    %10321 = vmatprep.subr.bf16.mxu0 %v10159
    %10322 = vmatpush1.bf16.msra.mxu0 %v10158
    %10323 = vmatprep.subr.bf16.mxu0 %v10163
    %10324 = vmatpush1.bf16.msra.mxu0 %v10162
    %10325 = vmatprep.subr.bf16.mxu0 %v10167
    %10326 = vmatpush1.bf16.msra.mxu0 %v10166
    %10327 = vmatprep.subr.bf16.mxu0 %v10171
    %10328 = vmatpush1.bf16.msra.mxu0 %v10170
    %10329 = vmatprep.subr.bf16.mxu0 %v10175
    %10330 = vmatpush1.bf16.msra.mxu0 %v10174
    %10331 = vmatprep.subr.bf16.mxu0 0
    %10332 = vmatpush1.bf16.msra.mxu0 0
    %10333 = vmatprep.subr.bf16.mxu0 0
    %10334 = vmatpush1.bf16.msra.mxu0 0
    %10335 = vmatprep.subr.bf16.mxu0 0
    %10336 = vmatpush1.bf16.msra.mxu0 0
    %10337 = vmatprep.subr.bf16.mxu0 0
    %10338 = vmatpush1.bf16.msra.mxu0 0
    %10339 = vmatprep.subr.bf16.mxu0 0
    %10340 = vmatpush1.bf16.msra.mxu0 0
    %10341 = vmatprep.subr.bf16.mxu0 0
    %10342 = vmatpush1.bf16.msra.mxu0 0
    %10343 = vmatprep.subr.bf16.mxu0 0
    %10344 = vmatpush1.bf16.msra.mxu0 0
    %10345 = vmatprep.subr.bf16.mxu0 0
    %10346 = vmatpush1.bf16.msra.mxu0 0
    %10347 = vmatprep.mubr.bf16.mxu0 0
    %10348 = vmatmul.mubr.bf16.gmra.mrb[0].mxu0 %v9790
    %v10349 = vpop.f32.mrb[0].mxu0
    %v10350 = vadd.f32 %v10309, %v10349
    %v10351 = vpop.f32.mrb[0].mxu0
    %v10352 = vadd.f32 %v10311, %v10351
    %v10353 = vpop.f32.mrb[0].mxu0
    %v10354 = vpop.f32.mrb[0].mxu0
    %10355 = vdwg.mxu0
    %10356 = vmatprep.subr.bf16.mxu0 %v10085
    %10357 = vmatpush1.bf16.msra.mxu0 %v10084
    %10358 = vmatprep.subr.bf16.mxu0 %v10089
    %10359 = vmatpush1.bf16.msra.mxu0 %v10088
    %10360 = vmatprep.subr.bf16.mxu0 %v10093
    %10361 = vmatpush1.bf16.msra.mxu0 %v10092
    %10362 = vmatprep.subr.bf16.mxu0 %v10097
    %10363 = vmatpush1.bf16.msra.mxu0 %v10096
    %10364 = vmatprep.subr.bf16.mxu0 %v10101
    %10365 = vmatpush1.bf16.msra.mxu0 %v10100
    %10366 = vmatprep.subr.bf16.mxu0 %v10105
    %10367 = vmatpush1.bf16.msra.mxu0 %v10104
    %10368 = vmatprep.subr.bf16.mxu0 %v10109
    %10369 = vmatpush1.bf16.msra.mxu0 %v10108
    %10370 = vmatprep.subr.bf16.mxu0 %v10113
    %10371 = vmatpush1.bf16.msra.mxu0 %v10112
    %10372 = vmatprep.subr.bf16.mxu0 %v10117
    %10373 = vmatpush1.bf16.msra.mxu0 %v10116
    %10374 = vmatprep.subr.bf16.mxu0 %v10121
    %10375 = vmatpush1.bf16.msra.mxu0 %v10120
    %10376 = vmatprep.subr.bf16.mxu0 %v10125
    %10377 = vmatpush1.bf16.msra.mxu0 %v10124
    %10378 = vmatprep.subr.bf16.mxu0 %v10129
    %10379 = vmatpush1.bf16.msra.mxu0 %v10128
    %10380 = vmatprep.subr.bf16.mxu0 %v10133
    %10381 = vmatpush1.bf16.msra.mxu0 %v10132
    %10382 = vmatprep.subr.bf16.mxu0 %v10137
    %10383 = vmatpush1.bf16.msra.mxu0 %v10136
    %10384 = vmatprep.subr.bf16.mxu0 %v10141
    %10385 = vmatpush1.bf16.msra.mxu0 %v10140
    %10386 = vmatprep.subr.bf16.mxu0 %v10145
    %10387 = vmatpush1.bf16.msra.mxu0 %v10144
    %10388 = vmatprep.mubr.bf16.mxu0 %v9789
    %10389 = vmatmul.mubr.bf16.gmra.mrb[0].mxu0 %v9788
    %v10390 = vpop.f32.mrb[0].mxu0
    %v10391 = vadd.f32 0.0, %v10390
    %v10392 = vpop.f32.mrb[0].mxu0
    %v10393 = vadd.f32 0.0, %v10392
    %v10394 = vpop.f32.mrb[0].mxu0
    %v10395 = vpop.f32.mrb[0].mxu0
    %10396 = vdwg.mxu0
    %10397 = vmatprep.subr.bf16.mxu0 %v10149
    %10398 = vmatpush1.bf16.msra.mxu0 %v10148
    %10399 = vmatprep.subr.bf16.mxu0 %v10153
    %10400 = vmatpush1.bf16.msra.mxu0 %v10152
    %10401 = vmatprep.subr.bf16.mxu0 %v10157
    %10402 = vmatpush1.bf16.msra.mxu0 %v10156
    %10403 = vmatprep.subr.bf16.mxu0 %v10161
    %10404 = vmatpush1.bf16.msra.mxu0 %v10160
    %10405 = vmatprep.subr.bf16.mxu0 %v10165
    %10406 = vmatpush1.bf16.msra.mxu0 %v10164
    %10407 = vmatprep.subr.bf16.mxu0 %v10169
    %10408 = vmatpush1.bf16.msra.mxu0 %v10168
    %10409 = vmatprep.subr.bf16.mxu0 %v10173
    %10410 = vmatpush1.bf16.msra.mxu0 %v10172
    %10411 = vmatprep.subr.bf16.mxu0 %v10177
    %10412 = vmatpush1.bf16.msra.mxu0 %v10176
    %10413 = vmatprep.subr.bf16.mxu0 0
    %10414 = vmatpush1.bf16.msra.mxu0 0
    %10415 = vmatprep.subr.bf16.mxu0 0
    %10416 = vmatpush1.bf16.msra.mxu0 0
    %10417 = vmatprep.subr.bf16.mxu0 0
    %10418 = vmatpush1.bf16.msra.mxu0 0
    %10419 = vmatprep.subr.bf16.mxu0 0
    %10420 = vmatpush1.bf16.msra.mxu0 0
    %10421 = vmatprep.subr.bf16.mxu0 0
    %10422 = vmatpush1.bf16.msra.mxu0 0
    %10423 = vmatprep.subr.bf16.mxu0 0
    %10424 = vmatpush1.bf16.msra.mxu0 0
    %10425 = vmatprep.subr.bf16.mxu0 0
    %10426 = vmatpush1.bf16.msra.mxu0 0
    %10427 = vmatprep.subr.bf16.mxu0 0
    %10428 = vmatpush1.bf16.msra.mxu0 0
    %10429 = vmatprep.mubr.bf16.mxu0 0
    %10430 = vmatmul.mubr.bf16.gmra.mrb[0].mxu0 %v9790
    %v10431 = vpop.f32.mrb[0].mxu0
    %v10432 = vadd.f32 %v10391, %v10431
    %v10433 = vpop.f32.mrb[0].mxu0
    %v10434 = vadd.f32 %v10393, %v10433
    %v10435 = vpop.f32.mrb[0].mxu0
    %v10436 = vpop.f32.mrb[0].mxu0
    %10437 = vdwg.mxu0
    %v10438 = vadd.f32 %v9604, %v10350
    %v10439 = vadd.f32 %v9606, %v10352
    %v10440 = vadd.f32 %v9686, %v10432
    %v10441 = vadd.f32 %v9688, %v10434
    %v10442 = vld [vmem:[%s4514] sm:$0xff]
    %v10443 = vld [vmem:[%s4514 + $0x8] sm:$0xff]
    %v10444 = vld [vmem:[%s4514 + $0x10] sm:$0xff]
    %v10445 = vld [vmem:[%s4514 + $0x18] sm:$0xff]
    %v10446 = vld [vmem:[%s4514 + $0x20] sm:$0xff]
    %v10447 = vld [vmem:[%s4514 + $0x28] sm:$0xff]
    %v10448 = vld [vmem:[%s4514 + $0x30] sm:$0xff]
    %v10449 = vld [vmem:[%s4514 + $0x38] sm:$0xff]
    %v10450 = vld [vmem:[%s4514 + $0x40] sm:$0xff]
    %v10451 = vld [vmem:[%s4514 + $0x48] sm:$0xff]
    %v10452 = vld [vmem:[%s4514 + $0x50] sm:$0xff]
    %v10453 = vld [vmem:[%s4514 + $0x58] sm:$0xff]
    %v10454 = vld [vmem:[%s4514 + $0x60] sm:$0xff]
    %v10455 = vld [vmem:[%s4514 + $0x68] sm:$0xff]
    %v10456 = vld [vmem:[%s4514 + $0x70] sm:$0xff]
    %v10457 = vld [vmem:[%s4514 + $0x78] sm:$0xff]
    %v10458 = vld [vmem:[%s4514 + $0x80] sm:$0xff]
    %v10459 = vld [vmem:[%s4514 + $0x88] sm:$0xff]
    %v10460 = vld [vmem:[%s4514 + $0x90] sm:$0xff]
    %v10461 = vld [vmem:[%s4514 + $0x98] sm:$0xff]
    %v10462 = vld [vmem:[%s4514 + $0xa0] sm:$0xff]
    %v10463 = vld [vmem:[%s4514 + $0xa8] sm:$0xff]
    %v10464 = vld [vmem:[%s4514 + $0xb0] sm:$0xff]
    %v10465 = vld [vmem:[%s4514 + $0xb8] sm:$0xff]
    %v10466 = vld [vmem:[%s4514 + $0xc0] sm:$0xff]
    %v10467 = vld [vmem:[%s4514 + $0xc8] sm:$0xff]
    %v10468 = vld [vmem:[%s4514 + $0xd0] sm:$0xff]
    %v10469 = vld [vmem:[%s4514 + $0xd8] sm:$0xff]
    %v10470 = vld [vmem:[%s4514 + $0xe0] sm:$0xff]
    %v10471 = vld [vmem:[%s4514 + $0xe8] sm:$0xff]
    %v10472 = vld [vmem:[%s4514 + $0xf0] sm:$0xff]
    %v10473 = vld [vmem:[%s4514 + $0xf8] sm:$0xff]
    %v10474 = vld [vmem:[%s4514 + $0x100] sm:$0xff]
    %v10475 = vld [vmem:[%s4514 + $0x108] sm:$0xff]
    %v10476 = vld [vmem:[%s4514 + $0x110] sm:$0xff]
    %v10477 = vld [vmem:[%s4514 + $0x118] sm:$0xff]
    %v10478 = vld [vmem:[%s4514 + $0x120] sm:$0xff]
    %v10479 = vld [vmem:[%s4514 + $0x128] sm:$0xff]
    %v10480 = vld [vmem:[%s4514 + $0x130] sm:$0xff]
    %v10481 = vld [vmem:[%s4514 + $0x138] sm:$0xff]
    %v10482 = vld [vmem:[%s4514 + $0x140] sm:$0xff]
    %v10483 = vld [vmem:[%s4514 + $0x148] sm:$0xff]
    %v10484 = vld [vmem:[%s4514 + $0x150] sm:$0xff]
    %v10485 = vld [vmem:[%s4514 + $0x158] sm:$0xff]
    %v10486 = vld [vmem:[%s4514 + $0x160] sm:$0xff]
    %v10487 = vld [vmem:[%s4514 + $0x168] sm:$0xff]
    %v10488 = vld [vmem:[%s4514 + $0x170] sm:$0xff]
    %v10489 = vld [vmem:[%s4514 + $0x178] sm:$0xff]
    %v10490 = vld [vmem:[%s4514 + $0x180] sm:$0xff]
    %v10491 = vld [vmem:[%s4514 + $0x188] sm:$0xff]
    %v10492 = vld [vmem:[%s4514 + $0x190] sm:$0xff]
    %v10493 = vld [vmem:[%s4514 + $0x198] sm:$0xff]
    %v10494 = vld [vmem:[%s4514 + $0x1a0] sm:$0xff]
    %v10495 = vld [vmem:[%s4514 + $0x1a8] sm:$0xff]
    %v10496 = vld [vmem:[%s4514 + $0x1b0] sm:$0xff]
    %v10497 = vld [vmem:[%s4514 + $0x1b8] sm:$0xff]
    %v10498 = vld [vmem:[%s4514 + $0x1c0] sm:$0xff]
    %v10499 = vld [vmem:[%s4514 + $0x1c8] sm:$0xff]
    %v10500 = vld [vmem:[%s4514 + $0x1d0] sm:$0xff]
    %v10501 = vld [vmem:[%s4514 + $0x1d8] sm:$0xff]
    %v10502 = vld [vmem:[%s4514 + $0x1e0] sm:$0xff]
    %v10503 = vld [vmem:[%s4514 + $0x1e8] sm:$0xff]
    %v10504 = vld [vmem:[%s4514 + $0x1f0] sm:$0xff]
    %v10505 = vld [vmem:[%s4514 + $0x1f8] sm:$0xff]
    %v10506 = vld [vmem:[%s4514 + $0x200] sm:$0xff]
    %v10507 = vld [vmem:[%s4514 + $0x208] sm:$0xff]
    %v10508 = vld [vmem:[%s4514 + $0x210] sm:$0xff]
    %v10509 = vld [vmem:[%s4514 + $0x218] sm:$0xff]
    %v10510 = vld [vmem:[%s4514 + $0x220] sm:$0xff]
    %v10511 = vld [vmem:[%s4514 + $0x228] sm:$0xff]
    %v10512 = vld [vmem:[%s4514 + $0x230] sm:$0xff]
    %v10513 = vld [vmem:[%s4514 + $0x238] sm:$0xff]
    %v10514 = vld [vmem:[%s4514 + $0x240] sm:$0xff]
    %v10515 = vld [vmem:[%s4514 + $0x248] sm:$0xff]
    %v10516 = vld [vmem:[%s4514 + $0x250] sm:$0xff]
    %v10517 = vld [vmem:[%s4514 + $0x258] sm:$0xff]
    %v10518 = vld [vmem:[%s4514 + $0x260] sm:$0xff]
    %v10519 = vld [vmem:[%s4514 + $0x268] sm:$0xff]
    %v10520 = vld [vmem:[%s4514 + $0x270] sm:$0xff]
    %v10521 = vld [vmem:[%s4514 + $0x278] sm:$0xff]
    %v10522 = vld [vmem:[%s4514 + $0x280] sm:$0xff]
    %v10523 = vld [vmem:[%s4514 + $0x288] sm:$0xff]
    %v10524 = vld [vmem:[%s4514 + $0x290] sm:$0xff]
    %v10525 = vld [vmem:[%s4514 + $0x298] sm:$0xff]
    %v10526 = vld [vmem:[%s4514 + $0x2a0] sm:$0xff]
    %v10527 = vld [vmem:[%s4514 + $0x2a8] sm:$0xff]
    %v10528 = vld [vmem:[%s4514 + $0x2b0] sm:$0xff]
    %v10529 = vld [vmem:[%s4514 + $0x2b8] sm:$0xff]
    %v10530 = vld [vmem:[%s4514 + $0x2c0] sm:$0xff]
    %v10531 = vld [vmem:[%s4514 + $0x2c8] sm:$0xff]
    %v10532 = vld [vmem:[%s4514 + $0x2d0] sm:$0xff]
    %v10533 = vld [vmem:[%s4514 + $0x2d8] sm:$0xff]
    %v10534 = vld [vmem:[%s4514 + $0x2e0] sm:$0xff]
    %v10535 = vld [vmem:[%s4514 + $0x2e8] sm:$0xff]
    %v10536 = vld [vmem:[%s4514 + $0x2f0] sm:$0xff]
    %v10537 = vld [vmem:[%s4514 + $0x2f8] sm:$0xff]
    %v10538 = vrot.slane %v8200, 3
    %v10539 = vrot.slane %v8201, 3
    %v10540 = vrot.slane %v8202, 3
    %v10640 = vunpack.c.l.b16 %v10442
    %v10641 = vunpack.c.h.b16 %v10442
    %v10642 = vunpack.c.l.b16 %v10443
    %v10643 = vunpack.c.h.b16 %v10443
    %v10644 = vunpack.c.l.b16 %v10444
    %v10645 = vunpack.c.h.b16 %v10444
    %v10646 = vunpack.c.l.b16 %v10445
    %v10647 = vunpack.c.h.b16 %v10445
    %v10648 = vunpack.c.l.b16 %v10446
    %v10649 = vunpack.c.h.b16 %v10446
    %v10650 = vunpack.c.l.b16 %v10447
    %v10651 = vunpack.c.h.b16 %v10447
    %v10652 = vunpack.c.l.b16 %v10448
    %v10653 = vunpack.c.h.b16 %v10448
    %v10654 = vunpack.c.l.b16 %v10449
    %v10655 = vunpack.c.h.b16 %v10449
    %v10656 = vunpack.c.l.b16 %v10450
    %v10657 = vunpack.c.h.b16 %v10450
    %v10658 = vunpack.c.l.b16 %v10451
    %v10659 = vunpack.c.h.b16 %v10451
    %v10660 = vunpack.c.l.b16 %v10452
    %v10661 = vunpack.c.h.b16 %v10452
    %v10662 = vunpack.c.l.b16 %v10453
    %v10663 = vunpack.c.h.b16 %v10453
    %v10664 = vunpack.c.l.b16 %v10454
    %v10665 = vunpack.c.h.b16 %v10454
    %v10666 = vunpack.c.l.b16 %v10455
    %v10667 = vunpack.c.h.b16 %v10455
    %v10668 = vunpack.c.l.b16 %v10456
    %v10669 = vunpack.c.h.b16 %v10456
    %v10670 = vunpack.c.l.b16 %v10457
    %v10671 = vunpack.c.h.b16 %v10457
    %v10672 = vunpack.c.l.b16 %v10458
    %v10673 = vunpack.c.h.b16 %v10458
    %v10674 = vunpack.c.l.b16 %v10459
    %v10675 = vunpack.c.h.b16 %v10459
    %v10676 = vunpack.c.l.b16 %v10460
    %v10677 = vunpack.c.h.b16 %v10460
    %v10678 = vunpack.c.l.b16 %v10461
    %v10679 = vunpack.c.h.b16 %v10461
    %v10680 = vunpack.c.l.b16 %v10462
    %v10681 = vunpack.c.h.b16 %v10462
    %v10682 = vunpack.c.l.b16 %v10463
    %v10683 = vunpack.c.h.b16 %v10463
    %v10684 = vunpack.c.l.b16 %v10464
    %v10685 = vunpack.c.h.b16 %v10464
    %v10686 = vunpack.c.l.b16 %v10465
    %v10687 = vunpack.c.h.b16 %v10465
    %v10688 = vunpack.c.l.b16 %v10466
    %v10689 = vunpack.c.h.b16 %v10466
    %v10690 = vunpack.c.l.b16 %v10467
    %v10691 = vunpack.c.h.b16 %v10467
    %v10692 = vunpack.c.l.b16 %v10468
    %v10693 = vunpack.c.h.b16 %v10468
    %v10694 = vunpack.c.l.b16 %v10469
    %v10695 = vunpack.c.h.b16 %v10469
    %v10696 = vunpack.c.l.b16 %v10470
    %v10697 = vunpack.c.h.b16 %v10470
    %v10698 = vunpack.c.l.b16 %v10471
    %v10699 = vunpack.c.h.b16 %v10471
    %v10700 = vunpack.c.l.b16 %v10472
    %v10701 = vunpack.c.h.b16 %v10472
    %v10702 = vunpack.c.l.b16 %v10473
    %v10703 = vunpack.c.h.b16 %v10473
    %v10704 = vunpack.c.l.b16 %v10474
    %v10705 = vunpack.c.h.b16 %v10474
    %v10706 = vunpack.c.l.b16 %v10475
    %v10707 = vunpack.c.h.b16 %v10475
    %v10708 = vunpack.c.l.b16 %v10476
    %v10709 = vunpack.c.h.b16 %v10476
    %v10710 = vunpack.c.l.b16 %v10477
    %v10711 = vunpack.c.h.b16 %v10477
    %v10712 = vunpack.c.l.b16 %v10478
    %v10713 = vunpack.c.h.b16 %v10478
    %v10714 = vunpack.c.l.b16 %v10479
    %v10715 = vunpack.c.h.b16 %v10479
    %v10716 = vunpack.c.l.b16 %v10480
    %v10717 = vunpack.c.h.b16 %v10480
    %v10718 = vunpack.c.l.b16 %v10481
    %v10719 = vunpack.c.h.b16 %v10481
    %v10720 = vunpack.c.l.b16 %v10482
    %v10721 = vunpack.c.h.b16 %v10482
    %v10722 = vunpack.c.l.b16 %v10483
    %v10723 = vunpack.c.h.b16 %v10483
    %v10724 = vunpack.c.l.b16 %v10484
    %v10725 = vunpack.c.h.b16 %v10484
    %v10726 = vunpack.c.l.b16 %v10485
    %v10727 = vunpack.c.h.b16 %v10485
    %v10728 = vunpack.c.l.b16 %v10486
    %v10729 = vunpack.c.h.b16 %v10486
    %v10730 = vunpack.c.l.b16 %v10487
    %v10731 = vunpack.c.h.b16 %v10487
    %v10732 = vunpack.c.l.b16 %v10488
    %v10733 = vunpack.c.h.b16 %v10488
    %v10734 = vunpack.c.l.b16 %v10489
    %v10735 = vunpack.c.h.b16 %v10489
    %v10736 = vunpack.c.l.b16 %v10490
    %v10737 = vunpack.c.h.b16 %v10490
    %v10738 = vunpack.c.l.b16 %v10491
    %v10739 = vunpack.c.h.b16 %v10491
    %v10740 = vunpack.c.l.b16 %v10492
    %v10741 = vunpack.c.h.b16 %v10492
    %v10742 = vunpack.c.l.b16 %v10493
    %v10743 = vunpack.c.h.b16 %v10493
    %v10744 = vunpack.c.l.b16 %v10494
    %v10745 = vunpack.c.h.b16 %v10494
    %v10746 = vunpack.c.l.b16 %v10495
    %v10747 = vunpack.c.h.b16 %v10495
    %v10748 = vunpack.c.l.b16 %v10496
    %v10749 = vunpack.c.h.b16 %v10496
    %v10750 = vunpack.c.l.b16 %v10497
    %v10751 = vunpack.c.h.b16 %v10497
    %v10752 = vunpack.c.l.b16 %v10498
    %v10753 = vunpack.c.h.b16 %v10498
    %v10754 = vunpack.c.l.b16 %v10499
    %v10755 = vunpack.c.h.b16 %v10499
    %v10756 = vunpack.c.l.b16 %v10500
    %v10757 = vunpack.c.h.b16 %v10500
    %v10758 = vunpack.c.l.b16 %v10501
    %v10759 = vunpack.c.h.b16 %v10501
    %v10760 = vunpack.c.l.b16 %v10502
    %v10761 = vunpack.c.h.b16 %v10502
    %v10762 = vunpack.c.l.b16 %v10503
    %v10763 = vunpack.c.h.b16 %v10503
    %v10764 = vunpack.c.l.b16 %v10504
    %v10765 = vunpack.c.h.b16 %v10504
    %v10766 = vunpack.c.l.b16 %v10505
    %v10767 = vunpack.c.h.b16 %v10505
    %v10768 = vunpack.c.l.b16 %v10506
    %v10769 = vunpack.c.h.b16 %v10506
    %v10770 = vunpack.c.l.b16 %v10507
    %v10771 = vunpack.c.h.b16 %v10507
    %v10772 = vunpack.c.l.b16 %v10508
    %v10773 = vunpack.c.h.b16 %v10508
    %v10774 = vunpack.c.l.b16 %v10509
    %v10775 = vunpack.c.h.b16 %v10509
    %v10776 = vunpack.c.l.b16 %v10510
    %v10777 = vunpack.c.h.b16 %v10510
    %v10778 = vunpack.c.l.b16 %v10511
    %v10779 = vunpack.c.h.b16 %v10511
    %v10780 = vunpack.c.l.b16 %v10512
    %v10781 = vunpack.c.h.b16 %v10512
    %v10782 = vunpack.c.l.b16 %v10513
    %v10783 = vunpack.c.h.b16 %v10513
    %v10784 = vunpack.c.l.b16 %v10514
    %v10785 = vunpack.c.h.b16 %v10514
    %v10786 = vunpack.c.l.b16 %v10515
    %v10787 = vunpack.c.h.b16 %v10515
    %v10788 = vunpack.c.l.b16 %v10516
    %v10789 = vunpack.c.h.b16 %v10516
    %v10790 = vunpack.c.l.b16 %v10517
    %v10791 = vunpack.c.h.b16 %v10517
    %v10792 = vunpack.c.l.b16 %v10518
    %v10793 = vunpack.c.h.b16 %v10518
    %v10794 = vunpack.c.l.b16 %v10519
    %v10795 = vunpack.c.h.b16 %v10519
    %v10796 = vunpack.c.l.b16 %v10520
    %v10797 = vunpack.c.h.b16 %v10520
    %v10798 = vunpack.c.l.b16 %v10521
    %v10799 = vunpack.c.h.b16 %v10521
    %v10800 = vunpack.c.l.b16 %v10522
    %v10801 = vunpack.c.h.b16 %v10522
    %v10802 = vunpack.c.l.b16 %v10523
    %v10803 = vunpack.c.h.b16 %v10523
    %v10804 = vunpack.c.l.b16 %v10524
    %v10805 = vunpack.c.h.b16 %v10524
    %v10806 = vunpack.c.l.b16 %v10525
    %v10807 = vunpack.c.h.b16 %v10525
    %v10808 = vunpack.c.l.b16 %v10526
    %v10809 = vunpack.c.h.b16 %v10526
    %v10810 = vunpack.c.l.b16 %v10527
    %v10811 = vunpack.c.h.b16 %v10527
    %v10812 = vunpack.c.l.b16 %v10528
    %v10813 = vunpack.c.h.b16 %v10528
    %v10814 = vunpack.c.l.b16 %v10529
    %v10815 = vunpack.c.h.b16 %v10529
    %v10816 = vunpack.c.l.b16 %v10530
    %v10817 = vunpack.c.h.b16 %v10530
    %v10818 = vunpack.c.l.b16 %v10531
    %v10819 = vunpack.c.h.b16 %v10531
    %v10820 = vunpack.c.l.b16 %v10532
    %v10821 = vunpack.c.h.b16 %v10532
    %v10822 = vunpack.c.l.b16 %v10533
    %v10823 = vunpack.c.h.b16 %v10533
    %v10824 = vunpack.c.l.b16 %v10534
    %v10825 = vunpack.c.h.b16 %v10534
    %v10826 = vunpack.c.l.b16 %v10535
    %v10827 = vunpack.c.h.b16 %v10535
    %v10828 = vunpack.c.l.b16 %v10536
    %v10829 = vunpack.c.h.b16 %v10536
    %v10830 = vunpack.c.l.b16 %v10537
    %v10831 = vunpack.c.h.b16 %v10537
    %v10832 = vpack.c.b16 %v10644, %v10640
    %v10833 = vpack.c.b16 %v10645, %v10641
    %v10834 = vpack.c.b16 %v10646, %v10642
    %v10835 = vpack.c.b16 %v10647, %v10643
    %v10836 = vpack.c.b16 %v10652, %v10648
    %v10837 = vpack.c.b16 %v10653, %v10649
    %v10838 = vpack.c.b16 %v10654, %v10650
    %v10839 = vpack.c.b16 %v10655, %v10651
    %v10840 = vpack.c.b16 %v10660, %v10656
    %v10841 = vpack.c.b16 %v10661, %v10657
    %v10842 = vpack.c.b16 %v10662, %v10658
    %v10843 = vpack.c.b16 %v10663, %v10659
    %v10844 = vpack.c.b16 %v10668, %v10664
    %v10845 = vpack.c.b16 %v10669, %v10665
    %v10846 = vpack.c.b16 %v10670, %v10666
    %v10847 = vpack.c.b16 %v10671, %v10667
    %v10848 = vpack.c.b16 %v10676, %v10672
    %v10849 = vpack.c.b16 %v10677, %v10673
    %v10850 = vpack.c.b16 %v10678, %v10674
    %v10851 = vpack.c.b16 %v10679, %v10675
    %v10852 = vpack.c.b16 %v10684, %v10680
    %v10853 = vpack.c.b16 %v10685, %v10681
    %v10854 = vpack.c.b16 %v10686, %v10682
    %v10855 = vpack.c.b16 %v10687, %v10683
    %v10856 = vpack.c.b16 %v10692, %v10688
    %v10857 = vpack.c.b16 %v10693, %v10689
    %v10858 = vpack.c.b16 %v10694, %v10690
    %v10859 = vpack.c.b16 %v10695, %v10691
    %v10860 = vpack.c.b16 %v10700, %v10696
    %v10861 = vpack.c.b16 %v10701, %v10697
    %v10862 = vpack.c.b16 %v10702, %v10698
    %v10863 = vpack.c.b16 %v10703, %v10699
    %v10864 = vpack.c.b16 %v10708, %v10704
    %v10865 = vpack.c.b16 %v10709, %v10705
    %v10866 = vpack.c.b16 %v10710, %v10706
    %v10867 = vpack.c.b16 %v10711, %v10707
    %v10868 = vpack.c.b16 %v10716, %v10712
    %v10869 = vpack.c.b16 %v10717, %v10713
    %v10870 = vpack.c.b16 %v10718, %v10714
    %v10871 = vpack.c.b16 %v10719, %v10715
    %v10872 = vpack.c.b16 %v10724, %v10720
    %v10873 = vpack.c.b16 %v10725, %v10721
    %v10874 = vpack.c.b16 %v10726, %v10722
    %v10875 = vpack.c.b16 %v10727, %v10723
    %v10876 = vpack.c.b16 %v10732, %v10728
    %v10877 = vpack.c.b16 %v10733, %v10729
    %v10878 = vpack.c.b16 %v10734, %v10730
    %v10879 = vpack.c.b16 %v10735, %v10731
    %v10880 = vpack.c.b16 %v10740, %v10736
    %v10881 = vpack.c.b16 %v10741, %v10737
    %v10882 = vpack.c.b16 %v10742, %v10738
    %v10883 = vpack.c.b16 %v10743, %v10739
    %v10884 = vpack.c.b16 %v10748, %v10744
    %v10885 = vpack.c.b16 %v10749, %v10745
    %v10886 = vpack.c.b16 %v10750, %v10746
    %v10887 = vpack.c.b16 %v10751, %v10747
    %v10888 = vpack.c.b16 %v10756, %v10752
    %v10889 = vpack.c.b16 %v10757, %v10753
    %v10890 = vpack.c.b16 %v10758, %v10754
    %v10891 = vpack.c.b16 %v10759, %v10755
    %v10892 = vpack.c.b16 %v10764, %v10760
    %v10893 = vpack.c.b16 %v10765, %v10761
    %v10894 = vpack.c.b16 %v10766, %v10762
    %v10895 = vpack.c.b16 %v10767, %v10763
    %v10896 = vpack.c.b16 %v10772, %v10768
    %v10897 = vpack.c.b16 %v10773, %v10769
    %v10898 = vpack.c.b16 %v10774, %v10770
    %v10899 = vpack.c.b16 %v10775, %v10771
    %v10900 = vpack.c.b16 %v10780, %v10776
    %v10901 = vpack.c.b16 %v10781, %v10777
    %v10902 = vpack.c.b16 %v10782, %v10778
    %v10903 = vpack.c.b16 %v10783, %v10779
    %v10904 = vpack.c.b16 %v10788, %v10784
    %v10905 = vpack.c.b16 %v10789, %v10785
    %v10906 = vpack.c.b16 %v10790, %v10786
    %v10907 = vpack.c.b16 %v10791, %v10787
    %v10908 = vpack.c.b16 %v10796, %v10792
    %v10909 = vpack.c.b16 %v10797, %v10793
    %v10910 = vpack.c.b16 %v10798, %v10794
    %v10911 = vpack.c.b16 %v10799, %v10795
    %v10912 = vpack.c.b16 %v10804, %v10800
    %v10913 = vpack.c.b16 %v10805, %v10801
    %v10914 = vpack.c.b16 %v10806, %v10802
    %v10915 = vpack.c.b16 %v10807, %v10803
    %v10916 = vpack.c.b16 %v10812, %v10808
    %v10917 = vpack.c.b16 %v10813, %v10809
    %v10918 = vpack.c.b16 %v10814, %v10810
    %v10919 = vpack.c.b16 %v10815, %v10811
    %v10920 = vpack.c.b16 %v10820, %v10816
    %v10921 = vpack.c.b16 %v10821, %v10817
    %v10922 = vpack.c.b16 %v10822, %v10818
    %v10923 = vpack.c.b16 %v10823, %v10819
    %v10924 = vpack.c.b16 %v10828, %v10824
    %v10925 = vpack.c.b16 %v10829, %v10825
    %v10926 = vpack.c.b16 %v10830, %v10826
    %v10927 = vpack.c.b16 %v10831, %v10827
    %11024 = vmatprep.subr.bf16.mxu0 %v10833
    %11025 = vmatpush1.bf16.msra.mxu0 %v10832
    %11026 = vmatprep.subr.bf16.mxu0 %v10837
    %11027 = vmatpush1.bf16.msra.mxu0 %v10836
    %11028 = vmatprep.subr.bf16.mxu0 %v10841
    %11029 = vmatpush1.bf16.msra.mxu0 %v10840
    %11030 = vmatprep.subr.bf16.mxu0 %v10845
    %11031 = vmatpush1.bf16.msra.mxu0 %v10844
    %11032 = vmatprep.subr.bf16.mxu0 %v10849
    %11033 = vmatpush1.bf16.msra.mxu0 %v10848
    %11034 = vmatprep.subr.bf16.mxu0 %v10853
    %11035 = vmatpush1.bf16.msra.mxu0 %v10852
    %11036 = vmatprep.subr.bf16.mxu0 %v10857
    %11037 = vmatpush1.bf16.msra.mxu0 %v10856
    %11038 = vmatprep.subr.bf16.mxu0 %v10861
    %11039 = vmatpush1.bf16.msra.mxu0 %v10860
    %11040 = vmatprep.subr.bf16.mxu0 %v10865
    %11041 = vmatpush1.bf16.msra.mxu0 %v10864
    %11042 = vmatprep.subr.bf16.mxu0 %v10869
    %11043 = vmatpush1.bf16.msra.mxu0 %v10868
    %11044 = vmatprep.subr.bf16.mxu0 %v10873
    %11045 = vmatpush1.bf16.msra.mxu0 %v10872
    %11046 = vmatprep.subr.bf16.mxu0 %v10877
    %11047 = vmatpush1.bf16.msra.mxu0 %v10876
    %11048 = vmatprep.subr.bf16.mxu0 %v10881
    %11049 = vmatpush1.bf16.msra.mxu0 %v10880
    %11050 = vmatprep.subr.bf16.mxu0 %v10885
    %11051 = vmatpush1.bf16.msra.mxu0 %v10884
    %11052 = vmatprep.subr.bf16.mxu0 %v10889
    %11053 = vmatpush1.bf16.msra.mxu0 %v10888
    %11054 = vmatprep.subr.bf16.mxu0 %v10893
    %11055 = vmatpush1.bf16.msra.mxu0 %v10892
    %11056 = vmatprep.mubr.bf16.mxu0 %v10539
    %11057 = vmatmul.mubr.bf16.gmra.mrb[0].mxu0 %v10538
    %v11058 = vpop.f32.mrb[0].mxu0
    %v11059 = vadd.f32 0.0, %v11058
    %v11060 = vpop.f32.mrb[0].mxu0
    %v11061 = vadd.f32 0.0, %v11060
    %v11062 = vpop.f32.mrb[0].mxu0
    %v11063 = vpop.f32.mrb[0].mxu0
    %11064 = vdwg.mxu0
    %11065 = vmatprep.subr.bf16.mxu0 %v10897
    %11066 = vmatpush1.bf16.msra.mxu0 %v10896
    %11067 = vmatprep.subr.bf16.mxu0 %v10901
    %11068 = vmatpush1.bf16.msra.mxu0 %v10900
    %11069 = vmatprep.subr.bf16.mxu0 %v10905
    %11070 = vmatpush1.bf16.msra.mxu0 %v10904
    %11071 = vmatprep.subr.bf16.mxu0 %v10909
    %11072 = vmatpush1.bf16.msra.mxu0 %v10908
    %11073 = vmatprep.subr.bf16.mxu0 %v10913
    %11074 = vmatpush1.bf16.msra.mxu0 %v10912
    %11075 = vmatprep.subr.bf16.mxu0 %v10917
    %11076 = vmatpush1.bf16.msra.mxu0 %v10916
    %11077 = vmatprep.subr.bf16.mxu0 %v10921
    %11078 = vmatpush1.bf16.msra.mxu0 %v10920
    %11079 = vmatprep.subr.bf16.mxu0 %v10925
    %11080 = vmatpush1.bf16.msra.mxu0 %v10924
    %11081 = vmatprep.subr.bf16.mxu0 0
    %11082 = vmatpush1.bf16.msra.mxu0 0
    %11083 = vmatprep.subr.bf16.mxu0 0
    %11084 = vmatpush1.bf16.msra.mxu0 0
    %11085 = vmatprep.subr.bf16.mxu0 0
    %11086 = vmatpush1.bf16.msra.mxu0 0
    %11087 = vmatprep.subr.bf16.mxu0 0
    %11088 = vmatpush1.bf16.msra.mxu0 0
    %11089 = vmatprep.subr.bf16.mxu0 0
    %11090 = vmatpush1.bf16.msra.mxu0 0
    %11091 = vmatprep.subr.bf16.mxu0 0
    %11092 = vmatpush1.bf16.msra.mxu0 0
    %11093 = vmatprep.subr.bf16.mxu0 0
    %11094 = vmatpush1.bf16.msra.mxu0 0
    %11095 = vmatprep.subr.bf16.mxu0 0
    %11096 = vmatpush1.bf16.msra.mxu0 0
    %11097 = vmatprep.mubr.bf16.mxu0 0
    %11098 = vmatmul.mubr.bf16.gmra.mrb[0].mxu0 %v10540
    %v11099 = vpop.f32.mrb[0].mxu0
    %v11100 = vadd.f32 %v11059, %v11099
    %v11101 = vpop.f32.mrb[0].mxu0
    %v11102 = vadd.f32 %v11061, %v11101
    %v11103 = vpop.f32.mrb[0].mxu0
    %v11104 = vpop.f32.mrb[0].mxu0
    %11105 = vdwg.mxu0
    %11106 = vmatprep.subr.bf16.mxu0 %v10835
    %11107 = vmatpush1.bf16.msra.mxu0 %v10834
    %11108 = vmatprep.subr.bf16.mxu0 %v10839
    %11109 = vmatpush1.bf16.msra.mxu0 %v10838
    %11110 = vmatprep.subr.bf16.mxu0 %v10843
    %11111 = vmatpush1.bf16.msra.mxu0 %v10842
    %11112 = vmatprep.subr.bf16.mxu0 %v10847
    %11113 = vmatpush1.bf16.msra.mxu0 %v10846
    %11114 = vmatprep.subr.bf16.mxu0 %v10851
    %11115 = vmatpush1.bf16.msra.mxu0 %v10850
    %11116 = vmatprep.subr.bf16.mxu0 %v10855
    %11117 = vmatpush1.bf16.msra.mxu0 %v10854
    %11118 = vmatprep.subr.bf16.mxu0 %v10859
    %11119 = vmatpush1.bf16.msra.mxu0 %v10858
    %11120 = vmatprep.subr.bf16.mxu0 %v10863
    %11121 = vmatpush1.bf16.msra.mxu0 %v10862
    %11122 = vmatprep.subr.bf16.mxu0 %v10867
    %11123 = vmatpush1.bf16.msra.mxu0 %v10866
    %11124 = vmatprep.subr.bf16.mxu0 %v10871
    %11125 = vmatpush1.bf16.msra.mxu0 %v10870
    %11126 = vmatprep.subr.bf16.mxu0 %v10875
    %11127 = vmatpush1.bf16.msra.mxu0 %v10874
    %11128 = vmatprep.subr.bf16.mxu0 %v10879
    %11129 = vmatpush1.bf16.msra.mxu0 %v10878
    %11130 = vmatprep.subr.bf16.mxu0 %v10883
    %11131 = vmatpush1.bf16.msra.mxu0 %v10882
    %11132 = vmatprep.subr.bf16.mxu0 %v10887
    %11133 = vmatpush1.bf16.msra.mxu0 %v10886
    %11134 = vmatprep.subr.bf16.mxu0 %v10891
    %11135 = vmatpush1.bf16.msra.mxu0 %v10890
    %11136 = vmatprep.subr.bf16.mxu0 %v10895
    %11137 = vmatpush1.bf16.msra.mxu0 %v10894
    %11138 = vmatprep.mubr.bf16.mxu0 %v10539
    %11139 = vmatmul.mubr.bf16.gmra.mrb[0].mxu0 %v10538
    %v11140 = vpop.f32.mrb[0].mxu0
    %v11141 = vadd.f32 0.0, %v11140
    %v11142 = vpop.f32.mrb[0].mxu0
    %v11143 = vadd.f32 0.0, %v11142
    %v11144 = vpop.f32.mrb[0].mxu0
    %v11145 = vpop.f32.mrb[0].mxu0
    %11146 = vdwg.mxu0
    %11147 = vmatprep.subr.bf16.mxu0 %v10899
    %11148 = vmatpush1.bf16.msra.mxu0 %v10898
    %11149 = vmatprep.subr.bf16.mxu0 %v10903
    %11150 = vmatpush1.bf16.msra.mxu0 %v10902
    %11151 = vmatprep.subr.bf16.mxu0 %v10907
    %11152 = vmatpush1.bf16.msra.mxu0 %v10906
    %11153 = vmatprep.subr.bf16.mxu0 %v10911
    %11154 = vmatpush1.bf16.msra.mxu0 %v10910
    %11155 = vmatprep.subr.bf16.mxu0 %v10915
    %11156 = vmatpush1.bf16.msra.mxu0 %v10914
    %11157 = vmatprep.subr.bf16.mxu0 %v10919
    %11158 = vmatpush1.bf16.msra.mxu0 %v10918
    %11159 = vmatprep.subr.bf16.mxu0 %v10923
    %11160 = vmatpush1.bf16.msra.mxu0 %v10922
    %11161 = vmatprep.subr.bf16.mxu0 %v10927
    %11162 = vmatpush1.bf16.msra.mxu0 %v10926
    %11163 = vmatprep.subr.bf16.mxu0 0
    %11164 = vmatpush1.bf16.msra.mxu0 0
    %11165 = vmatprep.subr.bf16.mxu0 0
    %11166 = vmatpush1.bf16.msra.mxu0 0
    %11167 = vmatprep.subr.bf16.mxu0 0
    %11168 = vmatpush1.bf16.msra.mxu0 0
    %11169 = vmatprep.subr.bf16.mxu0 0
    %11170 = vmatpush1.bf16.msra.mxu0 0
    %11171 = vmatprep.subr.bf16.mxu0 0
    %11172 = vmatpush1.bf16.msra.mxu0 0
    %11173 = vmatprep.subr.bf16.mxu0 0
    %11174 = vmatpush1.bf16.msra.mxu0 0
    %11175 = vmatprep.subr.bf16.mxu0 0
    %11176 = vmatpush1.bf16.msra.mxu0 0
    %11177 = vmatprep.subr.bf16.mxu0 0
    %11178 = vmatpush1.bf16.msra.mxu0 0
    %11179 = vmatprep.mubr.bf16.mxu0 0
    %11180 = vmatmul.mubr.bf16.gmra.mrb[0].mxu0 %v10540
    %v11181 = vpop.f32.mrb[0].mxu0
    %v11182 = vadd.f32 %v11141, %v11181
    %v11183 = vpop.f32.mrb[0].mxu0
    %v11184 = vadd.f32 %v11143, %v11183
    %v11185 = vpop.f32.mrb[0].mxu0
    %v11186 = vpop.f32.mrb[0].mxu0
    %11187 = vdwg.mxu0
    %v11188 = vadd.f32 %v10438, %v11100
    %v11189 = vadd.f32 %v10439, %v11102
    %v11190 = vadd.f32 %v10440, %v11182
    %v11191 = vadd.f32 %v10441, %v11184
    %v11195 = vrot.slane %v8185, 1
    %v11196 = vrot.slane %v8186, 1
    %v11197 = vrot.slane %v8187, 1
    %v11201 = vmax.f32 %v8185, %v11195
    %v11202 = vmax.f32 %v8186, %v11196
    %v11203 = vmax.f32 %v8187, %v11197
    %v11204 = vpack.c.bf16 %v11201, %v11201
    %v11205 = vpack.c.bf16 %v11202, %v11202
    %v11206 = vpack.c.bf16 %v11203, %v11203
    %v11207 = vld [vmem:[%s5280] sm:$0xff]
    %v11208 = vld [vmem:[%s5280 + $0x8] sm:$0xff]
    %v11209 = vld [vmem:[%s5280 + $0x10] sm:$0xff]
    %v11210 = vld [vmem:[%s5280 + $0x18] sm:$0xff]
    %v11211 = vld [vmem:[%s5280 + $0x20] sm:$0xff]
    %v11212 = vld [vmem:[%s5280 + $0x28] sm:$0xff]
    %v11213 = vld [vmem:[%s5280 + $0x30] sm:$0xff]
    %v11214 = vld [vmem:[%s5280 + $0x38] sm:$0xff]
    %v11215 = vld [vmem:[%s5280 + $0x40] sm:$0xff]
    %v11216 = vld [vmem:[%s5280 + $0x48] sm:$0xff]
    %v11217 = vld [vmem:[%s5280 + $0x50] sm:$0xff]
    %v11218 = vld [vmem:[%s5280 + $0x58] sm:$0xff]
    %v11219 = vld [vmem:[%s5280 + $0x60] sm:$0xff]
    %v11220 = vld [vmem:[%s5280 + $0x68] sm:$0xff]
    %v11221 = vld [vmem:[%s5280 + $0x70] sm:$0xff]
    %v11222 = vld [vmem:[%s5280 + $0x78] sm:$0xff]
    %v11223 = vld [vmem:[%s5280 + $0x80] sm:$0xff]
    %v11224 = vld [vmem:[%s5280 + $0x88] sm:$0xff]
    %v11225 = vld [vmem:[%s5280 + $0x90] sm:$0xff]
    %v11226 = vld [vmem:[%s5280 + $0x98] sm:$0xff]
    %v11227 = vld [vmem:[%s5280 + $0xa0] sm:$0xff]
    %v11228 = vld [vmem:[%s5280 + $0xa8] sm:$0xff]
    %v11229 = vld [vmem:[%s5280 + $0xb0] sm:$0xff]
    %v11230 = vld [vmem:[%s5280 + $0xb8] sm:$0xff]
    %v11231 = vld [vmem:[%s5280 + $0xc0] sm:$0xff]
    %v11232 = vld [vmem:[%s5280 + $0xc8] sm:$0xff]
    %v11233 = vld [vmem:[%s5280 + $0xd0] sm:$0xff]
    %v11234 = vld [vmem:[%s5280 + $0xd8] sm:$0xff]
    %v11235 = vld [vmem:[%s5280 + $0xe0] sm:$0xff]
    %v11236 = vld [vmem:[%s5280 + $0xe8] sm:$0xff]
    %v11237 = vld [vmem:[%s5280 + $0xf0] sm:$0xff]
    %v11238 = vld [vmem:[%s5280 + $0xf8] sm:$0xff]
    %v11239 = vld [vmem:[%s5280 + $0x100] sm:$0xff]
    %v11240 = vld [vmem:[%s5280 + $0x108] sm:$0xff]
    %v11241 = vld [vmem:[%s5280 + $0x110] sm:$0xff]
    %v11242 = vld [vmem:[%s5280 + $0x118] sm:$0xff]
    %v11243 = vld [vmem:[%s5280 + $0x120] sm:$0xff]
    %v11244 = vld [vmem:[%s5280 + $0x128] sm:$0xff]
    %v11245 = vld [vmem:[%s5280 + $0x130] sm:$0xff]
    %v11246 = vld [vmem:[%s5280 + $0x138] sm:$0xff]
    %v11247 = vld [vmem:[%s5280 + $0x140] sm:$0xff]
    %v11248 = vld [vmem:[%s5280 + $0x148] sm:$0xff]
    %v11249 = vld [vmem:[%s5280 + $0x150] sm:$0xff]
    %v11250 = vld [vmem:[%s5280 + $0x158] sm:$0xff]
    %v11251 = vld [vmem:[%s5280 + $0x160] sm:$0xff]
    %v11252 = vld [vmem:[%s5280 + $0x168] sm:$0xff]
    %v11253 = vld [vmem:[%s5280 + $0x170] sm:$0xff]
    %v11254 = vld [vmem:[%s5280 + $0x178] sm:$0xff]
    %v11255 = vld [vmem:[%s5280 + $0x180] sm:$0xff]
    %v11256 = vld [vmem:[%s5280 + $0x188] sm:$0xff]
    %v11257 = vld [vmem:[%s5280 + $0x190] sm:$0xff]
    %v11258 = vld [vmem:[%s5280 + $0x198] sm:$0xff]
    %v11259 = vld [vmem:[%s5280 + $0x1a0] sm:$0xff]
    %v11260 = vld [vmem:[%s5280 + $0x1a8] sm:$0xff]
    %v11261 = vld [vmem:[%s5280 + $0x1b0] sm:$0xff]
    %v11262 = vld [vmem:[%s5280 + $0x1b8] sm:$0xff]
    %v11263 = vld [vmem:[%s5280 + $0x1c0] sm:$0xff]
    %v11264 = vld [vmem:[%s5280 + $0x1c8] sm:$0xff]
    %v11265 = vld [vmem:[%s5280 + $0x1d0] sm:$0xff]
    %v11266 = vld [vmem:[%s5280 + $0x1d8] sm:$0xff]
    %v11267 = vld [vmem:[%s5280 + $0x1e0] sm:$0xff]
    %v11268 = vld [vmem:[%s5280 + $0x1e8] sm:$0xff]
    %v11269 = vld [vmem:[%s5280 + $0x1f0] sm:$0xff]
    %v11270 = vld [vmem:[%s5280 + $0x1f8] sm:$0xff]
    %v11271 = vld [vmem:[%s5280 + $0x200] sm:$0xff]
    %v11272 = vld [vmem:[%s5280 + $0x208] sm:$0xff]
    %v11273 = vld [vmem:[%s5280 + $0x210] sm:$0xff]
    %v11274 = vld [vmem:[%s5280 + $0x218] sm:$0xff]
    %v11275 = vld [vmem:[%s5280 + $0x220] sm:$0xff]
    %v11276 = vld [vmem:[%s5280 + $0x228] sm:$0xff]
    %v11277 = vld [vmem:[%s5280 + $0x230] sm:$0xff]
    %v11278 = vld [vmem:[%s5280 + $0x238] sm:$0xff]
    %v11279 = vld [vmem:[%s5280 + $0x240] sm:$0xff]
    %v11280 = vld [vmem:[%s5280 + $0x248] sm:$0xff]
    %v11281 = vld [vmem:[%s5280 + $0x250] sm:$0xff]
    %v11282 = vld [vmem:[%s5280 + $0x258] sm:$0xff]
    %v11283 = vld [vmem:[%s5280 + $0x260] sm:$0xff]
    %v11284 = vld [vmem:[%s5280 + $0x268] sm:$0xff]
    %v11285 = vld [vmem:[%s5280 + $0x270] sm:$0xff]
    %v11286 = vld [vmem:[%s5280 + $0x278] sm:$0xff]
    %v11287 = vld [vmem:[%s5280 + $0x280] sm:$0xff]
    %v11288 = vld [vmem:[%s5280 + $0x288] sm:$0xff]
    %v11289 = vld [vmem:[%s5280 + $0x290] sm:$0xff]
    %v11290 = vld [vmem:[%s5280 + $0x298] sm:$0xff]
    %v11291 = vld [vmem:[%s5280 + $0x2a0] sm:$0xff]
    %v11292 = vld [vmem:[%s5280 + $0x2a8] sm:$0xff]
    %v11293 = vld [vmem:[%s5280 + $0x2b0] sm:$0xff]
    %v11294 = vld [vmem:[%s5280 + $0x2b8] sm:$0xff]
    %v11295 = vld [vmem:[%s5280 + $0x2c0] sm:$0xff]
    %v11296 = vld [vmem:[%s5280 + $0x2c8] sm:$0xff]
    %v11297 = vld [vmem:[%s5280 + $0x2d0] sm:$0xff]
    %v11298 = vld [vmem:[%s5280 + $0x2d8] sm:$0xff]
    %v11299 = vld [vmem:[%s5280 + $0x2e0] sm:$0xff]
    %v11300 = vld [vmem:[%s5280 + $0x2e8] sm:$0xff]
    %v11301 = vld [vmem:[%s5280 + $0x2f0] sm:$0xff]
    %v11302 = vld [vmem:[%s5280 + $0x2f8] sm:$0xff]
    %v11399 = vunpack.c.l.b16 %v11207
    %v11400 = vunpack.c.h.b16 %v11207
    %v11401 = vunpack.c.l.b16 %v11208
    %v11402 = vunpack.c.h.b16 %v11208
    %v11403 = vunpack.c.l.b16 %v11209
    %v11404 = vunpack.c.h.b16 %v11209
    %v11405 = vunpack.c.l.b16 %v11210
    %v11406 = vunpack.c.h.b16 %v11210
    %v11407 = vunpack.c.l.b16 %v11211
    %v11408 = vunpack.c.h.b16 %v11211
    %v11409 = vunpack.c.l.b16 %v11212
    %v11410 = vunpack.c.h.b16 %v11212
    %v11411 = vunpack.c.l.b16 %v11213
    %v11412 = vunpack.c.h.b16 %v11213
    %v11413 = vunpack.c.l.b16 %v11214
    %v11414 = vunpack.c.h.b16 %v11214
    %v11415 = vunpack.c.l.b16 %v11215
    %v11416 = vunpack.c.h.b16 %v11215
    %v11417 = vunpack.c.l.b16 %v11216
    %v11418 = vunpack.c.h.b16 %v11216
    %v11419 = vunpack.c.l.b16 %v11217
    %v11420 = vunpack.c.h.b16 %v11217
    %v11421 = vunpack.c.l.b16 %v11218
    %v11422 = vunpack.c.h.b16 %v11218
    %v11423 = vunpack.c.l.b16 %v11219
    %v11424 = vunpack.c.h.b16 %v11219
    %v11425 = vunpack.c.l.b16 %v11220
    %v11426 = vunpack.c.h.b16 %v11220
    %v11427 = vunpack.c.l.b16 %v11221
    %v11428 = vunpack.c.h.b16 %v11221
    %v11429 = vunpack.c.l.b16 %v11222
    %v11430 = vunpack.c.h.b16 %v11222
    %v11431 = vunpack.c.l.b16 %v11223
    %v11432 = vunpack.c.h.b16 %v11223
    %v11433 = vunpack.c.l.b16 %v11224
    %v11434 = vunpack.c.h.b16 %v11224
    %v11435 = vunpack.c.l.b16 %v11225
    %v11436 = vunpack.c.h.b16 %v11225
    %v11437 = vunpack.c.l.b16 %v11226
    %v11438 = vunpack.c.h.b16 %v11226
    %v11439 = vunpack.c.l.b16 %v11227
    %v11440 = vunpack.c.h.b16 %v11227
    %v11441 = vunpack.c.l.b16 %v11228
    %v11442 = vunpack.c.h.b16 %v11228
    %v11443 = vunpack.c.l.b16 %v11229
    %v11444 = vunpack.c.h.b16 %v11229
    %v11445 = vunpack.c.l.b16 %v11230
    %v11446 = vunpack.c.h.b16 %v11230
    %v11447 = vunpack.c.l.b16 %v11231
    %v11448 = vunpack.c.h.b16 %v11231
    %v11449 = vunpack.c.l.b16 %v11232
    %v11450 = vunpack.c.h.b16 %v11232
    %v11451 = vunpack.c.l.b16 %v11233
    %v11452 = vunpack.c.h.b16 %v11233
    %v11453 = vunpack.c.l.b16 %v11234
    %v11454 = vunpack.c.h.b16 %v11234
    %v11455 = vunpack.c.l.b16 %v11235
    %v11456 = vunpack.c.h.b16 %v11235
    %v11457 = vunpack.c.l.b16 %v11236
    %v11458 = vunpack.c.h.b16 %v11236
    %v11459 = vunpack.c.l.b16 %v11237
    %v11460 = vunpack.c.h.b16 %v11237
    %v11461 = vunpack.c.l.b16 %v11238
    %v11462 = vunpack.c.h.b16 %v11238
    %v11463 = vunpack.c.l.b16 %v11239
    %v11464 = vunpack.c.h.b16 %v11239
    %v11465 = vunpack.c.l.b16 %v11240
    %v11466 = vunpack.c.h.b16 %v11240
    %v11467 = vunpack.c.l.b16 %v11241
    %v11468 = vunpack.c.h.b16 %v11241
    %v11469 = vunpack.c.l.b16 %v11242
    %v11470 = vunpack.c.h.b16 %v11242
    %v11471 = vunpack.c.l.b16 %v11243
    %v11472 = vunpack.c.h.b16 %v11243
    %v11473 = vunpack.c.l.b16 %v11244
    %v11474 = vunpack.c.h.b16 %v11244
    %v11475 = vunpack.c.l.b16 %v11245
    %v11476 = vunpack.c.h.b16 %v11245
    %v11477 = vunpack.c.l.b16 %v11246
    %v11478 = vunpack.c.h.b16 %v11246
    %v11479 = vunpack.c.l.b16 %v11247
    %v11480 = vunpack.c.h.b16 %v11247
    %v11481 = vunpack.c.l.b16 %v11248
    %v11482 = vunpack.c.h.b16 %v11248
    %v11483 = vunpack.c.l.b16 %v11249
    %v11484 = vunpack.c.h.b16 %v11249
    %v11485 = vunpack.c.l.b16 %v11250
    %v11486 = vunpack.c.h.b16 %v11250
    %v11487 = vunpack.c.l.b16 %v11251
    %v11488 = vunpack.c.h.b16 %v11251
    %v11489 = vunpack.c.l.b16 %v11252
    %v11490 = vunpack.c.h.b16 %v11252
    %v11491 = vunpack.c.l.b16 %v11253
    %v11492 = vunpack.c.h.b16 %v11253
    %v11493 = vunpack.c.l.b16 %v11254
    %v11494 = vunpack.c.h.b16 %v11254
    %v11495 = vunpack.c.l.b16 %v11255
    %v11496 = vunpack.c.h.b16 %v11255
    %v11497 = vunpack.c.l.b16 %v11256
    %v11498 = vunpack.c.h.b16 %v11256
    %v11499 = vunpack.c.l.b16 %v11257
    %v11500 = vunpack.c.h.b16 %v11257
    %v11501 = vunpack.c.l.b16 %v11258
    %v11502 = vunpack.c.h.b16 %v11258
    %v11503 = vunpack.c.l.b16 %v11259
    %v11504 = vunpack.c.h.b16 %v11259
    %v11505 = vunpack.c.l.b16 %v11260
    %v11506 = vunpack.c.h.b16 %v11260
    %v11507 = vunpack.c.l.b16 %v11261
    %v11508 = vunpack.c.h.b16 %v11261
    %v11509 = vunpack.c.l.b16 %v11262
    %v11510 = vunpack.c.h.b16 %v11262
    %v11511 = vunpack.c.l.b16 %v11263
    %v11512 = vunpack.c.h.b16 %v11263
    %v11513 = vunpack.c.l.b16 %v11264
    %v11514 = vunpack.c.h.b16 %v11264
    %v11515 = vunpack.c.l.b16 %v11265
    %v11516 = vunpack.c.h.b16 %v11265
    %v11517 = vunpack.c.l.b16 %v11266
    %v11518 = vunpack.c.h.b16 %v11266
    %v11519 = vunpack.c.l.b16 %v11267
    %v11520 = vunpack.c.h.b16 %v11267
    %v11521 = vunpack.c.l.b16 %v11268
    %v11522 = vunpack.c.h.b16 %v11268
    %v11523 = vunpack.c.l.b16 %v11269
    %v11524 = vunpack.c.h.b16 %v11269
    %v11525 = vunpack.c.l.b16 %v11270
    %v11526 = vunpack.c.h.b16 %v11270
    %v11527 = vunpack.c.l.b16 %v11271
    %v11528 = vunpack.c.h.b16 %v11271
    %v11529 = vunpack.c.l.b16 %v11272
    %v11530 = vunpack.c.h.b16 %v11272
    %v11531 = vunpack.c.l.b16 %v11273
    %v11532 = vunpack.c.h.b16 %v11273
    %v11533 = vunpack.c.l.b16 %v11274
    %v11534 = vunpack.c.h.b16 %v11274
    %v11535 = vunpack.c.l.b16 %v11275
    %v11536 = vunpack.c.h.b16 %v11275
    %v11537 = vunpack.c.l.b16 %v11276
    %v11538 = vunpack.c.h.b16 %v11276
    %v11539 = vunpack.c.l.b16 %v11277
    %v11540 = vunpack.c.h.b16 %v11277
    %v11541 = vunpack.c.l.b16 %v11278
    %v11542 = vunpack.c.h.b16 %v11278
    %v11543 = vunpack.c.l.b16 %v11279
    %v11544 = vunpack.c.h.b16 %v11279
    %v11545 = vunpack.c.l.b16 %v11280
    %v11546 = vunpack.c.h.b16 %v11280
    %v11547 = vunpack.c.l.b16 %v11281
    %v11548 = vunpack.c.h.b16 %v11281
    %v11549 = vunpack.c.l.b16 %v11282
    %v11550 = vunpack.c.h.b16 %v11282
    %v11551 = vunpack.c.l.b16 %v11283
    %v11552 = vunpack.c.h.b16 %v11283
    %v11553 = vunpack.c.l.b16 %v11284
    %v11554 = vunpack.c.h.b16 %v11284
    %v11555 = vunpack.c.l.b16 %v11285
    %v11556 = vunpack.c.h.b16 %v11285
    %v11557 = vunpack.c.l.b16 %v11286
    %v11558 = vunpack.c.h.b16 %v11286
    %v11559 = vunpack.c.l.b16 %v11287
    %v11560 = vunpack.c.h.b16 %v11287
    %v11561 = vunpack.c.l.b16 %v11288
    %v11562 = vunpack.c.h.b16 %v11288
    %v11563 = vunpack.c.l.b16 %v11289
    %v11564 = vunpack.c.h.b16 %v11289
    %v11565 = vunpack.c.l.b16 %v11290
    %v11566 = vunpack.c.h.b16 %v11290
    %v11567 = vunpack.c.l.b16 %v11291
    %v11568 = vunpack.c.h.b16 %v11291
    %v11569 = vunpack.c.l.b16 %v11292
    %v11570 = vunpack.c.h.b16 %v11292
    %v11571 = vunpack.c.l.b16 %v11293
    %v11572 = vunpack.c.h.b16 %v11293
    %v11573 = vunpack.c.l.b16 %v11294
    %v11574 = vunpack.c.h.b16 %v11294
    %v11575 = vunpack.c.l.b16 %v11295
    %v11576 = vunpack.c.h.b16 %v11295
    %v11577 = vunpack.c.l.b16 %v11296
    %v11578 = vunpack.c.h.b16 %v11296
    %v11579 = vunpack.c.l.b16 %v11297
    %v11580 = vunpack.c.h.b16 %v11297
    %v11581 = vunpack.c.l.b16 %v11298
    %v11582 = vunpack.c.h.b16 %v11298
    %v11583 = vunpack.c.l.b16 %v11299
    %v11584 = vunpack.c.h.b16 %v11299
    %v11585 = vunpack.c.l.b16 %v11300
    %v11586 = vunpack.c.h.b16 %v11300
    %v11587 = vunpack.c.l.b16 %v11301
    %v11588 = vunpack.c.h.b16 %v11301
    %v11589 = vunpack.c.l.b16 %v11302
    %v11590 = vunpack.c.h.b16 %v11302
    %v11591 = vpack.c.b16 %v11403, %v11399
    %v11592 = vpack.c.b16 %v11404, %v11400
    %v11593 = vpack.c.b16 %v11405, %v11401
    %v11594 = vpack.c.b16 %v11406, %v11402
    %v11595 = vpack.c.b16 %v11411, %v11407
    %v11596 = vpack.c.b16 %v11412, %v11408
    %v11597 = vpack.c.b16 %v11413, %v11409
    %v11598 = vpack.c.b16 %v11414, %v11410
    %v11599 = vpack.c.b16 %v11419, %v11415
    %v11600 = vpack.c.b16 %v11420, %v11416
    %v11601 = vpack.c.b16 %v11421, %v11417
    %v11602 = vpack.c.b16 %v11422, %v11418
    %v11603 = vpack.c.b16 %v11427, %v11423
    %v11604 = vpack.c.b16 %v11428, %v11424
    %v11605 = vpack.c.b16 %v11429, %v11425
    %v11606 = vpack.c.b16 %v11430, %v11426
    %v11607 = vpack.c.b16 %v11435, %v11431
    %v11608 = vpack.c.b16 %v11436, %v11432
    %v11609 = vpack.c.b16 %v11437, %v11433
    %v11610 = vpack.c.b16 %v11438, %v11434
    %v11611 = vpack.c.b16 %v11443, %v11439
    %v11612 = vpack.c.b16 %v11444, %v11440
    %v11613 = vpack.c.b16 %v11445, %v11441
    %v11614 = vpack.c.b16 %v11446, %v11442
    %v11615 = vpack.c.b16 %v11451, %v11447
    %v11616 = vpack.c.b16 %v11452, %v11448
    %v11617 = vpack.c.b16 %v11453, %v11449
    %v11618 = vpack.c.b16 %v11454, %v11450
    %v11619 = vpack.c.b16 %v11459, %v11455
    %v11620 = vpack.c.b16 %v11460, %v11456
    %v11621 = vpack.c.b16 %v11461, %v11457
    %v11622 = vpack.c.b16 %v11462, %v11458
    %v11623 = vpack.c.b16 %v11467, %v11463
    %v11624 = vpack.c.b16 %v11468, %v11464
    %v11625 = vpack.c.b16 %v11469, %v11465
    %v11626 = vpack.c.b16 %v11470, %v11466
    %v11627 = vpack.c.b16 %v11475, %v11471
    %v11628 = vpack.c.b16 %v11476, %v11472
    %v11629 = vpack.c.b16 %v11477, %v11473
    %v11630 = vpack.c.b16 %v11478, %v11474
    %v11631 = vpack.c.b16 %v11483, %v11479
    %v11632 = vpack.c.b16 %v11484, %v11480
    %v11633 = vpack.c.b16 %v11485, %v11481
    %v11634 = vpack.c.b16 %v11486, %v11482
    %v11635 = vpack.c.b16 %v11491, %v11487
    %v11636 = vpack.c.b16 %v11492, %v11488
    %v11637 = vpack.c.b16 %v11493, %v11489
    %v11638 = vpack.c.b16 %v11494, %v11490
    %v11639 = vpack.c.b16 %v11499, %v11495
    %v11640 = vpack.c.b16 %v11500, %v11496
    %v11641 = vpack.c.b16 %v11501, %v11497
    %v11642 = vpack.c.b16 %v11502, %v11498
    %v11643 = vpack.c.b16 %v11507, %v11503
    %v11644 = vpack.c.b16 %v11508, %v11504
    %v11645 = vpack.c.b16 %v11509, %v11505
    %v11646 = vpack.c.b16 %v11510, %v11506
    %v11647 = vpack.c.b16 %v11515, %v11511
    %v11648 = vpack.c.b16 %v11516, %v11512
    %v11649 = vpack.c.b16 %v11517, %v11513
    %v11650 = vpack.c.b16 %v11518, %v11514
    %v11651 = vpack.c.b16 %v11523, %v11519
    %v11652 = vpack.c.b16 %v11524, %v11520
    %v11653 = vpack.c.b16 %v11525, %v11521
    %v11654 = vpack.c.b16 %v11526, %v11522
    %v11655 = vpack.c.b16 %v11531, %v11527
    %v11656 = vpack.c.b16 %v11532, %v11528
    %v11657 = vpack.c.b16 %v11533, %v11529
    %v11658 = vpack.c.b16 %v11534, %v11530
    %v11659 = vpack.c.b16 %v11539, %v11535
    %v11660 = vpack.c.b16 %v11540, %v11536
    %v11661 = vpack.c.b16 %v11541, %v11537
    %v11662 = vpack.c.b16 %v11542, %v11538
    %v11663 = vpack.c.b16 %v11547, %v11543
    %v11664 = vpack.c.b16 %v11548, %v11544
    %v11665 = vpack.c.b16 %v11549, %v11545
    %v11666 = vpack.c.b16 %v11550, %v11546
    %v11667 = vpack.c.b16 %v11555, %v11551
    %v11668 = vpack.c.b16 %v11556, %v11552
    %v11669 = vpack.c.b16 %v11557, %v11553
    %v11670 = vpack.c.b16 %v11558, %v11554
    %v11671 = vpack.c.b16 %v11563, %v11559
    %v11672 = vpack.c.b16 %v11564, %v11560
    %v11673 = vpack.c.b16 %v11565, %v11561
    %v11674 = vpack.c.b16 %v11566, %v11562
    %v11675 = vpack.c.b16 %v11571, %v11567
    %v11676 = vpack.c.b16 %v11572, %v11568
    %v11677 = vpack.c.b16 %v11573, %v11569
    %v11678 = vpack.c.b16 %v11574, %v11570
    %v11679 = vpack.c.b16 %v11579, %v11575
    %v11680 = vpack.c.b16 %v11580, %v11576
    %v11681 = vpack.c.b16 %v11581, %v11577
    %v11682 = vpack.c.b16 %v11582, %v11578
    %v11683 = vpack.c.b16 %v11587, %v11583
    %v11684 = vpack.c.b16 %v11588, %v11584
    %v11685 = vpack.c.b16 %v11589, %v11585
    %v11686 = vpack.c.b16 %v11590, %v11586
    %11783 = vmatprep.subr.bf16.mxu0 %v11592
    %11784 = vmatpush1.bf16.msra.mxu0 %v11591
    %11785 = vmatprep.subr.bf16.mxu0 %v11596
    %11786 = vmatpush1.bf16.msra.mxu0 %v11595
    %11787 = vmatprep.subr.bf16.mxu0 %v11600
    %11788 = vmatpush1.bf16.msra.mxu0 %v11599
    %11789 = vmatprep.subr.bf16.mxu0 %v11604
    %11790 = vmatpush1.bf16.msra.mxu0 %v11603
    %11791 = vmatprep.subr.bf16.mxu0 %v11608
    %11792 = vmatpush1.bf16.msra.mxu0 %v11607
    %11793 = vmatprep.subr.bf16.mxu0 %v11612
    %11794 = vmatpush1.bf16.msra.mxu0 %v11611
    %11795 = vmatprep.subr.bf16.mxu0 %v11616
    %11796 = vmatpush1.bf16.msra.mxu0 %v11615
    %11797 = vmatprep.subr.bf16.mxu0 %v11620
    %11798 = vmatpush1.bf16.msra.mxu0 %v11619
    %11799 = vmatprep.subr.bf16.mxu0 %v11624
    %11800 = vmatpush1.bf16.msra.mxu0 %v11623
    %11801 = vmatprep.subr.bf16.mxu0 %v11628
    %11802 = vmatpush1.bf16.msra.mxu0 %v11627
    %11803 = vmatprep.subr.bf16.mxu0 %v11632
    %11804 = vmatpush1.bf16.msra.mxu0 %v11631
    %11805 = vmatprep.subr.bf16.mxu0 %v11636
    %11806 = vmatpush1.bf16.msra.mxu0 %v11635
    %11807 = vmatprep.subr.bf16.mxu0 %v11640
    %11808 = vmatpush1.bf16.msra.mxu0 %v11639
    %11809 = vmatprep.subr.bf16.mxu0 %v11644
    %11810 = vmatpush1.bf16.msra.mxu0 %v11643
    %11811 = vmatprep.subr.bf16.mxu0 %v11648
    %11812 = vmatpush1.bf16.msra.mxu0 %v11647
    %11813 = vmatprep.subr.bf16.mxu0 %v11652
    %11814 = vmatpush1.bf16.msra.mxu0 %v11651
    %11815 = vmatprep.mubr.bf16.mxu0 %v11205
    %11816 = vmatmul.mubr.bf16.gmra.mrb[0].mxu0 %v11204
    %v11817 = vpop.f32.mrb[0].mxu0
    %v11818 = vadd.f32 0.0, %v11817
    %v11819 = vpop.f32.mrb[0].mxu0
    %v11820 = vadd.f32 0.0, %v11819
    %v11821 = vpop.f32.mrb[0].mxu0
    %v11822 = vpop.f32.mrb[0].mxu0
    %11823 = vdwg.mxu0
    %11824 = vmatprep.subr.bf16.mxu0 %v11656
    %11825 = vmatpush1.bf16.msra.mxu0 %v11655
    %11826 = vmatprep.subr.bf16.mxu0 %v11660
    %11827 = vmatpush1.bf16.msra.mxu0 %v11659
    %11828 = vmatprep.subr.bf16.mxu0 %v11664
    %11829 = vmatpush1.bf16.msra.mxu0 %v11663
    %11830 = vmatprep.subr.bf16.mxu0 %v11668
    %11831 = vmatpush1.bf16.msra.mxu0 %v11667
    %11832 = vmatprep.subr.bf16.mxu0 %v11672
    %11833 = vmatpush1.bf16.msra.mxu0 %v11671
    %11834 = vmatprep.subr.bf16.mxu0 %v11676
    %11835 = vmatpush1.bf16.msra.mxu0 %v11675
    %11836 = vmatprep.subr.bf16.mxu0 %v11680
    %11837 = vmatpush1.bf16.msra.mxu0 %v11679
    %11838 = vmatprep.subr.bf16.mxu0 %v11684
    %11839 = vmatpush1.bf16.msra.mxu0 %v11683
    %11840 = vmatprep.subr.bf16.mxu0 0
    %11841 = vmatpush1.bf16.msra.mxu0 0
    %11842 = vmatprep.subr.bf16.mxu0 0
    %11843 = vmatpush1.bf16.msra.mxu0 0
    %11844 = vmatprep.subr.bf16.mxu0 0
    %11845 = vmatpush1.bf16.msra.mxu0 0
    %11846 = vmatprep.subr.bf16.mxu0 0
    %11847 = vmatpush1.bf16.msra.mxu0 0
    %11848 = vmatprep.subr.bf16.mxu0 0
    %11849 = vmatpush1.bf16.msra.mxu0 0
    %11850 = vmatprep.subr.bf16.mxu0 0
    %11851 = vmatpush1.bf16.msra.mxu0 0
    %11852 = vmatprep.subr.bf16.mxu0 0
    %11853 = vmatpush1.bf16.msra.mxu0 0
    %11854 = vmatprep.subr.bf16.mxu0 0
    %11855 = vmatpush1.bf16.msra.mxu0 0
    %11856 = vmatprep.mubr.bf16.mxu0 0
    %11857 = vmatmul.mubr.bf16.gmra.mrb[0].mxu0 %v11206
    %v11858 = vpop.f32.mrb[0].mxu0
    %v11859 = vadd.f32 %v11818, %v11858
    %v11860 = vpop.f32.mrb[0].mxu0
    %v11861 = vadd.f32 %v11820, %v11860
    %v11862 = vpop.f32.mrb[0].mxu0
    %v11863 = vpop.f32.mrb[0].mxu0
    %11864 = vdwg.mxu0
    %11865 = vmatprep.subr.bf16.mxu0 %v11594
    %11866 = vmatpush1.bf16.msra.mxu0 %v11593
    %11867 = vmatprep.subr.bf16.mxu0 %v11598
    %11868 = vmatpush1.bf16.msra.mxu0 %v11597
    %11869 = vmatprep.subr.bf16.mxu0 %v11602
    %11870 = vmatpush1.bf16.msra.mxu0 %v11601
    %11871 = vmatprep.subr.bf16.mxu0 %v11606
    %11872 = vmatpush1.bf16.msra.mxu0 %v11605
    %11873 = vmatprep.subr.bf16.mxu0 %v11610
    %11874 = vmatpush1.bf16.msra.mxu0 %v11609
    %11875 = vmatprep.subr.bf16.mxu0 %v11614
    %11876 = vmatpush1.bf16.msra.mxu0 %v11613
    %11877 = vmatprep.subr.bf16.mxu0 %v11618
    %11878 = vmatpush1.bf16.msra.mxu0 %v11617
    %11879 = vmatprep.subr.bf16.mxu0 %v11622
    %11880 = vmatpush1.bf16.msra.mxu0 %v11621
    %11881 = vmatprep.subr.bf16.mxu0 %v11626
    %11882 = vmatpush1.bf16.msra.mxu0 %v11625
    %11883 = vmatprep.subr.bf16.mxu0 %v11630
    %11884 = vmatpush1.bf16.msra.mxu0 %v11629
    %11885 = vmatprep.subr.bf16.mxu0 %v11634
    %11886 = vmatpush1.bf16.msra.mxu0 %v11633
    %11887 = vmatprep.subr.bf16.mxu0 %v11638
    %11888 = vmatpush1.bf16.msra.mxu0 %v11637
    %11889 = vmatprep.subr.bf16.mxu0 %v11642
    %11890 = vmatpush1.bf16.msra.mxu0 %v11641
    %11891 = vmatprep.subr.bf16.mxu0 %v11646
    %11892 = vmatpush1.bf16.msra.mxu0 %v11645
    %11893 = vmatprep.subr.bf16.mxu0 %v11650
    %11894 = vmatpush1.bf16.msra.mxu0 %v11649
    %11895 = vmatprep.subr.bf16.mxu0 %v11654
    %11896 = vmatpush1.bf16.msra.mxu0 %v11653
    %11897 = vmatprep.mubr.bf16.mxu0 %v11205
    %11898 = vmatmul.mubr.bf16.gmra.mrb[0].mxu0 %v11204
    %v11899 = vpop.f32.mrb[0].mxu0
    %v11900 = vadd.f32 0.0, %v11899
    %v11901 = vpop.f32.mrb[0].mxu0
    %v11902 = vadd.f32 0.0, %v11901
    %v11903 = vpop.f32.mrb[0].mxu0
    %v11904 = vpop.f32.mrb[0].mxu0
    %11905 = vdwg.mxu0
    %11906 = vmatprep.subr.bf16.mxu0 %v11658
    %11907 = vmatpush1.bf16.msra.mxu0 %v11657
    %11908 = vmatprep.subr.bf16.mxu0 %v11662
    %11909 = vmatpush1.bf16.msra.mxu0 %v11661
    %11910 = vmatprep.subr.bf16.mxu0 %v11666
    %11911 = vmatpush1.bf16.msra.mxu0 %v11665
    %11912 = vmatprep.subr.bf16.mxu0 %v11670
    %11913 = vmatpush1.bf16.msra.mxu0 %v11669
    %11914 = vmatprep.subr.bf16.mxu0 %v11674
    %11915 = vmatpush1.bf16.msra.mxu0 %v11673
    %11916 = vmatprep.subr.bf16.mxu0 %v11678
    %11917 = vmatpush1.bf16.msra.mxu0 %v11677
    %11918 = vmatprep.subr.bf16.mxu0 %v11682
    %11919 = vmatpush1.bf16.msra.mxu0 %v11681
    %11920 = vmatprep.subr.bf16.mxu0 %v11686
    %11921 = vmatpush1.bf16.msra.mxu0 %v11685
    %11922 = vmatprep.subr.bf16.mxu0 0
    %11923 = vmatpush1.bf16.msra.mxu0 0
    %11924 = vmatprep.subr.bf16.mxu0 0
    %11925 = vmatpush1.bf16.msra.mxu0 0
    %11926 = vmatprep.subr.bf16.mxu0 0
    %11927 = vmatpush1.bf16.msra.mxu0 0
    %11928 = vmatprep.subr.bf16.mxu0 0
    %11929 = vmatpush1.bf16.msra.mxu0 0
    %11930 = vmatprep.subr.bf16.mxu0 0
    %11931 = vmatpush1.bf16.msra.mxu0 0
    %11932 = vmatprep.subr.bf16.mxu0 0
    %11933 = vmatpush1.bf16.msra.mxu0 0
    %11934 = vmatprep.subr.bf16.mxu0 0
    %11935 = vmatpush1.bf16.msra.mxu0 0
    %11936 = vmatprep.subr.bf16.mxu0 0
    %11937 = vmatpush1.bf16.msra.mxu0 0
    %11938 = vmatprep.mubr.bf16.mxu0 0
    %11939 = vmatmul.mubr.bf16.gmra.mrb[0].mxu0 %v11206
    %v11940 = vpop.f32.mrb[0].mxu0
    %v11941 = vadd.f32 %v11900, %v11940
    %v11942 = vpop.f32.mrb[0].mxu0
    %v11943 = vadd.f32 %v11902, %v11942
    %v11944 = vpop.f32.mrb[0].mxu0
    %v11945 = vpop.f32.mrb[0].mxu0
    %11946 = vdwg.mxu0
    %v11947 = vadd.f32 %v11188, %v11859
    %v11948 = vadd.f32 %v11189, %v11861
    %v11949 = vadd.f32 %v11190, %v11941
    %v11950 = vadd.f32 %v11191, %v11943
    %v11951 = vld [vmem:[#allocation8] sm:$0xf]
    %v11953 = vlaneseq
    %v11954 = vshrl.u32 %v11953, 7
    %v11955 = vsub.s32 0, %v11954
    %v11956 = vrot.slane %v11951, %v11955
    %v11957 = vlaneseq
    %v11958 = vshrl.u32 %v11957, 7
    %v11959 = vsub.s32 1, %v11958
    %v11960 = vrot.slane %v11951, %v11959
    %v11961 = vlaneseq
    %v11962 = vshrl.u32 %v11961, 7
    %v11963 = vsub.s32 2, %v11962
    %v11964 = vrot.slane %v11951, %v11963
    %v11965 = vlaneseq
    %v11966 = vshrl.u32 %v11965, 7
    %v11967 = vsub.s32 3, %v11966
    %v11968 = vrot.slane %v11951, %v11967
    %v11973 = vadd.f32 %v11947, %v11956
    %v11974 = vadd.f32 %v11948, %v11960
    %v11975 = vadd.f32 %v11949, %v11964
    %v11976 = vadd.f32 %v11950, %v11968
    %v11977 = vmax.f32 %v11973, 0.0
    %v11978 = vmax.f32 %v11974, 0.0
    %v11979 = vmax.f32 %v11975, 0.0
    %v11980 = vmax.f32 %v11976, 0.0
    %v11985 = vcombine.low %v11977, %v11978
    %v11986 = vcombine.low %v11979, %v11980
    %v11988 = vunpack.c.l.s4 1966171168
    %v11989 = vunpack.c.0.s8 %v11988
    %v11990 = vlaneseq
    %v11991 = vshrl.u32 %v11990, 7
    %v11992 = vsub.s32 %v11989, %v11991
    %v11993 = vrot.slane %v11985, %v11992
    %v11995 = vunpack.c.l.s4 1966171168
    %v11996 = vunpack.c.0.s8 %v11995
    %v11997 = vlaneseq
    %v11998 = vshrl.u32 %v11997, 7
    %v11999 = vsub.s32 %v11996, %v11998
    %v12000 = vrot.slane %v11986, %v11999
    %v12001 = vcombine.low %v11993, %v12000
    %v12003 = vunpack.c.l.s4 1966171168
    %v12004 = vunpack.c.0.s8 %v12003
    %v12005 = vlaneseq
    %v12006 = vshrl.u32 %v12005, 7
    %v12007 = vsub.s32 %v12004, %v12006
    %v12008 = vrot.slane %v12001, %v12007
    %s12010 = scalar_lea.vmem [#allocation2], 1
    %12011 = vst.msk [vmem:[%s12010] ss:$2 sm:$0xf] %vm6087, %v12008
    %v12012 = vld [vmem:[#allocation2] sm:$0xff]
    %v12014 = vcombine.high %v12012, %v12012
    %v12016 = vunpack.c.l.s4 1983009808
    %v12017 = vunpack.c.0.s8 %v12016
    %v12018 = vlaneseq
    %v12019 = vshrl.u32 %v12018, 7
    %v12020 = vsub.s32 %v12017, %v12019
    %v12021 = vrot.slane %v12012, %v12020
    %v12023 = vunpack.c.l.s4 1983009808
    %v12024 = vunpack.c.0.s8 %v12023
    %v12025 = vlaneseq
    %v12026 = vshrl.u32 %v12025, 7
    %v12027 = vsub.s32 %v12024, %v12026
    %v12028 = vrot.slane %v12014, %v12027
    %v12029 = vcombine.high %v12021, %v12021
    %v12030 = vcombine.high %v12028, %v12028
    %v12035 = vpack.c.bf16 %v12021, %v12021
    %v12036 = vpack.c.bf16 %v12029, %v12029
    %v12037 = vpack.c.bf16 %v12028, %v12028
    %v12038 = vpack.c.bf16 %v12030, %v12030
    %v12039 = vld [vmem:[#allocation9] sm:$0xf]
    %v12040 = vld [vmem:[#allocation9 + $0x4] sm:$0xf]
    %v12041 = vld [vmem:[#allocation9 + $0x8] sm:$0xf]
    %v12042 = vld [vmem:[#allocation9 + $0xc] sm:$0xf]
    %v12043 = vld [vmem:[#allocation9 + $0x10] sm:$0xf]
    %v12044 = vld [vmem:[#allocation9 + $0x14] sm:$0xf]
    %v12045 = vld [vmem:[#allocation9 + $0x18] sm:$0xf]
    %v12046 = vld [vmem:[#allocation9 + $0x1c] sm:$0xf]
    %v12047 = vld [vmem:[#allocation9 + $0x20] sm:$0xf]
    %v12048 = vld [vmem:[#allocation9 + $0x24] sm:$0xf]
    %v12049 = vld [vmem:[#allocation9 + $0x28] sm:$0xf]
    %v12050 = vld [vmem:[#allocation9 + $0x2c] sm:$0xf]
    %v12051 = vld [vmem:[#allocation9 + $0x30] sm:$0xf]
    %v12052 = vld [vmem:[#allocation9 + $0x34] sm:$0xf]
    %v12053 = vld [vmem:[#allocation9 + $0x38] sm:$0xf]
    %v12054 = vld [vmem:[#allocation9 + $0x3c] sm:$0xf]
    %v12055 = vld [vmem:[#allocation9 + $0x40] sm:$0xf]
    %v12056 = vld [vmem:[#allocation9 + $0x44] sm:$0xf]
    %v12057 = vld [vmem:[#allocation9 + $0x48] sm:$0xf]
    %v12058 = vld [vmem:[#allocation9 + $0x4c] sm:$0xf]
    %v12059 = vld [vmem:[#allocation9 + $0x50] sm:$0xf]
    %v12060 = vld [vmem:[#allocation9 + $0x54] sm:$0xf]
    %v12061 = vld [vmem:[#allocation9 + $0x58] sm:$0xf]
    %v12062 = vld [vmem:[#allocation9 + $0x5c] sm:$0xf]
    %v12063 = vld [vmem:[#allocation9 + $0x60] sm:$0xf]
    %v12064 = vld [vmem:[#allocation9 + $0x64] sm:$0xf]
    %v12065 = vld [vmem:[#allocation9 + $0x68] sm:$0xf]
    %v12066 = vld [vmem:[#allocation9 + $0x6c] sm:$0xf]
    %v12067 = vld [vmem:[#allocation9 + $0x70] sm:$0xf]
    %v12068 = vld [vmem:[#allocation9 + $0x74] sm:$0xf]
    %v12069 = vld [vmem:[#allocation9 + $0x78] sm:$0xf]
    %v12070 = vld [vmem:[#allocation9 + $0x7c] sm:$0xf]
    %v12071 = vld [vmem:[#allocation9 + $0x80] sm:$0xf]
    %v12072 = vld [vmem:[#allocation9 + $0x84] sm:$0xf]
    %v12073 = vld [vmem:[#allocation9 + $0x88] sm:$0xf]
    %v12074 = vld [vmem:[#allocation9 + $0x8c] sm:$0xf]
    %v12075 = vld [vmem:[#allocation9 + $0x90] sm:$0xf]
    %v12076 = vld [vmem:[#allocation9 + $0x94] sm:$0xf]
    %v12077 = vld [vmem:[#allocation9 + $0x98] sm:$0xf]
    %v12078 = vld [vmem:[#allocation9 + $0x9c] sm:$0xf]
    %v12079 = vld [vmem:[#allocation9 + $0xa0] sm:$0xf]
    %v12080 = vld [vmem:[#allocation9 + $0xa4] sm:$0xf]
    %v12081 = vld [vmem:[#allocation9 + $0xa8] sm:$0xf]
    %v12082 = vld [vmem:[#allocation9 + $0xac] sm:$0xf]
    %v12083 = vld [vmem:[#allocation9 + $0xb0] sm:$0xf]
    %v12084 = vld [vmem:[#allocation9 + $0xb4] sm:$0xf]
    %v12085 = vld [vmem:[#allocation9 + $0xb8] sm:$0xf]
    %v12086 = vld [vmem:[#allocation9 + $0xbc] sm:$0xf]
    %v12087 = vld [vmem:[#allocation9 + $0xc0] sm:$0xf]
    %v12088 = vld [vmem:[#allocation9 + $0xc4] sm:$0xf]
    %v12089 = vld [vmem:[#allocation9 + $0xc8] sm:$0xf]
    %v12090 = vld [vmem:[#allocation9 + $0xcc] sm:$0xf]
    %v12091 = vld [vmem:[#allocation9 + $0xd0] sm:$0xf]
    %v12092 = vld [vmem:[#allocation9 + $0xd4] sm:$0xf]
    %v12093 = vld [vmem:[#allocation9 + $0xd8] sm:$0xf]
    %v12094 = vld [vmem:[#allocation9 + $0xdc] sm:$0xf]
    %v12095 = vld [vmem:[#allocation9 + $0xe0] sm:$0xf]
    %v12096 = vld [vmem:[#allocation9 + $0xe4] sm:$0xf]
    %v12097 = vld [vmem:[#allocation9 + $0xe8] sm:$0xf]
    %v12098 = vld [vmem:[#allocation9 + $0xec] sm:$0xf]
    %v12099 = vld [vmem:[#allocation9 + $0xf0] sm:$0xf]
    %v12100 = vld [vmem:[#allocation9 + $0xf4] sm:$0xf]
    %v12101 = vld [vmem:[#allocation9 + $0xf8] sm:$0xf]
    %v12102 = vld [vmem:[#allocation9 + $0xfc] sm:$0xf]
    %v12103 = vld [vmem:[#allocation11] sm:$0x1]
    %v12105 = vlaneseq
    %v12106 = vshrl.u32 %v12105, 7
    %v12107 = vsub.s32 0, %v12106
    %v12108 = vrot.slane %v12103, %v12107
    %v12174 = vunpack.c.l.b16 %v12039
    %v12175 = vunpack.c.l.b16 %v12040
    %v12176 = vunpack.c.l.b16 %v12041
    %v12177 = vunpack.c.l.b16 %v12042
    %v12178 = vunpack.c.l.b16 %v12043
    %v12179 = vunpack.c.l.b16 %v12044
    %v12180 = vunpack.c.l.b16 %v12045
    %v12181 = vunpack.c.l.b16 %v12046
    %v12182 = vunpack.c.l.b16 %v12047
    %v12183 = vunpack.c.l.b16 %v12048
    %v12184 = vunpack.c.l.b16 %v12049
    %v12185 = vunpack.c.l.b16 %v12050
    %v12186 = vunpack.c.l.b16 %v12051
    %v12187 = vunpack.c.l.b16 %v12052
    %v12188 = vunpack.c.l.b16 %v12053
    %v12189 = vunpack.c.l.b16 %v12054
    %v12190 = vunpack.c.l.b16 %v12055
    %v12191 = vunpack.c.l.b16 %v12056
    %v12192 = vunpack.c.l.b16 %v12057
    %v12193 = vunpack.c.l.b16 %v12058
    %v12194 = vunpack.c.l.b16 %v12059
    %v12195 = vunpack.c.l.b16 %v12060
    %v12196 = vunpack.c.l.b16 %v12061
    %v12197 = vunpack.c.l.b16 %v12062
    %v12198 = vunpack.c.l.b16 %v12063
    %v12199 = vunpack.c.l.b16 %v12064
    %v12200 = vunpack.c.l.b16 %v12065
    %v12201 = vunpack.c.l.b16 %v12066
    %v12202 = vunpack.c.l.b16 %v12067
    %v12203 = vunpack.c.l.b16 %v12068
    %v12204 = vunpack.c.l.b16 %v12069
    %v12205 = vunpack.c.l.b16 %v12070
    %v12206 = vunpack.c.l.b16 %v12071
    %v12207 = vunpack.c.l.b16 %v12072
    %v12208 = vunpack.c.l.b16 %v12073
    %v12209 = vunpack.c.l.b16 %v12074
    %v12210 = vunpack.c.l.b16 %v12075
    %v12211 = vunpack.c.l.b16 %v12076
    %v12212 = vunpack.c.l.b16 %v12077
    %v12213 = vunpack.c.l.b16 %v12078
    %v12214 = vunpack.c.l.b16 %v12079
    %v12215 = vunpack.c.l.b16 %v12080
    %v12216 = vunpack.c.l.b16 %v12081
    %v12217 = vunpack.c.l.b16 %v12082
    %v12218 = vunpack.c.l.b16 %v12083
    %v12219 = vunpack.c.l.b16 %v12084
    %v12220 = vunpack.c.l.b16 %v12085
    %v12221 = vunpack.c.l.b16 %v12086
    %v12222 = vunpack.c.l.b16 %v12087
    %v12223 = vunpack.c.l.b16 %v12088
    %v12224 = vunpack.c.l.b16 %v12089
    %v12225 = vunpack.c.l.b16 %v12090
    %v12226 = vunpack.c.l.b16 %v12091
    %v12227 = vunpack.c.l.b16 %v12092
    %v12228 = vunpack.c.l.b16 %v12093
    %v12229 = vunpack.c.l.b16 %v12094
    %v12230 = vunpack.c.l.b16 %v12095
    %v12231 = vunpack.c.l.b16 %v12096
    %v12232 = vunpack.c.l.b16 %v12097
    %v12233 = vunpack.c.l.b16 %v12098
    %v12234 = vunpack.c.l.b16 %v12099
    %v12235 = vunpack.c.l.b16 %v12100
    %v12236 = vunpack.c.l.b16 %v12101
    %v12237 = vunpack.c.l.b16 %v12102
    %v12238 = vpack.c.b16 %v12175, %v12174
    %v12239 = vpack.c.b16 %v12177, %v12176
    %v12240 = vpack.c.b16 %v12179, %v12178
    %v12241 = vpack.c.b16 %v12181, %v12180
    %v12242 = vpack.c.b16 %v12183, %v12182
    %v12243 = vpack.c.b16 %v12185, %v12184
    %v12244 = vpack.c.b16 %v12187, %v12186
    %v12245 = vpack.c.b16 %v12189, %v12188
    %v12246 = vpack.c.b16 %v12191, %v12190
    %v12247 = vpack.c.b16 %v12193, %v12192
    %v12248 = vpack.c.b16 %v12195, %v12194
    %v12249 = vpack.c.b16 %v12197, %v12196
    %v12250 = vpack.c.b16 %v12199, %v12198
    %v12251 = vpack.c.b16 %v12201, %v12200
    %v12252 = vpack.c.b16 %v12203, %v12202
    %v12253 = vpack.c.b16 %v12205, %v12204
    %v12254 = vpack.c.b16 %v12207, %v12206
    %v12255 = vpack.c.b16 %v12209, %v12208
    %v12256 = vpack.c.b16 %v12211, %v12210
    %v12257 = vpack.c.b16 %v12213, %v12212
    %v12258 = vpack.c.b16 %v12215, %v12214
    %v12259 = vpack.c.b16 %v12217, %v12216
    %v12260 = vpack.c.b16 %v12219, %v12218
    %v12261 = vpack.c.b16 %v12221, %v12220
    %v12262 = vpack.c.b16 %v12223, %v12222
    %v12263 = vpack.c.b16 %v12225, %v12224
    %v12264 = vpack.c.b16 %v12227, %v12226
    %v12265 = vpack.c.b16 %v12229, %v12228
    %v12266 = vpack.c.b16 %v12231, %v12230
    %v12267 = vpack.c.b16 %v12233, %v12232
    %v12268 = vpack.c.b16 %v12235, %v12234
    %v12269 = vpack.c.b16 %v12237, %v12236
    %12302 = vmatprep.subr.bf16.mxu0 0
    %12303 = vmatpush1.bf16.msra.mxu0 %v12238
    %12304 = vmatprep.subr.bf16.mxu0 0
    %12305 = vmatpush1.bf16.msra.mxu0 %v12239
    %12306 = vmatprep.subr.bf16.mxu0 0
    %12307 = vmatpush1.bf16.msra.mxu0 %v12240
    %12308 = vmatprep.subr.bf16.mxu0 0
    %12309 = vmatpush1.bf16.msra.mxu0 %v12241
    %12310 = vmatprep.subr.bf16.mxu0 0
    %12311 = vmatpush1.bf16.msra.mxu0 %v12242
    %12312 = vmatprep.subr.bf16.mxu0 0
    %12313 = vmatpush1.bf16.msra.mxu0 %v12243
    %12314 = vmatprep.subr.bf16.mxu0 0
    %12315 = vmatpush1.bf16.msra.mxu0 %v12244
    %12316 = vmatprep.subr.bf16.mxu0 0
    %12317 = vmatpush1.bf16.msra.mxu0 %v12245
    %12318 = vmatprep.subr.bf16.mxu0 0
    %12319 = vmatpush1.bf16.msra.mxu0 %v12246
    %12320 = vmatprep.subr.bf16.mxu0 0
    %12321 = vmatpush1.bf16.msra.mxu0 %v12247
    %12322 = vmatprep.subr.bf16.mxu0 0
    %12323 = vmatpush1.bf16.msra.mxu0 %v12248
    %12324 = vmatprep.subr.bf16.mxu0 0
    %12325 = vmatpush1.bf16.msra.mxu0 %v12249
    %12326 = vmatprep.subr.bf16.mxu0 0
    %12327 = vmatpush1.bf16.msra.mxu0 %v12250
    %12328 = vmatprep.subr.bf16.mxu0 0
    %12329 = vmatpush1.bf16.msra.mxu0 %v12251
    %12330 = vmatprep.subr.bf16.mxu0 0
    %12331 = vmatpush1.bf16.msra.mxu0 %v12252
    %12332 = vmatprep.subr.bf16.mxu0 0
    %12333 = vmatpush1.bf16.msra.mxu0 %v12253
    %12334 = vmatprep.mubr.bf16.mxu0 %v12036
    %12335 = vmatmul.mubr.bf16.gmra.mrb[0].mxu0 %v12035
    %v12336 = vpop.f32.mrb[0].mxu0
    %v12337 = vadd.f32 %v12108, %v12336
    %v12338 = vpop.f32.mrb[0].mxu0
    %v12339 = vpop.f32.mrb[0].mxu0
    %v12340 = vpop.f32.mrb[0].mxu0
    %12341 = vdwg.mxu0
    %12342 = vmatprep.subr.bf16.mxu0 0
    %12343 = vmatpush1.bf16.msra.mxu0 %v12254
    %12344 = vmatprep.subr.bf16.mxu0 0
    %12345 = vmatpush1.bf16.msra.mxu0 %v12255
    %12346 = vmatprep.subr.bf16.mxu0 0
    %12347 = vmatpush1.bf16.msra.mxu0 %v12256
    %12348 = vmatprep.subr.bf16.mxu0 0
    %12349 = vmatpush1.bf16.msra.mxu0 %v12257
    %12350 = vmatprep.subr.bf16.mxu0 0
    %12351 = vmatpush1.bf16.msra.mxu0 %v12258
    %12352 = vmatprep.subr.bf16.mxu0 0
    %12353 = vmatpush1.bf16.msra.mxu0 %v12259
    %12354 = vmatprep.subr.bf16.mxu0 0
    %12355 = vmatpush1.bf16.msra.mxu0 %v12260
    %12356 = vmatprep.subr.bf16.mxu0 0
    %12357 = vmatpush1.bf16.msra.mxu0 %v12261
    %12358 = vmatprep.subr.bf16.mxu0 0
    %12359 = vmatpush1.bf16.msra.mxu0 %v12262
    %12360 = vmatprep.subr.bf16.mxu0 0
    %12361 = vmatpush1.bf16.msra.mxu0 %v12263
    %12362 = vmatprep.subr.bf16.mxu0 0
    %12363 = vmatpush1.bf16.msra.mxu0 %v12264
    %12364 = vmatprep.subr.bf16.mxu0 0
    %12365 = vmatpush1.bf16.msra.mxu0 %v12265
    %12366 = vmatprep.subr.bf16.mxu0 0
    %12367 = vmatpush1.bf16.msra.mxu0 %v12266
    %12368 = vmatprep.subr.bf16.mxu0 0
    %12369 = vmatpush1.bf16.msra.mxu0 %v12267
    %12370 = vmatprep.subr.bf16.mxu0 0
    %12371 = vmatpush1.bf16.msra.mxu0 %v12268
    %12372 = vmatprep.subr.bf16.mxu0 0
    %12373 = vmatpush1.bf16.msra.mxu0 %v12269
    %12374 = vmatprep.mubr.bf16.mxu0 %v12038
    %12375 = vmatmul.mubr.bf16.gmra.mrb[0].mxu0 %v12037
    %v12376 = vpop.f32.mrb[0].mxu0
    %v12377 = vadd.f32 %v12337, %v12376
    %v12378 = vpop.f32.mrb[0].mxu0
    %v12379 = vpop.f32.mrb[0].mxu0
    %v12380 = vpop.f32.mrb[0].mxu0
    %12381 = vdwg.mxu0
    %v12382 = vpack.c.bf16 %v12377, %v12377
    %v12383 = vld [vmem:[#allocation12] sm:$0xf]
    %v12384 = vld [vmem:[#allocation12 + $0x4] sm:$0xf]
    %v12385 = vld [vmem:[#allocation12 + $0x8] sm:$0xf]
    %v12386 = vld [vmem:[#allocation12 + $0xc] sm:$0xf]
    %v12387 = vld [vmem:[#allocation12 + $0x10] sm:$0xf]
    %v12388 = vld [vmem:[#allocation12 + $0x14] sm:$0xf]
    %v12389 = vld [vmem:[#allocation12 + $0x18] sm:$0xf]
    %v12390 = vld [vmem:[#allocation12 + $0x1c] sm:$0xf]
    %v12391 = vld [vmem:[#allocation12 + $0x20] sm:$0xf]
    %v12392 = vld [vmem:[#allocation12 + $0x24] sm:$0xf]
    %v12393 = vld [vmem:[#allocation12 + $0x28] sm:$0xf]
    %v12394 = vld [vmem:[#allocation12 + $0x2c] sm:$0xf]
    %v12395 = vld [vmem:[#allocation12 + $0x30] sm:$0xf]
    %v12396 = vld [vmem:[#allocation12 + $0x34] sm:$0xf]
    %v12397 = vld [vmem:[#allocation12 + $0x38] sm:$0xf]
    %v12398 = vld [vmem:[#allocation12 + $0x3c] sm:$0xf]
    %v12399 = vld [vmem:[#allocation14] sm:$0x1]
    %v12401 = vlaneseq
    %v12402 = vshrl.u32 %v12401, 7
    %v12403 = vsub.s32 0, %v12402
    %v12404 = vrot.slane %v12399, %v12403
    %v12422 = vunpack.c.l.b16 %v12383
    %v12423 = vunpack.c.l.b16 %v12384
    %v12424 = vunpack.c.l.b16 %v12385
    %v12425 = vunpack.c.l.b16 %v12386
    %v12426 = vunpack.c.l.b16 %v12387
    %v12427 = vunpack.c.l.b16 %v12388
    %v12428 = vunpack.c.l.b16 %v12389
    %v12429 = vunpack.c.l.b16 %v12390
    %v12430 = vunpack.c.l.b16 %v12391
    %v12431 = vunpack.c.l.b16 %v12392
    %v12432 = vunpack.c.l.b16 %v12393
    %v12433 = vunpack.c.l.b16 %v12394
    %v12434 = vunpack.c.l.b16 %v12395
    %v12435 = vunpack.c.l.b16 %v12396
    %v12436 = vunpack.c.l.b16 %v12397
    %v12437 = vunpack.c.l.b16 %v12398
    %v12438 = vpack.c.b16 %v12423, %v12422
    %v12439 = vpack.c.b16 %v12425, %v12424
    %v12440 = vpack.c.b16 %v12427, %v12426
    %v12441 = vpack.c.b16 %v12429, %v12428
    %v12442 = vpack.c.b16 %v12431, %v12430
    %v12443 = vpack.c.b16 %v12433, %v12432
    %v12444 = vpack.c.b16 %v12435, %v12434
    %v12445 = vpack.c.b16 %v12437, %v12436
    %12454 = vmatprep.subr.bf16.mxu0 0
    %12455 = vmatpush1.bf16.msra.mxu0 %v12438
    %12456 = vmatprep.subr.bf16.mxu0 0
    %12457 = vmatpush1.bf16.msra.mxu0 %v12439
    %12458 = vmatprep.subr.bf16.mxu0 0
    %12459 = vmatpush1.bf16.msra.mxu0 %v12440
    %12460 = vmatprep.subr.bf16.mxu0 0
    %12461 = vmatpush1.bf16.msra.mxu0 %v12441
    %12462 = vmatprep.subr.bf16.mxu0 0
    %12463 = vmatpush1.bf16.msra.mxu0 %v12442
    %12464 = vmatprep.subr.bf16.mxu0 0
    %12465 = vmatpush1.bf16.msra.mxu0 %v12443
    %12466 = vmatprep.subr.bf16.mxu0 0
    %12467 = vmatpush1.bf16.msra.mxu0 %v12444
    %12468 = vmatprep.subr.bf16.mxu0 0
    %12469 = vmatpush1.bf16.msra.mxu0 %v12445
    %12470 = vmatprep.subr.bf16.mxu0 0
    %12471 = vmatpush1.bf16.msra.mxu0 0
    %12472 = vmatprep.subr.bf16.mxu0 0
    %12473 = vmatpush1.bf16.msra.mxu0 0
    %12474 = vmatprep.subr.bf16.mxu0 0
    %12475 = vmatpush1.bf16.msra.mxu0 0
    %12476 = vmatprep.subr.bf16.mxu0 0
    %12477 = vmatpush1.bf16.msra.mxu0 0
    %12478 = vmatprep.subr.bf16.mxu0 0
    %12479 = vmatpush1.bf16.msra.mxu0 0
    %12480 = vmatprep.subr.bf16.mxu0 0
    %12481 = vmatpush1.bf16.msra.mxu0 0
    %12482 = vmatprep.subr.bf16.mxu0 0
    %12483 = vmatpush1.bf16.msra.mxu0 0
    %12484 = vmatprep.subr.bf16.mxu0 0
    %12485 = vmatpush1.bf16.msra.mxu0 0
    %12486 = vmatprep.mubr.bf16.mxu0 0
    %12487 = vmatmul.mubr.bf16.gmra.mrb[0].mxu0 %v12382
    %v12488 = vpop.f32.mrb[0].mxu0
    %v12489 = vadd.f32 %v12404, %v12488
    %v12490 = vpop.f32.mrb[0].mxu0
    %v12491 = vpop.f32.mrb[0].mxu0
    %v12492 = vpop.f32.mrb[0].mxu0
    %12493 = vdwg.mxu0
    %v12494 = vmax.f32 %v12489, 0.0
    %v12495 = vpack.c.bf16 %v12494, %v12494
    %v12496 = vld [vmem:[#allocation15] sm:$0xf]
    %v12497 = vld [vmem:[#allocation15 + $0x4] sm:$0xf]
    %v12498 = vld [vmem:[#allocation15 + $0x8] sm:$0xf]
    %v12499 = vld [vmem:[#allocation15 + $0xc] sm:$0xf]
    %v12500 = vld [vmem:[#allocation15 + $0x10] sm:$0xf]
    %v12501 = vld [vmem:[#allocation15 + $0x14] sm:$0xf]
    %v12502 = vld [vmem:[#allocation15 + $0x18] sm:$0xf]
    %v12503 = vld [vmem:[#allocation15 + $0x1c] sm:$0xf]
    %v12504 = vld [vmem:[#allocation15 + $0x20] sm:$0xf]
    %v12505 = vld [vmem:[#allocation15 + $0x24] sm:$0xf]
    %v12506 = vld [vmem:[#allocation15 + $0x28] sm:$0xf]
    %v12507 = vld [vmem:[#allocation15 + $0x2c] sm:$0xf]
    %v12508 = vld [vmem:[#allocation15 + $0x30] sm:$0xf]
    %v12509 = vld [vmem:[#allocation15 + $0x34] sm:$0xf]
    %v12510 = vld [vmem:[#allocation15 + $0x38] sm:$0xf]
    %v12511 = vld [vmem:[#allocation15 + $0x3c] sm:$0xf]
    %v12512 = vld [vmem:[#allocation17] sm:$0x1]
    %v12514 = vlaneseq
    %v12515 = vshrl.u32 %v12514, 7
    %v12516 = vsub.s32 0, %v12515
    %v12517 = vrot.slane %v12512, %v12516
    %v12535 = vunpack.c.l.b16 %v12496
    %v12536 = vunpack.c.l.b16 %v12497
    %v12537 = vunpack.c.l.b16 %v12498
    %v12538 = vunpack.c.l.b16 %v12499
    %v12539 = vunpack.c.l.b16 %v12500
    %v12540 = vunpack.c.l.b16 %v12501
    %v12541 = vunpack.c.l.b16 %v12502
    %v12542 = vunpack.c.l.b16 %v12503
    %v12543 = vunpack.c.l.b16 %v12504
    %v12544 = vunpack.c.l.b16 %v12505
    %v12545 = vunpack.c.l.b16 %v12506
    %v12546 = vunpack.c.l.b16 %v12507
    %v12547 = vunpack.c.l.b16 %v12508
    %v12548 = vunpack.c.l.b16 %v12509
    %v12549 = vunpack.c.l.b16 %v12510
    %v12550 = vunpack.c.l.b16 %v12511
    %v12551 = vpack.c.b16 %v12536, %v12535
    %v12552 = vpack.c.b16 %v12538, %v12537
    %v12553 = vpack.c.b16 %v12540, %v12539
    %v12554 = vpack.c.b16 %v12542, %v12541
    %v12555 = vpack.c.b16 %v12544, %v12543
    %v12556 = vpack.c.b16 %v12546, %v12545
    %v12557 = vpack.c.b16 %v12548, %v12547
    %v12558 = vpack.c.b16 %v12550, %v12549
    %12567 = vmatprep.subr.bf16.mxu0 0
    %12568 = vmatpush1.bf16.msra.mxu0 %v12551
    %12569 = vmatprep.subr.bf16.mxu0 0
    %12570 = vmatpush1.bf16.msra.mxu0 %v12552
    %12571 = vmatprep.subr.bf16.mxu0 0
    %12572 = vmatpush1.bf16.msra.mxu0 %v12553
    %12573 = vmatprep.subr.bf16.mxu0 0
    %12574 = vmatpush1.bf16.msra.mxu0 %v12554
    %12575 = vmatprep.subr.bf16.mxu0 0
    %12576 = vmatpush1.bf16.msra.mxu0 %v12555
    %12577 = vmatprep.subr.bf16.mxu0 0
    %12578 = vmatpush1.bf16.msra.mxu0 %v12556
    %12579 = vmatprep.subr.bf16.mxu0 0
    %12580 = vmatpush1.bf16.msra.mxu0 %v12557
    %12581 = vmatprep.subr.bf16.mxu0 0
    %12582 = vmatpush1.bf16.msra.mxu0 %v12558
    %12583 = vmatprep.subr.bf16.mxu0 0
    %12584 = vmatpush1.bf16.msra.mxu0 0
    %12585 = vmatprep.subr.bf16.mxu0 0
    %12586 = vmatpush1.bf16.msra.mxu0 0
    %12587 = vmatprep.subr.bf16.mxu0 0
    %12588 = vmatpush1.bf16.msra.mxu0 0
    %12589 = vmatprep.subr.bf16.mxu0 0
    %12590 = vmatpush1.bf16.msra.mxu0 0
    %12591 = vmatprep.subr.bf16.mxu0 0
    %12592 = vmatpush1.bf16.msra.mxu0 0
    %12593 = vmatprep.subr.bf16.mxu0 0
    %12594 = vmatpush1.bf16.msra.mxu0 0
    %12595 = vmatprep.subr.bf16.mxu0 0
    %12596 = vmatpush1.bf16.msra.mxu0 0
    %12597 = vmatprep.subr.bf16.mxu0 0
    %12598 = vmatpush1.bf16.msra.mxu0 0
    %12599 = vmatprep.mubr.bf16.mxu0 0
    %12600 = vmatmul.mubr.bf16.gmra.mrb[0].mxu0 %v12495
    %v12601 = vpop.f32.mrb[0].mxu0
    %v12602 = vadd.f32 %v12517, %v12601
    %v12603 = vpop.f32.mrb[0].mxu0
    %v12604 = vpop.f32.mrb[0].mxu0
    %v12605 = vpop.f32.mrb[0].mxu0
    %12606 = vdwg.mxu0
    %vm12607 = vcmask 74752
    %v12608 = vsel %vm12607, %v12602, -inf
    %12609 = vmax.xlane.f32.xlu0 %v12608
    %v12610 = vpop.xlane.xlu0 %12609
    %v12611 = vsub.f32 %v12602, %v12610
    %v12612 = vmul.f32 %v12611, 1.442695
    %v12613 = vpow.pop %v12612
    %v12614 = vsel %vm12607, %v12613, 0.0
    %12615 = vadd.xlane.f32.xlu0 %v12614
    %v12616 = vpop.xlane.xlu0 %12615
    %v12617 = vrcp.pop %v12616
    %v12618 = vmul.f32 %v12613, %v12617
    %12619 = vst.msk [vmem:[#allocation18] sm:$0x3] %vm12607, %v12618
    // Predicated region
    $region82: #{convnet_trad_forward.1} parent=1 // pred_check
      _
    $region83: #{convnet_trad_forward.1} parent=1 // pred_check_branch
      %12621 = sbr.rel (0) target = $region85
    $region84: #{convnet_trad_forward.1} parent=1 // pred_region
      %s12623 = ssub.s32 32, 32
      %12624 = vsyncadd [#allocation5], %s12623
      %s12626 = sshll.u32 [#allocation18], 4
      %s12627 = int_to_ptr.vmem [resolvable:$true] %s12626
      %12629 = dma.vmem_to_hbm [thread:$0]  %s12627, 32, %s11, [#allocation5]
    $region85: #{convnet_trad_forward.1} parent=1 // pred_fallthru
      _
    // Predicated region
    $region86: #{convnet_trad_forward.1} parent=1 // pred_check
      _
    $region87: #{convnet_trad_forward.1} parent=1 // pred_check_branch
      %12631 = sbr.rel (0) target = $region89
    $region88: #{convnet_trad_forward.1} parent=1 // pred_region
      %12632 = dma.done [#allocation5], 32
    $region89: #{convnet_trad_forward.1} parent=1 // pred_fallthru
      _
    %12633 = vsyncpa [#allocation4], 1
    %12634 = vsyncpa [#allocation7], 1
    %12635 = vsyncpa [#allocation10], 1
    %12636 = vsyncpa [#allocation13], 1
    %12637 = vsyncpa [#allocation16], 1
    %12638 = vsyncpa [#allocation5], 1

</llo_original>
